<compile_context>
chip_gen: v6e
topology: v6e:2x2x1
jax: 0.10.0
libtpu: 0.0.40
codegen_flags: <defaults>
</compile_context>

<pallas_src>
import jax
import jax.numpy as jnp
from jax.experimental import pallas as pl
from jax.experimental.pallas import tpu as pltpu


# ---------------------------------------------------------------------------
# Fused bidirectional LSTM: one grid step per sequence (premise / hypothesis),
# full time loop + both directions inside the kernel body.
# ---------------------------------------------------------------------------
def _bilstm_kernel(x_ref, w_ref, b_ref, out_ref, of_ref, ob_ref):
    # x_ref  : (T, N, D)      one sequence (leading 2-axis squeezed by BlockSpec)
    # w_ref  : (2, D+H, 4H)   combined [W_ih; W_hh], index 0 = fwd, 1 = bwd
    # b_ref  : (2, 1, 4H)     fused bias (b_ih + b_hh) per direction
    # out_ref: (T, N, 2H)     [h_fwd, h_bwd] concatenated on the last dim
    # of_ref / ob_ref: (T, N, H) VMEM scratch for the per-direction outputs
    T, N, _ = x_ref.shape
    H = of_ref.shape[-1]

    w_f = w_ref[0]                       # loaded once, reused every step
    w_b = w_ref[1]
    b_f = b_ref[0]
    b_b = b_ref[1]

    def cell(x, h, c, w, b):
        z = jnp.concatenate([x, h], axis=-1)                        # (N, D+H)
        g = jnp.dot(z, w, preferred_element_type=jnp.float32) + b   # (N, 4H)
        i = jax.nn.sigmoid(g[:, 0:H])                # PyTorch gate order i,f,g,o
        f = jax.nn.sigmoid(g[:, H:2 * H])
        u = jnp.tanh(g[:, 2 * H:3 * H])
        o = jax.nn.sigmoid(g[:, 3 * H:4 * H])
        c_new = f * c + i * u
        h_new = o * jnp.tanh(c_new)
        return h_new, c_new

    zeros = jnp.zeros((N, H), jnp.float32)
    h_f, c_f = zeros, zeros
    h_b, c_b = zeros, zeros

    # T is small and static -> fully unrolled; fwd/bwd chains are independent,
    # so their gate matmuls overlap on the MXU.  Backward reads x_ref[T-1-t]
    # directly (reversal handled in-kernel).
    for t in range(T):
        tb = T - 1 - t
        h_f, c_f = cell(x_ref[t], h_f, c_f, w_f, b_f)
        h_b, c_b = cell(x_ref[tb], h_b, c_b, w_b, b_b)
        of_ref[t] = h_f
        ob_ref[tb] = h_b

    # Single full-block write of the merged (T, N, 2H) output.
    out_ref[...] = jnp.concatenate([of_ref[...], ob_ref[...]], axis=-1)


def bilstm(x, w, b):
    # x: (2, T, N, D)  premise / hypothesis stacked on the leading axis
    # w: (2, D+H, 4H)  shared weights (same layer applied to both sequences)
    S, T, N, D = x.shape
    H4 = w.shape[-1]
    H = H4 // 4
    return pl.pallas_call(
        _bilstm_kernel,
        out_shape=jax.ShapeDtypeStruct((S, T, N, 2 * H), jnp.float32),
        grid=(S,),
        in_specs=[
            pl.BlockSpec((None, T, N, D), lambda s: (s, 0, 0, 0)),
            pl.BlockSpec((2, D + H, H4), lambda s: (0, 0, 0)),
            pl.BlockSpec((2, 1, H4), lambda s: (0, 0, 0)),
        ],
        out_specs=pl.BlockSpec((None, T, N, 2 * H), lambda s: (s, 0, 0, 0)),
        scratch_shapes=[pltpu.VMEM((T, N, H), jnp.float32),
                        pltpu.VMEM((T, N, H), jnp.float32)],
        compiler_params=pltpu.CompilerParams(
            dimension_semantics=("parallel",)),   # lets v7x shard the 2 sequences
    )(x, w, b)


# ---------------------------------------------------------------------------
# Attention + soft alignment + ESIM feature concatenation, fused over all T
# ---------------------------------------------------------------------------
def _attn_kernel(e_ref, m_ref):
    a = e_ref[0]                                   # (T, N, 2H)  premise encoding
    b = e_ref[1]                                   # (T, N, 2H)  hypothesis encoding
    # attn = matmul(a, b.transpose(1, 2)) over dim 0 batch -> (T, N, N)
    e = jnp.einsum("tnh,tmh->tnm", a, b, preferred_element_type=jnp.float32)

    # softmax over torch dim=2 -> a_tilde
    p2 = jnp.exp(e - jnp.max(e, axis=2, keepdims=True))
    pa = p2 / jnp.sum(p2, axis=2, keepdims=True)
    a_t = jnp.einsum("tnm,tmh->tnh", pa, b, preferred_element_type=jnp.float32)

    # softmax over torch dim=1, transposed matmul with a -> b_tilde
    p1 = jnp.exp(e - jnp.max(e, axis=1, keepdims=True))
    pb = p1 / jnp.sum(p1, axis=1, keepdims=True)
    b_t = jnp.einsum("tnm,tnh->tmh", pb, a, preferred_element_type=jnp.float32)

    m_ref[0] = jnp.concatenate([a, a_t, a - a_t, a * a_t], axis=-1)
    m_ref[1] = jnp.concatenate([b, b_t, b - b_t, b * b_t], axis=-1)


def esim_attention(enc):
    S, T, N, H2 = enc.shape
    return pl.pallas_call(
        _attn_kernel,
        out_shape=jax.ShapeDtypeStruct((S, T, N, 4 * H2), jnp.float32),
        grid=(1,),
        in_specs=[pl.BlockSpec((S, T, N, H2), lambda i: (0, 0, 0, 0))],
        out_specs=pl.BlockSpec((S, T, N, 4 * H2), lambda i: (0, 0, 0, 0)),
        compiler_params=pltpu.CompilerParams(
            dimension_semantics=("arbitrary",)),
    )(enc)


# ---------------------------------------------------------------------------
# Max/mean pooling over dim 1, final Linear + tanh
# ---------------------------------------------------------------------------
def _pool_fc_kernel(v_ref, w_ref, b_ref, out_ref):
    va = v_ref[0]                                  # (T, N, 2H)
    vb = v_ref[1]
    feat = jnp.concatenate(
        [jnp.max(va, axis=1), jnp.mean(va, axis=1),
         jnp.max(vb, axis=1), jnp.mean(vb, axis=1)], axis=-1)   # (T, 8H)
    out_ref[...] = jnp.tanh(
        jnp.dot(feat, w_ref[...], preferred_element_type=jnp.float32) + b_ref[...])


def pool_fc(v, fc_w, fc_b):
    S, T, N, H2 = v.shape
    H8 = 4 * H2
    return pl.pallas_call(
        _pool_fc_kernel,
        out_shape=jax.ShapeDtypeStruct((T, 3), jnp.float32),
        grid=(1,),
        in_specs=[
            pl.BlockSpec((S, T, N, H2), lambda i: (0, 0, 0, 0)),
            pl.BlockSpec((H8, 3), lambda i: (0, 0)),
            pl.BlockSpec((1, 3), lambda i: (0, 0)),
        ],
        out_specs=pl.BlockSpec((T, 3), lambda i: (0, 0)),
        compiler_params=pltpu.CompilerParams(
            dimension_semantics=("arbitrary",)),
    )(v, fc_w, fc_b)


# ---------------------------------------------------------------------------
# Full ESIM forward
# ---------------------------------------------------------------------------
def esim_forward(premise, hypothesis, params):
    emb = params["emb"]
    x = jnp.stack([emb[premise], emb[hypothesis]], axis=0)     # (2, T, N, E)
    enc = bilstm(x, params["enc_w"], params["enc_b"])          # (2, T, N, 2H)
    m = esim_attention(enc)                                    # (2, T, N, 8H)
    v = bilstm(m, params["inf_w"], params["inf_b"])            # (2, T, N, 2H)
    return pool_fc(v, params["fc_w"], params["fc_b"])          # (T, 3)


# ---------------------------------------------------------------------------
# Deterministic parameter initialization (synthetic, shapes from __init__)
# ---------------------------------------------------------------------------
def init_params(key, vocab_size, embedding_dim, hidden_size):
    H = hidden_size
    k_emb, k_enc, k_inf, k_fcw, k_fcb = jax.random.split(key, 5)

    def u(k, shape, scale):
        return jax.random.uniform(k, shape, jnp.float32, -scale, scale)

    def lstm_params(k, D):
        s = 1.0 / float(H) ** 0.5
        ks = jax.random.split(k, 6)

        def direction(kw_ih, kw_hh, kb):
            w = jnp.concatenate([u(kw_ih, (D, 4 * H), s),
                                 u(kw_hh, (H, 4 * H), s)], axis=0)  # [W_ih; W_hh]
            b = u(kb, (1, 4 * H), s)                                # b_ih + b_hh folded
            return w, b

        wf, bf = direction(ks[0], ks[1], ks[2])
        wb, bb = direction(ks[3], ks[4], ks[5])
        return jnp.stack([wf, wb]), jnp.stack([bf, bb])

    enc_w, enc_b = lstm_params(k_enc, embedding_dim)
    inf_w, inf_b = lstm_params(k_inf, 8 * H)
    s_fc = 1.0 / float(8 * H) ** 0.5
    return {
        "emb": jax.random.normal(k_emb, (vocab_size, embedding_dim), jnp.float32),
        "enc_w": enc_w, "enc_b": enc_b,
        "inf_w": inf_w, "inf_b": inf_b,
        "fc_w": u(k_fcw, (8 * H, 3), s_fc),
        "fc_b": u(k_fcb, (1, 3), s_fc),
    }


# ---------------------------------------------------------------------------
# Pure-JAX reference (no Pallas) for a numerical sanity check
# ---------------------------------------------------------------------------
def _lstm_ref(x, w, b):
    H = w.shape[1] // 4
    N = x.shape[1]

    def step(carry, xt):
        h, c = carry
        g = jnp.concatenate([xt, h], axis=-1) @ w + b
        i = jax.nn.sigmoid(g[:, :H])
        f = jax.nn.sigmoid(g[:, H:2 * H])
        u = jnp.tanh(g[:, 2 * H:3 * H])
        o = jax.nn.sigmoid(g[:, 3 * H:])
        c = f * c + i * u
        h = o * jnp.tanh(c)
        return (h, c), h

    init = (jnp.zeros((N, H), jnp.float32), jnp.zeros((N, H), jnp.float32))
    _, hs = jax.lax.scan(step, init, x)
    return hs


def _bilstm_ref(x, w, b):
    h_f = _lstm_ref(x, w[0], b[0])
    h_b = _lstm_ref(x[::-1], w[1], b[1])[::-1]
    return jnp.concatenate([h_f, h_b], axis=-1)


def esim_ref(premise, hypothesis, params):
    a = _bilstm_ref(params["emb"][premise], params["enc_w"], params["enc_b"])
    b = _bilstm_ref(params["emb"][hypothesis], params["enc_w"], params["enc_b"])
    attn = jnp.einsum("tnh,tmh->tnm", a, b)
    a_t = jnp.einsum("tnm,tmh->tnh", jax.nn.softmax(attn, axis=2), b)
    b_t = jnp.einsum("tnm,tnh->tmh", jax.nn.softmax(attn, axis=1), a)
    m_a = jnp.concatenate([a, a_t, a - a_t, a * a_t], axis=-1)
    m_b = jnp.concatenate([b, b_t, b - b_t, b * b_t], axis=-1)
    v_a = _bilstm_ref(m_a, params["inf_w"], params["inf_b"])
    v_b = _bilstm_ref(m_b, params["inf_w"], params["inf_b"])
    v = jnp.concatenate([v_a.max(axis=1), v_a.mean(axis=1),
                         v_b.max(axis=1), v_b.mean(axis=1)], axis=-1)
    return jnp.tanh(v @ params["fc_w"] + params["fc_b"])


if __name__ == "__main__":
    VOCAB, EMB, HID = 50, 16, 16      # hidden_size=16 -> 2H=32, 4H=64, 8H=128
    T, N = 8, 4                       # dim0 = seq-ish, dim1 = batch-ish (PyTorch layout)

    key = jax.random.PRNGKey(0)
    k_par, k_p, k_h = jax.random.split(key, 3)
    params = init_params(k_par, VOCAB, EMB, HID)
    premise = jax.random.randint(k_p, (T, N), 0, VOCAB, dtype=jnp.int32)
    hypothesis = jax.random.randint(k_h, (T, N), 0, VOCAB, dtype=jnp.int32)

    logits = jax.jit(esim_forward)(premise, hypothesis, params)
    logits = jax.block_until_ready(logits)
    assert logits.shape == (T, 3) and logits.dtype == jnp.float32

    with jax.default_matmul_precision("highest"):
        ref = jax.block_until_ready(esim_ref(premise, hypothesis, params))
    assert bool(jnp.all(jnp.isfinite(logits)))
    err = float(jnp.max(jnp.abs(logits - ref)))
    assert err < 2e-2, f"mismatch vs reference: {err}"

    print("KERNEL_OK")
</pallas_src>

<mosaic_0001>
module attributes {stable_mosaic.version = 11 : i64} {
  func.func @_bilstm_kernel(%arg0: i32, %arg1: memref<1x8x4x128xf32, #tpu.memory_space<vmem>>, %arg2: memref<2x144x64xf32, #tpu.memory_space<vmem>>, %arg3: memref<2x1x64xf32, #tpu.memory_space<vmem>>, %arg4: memref<1x8x4x32xf32, #tpu.memory_space<vmem>>, %arg5: memref<8x4x16xf32, #tpu.memory_space<vmem>>, %arg6: memref<8x4x16xf32, #tpu.memory_space<vmem>>) attributes {dimension_semantics = [#tpu.dimension_semantics<parallel>], iteration_bounds = array<i64: 2>, scalar_prefetch = 0 : i64, scratch_operands = 2 : i64, tpu.core_type = #tpu.core_type<tc>, window_params = [{transform_indices = @transform_0, window_bounds = array<i64: 1, 8, 4, 128>}, {pipeline_mode = #tpu.pipeline_mode<synchronous>, transform_indices = @transform_1, window_bounds = array<i64: 2, 144, 64>}, {pipeline_mode = #tpu.pipeline_mode<synchronous>, transform_indices = @transform_2, window_bounds = array<i64: 2, 1, 64>}, {transform_indices = @transform_3, window_bounds = array<i64: 1, 8, 4, 32>}]} {
    %c0 = arith.constant 0 : index
    %c0_0 = arith.constant 0 : index
    %c0_1 = arith.constant 0 : index
    %0 = vector.load %arg2[%c0, %c0_0, %c0_1] : memref<2x144x64xf32, #tpu.memory_space<vmem>>, vector<1x144x64xf32>
    %1 = vector.shape_cast %0 : vector<1x144x64xf32> to vector<144x64xf32>
    %c1 = arith.constant 1 : index
    %c0_2 = arith.constant 0 : index
    %c0_3 = arith.constant 0 : index
    %2 = vector.load %arg2[%c1, %c0_2, %c0_3] : memref<2x144x64xf32, #tpu.memory_space<vmem>>, vector<1x144x64xf32>
    %3 = vector.shape_cast %2 : vector<1x144x64xf32> to vector<144x64xf32>
    %c0_4 = arith.constant 0 : index
    %c0_5 = arith.constant 0 : index
    %c0_6 = arith.constant 0 : index
    %4 = vector.load %arg3[%c0_4, %c0_5, %c0_6] : memref<2x1x64xf32, #tpu.memory_space<vmem>>, vector<1x1x64xf32>
    %5 = vector.shape_cast %4 : vector<1x1x64xf32> to vector<1x64xf32>
    %c1_7 = arith.constant 1 : index
    %c0_8 = arith.constant 0 : index
    %c0_9 = arith.constant 0 : index
    %6 = vector.load %arg3[%c1_7, %c0_8, %c0_9] : memref<2x1x64xf32, #tpu.memory_space<vmem>>, vector<1x1x64xf32>
    %7 = vector.shape_cast %6 : vector<1x1x64xf32> to vector<1x64xf32>
    %cst = arith.constant 0.000000e+00 : f32
    %8 = vector.broadcast %cst : f32 to vector<4x16xf32>
    %c0_10 = arith.constant 0 : index
    %c0_11 = arith.constant 0 : index
    %c0_12 = arith.constant 0 : index
    %c0_13 = arith.constant 0 : index
    %9 = vector.load %arg1[%c0_10, %c0_11, %c0_12, %c0_13] : memref<1x8x4x128xf32, #tpu.memory_space<vmem>>, vector<1x1x4x128xf32>
    %10 = vector.shape_cast %9 : vector<1x1x4x128xf32> to vector<4x128xf32>
    %11 = tpu.concatenate %10, %8 in 1 : vector<4x128xf32>, vector<4x16xf32> -> vector<4x144xf32>
    %cst_14 = arith.constant dense<0.000000e+00> : vector<4x64xf32>
    %12 = tpu.matmul %11, %1, %cst_14 {dimension_numbers = #tpu.dot_dimension_numbers<[1], [0], [0], [1], [0, 0, 1, 1], [], []>} : vector<4x144xf32>, vector<144x64xf32>, vector<4x64xf32> -> vector<4x64xf32>
    %13 = vector.broadcast %5 : vector<1x64xf32> to vector<4x64xf32>
    %14 = arith.addf %12, %13 : vector<4x64xf32>
    %15 = vector.extract_strided_slice %14 {offsets = [0, 0], sizes = [4, 16], strides = [1, 1]} : vector<4x64xf32> to vector<4x16xf32>
    %16 = arith.negf %15 : vector<4x16xf32>
    %17 = math.exp %16 : vector<4x16xf32>
    %cst_15 = arith.constant 1.000000e+00 : f32
    %18 = vector.broadcast %cst_15 : f32 to vector<4x16xf32>
    %19 = arith.addf %18, %17 : vector<4x16xf32>
    %20 = arith.divf %18, %19 : vector<4x16xf32>
    %21 = vector.extract_strided_slice %14 {offsets = [0, 16], sizes = [4, 16], strides = [1, 1]} : vector<4x64xf32> to vector<4x16xf32>
    %22 = arith.negf %21 : vector<4x16xf32>
    %23 = math.exp %22 : vector<4x16xf32>
    %cst_16 = arith.constant 1.000000e+00 : f32
    %24 = vector.broadcast %cst_16 : f32 to vector<4x16xf32>
    %25 = arith.addf %24, %23 : vector<4x16xf32>
    %26 = arith.divf %24, %25 : vector<4x16xf32>
    %27 = vector.extract_strided_slice %14 {offsets = [0, 32], sizes = [4, 16], strides = [1, 1]} : vector<4x64xf32> to vector<4x16xf32>
    %28 = math.tanh %27 : vector<4x16xf32>
    %29 = vector.extract_strided_slice %14 {offsets = [0, 48], sizes = [4, 16], strides = [1, 1]} : vector<4x64xf32> to vector<4x16xf32>
    %30 = arith.negf %29 : vector<4x16xf32>
    %31 = math.exp %30 : vector<4x16xf32>
    %cst_17 = arith.constant 1.000000e+00 : f32
    %32 = vector.broadcast %cst_17 : f32 to vector<4x16xf32>
    %33 = arith.addf %32, %31 : vector<4x16xf32>
    %34 = arith.divf %32, %33 : vector<4x16xf32>
    %35 = arith.mulf %26, %8 : vector<4x16xf32>
    %36 = arith.mulf %20, %28 : vector<4x16xf32>
    %37 = arith.addf %35, %36 : vector<4x16xf32>
    %38 = math.tanh %37 : vector<4x16xf32>
    %39 = arith.mulf %34, %38 : vector<4x16xf32>
    %c0_18 = arith.constant 0 : index
    %c7 = arith.constant 7 : index
    %c0_19 = arith.constant 0 : index
    %c0_20 = arith.constant 0 : index
    %40 = vector.load %arg1[%c0_18, %c7, %c0_19, %c0_20] : memref<1x8x4x128xf32, #tpu.memory_space<vmem>>, vector<1x1x4x128xf32>
    %41 = vector.shape_cast %40 : vector<1x1x4x128xf32> to vector<4x128xf32>
    %42 = tpu.concatenate %41, %8 in 1 : vector<4x128xf32>, vector<4x16xf32> -> vector<4x144xf32>
    %cst_21 = arith.constant dense<0.000000e+00> : vector<4x64xf32>
    %43 = tpu.matmul %42, %3, %cst_21 {dimension_numbers = #tpu.dot_dimension_numbers<[1], [0], [0], [1], [0, 0, 1, 1], [], []>} : vector<4x144xf32>, vector<144x64xf32>, vector<4x64xf32> -> vector<4x64xf32>
    %44 = vector.broadcast %7 : vector<1x64xf32> to vector<4x64xf32>
    %45 = arith.addf %43, %44 : vector<4x64xf32>
    %46 = vector.extract_strided_slice %45 {offsets = [0, 0], sizes = [4, 16], strides = [1, 1]} : vector<4x64xf32> to vector<4x16xf32>
    %47 = arith.negf %46 : vector<4x16xf32>
    %48 = math.exp %47 : vector<4x16xf32>
    %cst_22 = arith.constant 1.000000e+00 : f32
    %49 = vector.broadcast %cst_22 : f32 to vector<4x16xf32>
    %50 = arith.addf %49, %48 : vector<4x16xf32>
    %51 = arith.divf %49, %50 : vector<4x16xf32>
    %52 = vector.extract_strided_slice %45 {offsets = [0, 16], sizes = [4, 16], strides = [1, 1]} : vector<4x64xf32> to vector<4x16xf32>
    %53 = arith.negf %52 : vector<4x16xf32>
    %54 = math.exp %53 : vector<4x16xf32>
    %cst_23 = arith.constant 1.000000e+00 : f32
    %55 = vector.broadcast %cst_23 : f32 to vector<4x16xf32>
    %56 = arith.addf %55, %54 : vector<4x16xf32>
    %57 = arith.divf %55, %56 : vector<4x16xf32>
    %58 = vector.extract_strided_slice %45 {offsets = [0, 32], sizes = [4, 16], strides = [1, 1]} : vector<4x64xf32> to vector<4x16xf32>
    %59 = math.tanh %58 : vector<4x16xf32>
    %60 = vector.extract_strided_slice %45 {offsets = [0, 48], sizes = [4, 16], strides = [1, 1]} : vector<4x64xf32> to vector<4x16xf32>
    %61 = arith.negf %60 : vector<4x16xf32>
    %62 = math.exp %61 : vector<4x16xf32>
    %cst_24 = arith.constant 1.000000e+00 : f32
    %63 = vector.broadcast %cst_24 : f32 to vector<4x16xf32>
    %64 = arith.addf %63, %62 : vector<4x16xf32>
    %65 = arith.divf %63, %64 : vector<4x16xf32>
    %66 = arith.mulf %57, %8 : vector<4x16xf32>
    %67 = arith.mulf %51, %59 : vector<4x16xf32>
    %68 = arith.addf %66, %67 : vector<4x16xf32>
    %69 = math.tanh %68 : vector<4x16xf32>
    %70 = arith.mulf %65, %69 : vector<4x16xf32>
    %c0_25 = arith.constant 0 : index
    %c0_26 = arith.constant 0 : index
    %c0_27 = arith.constant 0 : index
    %71 = vector.load %arg5[%c0_25, %c0_26, %c0_27] : memref<8x4x16xf32, #tpu.memory_space<vmem>>, vector<1x4x16xf32>
    %72 = vector.shape_cast %71 : vector<1x4x16xf32> to vector<4x16xf32>
    %73 = vector.shape_cast %39 : vector<4x16xf32> to vector<1x4x16xf32>
    tpu.vector_store %arg5[%c0_25, %c0_26, %c0_27], %73 {strides = array<i32>} : memref<8x4x16xf32, #tpu.memory_space<vmem>>, vector<1x4x16xf32>,
    %c7_28 = arith.constant 7 : index
    %c0_29 = arith.constant 0 : index
    %c0_30 = arith.constant 0 : index
    %74 = vector.load %arg6[%c7_28, %c0_29, %c0_30] : memref<8x4x16xf32, #tpu.memory_space<vmem>>, vector<1x4x16xf32>
    %75 = vector.shape_cast %74 : vector<1x4x16xf32> to vector<4x16xf32>
    %76 = vector.shape_cast %70 : vector<4x16xf32> to vector<1x4x16xf32>
    tpu.vector_store %arg6[%c7_28, %c0_29, %c0_30], %76 {strides = array<i32>} : memref<8x4x16xf32, #tpu.memory_space<vmem>>, vector<1x4x16xf32>,
    %c0_31 = arith.constant 0 : index
    %c1_32 = arith.constant 1 : index
    %c0_33 = arith.constant 0 : index
    %c0_34 = arith.constant 0 : index
    %77 = vector.load %arg1[%c0_31, %c1_32, %c0_33, %c0_34] : memref<1x8x4x128xf32, #tpu.memory_space<vmem>>, vector<1x1x4x128xf32>
    %78 = vector.shape_cast %77 : vector<1x1x4x128xf32> to vector<4x128xf32>
    %79 = tpu.concatenate %78, %39 in 1 : vector<4x128xf32>, vector<4x16xf32> -> vector<4x144xf32>
    %cst_35 = arith.constant dense<0.000000e+00> : vector<4x64xf32>
    %80 = tpu.matmul %79, %1, %cst_35 {dimension_numbers = #tpu.dot_dimension_numbers<[1], [0], [0], [1], [0, 0, 1, 1], [], []>} : vector<4x144xf32>, vector<144x64xf32>, vector<4x64xf32> -> vector<4x64xf32>
    %81 = vector.broadcast %5 : vector<1x64xf32> to vector<4x64xf32>
    %82 = arith.addf %80, %81 : vector<4x64xf32>
    %83 = vector.extract_strided_slice %82 {offsets = [0, 0], sizes = [4, 16], strides = [1, 1]} : vector<4x64xf32> to vector<4x16xf32>
    %84 = arith.negf %83 : vector<4x16xf32>
    %85 = math.exp %84 : vector<4x16xf32>
    %cst_36 = arith.constant 1.000000e+00 : f32
    %86 = vector.broadcast %cst_36 : f32 to vector<4x16xf32>
    %87 = arith.addf %86, %85 : vector<4x16xf32>
    %88 = arith.divf %86, %87 : vector<4x16xf32>
    %89 = vector.extract_strided_slice %82 {offsets = [0, 16], sizes = [4, 16], strides = [1, 1]} : vector<4x64xf32> to vector<4x16xf32>
    %90 = arith.negf %89 : vector<4x16xf32>
    %91 = math.exp %90 : vector<4x16xf32>
    %cst_37 = arith.constant 1.000000e+00 : f32
    %92 = vector.broadcast %cst_37 : f32 to vector<4x16xf32>
    %93 = arith.addf %92, %91 : vector<4x16xf32>
    %94 = arith.divf %92, %93 : vector<4x16xf32>
    %95 = vector.extract_strided_slice %82 {offsets = [0, 32], sizes = [4, 16], strides = [1, 1]} : vector<4x64xf32> to vector<4x16xf32>
    %96 = math.tanh %95 : vector<4x16xf32>
    %97 = vector.extract_strided_slice %82 {offsets = [0, 48], sizes = [4, 16], strides = [1, 1]} : vector<4x64xf32> to vector<4x16xf32>
    %98 = arith.negf %97 : vector<4x16xf32>
    %99 = math.exp %98 : vector<4x16xf32>
    %cst_38 = arith.constant 1.000000e+00 : f32
    %100 = vector.broadcast %cst_38 : f32 to vector<4x16xf32>
    %101 = arith.addf %100, %99 : vector<4x16xf32>
    %102 = arith.divf %100, %101 : vector<4x16xf32>
    %103 = arith.mulf %94, %37 : vector<4x16xf32>
    %104 = arith.mulf %88, %96 : vector<4x16xf32>
    %105 = arith.addf %103, %104 : vector<4x16xf32>
    %106 = math.tanh %105 : vector<4x16xf32>
    %107 = arith.mulf %102, %106 : vector<4x16xf32>
    %c0_39 = arith.constant 0 : index
    %c6 = arith.constant 6 : index
    %c0_40 = arith.constant 0 : index
    %c0_41 = arith.constant 0 : index
    %108 = vector.load %arg1[%c0_39, %c6, %c0_40, %c0_41] : memref<1x8x4x128xf32, #tpu.memory_space<vmem>>, vector<1x1x4x128xf32>
    %109 = vector.shape_cast %108 : vector<1x1x4x128xf32> to vector<4x128xf32>
    %110 = tpu.concatenate %109, %70 in 1 : vector<4x128xf32>, vector<4x16xf32> -> vector<4x144xf32>
    %cst_42 = arith.constant dense<0.000000e+00> : vector<4x64xf32>
    %111 = tpu.matmul %110, %3, %cst_42 {dimension_numbers = #tpu.dot_dimension_numbers<[1], [0], [0], [1], [0, 0, 1, 1], [], []>} : vector<4x144xf32>, vector<144x64xf32>, vector<4x64xf32> -> vector<4x64xf32>
    %112 = vector.broadcast %7 : vector<1x64xf32> to vector<4x64xf32>
    %113 = arith.addf %111, %112 : vector<4x64xf32>
    %114 = vector.extract_strided_slice %113 {offsets = [0, 0], sizes = [4, 16], strides = [1, 1]} : vector<4x64xf32> to vector<4x16xf32>
    %115 = arith.negf %114 : vector<4x16xf32>
    %116 = math.exp %115 : vector<4x16xf32>
    %cst_43 = arith.constant 1.000000e+00 : f32
    %117 = vector.broadcast %cst_43 : f32 to vector<4x16xf32>
    %118 = arith.addf %117, %116 : vector<4x16xf32>
    %119 = arith.divf %117, %118 : vector<4x16xf32>
    %120 = vector.extract_strided_slice %113 {offsets = [0, 16], sizes = [4, 16], strides = [1, 1]} : vector<4x64xf32> to vector<4x16xf32>
    %121 = arith.negf %120 : vector<4x16xf32>
    %122 = math.exp %121 : vector<4x16xf32>
    %cst_44 = arith.constant 1.000000e+00 : f32
    %123 = vector.broadcast %cst_44 : f32 to vector<4x16xf32>
    %124 = arith.addf %123, %122 : vector<4x16xf32>
    %125 = arith.divf %123, %124 : vector<4x16xf32>
    %126 = vector.extract_strided_slice %113 {offsets = [0, 32], sizes = [4, 16], strides = [1, 1]} : vector<4x64xf32> to vector<4x16xf32>
    %127 = math.tanh %126 : vector<4x16xf32>
    %128 = vector.extract_strided_slice %113 {offsets = [0, 48], sizes = [4, 16], strides = [1, 1]} : vector<4x64xf32> to vector<4x16xf32>
    %129 = arith.negf %128 : vector<4x16xf32>
    %130 = math.exp %129 : vector<4x16xf32>
    %cst_45 = arith.constant 1.000000e+00 : f32
    %131 = vector.broadcast %cst_45 : f32 to vector<4x16xf32>
    %132 = arith.addf %131, %130 : vector<4x16xf32>
    %133 = arith.divf %131, %132 : vector<4x16xf32>
    %134 = arith.mulf %125, %68 : vector<4x16xf32>
    %135 = arith.mulf %119, %127 : vector<4x16xf32>
    %136 = arith.addf %134, %135 : vector<4x16xf32>
    %137 = math.tanh %136 : vector<4x16xf32>
    %138 = arith.mulf %133, %137 : vector<4x16xf32>
    %c1_46 = arith.constant 1 : index
    %c0_47 = arith.constant 0 : index
    %c0_48 = arith.constant 0 : index
    %139 = vector.load %arg5[%c1_46, %c0_47, %c0_48] : memref<8x4x16xf32, #tpu.memory_space<vmem>>, vector<1x4x16xf32>
    %140 = vector.shape_cast %139 : vector<1x4x16xf32> to vector<4x16xf32>
    %141 = vector.shape_cast %107 : vector<4x16xf32> to vector<1x4x16xf32>
    tpu.vector_store %arg5[%c1_46, %c0_47, %c0_48], %141 {strides = array<i32>} : memref<8x4x16xf32, #tpu.memory_space<vmem>>, vector<1x4x16xf32>,
    %c6_49 = arith.constant 6 : index
    %c0_50 = arith.constant 0 : index
    %c0_51 = arith.constant 0 : index
    %142 = vector.load %arg6[%c6_49, %c0_50, %c0_51] : memref<8x4x16xf32, #tpu.memory_space<vmem>>, vector<1x4x16xf32>
    %143 = vector.shape_cast %142 : vector<1x4x16xf32> to vector<4x16xf32>
    %144 = vector.shape_cast %138 : vector<4x16xf32> to vector<1x4x16xf32>
    tpu.vector_store %arg6[%c6_49, %c0_50, %c0_51], %144 {strides = array<i32>} : memref<8x4x16xf32, #tpu.memory_space<vmem>>, vector<1x4x16xf32>,
    %c0_52 = arith.constant 0 : index
    %c2 = arith.constant 2 : index
    %c0_53 = arith.constant 0 : index
    %c0_54 = arith.constant 0 : index
    %145 = vector.load %arg1[%c0_52, %c2, %c0_53, %c0_54] : memref<1x8x4x128xf32, #tpu.memory_space<vmem>>, vector<1x1x4x128xf32>
    %146 = vector.shape_cast %145 : vector<1x1x4x128xf32> to vector<4x128xf32>
    %147 = tpu.concatenate %146, %107 in 1 : vector<4x128xf32>, vector<4x16xf32> -> vector<4x144xf32>
    %cst_55 = arith.constant dense<0.000000e+00> : vector<4x64xf32>
    %148 = tpu.matmul %147, %1, %cst_55 {dimension_numbers = #tpu.dot_dimension_numbers<[1], [0], [0], [1], [0, 0, 1, 1], [], []>} : vector<4x144xf32>, vector<144x64xf32>, vector<4x64xf32> -> vector<4x64xf32>
    %149 = vector.broadcast %5 : vector<1x64xf32> to vector<4x64xf32>
    %150 = arith.addf %148, %149 : vector<4x64xf32>
    %151 = vector.extract_strided_slice %150 {offsets = [0, 0], sizes = [4, 16], strides = [1, 1]} : vector<4x64xf32> to vector<4x16xf32>
    %152 = arith.negf %151 : vector<4x16xf32>
    %153 = math.exp %152 : vector<4x16xf32>
    %cst_56 = arith.constant 1.000000e+00 : f32
    %154 = vector.broadcast %cst_56 : f32 to vector<4x16xf32>
    %155 = arith.addf %154, %153 : vector<4x16xf32>
    %156 = arith.divf %154, %155 : vector<4x16xf32>
    %157 = vector.extract_strided_slice %150 {offsets = [0, 16], sizes = [4, 16], strides = [1, 1]} : vector<4x64xf32> to vector<4x16xf32>
    %158 = arith.negf %157 : vector<4x16xf32>
    %159 = math.exp %158 : vector<4x16xf32>
    %cst_57 = arith.constant 1.000000e+00 : f32
    %160 = vector.broadcast %cst_57 : f32 to vector<4x16xf32>
    %161 = arith.addf %160, %159 : vector<4x16xf32>
    %162 = arith.divf %160, %161 : vector<4x16xf32>
    %163 = vector.extract_strided_slice %150 {offsets = [0, 32], sizes = [4, 16], strides = [1, 1]} : vector<4x64xf32> to vector<4x16xf32>
    %164 = math.tanh %163 : vector<4x16xf32>
    %165 = vector.extract_strided_slice %150 {offsets = [0, 48], sizes = [4, 16], strides = [1, 1]} : vector<4x64xf32> to vector<4x16xf32>
    %166 = arith.negf %165 : vector<4x16xf32>
    %167 = math.exp %166 : vector<4x16xf32>
    %cst_58 = arith.constant 1.000000e+00 : f32
    %168 = vector.broadcast %cst_58 : f32 to vector<4x16xf32>
    %169 = arith.addf %168, %167 : vector<4x16xf32>
    %170 = arith.divf %168, %169 : vector<4x16xf32>
    %171 = arith.mulf %162, %105 : vector<4x16xf32>
    %172 = arith.mulf %156, %164 : vector<4x16xf32>
    %173 = arith.addf %171, %172 : vector<4x16xf32>
    %174 = math.tanh %173 : vector<4x16xf32>
    %175 = arith.mulf %170, %174 : vector<4x16xf32>
    %c0_59 = arith.constant 0 : index
    %c5 = arith.constant 5 : index
    %c0_60 = arith.constant 0 : index
    %c0_61 = arith.constant 0 : index
    %176 = vector.load %arg1[%c0_59, %c5, %c0_60, %c0_61] : memref<1x8x4x128xf32, #tpu.memory_space<vmem>>, vector<1x1x4x128xf32>
    %177 = vector.shape_cast %176 : vector<1x1x4x128xf32> to vector<4x128xf32>
    %178 = tpu.concatenate %177, %138 in 1 : vector<4x128xf32>, vector<4x16xf32> -> vector<4x144xf32>
    %cst_62 = arith.constant dense<0.000000e+00> : vector<4x64xf32>
    %179 = tpu.matmul %178, %3, %cst_62 {dimension_numbers = #tpu.dot_dimension_numbers<[1], [0], [0], [1], [0, 0, 1, 1], [], []>} : vector<4x144xf32>, vector<144x64xf32>, vector<4x64xf32> -> vector<4x64xf32>
    %180 = vector.broadcast %7 : vector<1x64xf32> to vector<4x64xf32>
    %181 = arith.addf %179, %180 : vector<4x64xf32>
    %182 = vector.extract_strided_slice %181 {offsets = [0, 0], sizes = [4, 16], strides = [1, 1]} : vector<4x64xf32> to vector<4x16xf32>
    %183 = arith.negf %182 : vector<4x16xf32>
    %184 = math.exp %183 : vector<4x16xf32>
    %cst_63 = arith.constant 1.000000e+00 : f32
    %185 = vector.broadcast %cst_63 : f32 to vector<4x16xf32>
    %186 = arith.addf %185, %184 : vector<4x16xf32>
    %187 = arith.divf %185, %186 : vector<4x16xf32>
    %188 = vector.extract_strided_slice %181 {offsets = [0, 16], sizes = [4, 16], strides = [1, 1]} : vector<4x64xf32> to vector<4x16xf32>
    %189 = arith.negf %188 : vector<4x16xf32>
    %190 = math.exp %189 : vector<4x16xf32>
    %cst_64 = arith.constant 1.000000e+00 : f32
    %191 = vector.broadcast %cst_64 : f32 to vector<4x16xf32>
    %192 = arith.addf %191, %190 : vector<4x16xf32>
    %193 = arith.divf %191, %192 : vector<4x16xf32>
    %194 = vector.extract_strided_slice %181 {offsets = [0, 32], sizes = [4, 16], strides = [1, 1]} : vector<4x64xf32> to vector<4x16xf32>
    %195 = math.tanh %194 : vector<4x16xf32>
    %196 = vector.extract_strided_slice %181 {offsets = [0, 48], sizes = [4, 16], strides = [1, 1]} : vector<4x64xf32> to vector<4x16xf32>
    %197 = arith.negf %196 : vector<4x16xf32>
    %198 = math.exp %197 : vector<4x16xf32>
    %cst_65 = arith.constant 1.000000e+00 : f32
    %199 = vector.broadcast %cst_65 : f32 to vector<4x16xf32>
    %200 = arith.addf %199, %198 : vector<4x16xf32>
    %201 = arith.divf %199, %200 : vector<4x16xf32>
    %202 = arith.mulf %193, %136 : vector<4x16xf32>
    %203 = arith.mulf %187, %195 : vector<4x16xf32>
    %204 = arith.addf %202, %203 : vector<4x16xf32>
    %205 = math.tanh %204 : vector<4x16xf32>
    %206 = arith.mulf %201, %205 : vector<4x16xf32>
    %c2_66 = arith.constant 2 : index
    %c0_67 = arith.constant 0 : index
    %c0_68 = arith.constant 0 : index
    %207 = vector.load %arg5[%c2_66, %c0_67, %c0_68] : memref<8x4x16xf32, #tpu.memory_space<vmem>>, vector<1x4x16xf32>
    %208 = vector.shape_cast %207 : vector<1x4x16xf32> to vector<4x16xf32>
    %209 = vector.shape_cast %175 : vector<4x16xf32> to vector<1x4x16xf32>
    tpu.vector_store %arg5[%c2_66, %c0_67, %c0_68], %209 {strides = array<i32>} : memref<8x4x16xf32, #tpu.memory_space<vmem>>, vector<1x4x16xf32>,
    %c5_69 = arith.constant 5 : index
    %c0_70 = arith.constant 0 : index
    %c0_71 = arith.constant 0 : index
    %210 = vector.load %arg6[%c5_69, %c0_70, %c0_71] : memref<8x4x16xf32, #tpu.memory_space<vmem>>, vector<1x4x16xf32>
    %211 = vector.shape_cast %210 : vector<1x4x16xf32> to vector<4x16xf32>
    %212 = vector.shape_cast %206 : vector<4x16xf32> to vector<1x4x16xf32>
    tpu.vector_store %arg6[%c5_69, %c0_70, %c0_71], %212 {strides = array<i32>} : memref<8x4x16xf32, #tpu.memory_space<vmem>>, vector<1x4x16xf32>,
    %c0_72 = arith.constant 0 : index
    %c3 = arith.constant 3 : index
    %c0_73 = arith.constant 0 : index
    %c0_74 = arith.constant 0 : index
    %213 = vector.load %arg1[%c0_72, %c3, %c0_73, %c0_74] : memref<1x8x4x128xf32, #tpu.memory_space<vmem>>, vector<1x1x4x128xf32>
    %214 = vector.shape_cast %213 : vector<1x1x4x128xf32> to vector<4x128xf32>
    %215 = tpu.concatenate %214, %175 in 1 : vector<4x128xf32>, vector<4x16xf32> -> vector<4x144xf32>
    %cst_75 = arith.constant dense<0.000000e+00> : vector<4x64xf32>
    %216 = tpu.matmul %215, %1, %cst_75 {dimension_numbers = #tpu.dot_dimension_numbers<[1], [0], [0], [1], [0, 0, 1, 1], [], []>} : vector<4x144xf32>, vector<144x64xf32>, vector<4x64xf32> -> vector<4x64xf32>
    %217 = vector.broadcast %5 : vector<1x64xf32> to vector<4x64xf32>
    %218 = arith.addf %216, %217 : vector<4x64xf32>
    %219 = vector.extract_strided_slice %218 {offsets = [0, 0], sizes = [4, 16], strides = [1, 1]} : vector<4x64xf32> to vector<4x16xf32>
    %220 = arith.negf %219 : vector<4x16xf32>
    %221 = math.exp %220 : vector<4x16xf32>
    %cst_76 = arith.constant 1.000000e+00 : f32
    %222 = vector.broadcast %cst_76 : f32 to vector<4x16xf32>
    %223 = arith.addf %222, %221 : vector<4x16xf32>
    %224 = arith.divf %222, %223 : vector<4x16xf32>
    %225 = vector.extract_strided_slice %218 {offsets = [0, 16], sizes = [4, 16], strides = [1, 1]} : vector<4x64xf32> to vector<4x16xf32>
    %226 = arith.negf %225 : vector<4x16xf32>
    %227 = math.exp %226 : vector<4x16xf32>
    %cst_77 = arith.constant 1.000000e+00 : f32
    %228 = vector.broadcast %cst_77 : f32 to vector<4x16xf32>
    %229 = arith.addf %228, %227 : vector<4x16xf32>
    %230 = arith.divf %228, %229 : vector<4x16xf32>
    %231 = vector.extract_strided_slice %218 {offsets = [0, 32], sizes = [4, 16], strides = [1, 1]} : vector<4x64xf32> to vector<4x16xf32>
    %232 = math.tanh %231 : vector<4x16xf32>
    %233 = vector.extract_strided_slice %218 {offsets = [0, 48], sizes = [4, 16], strides = [1, 1]} : vector<4x64xf32> to vector<4x16xf32>
    %234 = arith.negf %233 : vector<4x16xf32>
    %235 = math.exp %234 : vector<4x16xf32>
    %cst_78 = arith.constant 1.000000e+00 : f32
    %236 = vector.broadcast %cst_78 : f32 to vector<4x16xf32>
    %237 = arith.addf %236, %235 : vector<4x16xf32>
    %238 = arith.divf %236, %237 : vector<4x16xf32>
    %239 = arith.mulf %230, %173 : vector<4x16xf32>
    %240 = arith.mulf %224, %232 : vector<4x16xf32>
    %241 = arith.addf %239, %240 : vector<4x16xf32>
    %242 = math.tanh %241 : vector<4x16xf32>
    %243 = arith.mulf %238, %242 : vector<4x16xf32>
    %c0_79 = arith.constant 0 : index
    %c4 = arith.constant 4 : index
    %c0_80 = arith.constant 0 : index
    %c0_81 = arith.constant 0 : index
    %244 = vector.load %arg1[%c0_79, %c4, %c0_80, %c0_81] : memref<1x8x4x128xf32, #tpu.memory_space<vmem>>, vector<1x1x4x128xf32>
    %245 = vector.shape_cast %244 : vector<1x1x4x128xf32> to vector<4x128xf32>
    %246 = tpu.concatenate %245, %206 in 1 : vector<4x128xf32>, vector<4x16xf32> -> vector<4x144xf32>
    %cst_82 = arith.constant dense<0.000000e+00> : vector<4x64xf32>
    %247 = tpu.matmul %246, %3, %cst_82 {dimension_numbers = #tpu.dot_dimension_numbers<[1], [0], [0], [1], [0, 0, 1, 1], [], []>} : vector<4x144xf32>, vector<144x64xf32>, vector<4x64xf32> -> vector<4x64xf32>
    %248 = vector.broadcast %7 : vector<1x64xf32> to vector<4x64xf32>
    %249 = arith.addf %247, %248 : vector<4x64xf32>
    %250 = vector.extract_strided_slice %249 {offsets = [0, 0], sizes = [4, 16], strides = [1, 1]} : vector<4x64xf32> to vector<4x16xf32>
    %251 = arith.negf %250 : vector<4x16xf32>
    %252 = math.exp %251 : vector<4x16xf32>
    %cst_83 = arith.constant 1.000000e+00 : f32
    %253 = vector.broadcast %cst_83 : f32 to vector<4x16xf32>
    %254 = arith.addf %253, %252 : vector<4x16xf32>
    %255 = arith.divf %253, %254 : vector<4x16xf32>
    %256 = vector.extract_strided_slice %249 {offsets = [0, 16], sizes = [4, 16], strides = [1, 1]} : vector<4x64xf32> to vector<4x16xf32>
    %257 = arith.negf %256 : vector<4x16xf32>
    %258 = math.exp %257 : vector<4x16xf32>
    %cst_84 = arith.constant 1.000000e+00 : f32
    %259 = vector.broadcast %cst_84 : f32 to vector<4x16xf32>
    %260 = arith.addf %259, %258 : vector<4x16xf32>
    %261 = arith.divf %259, %260 : vector<4x16xf32>
    %262 = vector.extract_strided_slice %249 {offsets = [0, 32], sizes = [4, 16], strides = [1, 1]} : vector<4x64xf32> to vector<4x16xf32>
    %263 = math.tanh %262 : vector<4x16xf32>
    %264 = vector.extract_strided_slice %249 {offsets = [0, 48], sizes = [4, 16], strides = [1, 1]} : vector<4x64xf32> to vector<4x16xf32>
    %265 = arith.negf %264 : vector<4x16xf32>
    %266 = math.exp %265 : vector<4x16xf32>
    %cst_85 = arith.constant 1.000000e+00 : f32
    %267 = vector.broadcast %cst_85 : f32 to vector<4x16xf32>
    %268 = arith.addf %267, %266 : vector<4x16xf32>
    %269 = arith.divf %267, %268 : vector<4x16xf32>
    %270 = arith.mulf %261, %204 : vector<4x16xf32>
    %271 = arith.mulf %255, %263 : vector<4x16xf32>
    %272 = arith.addf %270, %271 : vector<4x16xf32>
    %273 = math.tanh %272 : vector<4x16xf32>
    %274 = arith.mulf %269, %273 : vector<4x16xf32>
    %c3_86 = arith.constant 3 : index
    %c0_87 = arith.constant 0 : index
    %c0_88 = arith.constant 0 : index
    %275 = vector.load %arg5[%c3_86, %c0_87, %c0_88] : memref<8x4x16xf32, #tpu.memory_space<vmem>>, vector<1x4x16xf32>
    %276 = vector.shape_cast %275 : vector<1x4x16xf32> to vector<4x16xf32>
    %277 = vector.shape_cast %243 : vector<4x16xf32> to vector<1x4x16xf32>
    tpu.vector_store %arg5[%c3_86, %c0_87, %c0_88], %277 {strides = array<i32>} : memref<8x4x16xf32, #tpu.memory_space<vmem>>, vector<1x4x16xf32>,
    %c4_89 = arith.constant 4 : index
    %c0_90 = arith.constant 0 : index
    %c0_91 = arith.constant 0 : index
    %278 = vector.load %arg6[%c4_89, %c0_90, %c0_91] : memref<8x4x16xf32, #tpu.memory_space<vmem>>, vector<1x4x16xf32>
    %279 = vector.shape_cast %278 : vector<1x4x16xf32> to vector<4x16xf32>
    %280 = vector.shape_cast %274 : vector<4x16xf32> to vector<1x4x16xf32>
    tpu.vector_store %arg6[%c4_89, %c0_90, %c0_91], %280 {strides = array<i32>} : memref<8x4x16xf32, #tpu.memory_space<vmem>>, vector<1x4x16xf32>,
    %c0_92 = arith.constant 0 : index
    %c4_93 = arith.constant 4 : index
    %c0_94 = arith.constant 0 : index
    %c0_95 = arith.constant 0 : index
    %281 = vector.load %arg1[%c0_92, %c4_93, %c0_94, %c0_95] : memref<1x8x4x128xf32, #tpu.memory_space<vmem>>, vector<1x1x4x128xf32>
    %282 = vector.shape_cast %281 : vector<1x1x4x128xf32> to vector<4x128xf32>
    %283 = tpu.concatenate %282, %243 in 1 : vector<4x128xf32>, vector<4x16xf32> -> vector<4x144xf32>
    %cst_96 = arith.constant dense<0.000000e+00> : vector<4x64xf32>
    %284 = tpu.matmul %283, %1, %cst_96 {dimension_numbers = #tpu.dot_dimension_numbers<[1], [0], [0], [1], [0, 0, 1, 1], [], []>} : vector<4x144xf32>, vector<144x64xf32>, vector<4x64xf32> -> vector<4x64xf32>
    %285 = vector.broadcast %5 : vector<1x64xf32> to vector<4x64xf32>
    %286 = arith.addf %284, %285 : vector<4x64xf32>
    %287 = vector.extract_strided_slice %286 {offsets = [0, 0], sizes = [4, 16], strides = [1, 1]} : vector<4x64xf32> to vector<4x16xf32>
    %288 = arith.negf %287 : vector<4x16xf32>
    %289 = math.exp %288 : vector<4x16xf32>
    %cst_97 = arith.constant 1.000000e+00 : f32
    %290 = vector.broadcast %cst_97 : f32 to vector<4x16xf32>
    %291 = arith.addf %290, %289 : vector<4x16xf32>
    %292 = arith.divf %290, %291 : vector<4x16xf32>
    %293 = vector.extract_strided_slice %286 {offsets = [0, 16], sizes = [4, 16], strides = [1, 1]} : vector<4x64xf32> to vector<4x16xf32>
    %294 = arith.negf %293 : vector<4x16xf32>
    %295 = math.exp %294 : vector<4x16xf32>
    %cst_98 = arith.constant 1.000000e+00 : f32
    %296 = vector.broadcast %cst_98 : f32 to vector<4x16xf32>
    %297 = arith.addf %296, %295 : vector<4x16xf32>
    %298 = arith.divf %296, %297 : vector<4x16xf32>
    %299 = vector.extract_strided_slice %286 {offsets = [0, 32], sizes = [4, 16], strides = [1, 1]} : vector<4x64xf32> to vector<4x16xf32>
    %300 = math.tanh %299 : vector<4x16xf32>
    %301 = vector.extract_strided_slice %286 {offsets = [0, 48], sizes = [4, 16], strides = [1, 1]} : vector<4x64xf32> to vector<4x16xf32>
    %302 = arith.negf %301 : vector<4x16xf32>
    %303 = math.exp %302 : vector<4x16xf32>
    %cst_99 = arith.constant 1.000000e+00 : f32
    %304 = vector.broadcast %cst_99 : f32 to vector<4x16xf32>
    %305 = arith.addf %304, %303 : vector<4x16xf32>
    %306 = arith.divf %304, %305 : vector<4x16xf32>
    %307 = arith.mulf %298, %241 : vector<4x16xf32>
    %308 = arith.mulf %292, %300 : vector<4x16xf32>
    %309 = arith.addf %307, %308 : vector<4x16xf32>
    %310 = math.tanh %309 : vector<4x16xf32>
    %311 = arith.mulf %306, %310 : vector<4x16xf32>
    %c0_100 = arith.constant 0 : index
    %c3_101 = arith.constant 3 : index
    %c0_102 = arith.constant 0 : index
    %c0_103 = arith.constant 0 : index
    %312 = vector.load %arg1[%c0_100, %c3_101, %c0_102, %c0_103] : memref<1x8x4x128xf32, #tpu.memory_space<vmem>>, vector<1x1x4x128xf32>
    %313 = vector.shape_cast %312 : vector<1x1x4x128xf32> to vector<4x128xf32>
    %314 = tpu.concatenate %313, %274 in 1 : vector<4x128xf32>, vector<4x16xf32> -> vector<4x144xf32>
    %cst_104 = arith.constant dense<0.000000e+00> : vector<4x64xf32>
    %315 = tpu.matmul %314, %3, %cst_104 {dimension_numbers = #tpu.dot_dimension_numbers<[1], [0], [0], [1], [0, 0, 1, 1], [], []>} : vector<4x144xf32>, vector<144x64xf32>, vector<4x64xf32> -> vector<4x64xf32>
    %316 = vector.broadcast %7 : vector<1x64xf32> to vector<4x64xf32>
    %317 = arith.addf %315, %316 : vector<4x64xf32>
    %318 = vector.extract_strided_slice %317 {offsets = [0, 0], sizes = [4, 16], strides = [1, 1]} : vector<4x64xf32> to vector<4x16xf32>
    %319 = arith.negf %318 : vector<4x16xf32>
    %320 = math.exp %319 : vector<4x16xf32>
    %cst_105 = arith.constant 1.000000e+00 : f32
    %321 = vector.broadcast %cst_105 : f32 to vector<4x16xf32>
    %322 = arith.addf %321, %320 : vector<4x16xf32>
    %323 = arith.divf %321, %322 : vector<4x16xf32>
    %324 = vector.extract_strided_slice %317 {offsets = [0, 16], sizes = [4, 16], strides = [1, 1]} : vector<4x64xf32> to vector<4x16xf32>
    %325 = arith.negf %324 : vector<4x16xf32>
    %326 = math.exp %325 : vector<4x16xf32>
    %cst_106 = arith.constant 1.000000e+00 : f32
    %327 = vector.broadcast %cst_106 : f32 to vector<4x16xf32>
    %328 = arith.addf %327, %326 : vector<4x16xf32>
    %329 = arith.divf %327, %328 : vector<4x16xf32>
    %330 = vector.extract_strided_slice %317 {offsets = [0, 32], sizes = [4, 16], strides = [1, 1]} : vector<4x64xf32> to vector<4x16xf32>
    %331 = math.tanh %330 : vector<4x16xf32>
    %332 = vector.extract_strided_slice %317 {offsets = [0, 48], sizes = [4, 16], strides = [1, 1]} : vector<4x64xf32> to vector<4x16xf32>
    %333 = arith.negf %332 : vector<4x16xf32>
    %334 = math.exp %333 : vector<4x16xf32>
    %cst_107 = arith.constant 1.000000e+00 : f32
    %335 = vector.broadcast %cst_107 : f32 to vector<4x16xf32>
    %336 = arith.addf %335, %334 : vector<4x16xf32>
    %337 = arith.divf %335, %336 : vector<4x16xf32>
    %338 = arith.mulf %329, %272 : vector<4x16xf32>
    %339 = arith.mulf %323, %331 : vector<4x16xf32>
    %340 = arith.addf %338, %339 : vector<4x16xf32>
    %341 = math.tanh %340 : vector<4x16xf32>
    %342 = arith.mulf %337, %341 : vector<4x16xf32>
    %c4_108 = arith.constant 4 : index
    %c0_109 = arith.constant 0 : index
    %c0_110 = arith.constant 0 : index
    %343 = vector.load %arg5[%c4_108, %c0_109, %c0_110] : memref<8x4x16xf32, #tpu.memory_space<vmem>>, vector<1x4x16xf32>
    %344 = vector.shape_cast %343 : vector<1x4x16xf32> to vector<4x16xf32>
    %345 = vector.shape_cast %311 : vector<4x16xf32> to vector<1x4x16xf32>
    tpu.vector_store %arg5[%c4_108, %c0_109, %c0_110], %345 {strides = array<i32>} : memref<8x4x16xf32, #tpu.memory_space<vmem>>, vector<1x4x16xf32>,
    %c3_111 = arith.constant 3 : index
    %c0_112 = arith.constant 0 : index
    %c0_113 = arith.constant 0 : index
    %346 = vector.load %arg6[%c3_111, %c0_112, %c0_113] : memref<8x4x16xf32, #tpu.memory_space<vmem>>, vector<1x4x16xf32>
    %347 = vector.shape_cast %346 : vector<1x4x16xf32> to vector<4x16xf32>
    %348 = vector.shape_cast %342 : vector<4x16xf32> to vector<1x4x16xf32>
    tpu.vector_store %arg6[%c3_111, %c0_112, %c0_113], %348 {strides = array<i32>} : memref<8x4x16xf32, #tpu.memory_space<vmem>>, vector<1x4x16xf32>,
    %c0_114 = arith.constant 0 : index
    %c5_115 = arith.constant 5 : index
    %c0_116 = arith.constant 0 : index
    %c0_117 = arith.constant 0 : index
    %349 = vector.load %arg1[%c0_114, %c5_115, %c0_116, %c0_117] : memref<1x8x4x128xf32, #tpu.memory_space<vmem>>, vector<1x1x4x128xf32>
    %350 = vector.shape_cast %349 : vector<1x1x4x128xf32> to vector<4x128xf32>
    %351 = tpu.concatenate %350, %311 in 1 : vector<4x128xf32>, vector<4x16xf32> -> vector<4x144xf32>
    %cst_118 = arith.constant dense<0.000000e+00> : vector<4x64xf32>
    %352 = tpu.matmul %351, %1, %cst_118 {dimension_numbers = #tpu.dot_dimension_numbers<[1], [0], [0], [1], [0, 0, 1, 1], [], []>} : vector<4x144xf32>, vector<144x64xf32>, vector<4x64xf32> -> vector<4x64xf32>
    %353 = vector.broadcast %5 : vector<1x64xf32> to vector<4x64xf32>
    %354 = arith.addf %352, %353 : vector<4x64xf32>
    %355 = vector.extract_strided_slice %354 {offsets = [0, 0], sizes = [4, 16], strides = [1, 1]} : vector<4x64xf32> to vector<4x16xf32>
    %356 = arith.negf %355 : vector<4x16xf32>
    %357 = math.exp %356 : vector<4x16xf32>
    %cst_119 = arith.constant 1.000000e+00 : f32
    %358 = vector.broadcast %cst_119 : f32 to vector<4x16xf32>
    %359 = arith.addf %358, %357 : vector<4x16xf32>
    %360 = arith.divf %358, %359 : vector<4x16xf32>
    %361 = vector.extract_strided_slice %354 {offsets = [0, 16], sizes = [4, 16], strides = [1, 1]} : vector<4x64xf32> to vector<4x16xf32>
    %362 = arith.negf %361 : vector<4x16xf32>
    %363 = math.exp %362 : vector<4x16xf32>
    %cst_120 = arith.constant 1.000000e+00 : f32
    %364 = vector.broadcast %cst_120 : f32 to vector<4x16xf32>
    %365 = arith.addf %364, %363 : vector<4x16xf32>
    %366 = arith.divf %364, %365 : vector<4x16xf32>
    %367 = vector.extract_strided_slice %354 {offsets = [0, 32], sizes = [4, 16], strides = [1, 1]} : vector<4x64xf32> to vector<4x16xf32>
    %368 = math.tanh %367 : vector<4x16xf32>
    %369 = vector.extract_strided_slice %354 {offsets = [0, 48], sizes = [4, 16], strides = [1, 1]} : vector<4x64xf32> to vector<4x16xf32>
    %370 = arith.negf %369 : vector<4x16xf32>
    %371 = math.exp %370 : vector<4x16xf32>
    %cst_121 = arith.constant 1.000000e+00 : f32
    %372 = vector.broadcast %cst_121 : f32 to vector<4x16xf32>
    %373 = arith.addf %372, %371 : vector<4x16xf32>
    %374 = arith.divf %372, %373 : vector<4x16xf32>
    %375 = arith.mulf %366, %309 : vector<4x16xf32>
    %376 = arith.mulf %360, %368 : vector<4x16xf32>
    %377 = arith.addf %375, %376 : vector<4x16xf32>
    %378 = math.tanh %377 : vector<4x16xf32>
    %379 = arith.mulf %374, %378 : vector<4x16xf32>
    %c0_122 = arith.constant 0 : index
    %c2_123 = arith.constant 2 : index
    %c0_124 = arith.constant 0 : index
    %c0_125 = arith.constant 0 : index
    %380 = vector.load %arg1[%c0_122, %c2_123, %c0_124, %c0_125] : memref<1x8x4x128xf32, #tpu.memory_space<vmem>>, vector<1x1x4x128xf32>
    %381 = vector.shape_cast %380 : vector<1x1x4x128xf32> to vector<4x128xf32>
    %382 = tpu.concatenate %381, %342 in 1 : vector<4x128xf32>, vector<4x16xf32> -> vector<4x144xf32>
    %cst_126 = arith.constant dense<0.000000e+00> : vector<4x64xf32>
    %383 = tpu.matmul %382, %3, %cst_126 {dimension_numbers = #tpu.dot_dimension_numbers<[1], [0], [0], [1], [0, 0, 1, 1], [], []>} : vector<4x144xf32>, vector<144x64xf32>, vector<4x64xf32> -> vector<4x64xf32>
    %384 = vector.broadcast %7 : vector<1x64xf32> to vector<4x64xf32>
    %385 = arith.addf %383, %384 : vector<4x64xf32>
    %386 = vector.extract_strided_slice %385 {offsets = [0, 0], sizes = [4, 16], strides = [1, 1]} : vector<4x64xf32> to vector<4x16xf32>
    %387 = arith.negf %386 : vector<4x16xf32>
    %388 = math.exp %387 : vector<4x16xf32>
    %cst_127 = arith.constant 1.000000e+00 : f32
    %389 = vector.broadcast %cst_127 : f32 to vector<4x16xf32>
    %390 = arith.addf %389, %388 : vector<4x16xf32>
    %391 = arith.divf %389, %390 : vector<4x16xf32>
    %392 = vector.extract_strided_slice %385 {offsets = [0, 16], sizes = [4, 16], strides = [1, 1]} : vector<4x64xf32> to vector<4x16xf32>
    %393 = arith.negf %392 : vector<4x16xf32>
    %394 = math.exp %393 : vector<4x16xf32>
    %cst_128 = arith.constant 1.000000e+00 : f32
    %395 = vector.broadcast %cst_128 : f32 to vector<4x16xf32>
    %396 = arith.addf %395, %394 : vector<4x16xf32>
    %397 = arith.divf %395, %396 : vector<4x16xf32>
    %398 = vector.extract_strided_slice %385 {offsets = [0, 32], sizes = [4, 16], strides = [1, 1]} : vector<4x64xf32> to vector<4x16xf32>
    %399 = math.tanh %398 : vector<4x16xf32>
    %400 = vector.extract_strided_slice %385 {offsets = [0, 48], sizes = [4, 16], strides = [1, 1]} : vector<4x64xf32> to vector<4x16xf32>
    %401 = arith.negf %400 : vector<4x16xf32>
    %402 = math.exp %401 : vector<4x16xf32>
    %cst_129 = arith.constant 1.000000e+00 : f32
    %403 = vector.broadcast %cst_129 : f32 to vector<4x16xf32>
    %404 = arith.addf %403, %402 : vector<4x16xf32>
    %405 = arith.divf %403, %404 : vector<4x16xf32>
    %406 = arith.mulf %397, %340 : vector<4x16xf32>
    %407 = arith.mulf %391, %399 : vector<4x16xf32>
    %408 = arith.addf %406, %407 : vector<4x16xf32>
    %409 = math.tanh %408 : vector<4x16xf32>
    %410 = arith.mulf %405, %409 : vector<4x16xf32>
    %c5_130 = arith.constant 5 : index
    %c0_131 = arith.constant 0 : index
    %c0_132 = arith.constant 0 : index
    %411 = vector.load %arg5[%c5_130, %c0_131, %c0_132] : memref<8x4x16xf32, #tpu.memory_space<vmem>>, vector<1x4x16xf32>
    %412 = vector.shape_cast %411 : vector<1x4x16xf32> to vector<4x16xf32>
    %413 = vector.shape_cast %379 : vector<4x16xf32> to vector<1x4x16xf32>
    tpu.vector_store %arg5[%c5_130, %c0_131, %c0_132], %413 {strides = array<i32>} : memref<8x4x16xf32, #tpu.memory_space<vmem>>, vector<1x4x16xf32>,
    %c2_133 = arith.constant 2 : index
    %c0_134 = arith.constant 0 : index
    %c0_135 = arith.constant 0 : index
    %414 = vector.load %arg6[%c2_133, %c0_134, %c0_135] : memref<8x4x16xf32, #tpu.memory_space<vmem>>, vector<1x4x16xf32>
    %415 = vector.shape_cast %414 : vector<1x4x16xf32> to vector<4x16xf32>
    %416 = vector.shape_cast %410 : vector<4x16xf32> to vector<1x4x16xf32>
    tpu.vector_store %arg6[%c2_133, %c0_134, %c0_135], %416 {strides = array<i32>} : memref<8x4x16xf32, #tpu.memory_space<vmem>>, vector<1x4x16xf32>,
    %c0_136 = arith.constant 0 : index
    %c6_137 = arith.constant 6 : index
    %c0_138 = arith.constant 0 : index
    %c0_139 = arith.constant 0 : index
    %417 = vector.load %arg1[%c0_136, %c6_137, %c0_138, %c0_139] : memref<1x8x4x128xf32, #tpu.memory_space<vmem>>, vector<1x1x4x128xf32>
    %418 = vector.shape_cast %417 : vector<1x1x4x128xf32> to vector<4x128xf32>
    %419 = tpu.concatenate %418, %379 in 1 : vector<4x128xf32>, vector<4x16xf32> -> vector<4x144xf32>
    %cst_140 = arith.constant dense<0.000000e+00> : vector<4x64xf32>
    %420 = tpu.matmul %419, %1, %cst_140 {dimension_numbers = #tpu.dot_dimension_numbers<[1], [0], [0], [1], [0, 0, 1, 1], [], []>} : vector<4x144xf32>, vector<144x64xf32>, vector<4x64xf32> -> vector<4x64xf32>
    %421 = vector.broadcast %5 : vector<1x64xf32> to vector<4x64xf32>
    %422 = arith.addf %420, %421 : vector<4x64xf32>
    %423 = vector.extract_strided_slice %422 {offsets = [0, 0], sizes = [4, 16], strides = [1, 1]} : vector<4x64xf32> to vector<4x16xf32>
    %424 = arith.negf %423 : vector<4x16xf32>
    %425 = math.exp %424 : vector<4x16xf32>
    %cst_141 = arith.constant 1.000000e+00 : f32
    %426 = vector.broadcast %cst_141 : f32 to vector<4x16xf32>
    %427 = arith.addf %426, %425 : vector<4x16xf32>
    %428 = arith.divf %426, %427 : vector<4x16xf32>
    %429 = vector.extract_strided_slice %422 {offsets = [0, 16], sizes = [4, 16], strides = [1, 1]} : vector<4x64xf32> to vector<4x16xf32>
    %430 = arith.negf %429 : vector<4x16xf32>
    %431 = math.exp %430 : vector<4x16xf32>
    %cst_142 = arith.constant 1.000000e+00 : f32
    %432 = vector.broadcast %cst_142 : f32 to vector<4x16xf32>
    %433 = arith.addf %432, %431 : vector<4x16xf32>
    %434 = arith.divf %432, %433 : vector<4x16xf32>
    %435 = vector.extract_strided_slice %422 {offsets = [0, 32], sizes = [4, 16], strides = [1, 1]} : vector<4x64xf32> to vector<4x16xf32>
    %436 = math.tanh %435 : vector<4x16xf32>
    %437 = vector.extract_strided_slice %422 {offsets = [0, 48], sizes = [4, 16], strides = [1, 1]} : vector<4x64xf32> to vector<4x16xf32>
    %438 = arith.negf %437 : vector<4x16xf32>
    %439 = math.exp %438 : vector<4x16xf32>
    %cst_143 = arith.constant 1.000000e+00 : f32
    %440 = vector.broadcast %cst_143 : f32 to vector<4x16xf32>
    %441 = arith.addf %440, %439 : vector<4x16xf32>
    %442 = arith.divf %440, %441 : vector<4x16xf32>
    %443 = arith.mulf %434, %377 : vector<4x16xf32>
    %444 = arith.mulf %428, %436 : vector<4x16xf32>
    %445 = arith.addf %443, %444 : vector<4x16xf32>
    %446 = math.tanh %445 : vector<4x16xf32>
    %447 = arith.mulf %442, %446 : vector<4x16xf32>
    %c0_144 = arith.constant 0 : index
    %c1_145 = arith.constant 1 : index
    %c0_146 = arith.constant 0 : index
    %c0_147 = arith.constant 0 : index
    %448 = vector.load %arg1[%c0_144, %c1_145, %c0_146, %c0_147] : memref<1x8x4x128xf32, #tpu.memory_space<vmem>>, vector<1x1x4x128xf32>
    %449 = vector.shape_cast %448 : vector<1x1x4x128xf32> to vector<4x128xf32>
    %450 = tpu.concatenate %449, %410 in 1 : vector<4x128xf32>, vector<4x16xf32> -> vector<4x144xf32>
    %cst_148 = arith.constant dense<0.000000e+00> : vector<4x64xf32>
    %451 = tpu.matmul %450, %3, %cst_148 {dimension_numbers = #tpu.dot_dimension_numbers<[1], [0], [0], [1], [0, 0, 1, 1], [], []>} : vector<4x144xf32>, vector<144x64xf32>, vector<4x64xf32> -> vector<4x64xf32>
    %452 = vector.broadcast %7 : vector<1x64xf32> to vector<4x64xf32>
    %453 = arith.addf %451, %452 : vector<4x64xf32>
    %454 = vector.extract_strided_slice %453 {offsets = [0, 0], sizes = [4, 16], strides = [1, 1]} : vector<4x64xf32> to vector<4x16xf32>
    %455 = arith.negf %454 : vector<4x16xf32>
    %456 = math.exp %455 : vector<4x16xf32>
    %cst_149 = arith.constant 1.000000e+00 : f32
    %457 = vector.broadcast %cst_149 : f32 to vector<4x16xf32>
    %458 = arith.addf %457, %456 : vector<4x16xf32>
    %459 = arith.divf %457, %458 : vector<4x16xf32>
    %460 = vector.extract_strided_slice %453 {offsets = [0, 16], sizes = [4, 16], strides = [1, 1]} : vector<4x64xf32> to vector<4x16xf32>
    %461 = arith.negf %460 : vector<4x16xf32>
    %462 = math.exp %461 : vector<4x16xf32>
    %cst_150 = arith.constant 1.000000e+00 : f32
    %463 = vector.broadcast %cst_150 : f32 to vector<4x16xf32>
    %464 = arith.addf %463, %462 : vector<4x16xf32>
    %465 = arith.divf %463, %464 : vector<4x16xf32>
    %466 = vector.extract_strided_slice %453 {offsets = [0, 32], sizes = [4, 16], strides = [1, 1]} : vector<4x64xf32> to vector<4x16xf32>
    %467 = math.tanh %466 : vector<4x16xf32>
    %468 = vector.extract_strided_slice %453 {offsets = [0, 48], sizes = [4, 16], strides = [1, 1]} : vector<4x64xf32> to vector<4x16xf32>
    %469 = arith.negf %468 : vector<4x16xf32>
    %470 = math.exp %469 : vector<4x16xf32>
    %cst_151 = arith.constant 1.000000e+00 : f32
    %471 = vector.broadcast %cst_151 : f32 to vector<4x16xf32>
    %472 = arith.addf %471, %470 : vector<4x16xf32>
    %473 = arith.divf %471, %472 : vector<4x16xf32>
    %474 = arith.mulf %465, %408 : vector<4x16xf32>
    %475 = arith.mulf %459, %467 : vector<4x16xf32>
    %476 = arith.addf %474, %475 : vector<4x16xf32>
    %477 = math.tanh %476 : vector<4x16xf32>
    %478 = arith.mulf %473, %477 : vector<4x16xf32>
    %c6_152 = arith.constant 6 : index
    %c0_153 = arith.constant 0 : index
    %c0_154 = arith.constant 0 : index
    %479 = vector.load %arg5[%c6_152, %c0_153, %c0_154] : memref<8x4x16xf32, #tpu.memory_space<vmem>>, vector<1x4x16xf32>
    %480 = vector.shape_cast %479 : vector<1x4x16xf32> to vector<4x16xf32>
    %481 = vector.shape_cast %447 : vector<4x16xf32> to vector<1x4x16xf32>
    tpu.vector_store %arg5[%c6_152, %c0_153, %c0_154], %481 {strides = array<i32>} : memref<8x4x16xf32, #tpu.memory_space<vmem>>, vector<1x4x16xf32>,
    %c1_155 = arith.constant 1 : index
    %c0_156 = arith.constant 0 : index
    %c0_157 = arith.constant 0 : index
    %482 = vector.load %arg6[%c1_155, %c0_156, %c0_157] : memref<8x4x16xf32, #tpu.memory_space<vmem>>, vector<1x4x16xf32>
    %483 = vector.shape_cast %482 : vector<1x4x16xf32> to vector<4x16xf32>
    %484 = vector.shape_cast %478 : vector<4x16xf32> to vector<1x4x16xf32>
    tpu.vector_store %arg6[%c1_155, %c0_156, %c0_157], %484 {strides = array<i32>} : memref<8x4x16xf32, #tpu.memory_space<vmem>>, vector<1x4x16xf32>,
    %c0_158 = arith.constant 0 : index
    %c7_159 = arith.constant 7 : index
    %c0_160 = arith.constant 0 : index
    %c0_161 = arith.constant 0 : index
    %485 = vector.load %arg1[%c0_158, %c7_159, %c0_160, %c0_161] : memref<1x8x4x128xf32, #tpu.memory_space<vmem>>, vector<1x1x4x128xf32>
    %486 = vector.shape_cast %485 : vector<1x1x4x128xf32> to vector<4x128xf32>
    %487 = tpu.concatenate %486, %447 in 1 : vector<4x128xf32>, vector<4x16xf32> -> vector<4x144xf32>
    %cst_162 = arith.constant dense<0.000000e+00> : vector<4x64xf32>
    %488 = tpu.matmul %487, %1, %cst_162 {dimension_numbers = #tpu.dot_dimension_numbers<[1], [0], [0], [1], [0, 0, 1, 1], [], []>} : vector<4x144xf32>, vector<144x64xf32>, vector<4x64xf32> -> vector<4x64xf32>
    %489 = vector.broadcast %5 : vector<1x64xf32> to vector<4x64xf32>
    %490 = arith.addf %488, %489 : vector<4x64xf32>
    %491 = vector.extract_strided_slice %490 {offsets = [0, 0], sizes = [4, 16], strides = [1, 1]} : vector<4x64xf32> to vector<4x16xf32>
    %492 = arith.negf %491 : vector<4x16xf32>
    %493 = math.exp %492 : vector<4x16xf32>
    %cst_163 = arith.constant 1.000000e+00 : f32
    %494 = vector.broadcast %cst_163 : f32 to vector<4x16xf32>
    %495 = arith.addf %494, %493 : vector<4x16xf32>
    %496 = arith.divf %494, %495 : vector<4x16xf32>
    %497 = vector.extract_strided_slice %490 {offsets = [0, 16], sizes = [4, 16], strides = [1, 1]} : vector<4x64xf32> to vector<4x16xf32>
    %498 = arith.negf %497 : vector<4x16xf32>
    %499 = math.exp %498 : vector<4x16xf32>
    %cst_164 = arith.constant 1.000000e+00 : f32
    %500 = vector.broadcast %cst_164 : f32 to vector<4x16xf32>
    %501 = arith.addf %500, %499 : vector<4x16xf32>
    %502 = arith.divf %500, %501 : vector<4x16xf32>
    %503 = vector.extract_strided_slice %490 {offsets = [0, 32], sizes = [4, 16], strides = [1, 1]} : vector<4x64xf32> to vector<4x16xf32>
    %504 = math.tanh %503 : vector<4x16xf32>
    %505 = vector.extract_strided_slice %490 {offsets = [0, 48], sizes = [4, 16], strides = [1, 1]} : vector<4x64xf32> to vector<4x16xf32>
    %506 = arith.negf %505 : vector<4x16xf32>
    %507 = math.exp %506 : vector<4x16xf32>
    %cst_165 = arith.constant 1.000000e+00 : f32
    %508 = vector.broadcast %cst_165 : f32 to vector<4x16xf32>
    %509 = arith.addf %508, %507 : vector<4x16xf32>
    %510 = arith.divf %508, %509 : vector<4x16xf32>
    %511 = arith.mulf %502, %445 : vector<4x16xf32>
    %512 = arith.mulf %496, %504 : vector<4x16xf32>
    %513 = arith.addf %511, %512 : vector<4x16xf32>
    %514 = math.tanh %513 : vector<4x16xf32>
    %515 = arith.mulf %510, %514 : vector<4x16xf32>
    %c0_166 = arith.constant 0 : index
    %c0_167 = arith.constant 0 : index
    %c0_168 = arith.constant 0 : index
    %c0_169 = arith.constant 0 : index
    %516 = vector.load %arg1[%c0_166, %c0_167, %c0_168, %c0_169] : memref<1x8x4x128xf32, #tpu.memory_space<vmem>>, vector<1x1x4x128xf32>
    %517 = vector.shape_cast %516 : vector<1x1x4x128xf32> to vector<4x128xf32>
    %518 = tpu.concatenate %517, %478 in 1 : vector<4x128xf32>, vector<4x16xf32> -> vector<4x144xf32>
    %cst_170 = arith.constant dense<0.000000e+00> : vector<4x64xf32>
    %519 = tpu.matmul %518, %3, %cst_170 {dimension_numbers = #tpu.dot_dimension_numbers<[1], [0], [0], [1], [0, 0, 1, 1], [], []>} : vector<4x144xf32>, vector<144x64xf32>, vector<4x64xf32> -> vector<4x64xf32>
    %520 = vector.broadcast %7 : vector<1x64xf32> to vector<4x64xf32>
    %521 = arith.addf %519, %520 : vector<4x64xf32>
    %522 = vector.extract_strided_slice %521 {offsets = [0, 0], sizes = [4, 16], strides = [1, 1]} : vector<4x64xf32> to vector<4x16xf32>
    %523 = arith.negf %522 : vector<4x16xf32>
    %524 = math.exp %523 : vector<4x16xf32>
    %cst_171 = arith.constant 1.000000e+00 : f32
    %525 = vector.broadcast %cst_171 : f32 to vector<4x16xf32>
    %526 = arith.addf %525, %524 : vector<4x16xf32>
    %527 = arith.divf %525, %526 : vector<4x16xf32>
    %528 = vector.extract_strided_slice %521 {offsets = [0, 16], sizes = [4, 16], strides = [1, 1]} : vector<4x64xf32> to vector<4x16xf32>
    %529 = arith.negf %528 : vector<4x16xf32>
    %530 = math.exp %529 : vector<4x16xf32>
    %cst_172 = arith.constant 1.000000e+00 : f32
    %531 = vector.broadcast %cst_172 : f32 to vector<4x16xf32>
    %532 = arith.addf %531, %530 : vector<4x16xf32>
    %533 = arith.divf %531, %532 : vector<4x16xf32>
    %534 = vector.extract_strided_slice %521 {offsets = [0, 32], sizes = [4, 16], strides = [1, 1]} : vector<4x64xf32> to vector<4x16xf32>
    %535 = math.tanh %534 : vector<4x16xf32>
    %536 = vector.extract_strided_slice %521 {offsets = [0, 48], sizes = [4, 16], strides = [1, 1]} : vector<4x64xf32> to vector<4x16xf32>
    %537 = arith.negf %536 : vector<4x16xf32>
    %538 = math.exp %537 : vector<4x16xf32>
    %cst_173 = arith.constant 1.000000e+00 : f32
    %539 = vector.broadcast %cst_173 : f32 to vector<4x16xf32>
    %540 = arith.addf %539, %538 : vector<4x16xf32>
    %541 = arith.divf %539, %540 : vector<4x16xf32>
    %542 = arith.mulf %533, %476 : vector<4x16xf32>
    %543 = arith.mulf %527, %535 : vector<4x16xf32>
    %544 = arith.addf %542, %543 : vector<4x16xf32>
    %545 = math.tanh %544 : vector<4x16xf32>
    %546 = arith.mulf %541, %545 : vector<4x16xf32>
    %c7_174 = arith.constant 7 : index
    %c0_175 = arith.constant 0 : index
    %c0_176 = arith.constant 0 : index
    %547 = vector.load %arg5[%c7_174, %c0_175, %c0_176] : memref<8x4x16xf32, #tpu.memory_space<vmem>>, vector<1x4x16xf32>
    %548 = vector.shape_cast %547 : vector<1x4x16xf32> to vector<4x16xf32>
    %549 = vector.shape_cast %515 : vector<4x16xf32> to vector<1x4x16xf32>
    tpu.vector_store %arg5[%c7_174, %c0_175, %c0_176], %549 {strides = array<i32>} : memref<8x4x16xf32, #tpu.memory_space<vmem>>, vector<1x4x16xf32>,
    %c0_177 = arith.constant 0 : index
    %c0_178 = arith.constant 0 : index
    %c0_179 = arith.constant 0 : index
    %550 = vector.load %arg6[%c0_177, %c0_178, %c0_179] : memref<8x4x16xf32, #tpu.memory_space<vmem>>, vector<1x4x16xf32>
    %551 = vector.shape_cast %550 : vector<1x4x16xf32> to vector<4x16xf32>
    %552 = vector.shape_cast %546 : vector<4x16xf32> to vector<1x4x16xf32>
    tpu.vector_store %arg6[%c0_177, %c0_178, %c0_179], %552 {strides = array<i32>} : memref<8x4x16xf32, #tpu.memory_space<vmem>>, vector<1x4x16xf32>,
    %c0_180 = arith.constant 0 : index
    %c0_181 = arith.constant 0 : index
    %c0_182 = arith.constant 0 : index
    %553 = vector.load %arg5[%c0_180, %c0_181, %c0_182] : memref<8x4x16xf32, #tpu.memory_space<vmem>>, vector<8x4x16xf32>
    %c0_183 = arith.constant 0 : index
    %c0_184 = arith.constant 0 : index
    %c0_185 = arith.constant 0 : index
    %554 = vector.load %arg6[%c0_183, %c0_184, %c0_185] : memref<8x4x16xf32, #tpu.memory_space<vmem>>, vector<8x4x16xf32>
    %555 = tpu.concatenate %553, %554 in 2 : vector<8x4x16xf32>, vector<8x4x16xf32> -> vector<8x4x32xf32>
    %c0_186 = arith.constant 0 : index
    %c0_187 = arith.constant 0 : index
    %c0_188 = arith.constant 0 : index
    %c0_189 = arith.constant 0 : index
    %556 = vector.load %arg4[%c0_186, %c0_187, %c0_188, %c0_189] : memref<1x8x4x32xf32, #tpu.memory_space<vmem>>, vector<1x8x4x32xf32>
    %557 = vector.shape_cast %556 : vector<1x8x4x32xf32> to vector<8x4x32xf32>
    %558 = vector.shape_cast %555 : vector<8x4x32xf32> to vector<1x8x4x32xf32>
    tpu.vector_store %arg4[%c0_186, %c0_187, %c0_188, %c0_189], %558 {strides = array<i32>} : memref<1x8x4x32xf32, #tpu.memory_space<vmem>>, vector<1x8x4x32xf32>,
    return
  }
  func.func @transform_0(%arg0: i32) -> (i32, i32, i32, i32) {
    %c0_i32 = arith.constant 0 : i32
    %c0_i32_0 = arith.constant 0 : i32
    %c0_i32_1 = arith.constant 0 : i32
    %c0_i32_2 = arith.constant 0 : i32
    return %arg0, %c0_i32, %c0_i32_0, %c0_i32_1 : i32, i32, i32, i32
  }
  func.func @transform_1(%arg0: i32) -> (i32, i32, i32) {
    %c0_i32 = arith.constant 0 : i32
    %c0_i32_0 = arith.constant 0 : i32
    %c0_i32_1 = arith.constant 0 : i32
    %c0_i32_2 = arith.constant 0 : i32
    return %c0_i32, %c0_i32_0, %c0_i32_1 : i32, i32, i32
  }
  func.func @transform_2(%arg0: i32) -> (i32, i32, i32) {
    %c0_i32 = arith.constant 0 : i32
    %c0_i32_0 = arith.constant 0 : i32
    %c0_i32_1 = arith.constant 0 : i32
    %c0_i32_2 = arith.constant 0 : i32
    return %c0_i32, %c0_i32_0, %c0_i32_1 : i32, i32, i32
  }
  func.func @transform_3(%arg0: i32) -> (i32, i32, i32, i32) {
    %c0_i32 = arith.constant 0 : i32
    %c0_i32_0 = arith.constant 0 : i32
    %c0_i32_1 = arith.constant 0 : i32
    %c0_i32_2 = arith.constant 0 : i32
    return %arg0, %c0_i32, %c0_i32_0, %c0_i32_1 : i32, i32, i32, i32
  }
}

module attributes {stable_mosaic.version = 11 : i64} {
  func.func @_attn_kernel(%arg0: i32, %arg1: memref<2x8x4x32xf32, #tpu.memory_space<vmem>>, %arg2: memref<2x8x4x128xf32, #tpu.memory_space<vmem>>) attributes {dimension_semantics = [#tpu.dimension_semantics<arbitrary>], iteration_bounds = array<i64: 1>, scalar_prefetch = 0 : i64, scratch_operands = 0 : i64, tpu.core_type = #tpu.core_type<tc>, window_params = [{pipeline_mode = #tpu.pipeline_mode<synchronous>, transform_indices = @transform_0, window_bounds = array<i64: 2, 8, 4, 32>}, {pipeline_mode = #tpu.pipeline_mode<synchronous>, transform_indices = @transform_1, window_bounds = array<i64: 2, 8, 4, 128>}]} {
    %c0 = arith.constant 0 : index
    %c0_0 = arith.constant 0 : index
    %c0_1 = arith.constant 0 : index
    %c0_2 = arith.constant 0 : index
    %0 = vector.load %arg1[%c0, %c0_0, %c0_1, %c0_2] : memref<2x8x4x32xf32, #tpu.memory_space<vmem>>, vector<1x8x4x32xf32>
    %1 = vector.shape_cast %0 : vector<1x8x4x32xf32> to vector<8x4x32xf32>
    %c1 = arith.constant 1 : index
    %c0_3 = arith.constant 0 : index
    %c0_4 = arith.constant 0 : index
    %c0_5 = arith.constant 0 : index
    %2 = vector.load %arg1[%c1, %c0_3, %c0_4, %c0_5] : memref<2x8x4x32xf32, #tpu.memory_space<vmem>>, vector<1x8x4x32xf32>
    %3 = vector.shape_cast %2 : vector<1x8x4x32xf32> to vector<8x4x32xf32>
    "tpu.trace_start"() <{level = 10 : i32, message = "tnh,tmh->tnm"}> : () -> ()
    %cst = arith.constant dense<0.000000e+00> : vector<8x4x4xf32>
    %4 = tpu.matmul %1, %3, %cst {dimension_numbers = #tpu.dot_dimension_numbers<[2], [2], [1], [1], [0, 0, 0, 1, 1, 1], [0], [0]>} : vector<8x4x32xf32>, vector<8x4x32xf32>, vector<8x4x4xf32> -> vector<8x4x4xf32>
    "tpu.trace_stop"() : () -> ()
    %cst_6 = arith.constant dense<0xFF800000> : vector<8x4xf32>
    %5 = vector.multi_reduction <maximumf>, %4, %cst_6 [2] : vector<8x4x4xf32> to vector<8x4xf32>
    %6 = vector.shape_cast %5 : vector<8x4xf32> to vector<8x4x1xf32>
    %7 = vector.broadcast %6 : vector<8x4x1xf32> to vector<8x4x4xf32>
    %8 = arith.subf %4, %7 : vector<8x4x4xf32>
    %9 = math.exp %8 : vector<8x4x4xf32>
    %cst_7 = arith.constant dense<0.000000e+00> : vector<8x4xf32>
    %10 = vector.multi_reduction <add>, %9, %cst_7 [2] : vector<8x4x4xf32> to vector<8x4xf32>
    %11 = vector.shape_cast %10 : vector<8x4xf32> to vector<8x4x1xf32>
    %12 = vector.broadcast %11 : vector<8x4x1xf32> to vector<8x4x4xf32>
    %13 = arith.divf %9, %12 : vector<8x4x4xf32>
    "tpu.trace_start"() <{level = 10 : i32, message = "tnm,tmh->tnh"}> : () -> ()
    %cst_8 = arith.constant dense<0.000000e+00> : vector<8x4x32xf32>
    %14 = tpu.matmul %13, %3, %cst_8 {dimension_numbers = #tpu.dot_dimension_numbers<[2], [1], [1], [2], [0, 0, 0, 1, 1, 2], [0], [0]>} : vector<8x4x4xf32>, vector<8x4x32xf32>, vector<8x4x32xf32> -> vector<8x4x32xf32>
    "tpu.trace_stop"() : () -> ()
    %cst_9 = arith.constant dense<0xFF800000> : vector<8x4xf32>
    %15 = vector.multi_reduction <maximumf>, %4, %cst_9 [1] : vector<8x4x4xf32> to vector<8x4xf32>
    %16 = vector.shape_cast %15 : vector<8x4xf32> to vector<8x1x4xf32>
    %17 = vector.broadcast %16 : vector<8x1x4xf32> to vector<8x4x4xf32>
    %18 = arith.subf %4, %17 : vector<8x4x4xf32>
    %19 = math.exp %18 : vector<8x4x4xf32>
    %cst_10 = arith.constant dense<0.000000e+00> : vector<8x4xf32>
    %20 = vector.multi_reduction <add>, %19, %cst_10 [1] : vector<8x4x4xf32> to vector<8x4xf32>
    %21 = vector.shape_cast %20 : vector<8x4xf32> to vector<8x1x4xf32>
    %22 = vector.broadcast %21 : vector<8x1x4xf32> to vector<8x4x4xf32>
    %23 = arith.divf %19, %22 : vector<8x4x4xf32>
    "tpu.trace_start"() <{level = 10 : i32, message = "tnm,tnh->tmh"}> : () -> ()
    %cst_11 = arith.constant dense<0.000000e+00> : vector<8x4x32xf32>
    %24 = tpu.matmul %23, %1, %cst_11 {dimension_numbers = #tpu.dot_dimension_numbers<[1], [1], [2], [2], [0, 0, 0, 2, 1, 2], [0], [0]>} : vector<8x4x4xf32>, vector<8x4x32xf32>, vector<8x4x32xf32> -> vector<8x4x32xf32>
    "tpu.trace_stop"() : () -> ()
    %25 = arith.subf %1, %14 : vector<8x4x32xf32>
    %26 = arith.mulf %1, %14 : vector<8x4x32xf32>
    %27 = tpu.concatenate %1, %14, %25, %26 in 2 : vector<8x4x32xf32>, vector<8x4x32xf32>, vector<8x4x32xf32>, vector<8x4x32xf32> -> vector<8x4x128xf32>
    %c0_12 = arith.constant 0 : index
    %c0_13 = arith.constant 0 : index
    %c0_14 = arith.constant 0 : index
    %c0_15 = arith.constant 0 : index
    %28 = vector.load %arg2[%c0_12, %c0_13, %c0_14, %c0_15] : memref<2x8x4x128xf32, #tpu.memory_space<vmem>>, vector<1x8x4x128xf32>
    %29 = vector.shape_cast %28 : vector<1x8x4x128xf32> to vector<8x4x128xf32>
    %30 = vector.shape_cast %27 : vector<8x4x128xf32> to vector<1x8x4x128xf32>
    tpu.vector_store %arg2[%c0_12, %c0_13, %c0_14, %c0_15], %30 {strides = array<i32>} : memref<2x8x4x128xf32, #tpu.memory_space<vmem>>, vector<1x8x4x128xf32>,
    %31 = arith.subf %3, %24 : vector<8x4x32xf32>
    %32 = arith.mulf %3, %24 : vector<8x4x32xf32>
    %33 = tpu.concatenate %3, %24, %31, %32 in 2 : vector<8x4x32xf32>, vector<8x4x32xf32>, vector<8x4x32xf32>, vector<8x4x32xf32> -> vector<8x4x128xf32>
    %c1_16 = arith.constant 1 : index
    %c0_17 = arith.constant 0 : index
    %c0_18 = arith.constant 0 : index
    %c0_19 = arith.constant 0 : index
    %34 = vector.load %arg2[%c1_16, %c0_17, %c0_18, %c0_19] : memref<2x8x4x128xf32, #tpu.memory_space<vmem>>, vector<1x8x4x128xf32>
    %35 = vector.shape_cast %34 : vector<1x8x4x128xf32> to vector<8x4x128xf32>
    %36 = vector.shape_cast %33 : vector<8x4x128xf32> to vector<1x8x4x128xf32>
    tpu.vector_store %arg2[%c1_16, %c0_17, %c0_18, %c0_19], %36 {strides = array<i32>} : memref<2x8x4x128xf32, #tpu.memory_space<vmem>>, vector<1x8x4x128xf32>,
    return
  }
  func.func @transform_0(%arg0: i32) -> (i32, i32, i32, i32) {
    %c0_i32 = arith.constant 0 : i32
    %c0_i32_0 = arith.constant 0 : i32
    %c0_i32_1 = arith.constant 0 : i32
    %c0_i32_2 = arith.constant 0 : i32
    %c0_i32_3 = arith.constant 0 : i32
    return %c0_i32, %c0_i32_0, %c0_i32_1, %c0_i32_2 : i32, i32, i32, i32
  }
  func.func @transform_1(%arg0: i32) -> (i32, i32, i32, i32) {
    %c0_i32 = arith.constant 0 : i32
    %c0_i32_0 = arith.constant 0 : i32
    %c0_i32_1 = arith.constant 0 : i32
    %c0_i32_2 = arith.constant 0 : i32
    %c0_i32_3 = arith.constant 0 : i32
    return %c0_i32, %c0_i32_0, %c0_i32_1, %c0_i32_2 : i32, i32, i32, i32
  }
}

module attributes {stable_mosaic.version = 11 : i64} {
  func.func @_bilstm_kernel(%arg0: i32, %arg1: memref<1x8x4x16xf32, #tpu.memory_space<vmem>>, %arg2: memref<2x32x64xf32, #tpu.memory_space<vmem>>, %arg3: memref<2x1x64xf32, #tpu.memory_space<vmem>>, %arg4: memref<1x8x4x32xf32, #tpu.memory_space<vmem>>, %arg5: memref<8x4x16xf32, #tpu.memory_space<vmem>>, %arg6: memref<8x4x16xf32, #tpu.memory_space<vmem>>) attributes {dimension_semantics = [#tpu.dimension_semantics<parallel>], iteration_bounds = array<i64: 2>, scalar_prefetch = 0 : i64, scratch_operands = 2 : i64, tpu.core_type = #tpu.core_type<tc>, window_params = [{transform_indices = @transform_0, window_bounds = array<i64: 1, 8, 4, 16>}, {pipeline_mode = #tpu.pipeline_mode<synchronous>, transform_indices = @transform_1, window_bounds = array<i64: 2, 32, 64>}, {pipeline_mode = #tpu.pipeline_mode<synchronous>, transform_indices = @transform_2, window_bounds = array<i64: 2, 1, 64>}, {transform_indices = @transform_3, window_bounds = array<i64: 1, 8, 4, 32>}]} {
    %c0 = arith.constant 0 : index
    %c0_0 = arith.constant 0 : index
    %c0_1 = arith.constant 0 : index
    %0 = vector.load %arg2[%c0, %c0_0, %c0_1] : memref<2x32x64xf32, #tpu.memory_space<vmem>>, vector<1x32x64xf32>
    %1 = vector.shape_cast %0 : vector<1x32x64xf32> to vector<32x64xf32>
    %c1 = arith.constant 1 : index
    %c0_2 = arith.constant 0 : index
    %c0_3 = arith.constant 0 : index
    %2 = vector.load %arg2[%c1, %c0_2, %c0_3] : memref<2x32x64xf32, #tpu.memory_space<vmem>>, vector<1x32x64xf32>
    %3 = vector.shape_cast %2 : vector<1x32x64xf32> to vector<32x64xf32>
    %c0_4 = arith.constant 0 : index
    %c0_5 = arith.constant 0 : index
    %c0_6 = arith.constant 0 : index
    %4 = vector.load %arg3[%c0_4, %c0_5, %c0_6] : memref<2x1x64xf32, #tpu.memory_space<vmem>>, vector<1x1x64xf32>
    %5 = vector.shape_cast %4 : vector<1x1x64xf32> to vector<1x64xf32>
    %c1_7 = arith.constant 1 : index
    %c0_8 = arith.constant 0 : index
    %c0_9 = arith.constant 0 : index
    %6 = vector.load %arg3[%c1_7, %c0_8, %c0_9] : memref<2x1x64xf32, #tpu.memory_space<vmem>>, vector<1x1x64xf32>
    %7 = vector.shape_cast %6 : vector<1x1x64xf32> to vector<1x64xf32>
    %cst = arith.constant 0.000000e+00 : f32
    %8 = vector.broadcast %cst : f32 to vector<4x16xf32>
    %c0_10 = arith.constant 0 : index
    %c0_11 = arith.constant 0 : index
    %c0_12 = arith.constant 0 : index
    %c0_13 = arith.constant 0 : index
    %9 = vector.load %arg1[%c0_10, %c0_11, %c0_12, %c0_13] : memref<1x8x4x16xf32, #tpu.memory_space<vmem>>, vector<1x1x4x16xf32>
    %10 = vector.shape_cast %9 : vector<1x1x4x16xf32> to vector<4x16xf32>
    %11 = tpu.concatenate %10, %8 in 1 : vector<4x16xf32>, vector<4x16xf32> -> vector<4x32xf32>
    %cst_14 = arith.constant dense<0.000000e+00> : vector<4x64xf32>
    %12 = tpu.matmul %11, %1, %cst_14 {dimension_numbers = #tpu.dot_dimension_numbers<[1], [0], [0], [1], [0, 0, 1, 1], [], []>} : vector<4x32xf32>, vector<32x64xf32>, vector<4x64xf32> -> vector<4x64xf32>
    %13 = vector.broadcast %5 : vector<1x64xf32> to vector<4x64xf32>
    %14 = arith.addf %12, %13 : vector<4x64xf32>
    %15 = vector.extract_strided_slice %14 {offsets = [0, 0], sizes = [4, 16], strides = [1, 1]} : vector<4x64xf32> to vector<4x16xf32>
    %16 = arith.negf %15 : vector<4x16xf32>
    %17 = math.exp %16 : vector<4x16xf32>
    %cst_15 = arith.constant 1.000000e+00 : f32
    %18 = vector.broadcast %cst_15 : f32 to vector<4x16xf32>
    %19 = arith.addf %18, %17 : vector<4x16xf32>
    %20 = arith.divf %18, %19 : vector<4x16xf32>
    %21 = vector.extract_strided_slice %14 {offsets = [0, 16], sizes = [4, 16], strides = [1, 1]} : vector<4x64xf32> to vector<4x16xf32>
    %22 = arith.negf %21 : vector<4x16xf32>
    %23 = math.exp %22 : vector<4x16xf32>
    %cst_16 = arith.constant 1.000000e+00 : f32
    %24 = vector.broadcast %cst_16 : f32 to vector<4x16xf32>
    %25 = arith.addf %24, %23 : vector<4x16xf32>
    %26 = arith.divf %24, %25 : vector<4x16xf32>
    %27 = vector.extract_strided_slice %14 {offsets = [0, 32], sizes = [4, 16], strides = [1, 1]} : vector<4x64xf32> to vector<4x16xf32>
    %28 = math.tanh %27 : vector<4x16xf32>
    %29 = vector.extract_strided_slice %14 {offsets = [0, 48], sizes = [4, 16], strides = [1, 1]} : vector<4x64xf32> to vector<4x16xf32>
    %30 = arith.negf %29 : vector<4x16xf32>
    %31 = math.exp %30 : vector<4x16xf32>
    %cst_17 = arith.constant 1.000000e+00 : f32
    %32 = vector.broadcast %cst_17 : f32 to vector<4x16xf32>
    %33 = arith.addf %32, %31 : vector<4x16xf32>
    %34 = arith.divf %32, %33 : vector<4x16xf32>
    %35 = arith.mulf %26, %8 : vector<4x16xf32>
    %36 = arith.mulf %20, %28 : vector<4x16xf32>
    %37 = arith.addf %35, %36 : vector<4x16xf32>
    %38 = math.tanh %37 : vector<4x16xf32>
    %39 = arith.mulf %34, %38 : vector<4x16xf32>
    %c0_18 = arith.constant 0 : index
    %c7 = arith.constant 7 : index
    %c0_19 = arith.constant 0 : index
    %c0_20 = arith.constant 0 : index
    %40 = vector.load %arg1[%c0_18, %c7, %c0_19, %c0_20] : memref<1x8x4x16xf32, #tpu.memory_space<vmem>>, vector<1x1x4x16xf32>
    %41 = vector.shape_cast %40 : vector<1x1x4x16xf32> to vector<4x16xf32>
    %42 = tpu.concatenate %41, %8 in 1 : vector<4x16xf32>, vector<4x16xf32> -> vector<4x32xf32>
    %cst_21 = arith.constant dense<0.000000e+00> : vector<4x64xf32>
    %43 = tpu.matmul %42, %3, %cst_21 {dimension_numbers = #tpu.dot_dimension_numbers<[1], [0], [0], [1], [0, 0, 1, 1], [], []>} : vector<4x32xf32>, vector<32x64xf32>, vector<4x64xf32> -> vector<4x64xf32>
    %44 = vector.broadcast %7 : vector<1x64xf32> to vector<4x64xf32>
    %45 = arith.addf %43, %44 : vector<4x64xf32>
    %46 = vector.extract_strided_slice %45 {offsets = [0, 0], sizes = [4, 16], strides = [1, 1]} : vector<4x64xf32> to vector<4x16xf32>
    %47 = arith.negf %46 : vector<4x16xf32>
    %48 = math.exp %47 : vector<4x16xf32>
    %cst_22 = arith.constant 1.000000e+00 : f32
    %49 = vector.broadcast %cst_22 : f32 to vector<4x16xf32>
    %50 = arith.addf %49, %48 : vector<4x16xf32>
    %51 = arith.divf %49, %50 : vector<4x16xf32>
    %52 = vector.extract_strided_slice %45 {offsets = [0, 16], sizes = [4, 16], strides = [1, 1]} : vector<4x64xf32> to vector<4x16xf32>
    %53 = arith.negf %52 : vector<4x16xf32>
    %54 = math.exp %53 : vector<4x16xf32>
    %cst_23 = arith.constant 1.000000e+00 : f32
    %55 = vector.broadcast %cst_23 : f32 to vector<4x16xf32>
    %56 = arith.addf %55, %54 : vector<4x16xf32>
    %57 = arith.divf %55, %56 : vector<4x16xf32>
    %58 = vector.extract_strided_slice %45 {offsets = [0, 32], sizes = [4, 16], strides = [1, 1]} : vector<4x64xf32> to vector<4x16xf32>
    %59 = math.tanh %58 : vector<4x16xf32>
    %60 = vector.extract_strided_slice %45 {offsets = [0, 48], sizes = [4, 16], strides = [1, 1]} : vector<4x64xf32> to vector<4x16xf32>
    %61 = arith.negf %60 : vector<4x16xf32>
    %62 = math.exp %61 : vector<4x16xf32>
    %cst_24 = arith.constant 1.000000e+00 : f32
    %63 = vector.broadcast %cst_24 : f32 to vector<4x16xf32>
    %64 = arith.addf %63, %62 : vector<4x16xf32>
    %65 = arith.divf %63, %64 : vector<4x16xf32>
    %66 = arith.mulf %57, %8 : vector<4x16xf32>
    %67 = arith.mulf %51, %59 : vector<4x16xf32>
    %68 = arith.addf %66, %67 : vector<4x16xf32>
    %69 = math.tanh %68 : vector<4x16xf32>
    %70 = arith.mulf %65, %69 : vector<4x16xf32>
    %c0_25 = arith.constant 0 : index
    %c0_26 = arith.constant 0 : index
    %c0_27 = arith.constant 0 : index
    %71 = vector.load %arg5[%c0_25, %c0_26, %c0_27] : memref<8x4x16xf32, #tpu.memory_space<vmem>>, vector<1x4x16xf32>
    %72 = vector.shape_cast %71 : vector<1x4x16xf32> to vector<4x16xf32>
    %73 = vector.shape_cast %39 : vector<4x16xf32> to vector<1x4x16xf32>
    tpu.vector_store %arg5[%c0_25, %c0_26, %c0_27], %73 {strides = array<i32>} : memref<8x4x16xf32, #tpu.memory_space<vmem>>, vector<1x4x16xf32>,
    %c7_28 = arith.constant 7 : index
    %c0_29 = arith.constant 0 : index
    %c0_30 = arith.constant 0 : index
    %74 = vector.load %arg6[%c7_28, %c0_29, %c0_30] : memref<8x4x16xf32, #tpu.memory_space<vmem>>, vector<1x4x16xf32>
    %75 = vector.shape_cast %74 : vector<1x4x16xf32> to vector<4x16xf32>
    %76 = vector.shape_cast %70 : vector<4x16xf32> to vector<1x4x16xf32>
    tpu.vector_store %arg6[%c7_28, %c0_29, %c0_30], %76 {strides = array<i32>} : memref<8x4x16xf32, #tpu.memory_space<vmem>>, vector<1x4x16xf32>,
    %c0_31 = arith.constant 0 : index
    %c1_32 = arith.constant 1 : index
    %c0_33 = arith.constant 0 : index
    %c0_34 = arith.constant 0 : index
    %77 = vector.load %arg1[%c0_31, %c1_32, %c0_33, %c0_34] : memref<1x8x4x16xf32, #tpu.memory_space<vmem>>, vector<1x1x4x16xf32>
    %78 = vector.shape_cast %77 : vector<1x1x4x16xf32> to vector<4x16xf32>
    %79 = tpu.concatenate %78, %39 in 1 : vector<4x16xf32>, vector<4x16xf32> -> vector<4x32xf32>
    %cst_35 = arith.constant dense<0.000000e+00> : vector<4x64xf32>
    %80 = tpu.matmul %79, %1, %cst_35 {dimension_numbers = #tpu.dot_dimension_numbers<[1], [0], [0], [1], [0, 0, 1, 1], [], []>} : vector<4x32xf32>, vector<32x64xf32>, vector<4x64xf32> -> vector<4x64xf32>
    %81 = vector.broadcast %5 : vector<1x64xf32> to vector<4x64xf32>
    %82 = arith.addf %80, %81 : vector<4x64xf32>
    %83 = vector.extract_strided_slice %82 {offsets = [0, 0], sizes = [4, 16], strides = [1, 1]} : vector<4x64xf32> to vector<4x16xf32>
    %84 = arith.negf %83 : vector<4x16xf32>
    %85 = math.exp %84 : vector<4x16xf32>
    %cst_36 = arith.constant 1.000000e+00 : f32
    %86 = vector.broadcast %cst_36 : f32 to vector<4x16xf32>
    %87 = arith.addf %86, %85 : vector<4x16xf32>
    %88 = arith.divf %86, %87 : vector<4x16xf32>
    %89 = vector.extract_strided_slice %82 {offsets = [0, 16], sizes = [4, 16], strides = [1, 1]} : vector<4x64xf32> to vector<4x16xf32>
    %90 = arith.negf %89 : vector<4x16xf32>
    %91 = math.exp %90 : vector<4x16xf32>
    %cst_37 = arith.constant 1.000000e+00 : f32
    %92 = vector.broadcast %cst_37 : f32 to vector<4x16xf32>
    %93 = arith.addf %92, %91 : vector<4x16xf32>
    %94 = arith.divf %92, %93 : vector<4x16xf32>
    %95 = vector.extract_strided_slice %82 {offsets = [0, 32], sizes = [4, 16], strides = [1, 1]} : vector<4x64xf32> to vector<4x16xf32>
    %96 = math.tanh %95 : vector<4x16xf32>
    %97 = vector.extract_strided_slice %82 {offsets = [0, 48], sizes = [4, 16], strides = [1, 1]} : vector<4x64xf32> to vector<4x16xf32>
    %98 = arith.negf %97 : vector<4x16xf32>
    %99 = math.exp %98 : vector<4x16xf32>
    %cst_38 = arith.constant 1.000000e+00 : f32
    %100 = vector.broadcast %cst_38 : f32 to vector<4x16xf32>
    %101 = arith.addf %100, %99 : vector<4x16xf32>
    %102 = arith.divf %100, %101 : vector<4x16xf32>
    %103 = arith.mulf %94, %37 : vector<4x16xf32>
    %104 = arith.mulf %88, %96 : vector<4x16xf32>
    %105 = arith.addf %103, %104 : vector<4x16xf32>
    %106 = math.tanh %105 : vector<4x16xf32>
    %107 = arith.mulf %102, %106 : vector<4x16xf32>
    %c0_39 = arith.constant 0 : index
    %c6 = arith.constant 6 : index
    %c0_40 = arith.constant 0 : index
    %c0_41 = arith.constant 0 : index
    %108 = vector.load %arg1[%c0_39, %c6, %c0_40, %c0_41] : memref<1x8x4x16xf32, #tpu.memory_space<vmem>>, vector<1x1x4x16xf32>
    %109 = vector.shape_cast %108 : vector<1x1x4x16xf32> to vector<4x16xf32>
    %110 = tpu.concatenate %109, %70 in 1 : vector<4x16xf32>, vector<4x16xf32> -> vector<4x32xf32>
    %cst_42 = arith.constant dense<0.000000e+00> : vector<4x64xf32>
    %111 = tpu.matmul %110, %3, %cst_42 {dimension_numbers = #tpu.dot_dimension_numbers<[1], [0], [0], [1], [0, 0, 1, 1], [], []>} : vector<4x32xf32>, vector<32x64xf32>, vector<4x64xf32> -> vector<4x64xf32>
    %112 = vector.broadcast %7 : vector<1x64xf32> to vector<4x64xf32>
    %113 = arith.addf %111, %112 : vector<4x64xf32>
    %114 = vector.extract_strided_slice %113 {offsets = [0, 0], sizes = [4, 16], strides = [1, 1]} : vector<4x64xf32> to vector<4x16xf32>
    %115 = arith.negf %114 : vector<4x16xf32>
    %116 = math.exp %115 : vector<4x16xf32>
    %cst_43 = arith.constant 1.000000e+00 : f32
    %117 = vector.broadcast %cst_43 : f32 to vector<4x16xf32>
    %118 = arith.addf %117, %116 : vector<4x16xf32>
    %119 = arith.divf %117, %118 : vector<4x16xf32>
    %120 = vector.extract_strided_slice %113 {offsets = [0, 16], sizes = [4, 16], strides = [1, 1]} : vector<4x64xf32> to vector<4x16xf32>
    %121 = arith.negf %120 : vector<4x16xf32>
    %122 = math.exp %121 : vector<4x16xf32>
    %cst_44 = arith.constant 1.000000e+00 : f32
    %123 = vector.broadcast %cst_44 : f32 to vector<4x16xf32>
    %124 = arith.addf %123, %122 : vector<4x16xf32>
    %125 = arith.divf %123, %124 : vector<4x16xf32>
    %126 = vector.extract_strided_slice %113 {offsets = [0, 32], sizes = [4, 16], strides = [1, 1]} : vector<4x64xf32> to vector<4x16xf32>
    %127 = math.tanh %126 : vector<4x16xf32>
    %128 = vector.extract_strided_slice %113 {offsets = [0, 48], sizes = [4, 16], strides = [1, 1]} : vector<4x64xf32> to vector<4x16xf32>
    %129 = arith.negf %128 : vector<4x16xf32>
    %130 = math.exp %129 : vector<4x16xf32>
    %cst_45 = arith.constant 1.000000e+00 : f32
    %131 = vector.broadcast %cst_45 : f32 to vector<4x16xf32>
    %132 = arith.addf %131, %130 : vector<4x16xf32>
    %133 = arith.divf %131, %132 : vector<4x16xf32>
    %134 = arith.mulf %125, %68 : vector<4x16xf32>
    %135 = arith.mulf %119, %127 : vector<4x16xf32>
    %136 = arith.addf %134, %135 : vector<4x16xf32>
    %137 = math.tanh %136 : vector<4x16xf32>
    %138 = arith.mulf %133, %137 : vector<4x16xf32>
    %c1_46 = arith.constant 1 : index
    %c0_47 = arith.constant 0 : index
    %c0_48 = arith.constant 0 : index
    %139 = vector.load %arg5[%c1_46, %c0_47, %c0_48] : memref<8x4x16xf32, #tpu.memory_space<vmem>>, vector<1x4x16xf32>
    %140 = vector.shape_cast %139 : vector<1x4x16xf32> to vector<4x16xf32>
    %141 = vector.shape_cast %107 : vector<4x16xf32> to vector<1x4x16xf32>
    tpu.vector_store %arg5[%c1_46, %c0_47, %c0_48], %141 {strides = array<i32>} : memref<8x4x16xf32, #tpu.memory_space<vmem>>, vector<1x4x16xf32>,
    %c6_49 = arith.constant 6 : index
    %c0_50 = arith.constant 0 : index
    %c0_51 = arith.constant 0 : index
    %142 = vector.load %arg6[%c6_49, %c0_50, %c0_51] : memref<8x4x16xf32, #tpu.memory_space<vmem>>, vector<1x4x16xf32>
    %143 = vector.shape_cast %142 : vector<1x4x16xf32> to vector<4x16xf32>
    %144 = vector.shape_cast %138 : vector<4x16xf32> to vector<1x4x16xf32>
    tpu.vector_store %arg6[%c6_49, %c0_50, %c0_51], %144 {strides = array<i32>} : memref<8x4x16xf32, #tpu.memory_space<vmem>>, vector<1x4x16xf32>,
    %c0_52 = arith.constant 0 : index
    %c2 = arith.constant 2 : index
    %c0_53 = arith.constant 0 : index
    %c0_54 = arith.constant 0 : index
    %145 = vector.load %arg1[%c0_52, %c2, %c0_53, %c0_54] : memref<1x8x4x16xf32, #tpu.memory_space<vmem>>, vector<1x1x4x16xf32>
    %146 = vector.shape_cast %145 : vector<1x1x4x16xf32> to vector<4x16xf32>
    %147 = tpu.concatenate %146, %107 in 1 : vector<4x16xf32>, vector<4x16xf32> -> vector<4x32xf32>
    %cst_55 = arith.constant dense<0.000000e+00> : vector<4x64xf32>
    %148 = tpu.matmul %147, %1, %cst_55 {dimension_numbers = #tpu.dot_dimension_numbers<[1], [0], [0], [1], [0, 0, 1, 1], [], []>} : vector<4x32xf32>, vector<32x64xf32>, vector<4x64xf32> -> vector<4x64xf32>
    %149 = vector.broadcast %5 : vector<1x64xf32> to vector<4x64xf32>
    %150 = arith.addf %148, %149 : vector<4x64xf32>
    %151 = vector.extract_strided_slice %150 {offsets = [0, 0], sizes = [4, 16], strides = [1, 1]} : vector<4x64xf32> to vector<4x16xf32>
    %152 = arith.negf %151 : vector<4x16xf32>
    %153 = math.exp %152 : vector<4x16xf32>
    %cst_56 = arith.constant 1.000000e+00 : f32
    %154 = vector.broadcast %cst_56 : f32 to vector<4x16xf32>
    %155 = arith.addf %154, %153 : vector<4x16xf32>
    %156 = arith.divf %154, %155 : vector<4x16xf32>
    %157 = vector.extract_strided_slice %150 {offsets = [0, 16], sizes = [4, 16], strides = [1, 1]} : vector<4x64xf32> to vector<4x16xf32>
    %158 = arith.negf %157 : vector<4x16xf32>
    %159 = math.exp %158 : vector<4x16xf32>
    %cst_57 = arith.constant 1.000000e+00 : f32
    %160 = vector.broadcast %cst_57 : f32 to vector<4x16xf32>
    %161 = arith.addf %160, %159 : vector<4x16xf32>
    %162 = arith.divf %160, %161 : vector<4x16xf32>
    %163 = vector.extract_strided_slice %150 {offsets = [0, 32], sizes = [4, 16], strides = [1, 1]} : vector<4x64xf32> to vector<4x16xf32>
    %164 = math.tanh %163 : vector<4x16xf32>
    %165 = vector.extract_strided_slice %150 {offsets = [0, 48], sizes = [4, 16], strides = [1, 1]} : vector<4x64xf32> to vector<4x16xf32>
    %166 = arith.negf %165 : vector<4x16xf32>
    %167 = math.exp %166 : vector<4x16xf32>
    %cst_58 = arith.constant 1.000000e+00 : f32
    %168 = vector.broadcast %cst_58 : f32 to vector<4x16xf32>
    %169 = arith.addf %168, %167 : vector<4x16xf32>
    %170 = arith.divf %168, %169 : vector<4x16xf32>
    %171 = arith.mulf %162, %105 : vector<4x16xf32>
    %172 = arith.mulf %156, %164 : vector<4x16xf32>
    %173 = arith.addf %171, %172 : vector<4x16xf32>
    %174 = math.tanh %173 : vector<4x16xf32>
    %175 = arith.mulf %170, %174 : vector<4x16xf32>
    %c0_59 = arith.constant 0 : index
    %c5 = arith.constant 5 : index
    %c0_60 = arith.constant 0 : index
    %c0_61 = arith.constant 0 : index
    %176 = vector.load %arg1[%c0_59, %c5, %c0_60, %c0_61] : memref<1x8x4x16xf32, #tpu.memory_space<vmem>>, vector<1x1x4x16xf32>
    %177 = vector.shape_cast %176 : vector<1x1x4x16xf32> to vector<4x16xf32>
    %178 = tpu.concatenate %177, %138 in 1 : vector<4x16xf32>, vector<4x16xf32> -> vector<4x32xf32>
    %cst_62 = arith.constant dense<0.000000e+00> : vector<4x64xf32>
    %179 = tpu.matmul %178, %3, %cst_62 {dimension_numbers = #tpu.dot_dimension_numbers<[1], [0], [0], [1], [0, 0, 1, 1], [], []>} : vector<4x32xf32>, vector<32x64xf32>, vector<4x64xf32> -> vector<4x64xf32>
    %180 = vector.broadcast %7 : vector<1x64xf32> to vector<4x64xf32>
    %181 = arith.addf %179, %180 : vector<4x64xf32>
    %182 = vector.extract_strided_slice %181 {offsets = [0, 0], sizes = [4, 16], strides = [1, 1]} : vector<4x64xf32> to vector<4x16xf32>
    %183 = arith.negf %182 : vector<4x16xf32>
    %184 = math.exp %183 : vector<4x16xf32>
    %cst_63 = arith.constant 1.000000e+00 : f32
    %185 = vector.broadcast %cst_63 : f32 to vector<4x16xf32>
    %186 = arith.addf %185, %184 : vector<4x16xf32>
    %187 = arith.divf %185, %186 : vector<4x16xf32>
    %188 = vector.extract_strided_slice %181 {offsets = [0, 16], sizes = [4, 16], strides = [1, 1]} : vector<4x64xf32> to vector<4x16xf32>
    %189 = arith.negf %188 : vector<4x16xf32>
    %190 = math.exp %189 : vector<4x16xf32>
    %cst_64 = arith.constant 1.000000e+00 : f32
    %191 = vector.broadcast %cst_64 : f32 to vector<4x16xf32>
    %192 = arith.addf %191, %190 : vector<4x16xf32>
    %193 = arith.divf %191, %192 : vector<4x16xf32>
    %194 = vector.extract_strided_slice %181 {offsets = [0, 32], sizes = [4, 16], strides = [1, 1]} : vector<4x64xf32> to vector<4x16xf32>
    %195 = math.tanh %194 : vector<4x16xf32>
    %196 = vector.extract_strided_slice %181 {offsets = [0, 48], sizes = [4, 16], strides = [1, 1]} : vector<4x64xf32> to vector<4x16xf32>
    %197 = arith.negf %196 : vector<4x16xf32>
    %198 = math.exp %197 : vector<4x16xf32>
    %cst_65 = arith.constant 1.000000e+00 : f32
    %199 = vector.broadcast %cst_65 : f32 to vector<4x16xf32>
    %200 = arith.addf %199, %198 : vector<4x16xf32>
    %201 = arith.divf %199, %200 : vector<4x16xf32>
    %202 = arith.mulf %193, %136 : vector<4x16xf32>
    %203 = arith.mulf %187, %195 : vector<4x16xf32>
    %204 = arith.addf %202, %203 : vector<4x16xf32>
    %205 = math.tanh %204 : vector<4x16xf32>
    %206 = arith.mulf %201, %205 : vector<4x16xf32>
    %c2_66 = arith.constant 2 : index
    %c0_67 = arith.constant 0 : index
    %c0_68 = arith.constant 0 : index
    %207 = vector.load %arg5[%c2_66, %c0_67, %c0_68] : memref<8x4x16xf32, #tpu.memory_space<vmem>>, vector<1x4x16xf32>
    %208 = vector.shape_cast %207 : vector<1x4x16xf32> to vector<4x16xf32>
    %209 = vector.shape_cast %175 : vector<4x16xf32> to vector<1x4x16xf32>
    tpu.vector_store %arg5[%c2_66, %c0_67, %c0_68], %209 {strides = array<i32>} : memref<8x4x16xf32, #tpu.memory_space<vmem>>, vector<1x4x16xf32>,
    %c5_69 = arith.constant 5 : index
    %c0_70 = arith.constant 0 : index
    %c0_71 = arith.constant 0 : index
    %210 = vector.load %arg6[%c5_69, %c0_70, %c0_71] : memref<8x4x16xf32, #tpu.memory_space<vmem>>, vector<1x4x16xf32>
    %211 = vector.shape_cast %210 : vector<1x4x16xf32> to vector<4x16xf32>
    %212 = vector.shape_cast %206 : vector<4x16xf32> to vector<1x4x16xf32>
    tpu.vector_store %arg6[%c5_69, %c0_70, %c0_71], %212 {strides = array<i32>} : memref<8x4x16xf32, #tpu.memory_space<vmem>>, vector<1x4x16xf32>,
    %c0_72 = arith.constant 0 : index
    %c3 = arith.constant 3 : index
    %c0_73 = arith.constant 0 : index
    %c0_74 = arith.constant 0 : index
    %213 = vector.load %arg1[%c0_72, %c3, %c0_73, %c0_74] : memref<1x8x4x16xf32, #tpu.memory_space<vmem>>, vector<1x1x4x16xf32>
    %214 = vector.shape_cast %213 : vector<1x1x4x16xf32> to vector<4x16xf32>
    %215 = tpu.concatenate %214, %175 in 1 : vector<4x16xf32>, vector<4x16xf32> -> vector<4x32xf32>
    %cst_75 = arith.constant dense<0.000000e+00> : vector<4x64xf32>
    %216 = tpu.matmul %215, %1, %cst_75 {dimension_numbers = #tpu.dot_dimension_numbers<[1], [0], [0], [1], [0, 0, 1, 1], [], []>} : vector<4x32xf32>, vector<32x64xf32>, vector<4x64xf32> -> vector<4x64xf32>
    %217 = vector.broadcast %5 : vector<1x64xf32> to vector<4x64xf32>
    %218 = arith.addf %216, %217 : vector<4x64xf32>
    %219 = vector.extract_strided_slice %218 {offsets = [0, 0], sizes = [4, 16], strides = [1, 1]} : vector<4x64xf32> to vector<4x16xf32>
    %220 = arith.negf %219 : vector<4x16xf32>
    %221 = math.exp %220 : vector<4x16xf32>
    %cst_76 = arith.constant 1.000000e+00 : f32
    %222 = vector.broadcast %cst_76 : f32 to vector<4x16xf32>
    %223 = arith.addf %222, %221 : vector<4x16xf32>
    %224 = arith.divf %222, %223 : vector<4x16xf32>
    %225 = vector.extract_strided_slice %218 {offsets = [0, 16], sizes = [4, 16], strides = [1, 1]} : vector<4x64xf32> to vector<4x16xf32>
    %226 = arith.negf %225 : vector<4x16xf32>
    %227 = math.exp %226 : vector<4x16xf32>
    %cst_77 = arith.constant 1.000000e+00 : f32
    %228 = vector.broadcast %cst_77 : f32 to vector<4x16xf32>
    %229 = arith.addf %228, %227 : vector<4x16xf32>
    %230 = arith.divf %228, %229 : vector<4x16xf32>
    %231 = vector.extract_strided_slice %218 {offsets = [0, 32], sizes = [4, 16], strides = [1, 1]} : vector<4x64xf32> to vector<4x16xf32>
    %232 = math.tanh %231 : vector<4x16xf32>
    %233 = vector.extract_strided_slice %218 {offsets = [0, 48], sizes = [4, 16], strides = [1, 1]} : vector<4x64xf32> to vector<4x16xf32>
    %234 = arith.negf %233 : vector<4x16xf32>
    %235 = math.exp %234 : vector<4x16xf32>
    %cst_78 = arith.constant 1.000000e+00 : f32
    %236 = vector.broadcast %cst_78 : f32 to vector<4x16xf32>
    %237 = arith.addf %236, %235 : vector<4x16xf32>
    %238 = arith.divf %236, %237 : vector<4x16xf32>
    %239 = arith.mulf %230, %173 : vector<4x16xf32>
    %240 = arith.mulf %224, %232 : vector<4x16xf32>
    %241 = arith.addf %239, %240 : vector<4x16xf32>
    %242 = math.tanh %241 : vector<4x16xf32>
    %243 = arith.mulf %238, %242 : vector<4x16xf32>
    %c0_79 = arith.constant 0 : index
    %c4 = arith.constant 4 : index
    %c0_80 = arith.constant 0 : index
    %c0_81 = arith.constant 0 : index
    %244 = vector.load %arg1[%c0_79, %c4, %c0_80, %c0_81] : memref<1x8x4x16xf32, #tpu.memory_space<vmem>>, vector<1x1x4x16xf32>
    %245 = vector.shape_cast %244 : vector<1x1x4x16xf32> to vector<4x16xf32>
    %246 = tpu.concatenate %245, %206 in 1 : vector<4x16xf32>, vector<4x16xf32> -> vector<4x32xf32>
    %cst_82 = arith.constant dense<0.000000e+00> : vector<4x64xf32>
    %247 = tpu.matmul %246, %3, %cst_82 {dimension_numbers = #tpu.dot_dimension_numbers<[1], [0], [0], [1], [0, 0, 1, 1], [], []>} : vector<4x32xf32>, vector<32x64xf32>, vector<4x64xf32> -> vector<4x64xf32>
    %248 = vector.broadcast %7 : vector<1x64xf32> to vector<4x64xf32>
    %249 = arith.addf %247, %248 : vector<4x64xf32>
    %250 = vector.extract_strided_slice %249 {offsets = [0, 0], sizes = [4, 16], strides = [1, 1]} : vector<4x64xf32> to vector<4x16xf32>
    %251 = arith.negf %250 : vector<4x16xf32>
    %252 = math.exp %251 : vector<4x16xf32>
    %cst_83 = arith.constant 1.000000e+00 : f32
    %253 = vector.broadcast %cst_83 : f32 to vector<4x16xf32>
    %254 = arith.addf %253, %252 : vector<4x16xf32>
    %255 = arith.divf %253, %254 : vector<4x16xf32>
    %256 = vector.extract_strided_slice %249 {offsets = [0, 16], sizes = [4, 16], strides = [1, 1]} : vector<4x64xf32> to vector<4x16xf32>
    %257 = arith.negf %256 : vector<4x16xf32>
    %258 = math.exp %257 : vector<4x16xf32>
    %cst_84 = arith.constant 1.000000e+00 : f32
    %259 = vector.broadcast %cst_84 : f32 to vector<4x16xf32>
    %260 = arith.addf %259, %258 : vector<4x16xf32>
    %261 = arith.divf %259, %260 : vector<4x16xf32>
    %262 = vector.extract_strided_slice %249 {offsets = [0, 32], sizes = [4, 16], strides = [1, 1]} : vector<4x64xf32> to vector<4x16xf32>
    %263 = math.tanh %262 : vector<4x16xf32>
    %264 = vector.extract_strided_slice %249 {offsets = [0, 48], sizes = [4, 16], strides = [1, 1]} : vector<4x64xf32> to vector<4x16xf32>
    %265 = arith.negf %264 : vector<4x16xf32>
    %266 = math.exp %265 : vector<4x16xf32>
    %cst_85 = arith.constant 1.000000e+00 : f32
    %267 = vector.broadcast %cst_85 : f32 to vector<4x16xf32>
    %268 = arith.addf %267, %266 : vector<4x16xf32>
    %269 = arith.divf %267, %268 : vector<4x16xf32>
    %270 = arith.mulf %261, %204 : vector<4x16xf32>
    %271 = arith.mulf %255, %263 : vector<4x16xf32>
    %272 = arith.addf %270, %271 : vector<4x16xf32>
    %273 = math.tanh %272 : vector<4x16xf32>
    %274 = arith.mulf %269, %273 : vector<4x16xf32>
    %c3_86 = arith.constant 3 : index
    %c0_87 = arith.constant 0 : index
    %c0_88 = arith.constant 0 : index
    %275 = vector.load %arg5[%c3_86, %c0_87, %c0_88] : memref<8x4x16xf32, #tpu.memory_space<vmem>>, vector<1x4x16xf32>
    %276 = vector.shape_cast %275 : vector<1x4x16xf32> to vector<4x16xf32>
    %277 = vector.shape_cast %243 : vector<4x16xf32> to vector<1x4x16xf32>
    tpu.vector_store %arg5[%c3_86, %c0_87, %c0_88], %277 {strides = array<i32>} : memref<8x4x16xf32, #tpu.memory_space<vmem>>, vector<1x4x16xf32>,
    %c4_89 = arith.constant 4 : index
    %c0_90 = arith.constant 0 : index
    %c0_91 = arith.constant 0 : index
    %278 = vector.load %arg6[%c4_89, %c0_90, %c0_91] : memref<8x4x16xf32, #tpu.memory_space<vmem>>, vector<1x4x16xf32>
    %279 = vector.shape_cast %278 : vector<1x4x16xf32> to vector<4x16xf32>
    %280 = vector.shape_cast %274 : vector<4x16xf32> to vector<1x4x16xf32>
    tpu.vector_store %arg6[%c4_89, %c0_90, %c0_91], %280 {strides = array<i32>} : memref<8x4x16xf32, #tpu.memory_space<vmem>>, vector<1x4x16xf32>,
    %c0_92 = arith.constant 0 : index
    %c4_93 = arith.constant 4 : index
    %c0_94 = arith.constant 0 : index
    %c0_95 = arith.constant 0 : index
    %281 = vector.load %arg1[%c0_92, %c4_93, %c0_94, %c0_95] : memref<1x8x4x16xf32, #tpu.memory_space<vmem>>, vector<1x1x4x16xf32>
    %282 = vector.shape_cast %281 : vector<1x1x4x16xf32> to vector<4x16xf32>
    %283 = tpu.concatenate %282, %243 in 1 : vector<4x16xf32>, vector<4x16xf32> -> vector<4x32xf32>
    %cst_96 = arith.constant dense<0.000000e+00> : vector<4x64xf32>
    %284 = tpu.matmul %283, %1, %cst_96 {dimension_numbers = #tpu.dot_dimension_numbers<[1], [0], [0], [1], [0, 0, 1, 1], [], []>} : vector<4x32xf32>, vector<32x64xf32>, vector<4x64xf32> -> vector<4x64xf32>
    %285 = vector.broadcast %5 : vector<1x64xf32> to vector<4x64xf32>
    %286 = arith.addf %284, %285 : vector<4x64xf32>
    %287 = vector.extract_strided_slice %286 {offsets = [0, 0], sizes = [4, 16], strides = [1, 1]} : vector<4x64xf32> to vector<4x16xf32>
    %288 = arith.negf %287 : vector<4x16xf32>
    %289 = math.exp %288 : vector<4x16xf32>
    %cst_97 = arith.constant 1.000000e+00 : f32
    %290 = vector.broadcast %cst_97 : f32 to vector<4x16xf32>
    %291 = arith.addf %290, %289 : vector<4x16xf32>
    %292 = arith.divf %290, %291 : vector<4x16xf32>
    %293 = vector.extract_strided_slice %286 {offsets = [0, 16], sizes = [4, 16], strides = [1, 1]} : vector<4x64xf32> to vector<4x16xf32>
    %294 = arith.negf %293 : vector<4x16xf32>
    %295 = math.exp %294 : vector<4x16xf32>
    %cst_98 = arith.constant 1.000000e+00 : f32
    %296 = vector.broadcast %cst_98 : f32 to vector<4x16xf32>
    %297 = arith.addf %296, %295 : vector<4x16xf32>
    %298 = arith.divf %296, %297 : vector<4x16xf32>
    %299 = vector.extract_strided_slice %286 {offsets = [0, 32], sizes = [4, 16], strides = [1, 1]} : vector<4x64xf32> to vector<4x16xf32>
    %300 = math.tanh %299 : vector<4x16xf32>
    %301 = vector.extract_strided_slice %286 {offsets = [0, 48], sizes = [4, 16], strides = [1, 1]} : vector<4x64xf32> to vector<4x16xf32>
    %302 = arith.negf %301 : vector<4x16xf32>
    %303 = math.exp %302 : vector<4x16xf32>
    %cst_99 = arith.constant 1.000000e+00 : f32
    %304 = vector.broadcast %cst_99 : f32 to vector<4x16xf32>
    %305 = arith.addf %304, %303 : vector<4x16xf32>
    %306 = arith.divf %304, %305 : vector<4x16xf32>
    %307 = arith.mulf %298, %241 : vector<4x16xf32>
    %308 = arith.mulf %292, %300 : vector<4x16xf32>
    %309 = arith.addf %307, %308 : vector<4x16xf32>
    %310 = math.tanh %309 : vector<4x16xf32>
    %311 = arith.mulf %306, %310 : vector<4x16xf32>
    %c0_100 = arith.constant 0 : index
    %c3_101 = arith.constant 3 : index
    %c0_102 = arith.constant 0 : index
    %c0_103 = arith.constant 0 : index
    %312 = vector.load %arg1[%c0_100, %c3_101, %c0_102, %c0_103] : memref<1x8x4x16xf32, #tpu.memory_space<vmem>>, vector<1x1x4x16xf32>
    %313 = vector.shape_cast %312 : vector<1x1x4x16xf32> to vector<4x16xf32>
    %314 = tpu.concatenate %313, %274 in 1 : vector<4x16xf32>, vector<4x16xf32> -> vector<4x32xf32>
    %cst_104 = arith.constant dense<0.000000e+00> : vector<4x64xf32>
    %315 = tpu.matmul %314, %3, %cst_104 {dimension_numbers = #tpu.dot_dimension_numbers<[1], [0], [0], [1], [0, 0, 1, 1], [], []>} : vector<4x32xf32>, vector<32x64xf32>, vector<4x64xf32> -> vector<4x64xf32>
    %316 = vector.broadcast %7 : vector<1x64xf32> to vector<4x64xf32>
    %317 = arith.addf %315, %316 : vector<4x64xf32>
    %318 = vector.extract_strided_slice %317 {offsets = [0, 0], sizes = [4, 16], strides = [1, 1]} : vector<4x64xf32> to vector<4x16xf32>
    %319 = arith.negf %318 : vector<4x16xf32>
    %320 = math.exp %319 : vector<4x16xf32>
    %cst_105 = arith.constant 1.000000e+00 : f32
    %321 = vector.broadcast %cst_105 : f32 to vector<4x16xf32>
    %322 = arith.addf %321, %320 : vector<4x16xf32>
    %323 = arith.divf %321, %322 : vector<4x16xf32>
    %324 = vector.extract_strided_slice %317 {offsets = [0, 16], sizes = [4, 16], strides = [1, 1]} : vector<4x64xf32> to vector<4x16xf32>
    %325 = arith.negf %324 : vector<4x16xf32>
    %326 = math.exp %325 : vector<4x16xf32>
    %cst_106 = arith.constant 1.000000e+00 : f32
    %327 = vector.broadcast %cst_106 : f32 to vector<4x16xf32>
    %328 = arith.addf %327, %326 : vector<4x16xf32>
    %329 = arith.divf %327, %328 : vector<4x16xf32>
    %330 = vector.extract_strided_slice %317 {offsets = [0, 32], sizes = [4, 16], strides = [1, 1]} : vector<4x64xf32> to vector<4x16xf32>
    %331 = math.tanh %330 : vector<4x16xf32>
    %332 = vector.extract_strided_slice %317 {offsets = [0, 48], sizes = [4, 16], strides = [1, 1]} : vector<4x64xf32> to vector<4x16xf32>
    %333 = arith.negf %332 : vector<4x16xf32>
    %334 = math.exp %333 : vector<4x16xf32>
    %cst_107 = arith.constant 1.000000e+00 : f32
    %335 = vector.broadcast %cst_107 : f32 to vector<4x16xf32>
    %336 = arith.addf %335, %334 : vector<4x16xf32>
    %337 = arith.divf %335, %336 : vector<4x16xf32>
    %338 = arith.mulf %329, %272 : vector<4x16xf32>
    %339 = arith.mulf %323, %331 : vector<4x16xf32>
    %340 = arith.addf %338, %339 : vector<4x16xf32>
    %341 = math.tanh %340 : vector<4x16xf32>
    %342 = arith.mulf %337, %341 : vector<4x16xf32>
    %c4_108 = arith.constant 4 : index
    %c0_109 = arith.constant 0 : index
    %c0_110 = arith.constant 0 : index
    %343 = vector.load %arg5[%c4_108, %c0_109, %c0_110] : memref<8x4x16xf32, #tpu.memory_space<vmem>>, vector<1x4x16xf32>
    %344 = vector.shape_cast %343 : vector<1x4x16xf32> to vector<4x16xf32>
    %345 = vector.shape_cast %311 : vector<4x16xf32> to vector<1x4x16xf32>
    tpu.vector_store %arg5[%c4_108, %c0_109, %c0_110], %345 {strides = array<i32>} : memref<8x4x16xf32, #tpu.memory_space<vmem>>, vector<1x4x16xf32>,
    %c3_111 = arith.constant 3 : index
    %c0_112 = arith.constant 0 : index
    %c0_113 = arith.constant 0 : index
    %346 = vector.load %arg6[%c3_111, %c0_112, %c0_113] : memref<8x4x16xf32, #tpu.memory_space<vmem>>, vector<1x4x16xf32>
    %347 = vector.shape_cast %346 : vector<1x4x16xf32> to vector<4x16xf32>
    %348 = vector.shape_cast %342 : vector<4x16xf32> to vector<1x4x16xf32>
    tpu.vector_store %arg6[%c3_111, %c0_112, %c0_113], %348 {strides = array<i32>} : memref<8x4x16xf32, #tpu.memory_space<vmem>>, vector<1x4x16xf32>,
    %c0_114 = arith.constant 0 : index
    %c5_115 = arith.constant 5 : index
    %c0_116 = arith.constant 0 : index
    %c0_117 = arith.constant 0 : index
    %349 = vector.load %arg1[%c0_114, %c5_115, %c0_116, %c0_117] : memref<1x8x4x16xf32, #tpu.memory_space<vmem>>, vector<1x1x4x16xf32>
    %350 = vector.shape_cast %349 : vector<1x1x4x16xf32> to vector<4x16xf32>
    %351 = tpu.concatenate %350, %311 in 1 : vector<4x16xf32>, vector<4x16xf32> -> vector<4x32xf32>
    %cst_118 = arith.constant dense<0.000000e+00> : vector<4x64xf32>
    %352 = tpu.matmul %351, %1, %cst_118 {dimension_numbers = #tpu.dot_dimension_numbers<[1], [0], [0], [1], [0, 0, 1, 1], [], []>} : vector<4x32xf32>, vector<32x64xf32>, vector<4x64xf32> -> vector<4x64xf32>
    %353 = vector.broadcast %5 : vector<1x64xf32> to vector<4x64xf32>
    %354 = arith.addf %352, %353 : vector<4x64xf32>
    %355 = vector.extract_strided_slice %354 {offsets = [0, 0], sizes = [4, 16], strides = [1, 1]} : vector<4x64xf32> to vector<4x16xf32>
    %356 = arith.negf %355 : vector<4x16xf32>
    %357 = math.exp %356 : vector<4x16xf32>
    %cst_119 = arith.constant 1.000000e+00 : f32
    %358 = vector.broadcast %cst_119 : f32 to vector<4x16xf32>
    %359 = arith.addf %358, %357 : vector<4x16xf32>
    %360 = arith.divf %358, %359 : vector<4x16xf32>
    %361 = vector.extract_strided_slice %354 {offsets = [0, 16], sizes = [4, 16], strides = [1, 1]} : vector<4x64xf32> to vector<4x16xf32>
    %362 = arith.negf %361 : vector<4x16xf32>
    %363 = math.exp %362 : vector<4x16xf32>
    %cst_120 = arith.constant 1.000000e+00 : f32
    %364 = vector.broadcast %cst_120 : f32 to vector<4x16xf32>
    %365 = arith.addf %364, %363 : vector<4x16xf32>
    %366 = arith.divf %364, %365 : vector<4x16xf32>
    %367 = vector.extract_strided_slice %354 {offsets = [0, 32], sizes = [4, 16], strides = [1, 1]} : vector<4x64xf32> to vector<4x16xf32>
    %368 = math.tanh %367 : vector<4x16xf32>
    %369 = vector.extract_strided_slice %354 {offsets = [0, 48], sizes = [4, 16], strides = [1, 1]} : vector<4x64xf32> to vector<4x16xf32>
    %370 = arith.negf %369 : vector<4x16xf32>
    %371 = math.exp %370 : vector<4x16xf32>
    %cst_121 = arith.constant 1.000000e+00 : f32
    %372 = vector.broadcast %cst_121 : f32 to vector<4x16xf32>
    %373 = arith.addf %372, %371 : vector<4x16xf32>
    %374 = arith.divf %372, %373 : vector<4x16xf32>
    %375 = arith.mulf %366, %309 : vector<4x16xf32>
    %376 = arith.mulf %360, %368 : vector<4x16xf32>
    %377 = arith.addf %375, %376 : vector<4x16xf32>
    %378 = math.tanh %377 : vector<4x16xf32>
    %379 = arith.mulf %374, %378 : vector<4x16xf32>
    %c0_122 = arith.constant 0 : index
    %c2_123 = arith.constant 2 : index
    %c0_124 = arith.constant 0 : index
    %c0_125 = arith.constant 0 : index
    %380 = vector.load %arg1[%c0_122, %c2_123, %c0_124, %c0_125] : memref<1x8x4x16xf32, #tpu.memory_space<vmem>>, vector<1x1x4x16xf32>
    %381 = vector.shape_cast %380 : vector<1x1x4x16xf32> to vector<4x16xf32>
    %382 = tpu.concatenate %381, %342 in 1 : vector<4x16xf32>, vector<4x16xf32> -> vector<4x32xf32>
    %cst_126 = arith.constant dense<0.000000e+00> : vector<4x64xf32>
    %383 = tpu.matmul %382, %3, %cst_126 {dimension_numbers = #tpu.dot_dimension_numbers<[1], [0], [0], [1], [0, 0, 1, 1], [], []>} : vector<4x32xf32>, vector<32x64xf32>, vector<4x64xf32> -> vector<4x64xf32>
    %384 = vector.broadcast %7 : vector<1x64xf32> to vector<4x64xf32>
    %385 = arith.addf %383, %384 : vector<4x64xf32>
    %386 = vector.extract_strided_slice %385 {offsets = [0, 0], sizes = [4, 16], strides = [1, 1]} : vector<4x64xf32> to vector<4x16xf32>
    %387 = arith.negf %386 : vector<4x16xf32>
    %388 = math.exp %387 : vector<4x16xf32>
    %cst_127 = arith.constant 1.000000e+00 : f32
    %389 = vector.broadcast %cst_127 : f32 to vector<4x16xf32>
    %390 = arith.addf %389, %388 : vector<4x16xf32>
    %391 = arith.divf %389, %390 : vector<4x16xf32>
    %392 = vector.extract_strided_slice %385 {offsets = [0, 16], sizes = [4, 16], strides = [1, 1]} : vector<4x64xf32> to vector<4x16xf32>
    %393 = arith.negf %392 : vector<4x16xf32>
    %394 = math.exp %393 : vector<4x16xf32>
    %cst_128 = arith.constant 1.000000e+00 : f32
    %395 = vector.broadcast %cst_128 : f32 to vector<4x16xf32>
    %396 = arith.addf %395, %394 : vector<4x16xf32>
    %397 = arith.divf %395, %396 : vector<4x16xf32>
    %398 = vector.extract_strided_slice %385 {offsets = [0, 32], sizes = [4, 16], strides = [1, 1]} : vector<4x64xf32> to vector<4x16xf32>
    %399 = math.tanh %398 : vector<4x16xf32>
    %400 = vector.extract_strided_slice %385 {offsets = [0, 48], sizes = [4, 16], strides = [1, 1]} : vector<4x64xf32> to vector<4x16xf32>
    %401 = arith.negf %400 : vector<4x16xf32>
    %402 = math.exp %401 : vector<4x16xf32>
    %cst_129 = arith.constant 1.000000e+00 : f32
    %403 = vector.broadcast %cst_129 : f32 to vector<4x16xf32>
    %404 = arith.addf %403, %402 : vector<4x16xf32>
    %405 = arith.divf %403, %404 : vector<4x16xf32>
    %406 = arith.mulf %397, %340 : vector<4x16xf32>
    %407 = arith.mulf %391, %399 : vector<4x16xf32>
    %408 = arith.addf %406, %407 : vector<4x16xf32>
    %409 = math.tanh %408 : vector<4x16xf32>
    %410 = arith.mulf %405, %409 : vector<4x16xf32>
    %c5_130 = arith.constant 5 : index
    %c0_131 = arith.constant 0 : index
    %c0_132 = arith.constant 0 : index
    %411 = vector.load %arg5[%c5_130, %c0_131, %c0_132] : memref<8x4x16xf32, #tpu.memory_space<vmem>>, vector<1x4x16xf32>
    %412 = vector.shape_cast %411 : vector<1x4x16xf32> to vector<4x16xf32>
    %413 = vector.shape_cast %379 : vector<4x16xf32> to vector<1x4x16xf32>
    tpu.vector_store %arg5[%c5_130, %c0_131, %c0_132], %413 {strides = array<i32>} : memref<8x4x16xf32, #tpu.memory_space<vmem>>, vector<1x4x16xf32>,
    %c2_133 = arith.constant 2 : index
    %c0_134 = arith.constant 0 : index
    %c0_135 = arith.constant 0 : index
    %414 = vector.load %arg6[%c2_133, %c0_134, %c0_135] : memref<8x4x16xf32, #tpu.memory_space<vmem>>, vector<1x4x16xf32>
    %415 = vector.shape_cast %414 : vector<1x4x16xf32> to vector<4x16xf32>
    %416 = vector.shape_cast %410 : vector<4x16xf32> to vector<1x4x16xf32>
    tpu.vector_store %arg6[%c2_133, %c0_134, %c0_135], %416 {strides = array<i32>} : memref<8x4x16xf32, #tpu.memory_space<vmem>>, vector<1x4x16xf32>,
    %c0_136 = arith.constant 0 : index
    %c6_137 = arith.constant 6 : index
    %c0_138 = arith.constant 0 : index
    %c0_139 = arith.constant 0 : index
    %417 = vector.load %arg1[%c0_136, %c6_137, %c0_138, %c0_139] : memref<1x8x4x16xf32, #tpu.memory_space<vmem>>, vector<1x1x4x16xf32>
    %418 = vector.shape_cast %417 : vector<1x1x4x16xf32> to vector<4x16xf32>
    %419 = tpu.concatenate %418, %379 in 1 : vector<4x16xf32>, vector<4x16xf32> -> vector<4x32xf32>
    %cst_140 = arith.constant dense<0.000000e+00> : vector<4x64xf32>
    %420 = tpu.matmul %419, %1, %cst_140 {dimension_numbers = #tpu.dot_dimension_numbers<[1], [0], [0], [1], [0, 0, 1, 1], [], []>} : vector<4x32xf32>, vector<32x64xf32>, vector<4x64xf32> -> vector<4x64xf32>
    %421 = vector.broadcast %5 : vector<1x64xf32> to vector<4x64xf32>
    %422 = arith.addf %420, %421 : vector<4x64xf32>
    %423 = vector.extract_strided_slice %422 {offsets = [0, 0], sizes = [4, 16], strides = [1, 1]} : vector<4x64xf32> to vector<4x16xf32>
    %424 = arith.negf %423 : vector<4x16xf32>
    %425 = math.exp %424 : vector<4x16xf32>
    %cst_141 = arith.constant 1.000000e+00 : f32
    %426 = vector.broadcast %cst_141 : f32 to vector<4x16xf32>
    %427 = arith.addf %426, %425 : vector<4x16xf32>
    %428 = arith.divf %426, %427 : vector<4x16xf32>
    %429 = vector.extract_strided_slice %422 {offsets = [0, 16], sizes = [4, 16], strides = [1, 1]} : vector<4x64xf32> to vector<4x16xf32>
    %430 = arith.negf %429 : vector<4x16xf32>
    %431 = math.exp %430 : vector<4x16xf32>
    %cst_142 = arith.constant 1.000000e+00 : f32
    %432 = vector.broadcast %cst_142 : f32 to vector<4x16xf32>
    %433 = arith.addf %432, %431 : vector<4x16xf32>
    %434 = arith.divf %432, %433 : vector<4x16xf32>
    %435 = vector.extract_strided_slice %422 {offsets = [0, 32], sizes = [4, 16], strides = [1, 1]} : vector<4x64xf32> to vector<4x16xf32>
    %436 = math.tanh %435 : vector<4x16xf32>
    %437 = vector.extract_strided_slice %422 {offsets = [0, 48], sizes = [4, 16], strides = [1, 1]} : vector<4x64xf32> to vector<4x16xf32>
    %438 = arith.negf %437 : vector<4x16xf32>
    %439 = math.exp %438 : vector<4x16xf32>
    %cst_143 = arith.constant 1.000000e+00 : f32
    %440 = vector.broadcast %cst_143 : f32 to vector<4x16xf32>
    %441 = arith.addf %440, %439 : vector<4x16xf32>
    %442 = arith.divf %440, %441 : vector<4x16xf32>
    %443 = arith.mulf %434, %377 : vector<4x16xf32>
    %444 = arith.mulf %428, %436 : vector<4x16xf32>
    %445 = arith.addf %443, %444 : vector<4x16xf32>
    %446 = math.tanh %445 : vector<4x16xf32>
    %447 = arith.mulf %442, %446 : vector<4x16xf32>
    %c0_144 = arith.constant 0 : index
    %c1_145 = arith.constant 1 : index
    %c0_146 = arith.constant 0 : index
    %c0_147 = arith.constant 0 : index
    %448 = vector.load %arg1[%c0_144, %c1_145, %c0_146, %c0_147] : memref<1x8x4x16xf32, #tpu.memory_space<vmem>>, vector<1x1x4x16xf32>
    %449 = vector.shape_cast %448 : vector<1x1x4x16xf32> to vector<4x16xf32>
    %450 = tpu.concatenate %449, %410 in 1 : vector<4x16xf32>, vector<4x16xf32> -> vector<4x32xf32>
    %cst_148 = arith.constant dense<0.000000e+00> : vector<4x64xf32>
    %451 = tpu.matmul %450, %3, %cst_148 {dimension_numbers = #tpu.dot_dimension_numbers<[1], [0], [0], [1], [0, 0, 1, 1], [], []>} : vector<4x32xf32>, vector<32x64xf32>, vector<4x64xf32> -> vector<4x64xf32>
    %452 = vector.broadcast %7 : vector<1x64xf32> to vector<4x64xf32>
    %453 = arith.addf %451, %452 : vector<4x64xf32>
    %454 = vector.extract_strided_slice %453 {offsets = [0, 0], sizes = [4, 16], strides = [1, 1]} : vector<4x64xf32> to vector<4x16xf32>
    %455 = arith.negf %454 : vector<4x16xf32>
    %456 = math.exp %455 : vector<4x16xf32>
    %cst_149 = arith.constant 1.000000e+00 : f32
    %457 = vector.broadcast %cst_149 : f32 to vector<4x16xf32>
    %458 = arith.addf %457, %456 : vector<4x16xf32>
    %459 = arith.divf %457, %458 : vector<4x16xf32>
    %460 = vector.extract_strided_slice %453 {offsets = [0, 16], sizes = [4, 16], strides = [1, 1]} : vector<4x64xf32> to vector<4x16xf32>
    %461 = arith.negf %460 : vector<4x16xf32>
    %462 = math.exp %461 : vector<4x16xf32>
    %cst_150 = arith.constant 1.000000e+00 : f32
    %463 = vector.broadcast %cst_150 : f32 to vector<4x16xf32>
    %464 = arith.addf %463, %462 : vector<4x16xf32>
    %465 = arith.divf %463, %464 : vector<4x16xf32>
    %466 = vector.extract_strided_slice %453 {offsets = [0, 32], sizes = [4, 16], strides = [1, 1]} : vector<4x64xf32> to vector<4x16xf32>
    %467 = math.tanh %466 : vector<4x16xf32>
    %468 = vector.extract_strided_slice %453 {offsets = [0, 48], sizes = [4, 16], strides = [1, 1]} : vector<4x64xf32> to vector<4x16xf32>
    %469 = arith.negf %468 : vector<4x16xf32>
    %470 = math.exp %469 : vector<4x16xf32>
    %cst_151 = arith.constant 1.000000e+00 : f32
    %471 = vector.broadcast %cst_151 : f32 to vector<4x16xf32>
    %472 = arith.addf %471, %470 : vector<4x16xf32>
    %473 = arith.divf %471, %472 : vector<4x16xf32>
    %474 = arith.mulf %465, %408 : vector<4x16xf32>
    %475 = arith.mulf %459, %467 : vector<4x16xf32>
    %476 = arith.addf %474, %475 : vector<4x16xf32>
    %477 = math.tanh %476 : vector<4x16xf32>
    %478 = arith.mulf %473, %477 : vector<4x16xf32>
    %c6_152 = arith.constant 6 : index
    %c0_153 = arith.constant 0 : index
    %c0_154 = arith.constant 0 : index
    %479 = vector.load %arg5[%c6_152, %c0_153, %c0_154] : memref<8x4x16xf32, #tpu.memory_space<vmem>>, vector<1x4x16xf32>
    %480 = vector.shape_cast %479 : vector<1x4x16xf32> to vector<4x16xf32>
    %481 = vector.shape_cast %447 : vector<4x16xf32> to vector<1x4x16xf32>
    tpu.vector_store %arg5[%c6_152, %c0_153, %c0_154], %481 {strides = array<i32>} : memref<8x4x16xf32, #tpu.memory_space<vmem>>, vector<1x4x16xf32>,
    %c1_155 = arith.constant 1 : index
    %c0_156 = arith.constant 0 : index
    %c0_157 = arith.constant 0 : index
    %482 = vector.load %arg6[%c1_155, %c0_156, %c0_157] : memref<8x4x16xf32, #tpu.memory_space<vmem>>, vector<1x4x16xf32>
    %483 = vector.shape_cast %482 : vector<1x4x16xf32> to vector<4x16xf32>
    %484 = vector.shape_cast %478 : vector<4x16xf32> to vector<1x4x16xf32>
    tpu.vector_store %arg6[%c1_155, %c0_156, %c0_157], %484 {strides = array<i32>} : memref<8x4x16xf32, #tpu.memory_space<vmem>>, vector<1x4x16xf32>,
    %c0_158 = arith.constant 0 : index
    %c7_159 = arith.constant 7 : index
    %c0_160 = arith.constant 0 : index
    %c0_161 = arith.constant 0 : index
    %485 = vector.load %arg1[%c0_158, %c7_159, %c0_160, %c0_161] : memref<1x8x4x16xf32, #tpu.memory_space<vmem>>, vector<1x1x4x16xf32>
    %486 = vector.shape_cast %485 : vector<1x1x4x16xf32> to vector<4x16xf32>
    %487 = tpu.concatenate %486, %447 in 1 : vector<4x16xf32>, vector<4x16xf32> -> vector<4x32xf32>
    %cst_162 = arith.constant dense<0.000000e+00> : vector<4x64xf32>
    %488 = tpu.matmul %487, %1, %cst_162 {dimension_numbers = #tpu.dot_dimension_numbers<[1], [0], [0], [1], [0, 0, 1, 1], [], []>} : vector<4x32xf32>, vector<32x64xf32>, vector<4x64xf32> -> vector<4x64xf32>
    %489 = vector.broadcast %5 : vector<1x64xf32> to vector<4x64xf32>
    %490 = arith.addf %488, %489 : vector<4x64xf32>
    %491 = vector.extract_strided_slice %490 {offsets = [0, 0], sizes = [4, 16], strides = [1, 1]} : vector<4x64xf32> to vector<4x16xf32>
    %492 = arith.negf %491 : vector<4x16xf32>
    %493 = math.exp %492 : vector<4x16xf32>
    %cst_163 = arith.constant 1.000000e+00 : f32
    %494 = vector.broadcast %cst_163 : f32 to vector<4x16xf32>
    %495 = arith.addf %494, %493 : vector<4x16xf32>
    %496 = arith.divf %494, %495 : vector<4x16xf32>
    %497 = vector.extract_strided_slice %490 {offsets = [0, 16], sizes = [4, 16], strides = [1, 1]} : vector<4x64xf32> to vector<4x16xf32>
    %498 = arith.negf %497 : vector<4x16xf32>
    %499 = math.exp %498 : vector<4x16xf32>
    %cst_164 = arith.constant 1.000000e+00 : f32
    %500 = vector.broadcast %cst_164 : f32 to vector<4x16xf32>
    %501 = arith.addf %500, %499 : vector<4x16xf32>
    %502 = arith.divf %500, %501 : vector<4x16xf32>
    %503 = vector.extract_strided_slice %490 {offsets = [0, 32], sizes = [4, 16], strides = [1, 1]} : vector<4x64xf32> to vector<4x16xf32>
    %504 = math.tanh %503 : vector<4x16xf32>
    %505 = vector.extract_strided_slice %490 {offsets = [0, 48], sizes = [4, 16], strides = [1, 1]} : vector<4x64xf32> to vector<4x16xf32>
    %506 = arith.negf %505 : vector<4x16xf32>
    %507 = math.exp %506 : vector<4x16xf32>
    %cst_165 = arith.constant 1.000000e+00 : f32
    %508 = vector.broadcast %cst_165 : f32 to vector<4x16xf32>
    %509 = arith.addf %508, %507 : vector<4x16xf32>
    %510 = arith.divf %508, %509 : vector<4x16xf32>
    %511 = arith.mulf %502, %445 : vector<4x16xf32>
    %512 = arith.mulf %496, %504 : vector<4x16xf32>
    %513 = arith.addf %511, %512 : vector<4x16xf32>
    %514 = math.tanh %513 : vector<4x16xf32>
    %515 = arith.mulf %510, %514 : vector<4x16xf32>
    %c0_166 = arith.constant 0 : index
    %c0_167 = arith.constant 0 : index
    %c0_168 = arith.constant 0 : index
    %c0_169 = arith.constant 0 : index
    %516 = vector.load %arg1[%c0_166, %c0_167, %c0_168, %c0_169] : memref<1x8x4x16xf32, #tpu.memory_space<vmem>>, vector<1x1x4x16xf32>
    %517 = vector.shape_cast %516 : vector<1x1x4x16xf32> to vector<4x16xf32>
    %518 = tpu.concatenate %517, %478 in 1 : vector<4x16xf32>, vector<4x16xf32> -> vector<4x32xf32>
    %cst_170 = arith.constant dense<0.000000e+00> : vector<4x64xf32>
    %519 = tpu.matmul %518, %3, %cst_170 {dimension_numbers = #tpu.dot_dimension_numbers<[1], [0], [0], [1], [0, 0, 1, 1], [], []>} : vector<4x32xf32>, vector<32x64xf32>, vector<4x64xf32> -> vector<4x64xf32>
    %520 = vector.broadcast %7 : vector<1x64xf32> to vector<4x64xf32>
    %521 = arith.addf %519, %520 : vector<4x64xf32>
    %522 = vector.extract_strided_slice %521 {offsets = [0, 0], sizes = [4, 16], strides = [1, 1]} : vector<4x64xf32> to vector<4x16xf32>
    %523 = arith.negf %522 : vector<4x16xf32>
    %524 = math.exp %523 : vector<4x16xf32>
    %cst_171 = arith.constant 1.000000e+00 : f32
    %525 = vector.broadcast %cst_171 : f32 to vector<4x16xf32>
    %526 = arith.addf %525, %524 : vector<4x16xf32>
    %527 = arith.divf %525, %526 : vector<4x16xf32>
    %528 = vector.extract_strided_slice %521 {offsets = [0, 16], sizes = [4, 16], strides = [1, 1]} : vector<4x64xf32> to vector<4x16xf32>
    %529 = arith.negf %528 : vector<4x16xf32>
    %530 = math.exp %529 : vector<4x16xf32>
    %cst_172 = arith.constant 1.000000e+00 : f32
    %531 = vector.broadcast %cst_172 : f32 to vector<4x16xf32>
    %532 = arith.addf %531, %530 : vector<4x16xf32>
    %533 = arith.divf %531, %532 : vector<4x16xf32>
    %534 = vector.extract_strided_slice %521 {offsets = [0, 32], sizes = [4, 16], strides = [1, 1]} : vector<4x64xf32> to vector<4x16xf32>
    %535 = math.tanh %534 : vector<4x16xf32>
    %536 = vector.extract_strided_slice %521 {offsets = [0, 48], sizes = [4, 16], strides = [1, 1]} : vector<4x64xf32> to vector<4x16xf32>
    %537 = arith.negf %536 : vector<4x16xf32>
    %538 = math.exp %537 : vector<4x16xf32>
    %cst_173 = arith.constant 1.000000e+00 : f32
    %539 = vector.broadcast %cst_173 : f32 to vector<4x16xf32>
    %540 = arith.addf %539, %538 : vector<4x16xf32>
    %541 = arith.divf %539, %540 : vector<4x16xf32>
    %542 = arith.mulf %533, %476 : vector<4x16xf32>
    %543 = arith.mulf %527, %535 : vector<4x16xf32>
    %544 = arith.addf %542, %543 : vector<4x16xf32>
    %545 = math.tanh %544 : vector<4x16xf32>
    %546 = arith.mulf %541, %545 : vector<4x16xf32>
    %c7_174 = arith.constant 7 : index
    %c0_175 = arith.constant 0 : index
    %c0_176 = arith.constant 0 : index
    %547 = vector.load %arg5[%c7_174, %c0_175, %c0_176] : memref<8x4x16xf32, #tpu.memory_space<vmem>>, vector<1x4x16xf32>
    %548 = vector.shape_cast %547 : vector<1x4x16xf32> to vector<4x16xf32>
    %549 = vector.shape_cast %515 : vector<4x16xf32> to vector<1x4x16xf32>
    tpu.vector_store %arg5[%c7_174, %c0_175, %c0_176], %549 {strides = array<i32>} : memref<8x4x16xf32, #tpu.memory_space<vmem>>, vector<1x4x16xf32>,
    %c0_177 = arith.constant 0 : index
    %c0_178 = arith.constant 0 : index
    %c0_179 = arith.constant 0 : index
    %550 = vector.load %arg6[%c0_177, %c0_178, %c0_179] : memref<8x4x16xf32, #tpu.memory_space<vmem>>, vector<1x4x16xf32>
    %551 = vector.shape_cast %550 : vector<1x4x16xf32> to vector<4x16xf32>
    %552 = vector.shape_cast %546 : vector<4x16xf32> to vector<1x4x16xf32>
    tpu.vector_store %arg6[%c0_177, %c0_178, %c0_179], %552 {strides = array<i32>} : memref<8x4x16xf32, #tpu.memory_space<vmem>>, vector<1x4x16xf32>,
    %c0_180 = arith.constant 0 : index
    %c0_181 = arith.constant 0 : index
    %c0_182 = arith.constant 0 : index
    %553 = vector.load %arg5[%c0_180, %c0_181, %c0_182] : memref<8x4x16xf32, #tpu.memory_space<vmem>>, vector<8x4x16xf32>
    %c0_183 = arith.constant 0 : index
    %c0_184 = arith.constant 0 : index
    %c0_185 = arith.constant 0 : index
    %554 = vector.load %arg6[%c0_183, %c0_184, %c0_185] : memref<8x4x16xf32, #tpu.memory_space<vmem>>, vector<8x4x16xf32>
    %555 = tpu.concatenate %553, %554 in 2 : vector<8x4x16xf32>, vector<8x4x16xf32> -> vector<8x4x32xf32>
    %c0_186 = arith.constant 0 : index
    %c0_187 = arith.constant 0 : index
    %c0_188 = arith.constant 0 : index
    %c0_189 = arith.constant 0 : index
    %556 = vector.load %arg4[%c0_186, %c0_187, %c0_188, %c0_189] : memref<1x8x4x32xf32, #tpu.memory_space<vmem>>, vector<1x8x4x32xf32>
    %557 = vector.shape_cast %556 : vector<1x8x4x32xf32> to vector<8x4x32xf32>
    %558 = vector.shape_cast %555 : vector<8x4x32xf32> to vector<1x8x4x32xf32>
    tpu.vector_store %arg4[%c0_186, %c0_187, %c0_188, %c0_189], %558 {strides = array<i32>} : memref<1x8x4x32xf32, #tpu.memory_space<vmem>>, vector<1x8x4x32xf32>,
    return
  }
  func.func @transform_0(%arg0: i32) -> (i32, i32, i32, i32) {
    %c0_i32 = arith.constant 0 : i32
    %c0_i32_0 = arith.constant 0 : i32
    %c0_i32_1 = arith.constant 0 : i32
    %c0_i32_2 = arith.constant 0 : i32
    return %arg0, %c0_i32, %c0_i32_0, %c0_i32_1 : i32, i32, i32, i32
  }
  func.func @transform_1(%arg0: i32) -> (i32, i32, i32) {
    %c0_i32 = arith.constant 0 : i32
    %c0_i32_0 = arith.constant 0 : i32
    %c0_i32_1 = arith.constant 0 : i32
    %c0_i32_2 = arith.constant 0 : i32
    return %c0_i32, %c0_i32_0, %c0_i32_1 : i32, i32, i32
  }
  func.func @transform_2(%arg0: i32) -> (i32, i32, i32) {
    %c0_i32 = arith.constant 0 : i32
    %c0_i32_0 = arith.constant 0 : i32
    %c0_i32_1 = arith.constant 0 : i32
    %c0_i32_2 = arith.constant 0 : i32
    return %c0_i32, %c0_i32_0, %c0_i32_1 : i32, i32, i32
  }
  func.func @transform_3(%arg0: i32) -> (i32, i32, i32, i32) {
    %c0_i32 = arith.constant 0 : i32
    %c0_i32_0 = arith.constant 0 : i32
    %c0_i32_1 = arith.constant 0 : i32
    %c0_i32_2 = arith.constant 0 : i32
    return %arg0, %c0_i32, %c0_i32_0, %c0_i32_1 : i32, i32, i32, i32
  }
}

module attributes {stable_mosaic.version = 11 : i64} {
  func.func @_pool_fc_kernel(%arg0: i32, %arg1: memref<2x8x4x32xf32, #tpu.memory_space<vmem>>, %arg2: memref<128x3xf32, #tpu.memory_space<vmem>>, %arg3: memref<1x3xf32, #tpu.memory_space<vmem>>, %arg4: memref<8x3xf32, #tpu.memory_space<vmem>>) attributes {dimension_semantics = [#tpu.dimension_semantics<arbitrary>], iteration_bounds = array<i64: 1>, scalar_prefetch = 0 : i64, scratch_operands = 0 : i64, tpu.core_type = #tpu.core_type<tc>, window_params = [{pipeline_mode = #tpu.pipeline_mode<synchronous>, transform_indices = @transform_0, window_bounds = array<i64: 2, 8, 4, 32>}, {pipeline_mode = #tpu.pipeline_mode<synchronous>, transform_indices = @transform_1, window_bounds = array<i64: 128, 3>}, {pipeline_mode = #tpu.pipeline_mode<synchronous>, transform_indices = @transform_2, window_bounds = array<i64: 1, 3>}, {pipeline_mode = #tpu.pipeline_mode<synchronous>, transform_indices = @transform_3, window_bounds = array<i64: 8, 3>}]} {
    %c0 = arith.constant 0 : index
    %c0_0 = arith.constant 0 : index
    %c0_1 = arith.constant 0 : index
    %c0_2 = arith.constant 0 : index
    %0 = vector.load %arg1[%c0, %c0_0, %c0_1, %c0_2] : memref<2x8x4x32xf32, #tpu.memory_space<vmem>>, vector<1x8x4x32xf32>
    %1 = vector.shape_cast %0 : vector<1x8x4x32xf32> to vector<8x4x32xf32>
    %c1 = arith.constant 1 : index
    %c0_3 = arith.constant 0 : index
    %c0_4 = arith.constant 0 : index
    %c0_5 = arith.constant 0 : index
    %2 = vector.load %arg1[%c1, %c0_3, %c0_4, %c0_5] : memref<2x8x4x32xf32, #tpu.memory_space<vmem>>, vector<1x8x4x32xf32>
    %3 = vector.shape_cast %2 : vector<1x8x4x32xf32> to vector<8x4x32xf32>
    %cst = arith.constant dense<0xFF800000> : vector<8x32xf32>
    %4 = vector.multi_reduction <maximumf>, %1, %cst [1] : vector<8x4x32xf32> to vector<8x32xf32>
    %cst_6 = arith.constant dense<0.000000e+00> : vector<8x32xf32>
    %5 = vector.multi_reduction <add>, %1, %cst_6 [1] : vector<8x4x32xf32> to vector<8x32xf32>
    %cst_7 = arith.constant 4.000000e+00 : f32
    %6 = vector.broadcast %cst_7 : f32 to vector<8x32xf32>
    %7 = arith.divf %5, %6 : vector<8x32xf32>
    %cst_8 = arith.constant dense<0xFF800000> : vector<8x32xf32>
    %8 = vector.multi_reduction <maximumf>, %3, %cst_8 [1] : vector<8x4x32xf32> to vector<8x32xf32>
    %cst_9 = arith.constant dense<0.000000e+00> : vector<8x32xf32>
    %9 = vector.multi_reduction <add>, %3, %cst_9 [1] : vector<8x4x32xf32> to vector<8x32xf32>
    %cst_10 = arith.constant 4.000000e+00 : f32
    %10 = vector.broadcast %cst_10 : f32 to vector<8x32xf32>
    %11 = arith.divf %9, %10 : vector<8x32xf32>
    %12 = tpu.concatenate %4, %7, %8, %11 in 1 : vector<8x32xf32>, vector<8x32xf32>, vector<8x32xf32>, vector<8x32xf32> -> vector<8x128xf32>
    %c0_11 = arith.constant 0 : index
    %c0_12 = arith.constant 0 : index
    %13 = vector.load %arg2[%c0_11, %c0_12] : memref<128x3xf32, #tpu.memory_space<vmem>>, vector<128x3xf32>
    %cst_13 = arith.constant dense<0.000000e+00> : vector<8x3xf32>
    %14 = tpu.matmul %12, %13, %cst_13 {dimension_numbers = #tpu.dot_dimension_numbers<[1], [0], [0], [1], [0, 0, 1, 1], [], []>} : vector<8x128xf32>, vector<128x3xf32>, vector<8x3xf32> -> vector<8x3xf32>
    %c0_14 = arith.constant 0 : index
    %c0_15 = arith.constant 0 : index
    %15 = vector.load %arg3[%c0_14, %c0_15] : memref<1x3xf32, #tpu.memory_space<vmem>>, vector<1x3xf32>
    %16 = vector.broadcast %15 : vector<1x3xf32> to vector<8x3xf32>
    %17 = arith.addf %14, %16 : vector<8x3xf32>
    %18 = math.tanh %17 : vector<8x3xf32>
    %c0_16 = arith.constant 0 : index
    %c0_17 = arith.constant 0 : index
    %19 = vector.load %arg4[%c0_16, %c0_17] : memref<8x3xf32, #tpu.memory_space<vmem>>, vector<8x3xf32>
    tpu.vector_store %arg4[%c0_16, %c0_17], %18 {strides = array<i32>} : memref<8x3xf32, #tpu.memory_space<vmem>>, vector<8x3xf32>,
    return
  }
  func.func @transform_0(%arg0: i32) -> (i32, i32, i32, i32) {
    %c0_i32 = arith.constant 0 : i32
    %c0_i32_0 = arith.constant 0 : i32
    %c0_i32_1 = arith.constant 0 : i32
    %c0_i32_2 = arith.constant 0 : i32
    %c0_i32_3 = arith.constant 0 : i32
    return %c0_i32, %c0_i32_0, %c0_i32_1, %c0_i32_2 : i32, i32, i32, i32
  }
  func.func @transform_1(%arg0: i32) -> (i32, i32) {
    %c0_i32 = arith.constant 0 : i32
    %c0_i32_0 = arith.constant 0 : i32
    %c0_i32_1 = arith.constant 0 : i32
    return %c0_i32, %c0_i32_0 : i32, i32
  }
  func.func @transform_2(%arg0: i32) -> (i32, i32) {
    %c0_i32 = arith.constant 0 : i32
    %c0_i32_0 = arith.constant 0 : i32
    %c0_i32_1 = arith.constant 0 : i32
    return %c0_i32, %c0_i32_0 : i32, i32
  }
  func.func @transform_3(%arg0: i32) -> (i32, i32) {
    %c0_i32 = arith.constant 0 : i32
    %c0_i32_0 = arith.constant 0 : i32
    %c0_i32_1 = arith.constant 0 : i32
    return %c0_i32, %c0_i32_0 : i32, i32
  }
}

</mosaic_0001>

<llo_original>
// kernel: esim_forward.7
$region0: #{esim_forward.7}
  #allocation0 [shape = 'u32[]', space=smem, size = 0x4, offset = 0x4, fixed_abs, tag = 'smem constant byte address 0x4 - core index']
  #allocation1 [shape = 'u32[144,128]{1,0:T(1,128)}', space=vmem, size = 0x12000, scoped, tag = 'internal scratch']
  %s0 = inlined_call_operand.vmem [shape: f32[2,8,4,32], index: 0, kind: input, shape index: {}]
  %s1 = inlined_call_operand.vmem [shape: f32[128,3], index: 1, kind: input, shape index: {}]
  %s2 = inlined_call_operand.vmem [shape: f32[1,3], index: 2, kind: input, shape index: {}]
  %s3 = inlined_call_operand.vmem [shape: f32[8,3], index: 3, kind: output, shape index: {}]
  %s4 = sld [smem:[#allocation0]]
  $region22: #{esim_forward.7} parent=0
    _
  %s6 = ssub.s32 1, %s4
  %s7 = scalar_select 0, %s6, %s4
  // Predicated region
  $region2: #{esim_forward.7} parent=0 // pred_check
    _
  $region3: #{esim_forward.7} parent=0 // pred_check_branch
    %9 = sbr.rel (0) target = $region5
  $region4: #{esim_forward.7} parent=0 // pred_region
    _
  $region5: #{esim_forward.7} parent=0 // pred_fallthru
    _
  // Predicated region
  $region6: #{esim_forward.7} parent=0 // pred_check
    _
  $region7: #{esim_forward.7} parent=0 // pred_check_branch
    %11 = sbr.rel (0) target = $region9
  $region8: #{esim_forward.7} parent=0 // pred_region
    _
  $region9: #{esim_forward.7} parent=0 // pred_fallthru
    _
  // Predicated region
  $region10: #{esim_forward.7} parent=0 // pred_check
    _
  $region11: #{esim_forward.7} parent=0 // pred_check_branch
    %13 = sbr.rel (0) target = $region13
  $region12: #{esim_forward.7} parent=0 // pred_region
    _
  $region13: #{esim_forward.7} parent=0 // pred_fallthru
    _
  %v14 = vld [vmem:[%s0] sm:$0xf]
  %v15 = vld [vmem:[%s0 + $0x4] sm:$0xf]
  %v16 = vld [vmem:[%s0 + $0x8] sm:$0xf]
  %v17 = vld [vmem:[%s0 + $0xc] sm:$0xf]
  %v18 = vld [vmem:[%s0 + $0x10] sm:$0xf]
  %v19 = vld [vmem:[%s0 + $0x14] sm:$0xf]
  %v20 = vld [vmem:[%s0 + $0x18] sm:$0xf]
  %v21 = vld [vmem:[%s0 + $0x1c] sm:$0xf]
  %s22 = scalar_lea.vmem %s0, 32
  %v23 = vld [vmem:[%s22] sm:$0xf]
  %v24 = vld [vmem:[%s22 + $0x4] sm:$0xf]
  %v25 = vld [vmem:[%s22 + $0x8] sm:$0xf]
  %v26 = vld [vmem:[%s22 + $0xc] sm:$0xf]
  %v27 = vld [vmem:[%s22 + $0x10] sm:$0xf]
  %v28 = vld [vmem:[%s22 + $0x14] sm:$0xf]
  %v29 = vld [vmem:[%s22 + $0x18] sm:$0xf]
  %v30 = vld [vmem:[%s22 + $0x1c] sm:$0xf]
  %vm31 = vcmask 257024
  %v32 = vsel %vm31, %v14, -inf
  %v33 = vrot.slane %v32, 4
  %v34 = vmax.f32 %v32, %v33
  %v35 = vrot.slane %v34, 2
  %v36 = vmax.f32 %v34, %v35
  %v37 = vrot.slane %v36, 1
  %v38 = vmax.f32 %v36, %v37
  %v39 = vsel %vm31, %v15, -inf
  %v40 = vrot.slane %v39, 4
  %v41 = vmax.f32 %v39, %v40
  %v42 = vrot.slane %v41, 2
  %v43 = vmax.f32 %v41, %v42
  %v44 = vrot.slane %v43, 1
  %v45 = vmax.f32 %v43, %v44
  %v46 = vsel %vm31, %v16, -inf
  %v47 = vrot.slane %v46, 4
  %v48 = vmax.f32 %v46, %v47
  %v49 = vrot.slane %v48, 2
  %v50 = vmax.f32 %v48, %v49
  %v51 = vrot.slane %v50, 1
  %v52 = vmax.f32 %v50, %v51
  %v53 = vsel %vm31, %v17, -inf
  %v54 = vrot.slane %v53, 4
  %v55 = vmax.f32 %v53, %v54
  %v56 = vrot.slane %v55, 2
  %v57 = vmax.f32 %v55, %v56
  %v58 = vrot.slane %v57, 1
  %v59 = vmax.f32 %v57, %v58
  %v60 = vsel %vm31, %v18, -inf
  %v61 = vrot.slane %v60, 4
  %v62 = vmax.f32 %v60, %v61
  %v63 = vrot.slane %v62, 2
  %v64 = vmax.f32 %v62, %v63
  %v65 = vrot.slane %v64, 1
  %v66 = vmax.f32 %v64, %v65
  %v67 = vsel %vm31, %v19, -inf
  %v68 = vrot.slane %v67, 4
  %v69 = vmax.f32 %v67, %v68
  %v70 = vrot.slane %v69, 2
  %v71 = vmax.f32 %v69, %v70
  %v72 = vrot.slane %v71, 1
  %v73 = vmax.f32 %v71, %v72
  %v74 = vsel %vm31, %v20, -inf
  %v75 = vrot.slane %v74, 4
  %v76 = vmax.f32 %v74, %v75
  %v77 = vrot.slane %v76, 2
  %v78 = vmax.f32 %v76, %v77
  %v79 = vrot.slane %v78, 1
  %v80 = vmax.f32 %v78, %v79
  %v81 = vsel %vm31, %v21, -inf
  %v82 = vrot.slane %v81, 4
  %v83 = vmax.f32 %v81, %v82
  %v84 = vrot.slane %v83, 2
  %v85 = vmax.f32 %v83, %v84
  %v86 = vrot.slane %v85, 1
  %v87 = vmax.f32 %v85, %v86
  %v88 = vsel %vm31, %v14, 0.0
  %v89 = vrot.slane %v88, 4
  %v90 = vadd.f32 %v88, %v89
  %v91 = vrot.slane %v90, 2
  %v92 = vadd.f32 %v90, %v91
  %v93 = vrot.slane %v92, 1
  %v94 = vadd.f32 %v92, %v93
  %v95 = vsel %vm31, %v15, 0.0
  %v96 = vrot.slane %v95, 4
  %v97 = vadd.f32 %v95, %v96
  %v98 = vrot.slane %v97, 2
  %v99 = vadd.f32 %v97, %v98
  %v100 = vrot.slane %v99, 1
  %v101 = vadd.f32 %v99, %v100
  %v102 = vsel %vm31, %v16, 0.0
  %v103 = vrot.slane %v102, 4
  %v104 = vadd.f32 %v102, %v103
  %v105 = vrot.slane %v104, 2
  %v106 = vadd.f32 %v104, %v105
  %v107 = vrot.slane %v106, 1
  %v108 = vadd.f32 %v106, %v107
  %v109 = vsel %vm31, %v17, 0.0
  %v110 = vrot.slane %v109, 4
  %v111 = vadd.f32 %v109, %v110
  %v112 = vrot.slane %v111, 2
  %v113 = vadd.f32 %v111, %v112
  %v114 = vrot.slane %v113, 1
  %v115 = vadd.f32 %v113, %v114
  %v116 = vsel %vm31, %v18, 0.0
  %v117 = vrot.slane %v116, 4
  %v118 = vadd.f32 %v116, %v117
  %v119 = vrot.slane %v118, 2
  %v120 = vadd.f32 %v118, %v119
  %v121 = vrot.slane %v120, 1
  %v122 = vadd.f32 %v120, %v121
  %v123 = vsel %vm31, %v19, 0.0
  %v124 = vrot.slane %v123, 4
  %v125 = vadd.f32 %v123, %v124
  %v126 = vrot.slane %v125, 2
  %v127 = vadd.f32 %v125, %v126
  %v128 = vrot.slane %v127, 1
  %v129 = vadd.f32 %v127, %v128
  %v130 = vsel %vm31, %v20, 0.0
  %v131 = vrot.slane %v130, 4
  %v132 = vadd.f32 %v130, %v131
  %v133 = vrot.slane %v132, 2
  %v134 = vadd.f32 %v132, %v133
  %v135 = vrot.slane %v134, 1
  %v136 = vadd.f32 %v134, %v135
  %v137 = vsel %vm31, %v21, 0.0
  %v138 = vrot.slane %v137, 4
  %v139 = vadd.f32 %v137, %v138
  %v140 = vrot.slane %v139, 2
  %v141 = vadd.f32 %v139, %v140
  %v142 = vrot.slane %v141, 1
  %v143 = vadd.f32 %v141, %v142
  %v144 = vrcp.pop 4.0
  %v145 = vmul.f32 %v94, %v144
  %v146 = vmul.f32 %v101, %v144
  %v147 = vmul.f32 %v108, %v144
  %v148 = vmul.f32 %v115, %v144
  %v149 = vmul.f32 %v122, %v144
  %v150 = vmul.f32 %v129, %v144
  %v151 = vmul.f32 %v136, %v144
  %v152 = vmul.f32 %v143, %v144
  %v153 = vsel %vm31, %v23, -inf
  %v154 = vrot.slane %v153, 4
  %v155 = vmax.f32 %v153, %v154
  %v156 = vrot.slane %v155, 2
  %v157 = vmax.f32 %v155, %v156
  %v158 = vrot.slane %v157, 1
  %v159 = vmax.f32 %v157, %v158
  %v160 = vsel %vm31, %v24, -inf
  %v161 = vrot.slane %v160, 4
  %v162 = vmax.f32 %v160, %v161
  %v163 = vrot.slane %v162, 2
  %v164 = vmax.f32 %v162, %v163
  %v165 = vrot.slane %v164, 1
  %v166 = vmax.f32 %v164, %v165
  %v167 = vsel %vm31, %v25, -inf
  %v168 = vrot.slane %v167, 4
  %v169 = vmax.f32 %v167, %v168
  %v170 = vrot.slane %v169, 2
  %v171 = vmax.f32 %v169, %v170
  %v172 = vrot.slane %v171, 1
  %v173 = vmax.f32 %v171, %v172
  %v174 = vsel %vm31, %v26, -inf
  %v175 = vrot.slane %v174, 4
  %v176 = vmax.f32 %v174, %v175
  %v177 = vrot.slane %v176, 2
  %v178 = vmax.f32 %v176, %v177
  %v179 = vrot.slane %v178, 1
  %v180 = vmax.f32 %v178, %v179
  %v181 = vsel %vm31, %v27, -inf
  %v182 = vrot.slane %v181, 4
  %v183 = vmax.f32 %v181, %v182
  %v184 = vrot.slane %v183, 2
  %v185 = vmax.f32 %v183, %v184
  %v186 = vrot.slane %v185, 1
  %v187 = vmax.f32 %v185, %v186
  %v188 = vsel %vm31, %v28, -inf
  %v189 = vrot.slane %v188, 4
  %v190 = vmax.f32 %v188, %v189
  %v191 = vrot.slane %v190, 2
  %v192 = vmax.f32 %v190, %v191
  %v193 = vrot.slane %v192, 1
  %v194 = vmax.f32 %v192, %v193
  %v195 = vsel %vm31, %v29, -inf
  %v196 = vrot.slane %v195, 4
  %v197 = vmax.f32 %v195, %v196
  %v198 = vrot.slane %v197, 2
  %v199 = vmax.f32 %v197, %v198
  %v200 = vrot.slane %v199, 1
  %v201 = vmax.f32 %v199, %v200
  %v202 = vsel %vm31, %v30, -inf
  %v203 = vrot.slane %v202, 4
  %v204 = vmax.f32 %v202, %v203
  %v205 = vrot.slane %v204, 2
  %v206 = vmax.f32 %v204, %v205
  %v207 = vrot.slane %v206, 1
  %v208 = vmax.f32 %v206, %v207
  %v209 = vsel %vm31, %v23, 0.0
  %v210 = vrot.slane %v209, 4
  %v211 = vadd.f32 %v209, %v210
  %v212 = vrot.slane %v211, 2
  %v213 = vadd.f32 %v211, %v212
  %v214 = vrot.slane %v213, 1
  %v215 = vadd.f32 %v213, %v214
  %v216 = vsel %vm31, %v24, 0.0
  %v217 = vrot.slane %v216, 4
  %v218 = vadd.f32 %v216, %v217
  %v219 = vrot.slane %v218, 2
  %v220 = vadd.f32 %v218, %v219
  %v221 = vrot.slane %v220, 1
  %v222 = vadd.f32 %v220, %v221
  %v223 = vsel %vm31, %v25, 0.0
  %v224 = vrot.slane %v223, 4
  %v225 = vadd.f32 %v223, %v224
  %v226 = vrot.slane %v225, 2
  %v227 = vadd.f32 %v225, %v226
  %v228 = vrot.slane %v227, 1
  %v229 = vadd.f32 %v227, %v228
  %v230 = vsel %vm31, %v26, 0.0
  %v231 = vrot.slane %v230, 4
  %v232 = vadd.f32 %v230, %v231
  %v233 = vrot.slane %v232, 2
  %v234 = vadd.f32 %v232, %v233
  %v235 = vrot.slane %v234, 1
  %v236 = vadd.f32 %v234, %v235
  %v237 = vsel %vm31, %v27, 0.0
  %v238 = vrot.slane %v237, 4
  %v239 = vadd.f32 %v237, %v238
  %v240 = vrot.slane %v239, 2
  %v241 = vadd.f32 %v239, %v240
  %v242 = vrot.slane %v241, 1
  %v243 = vadd.f32 %v241, %v242
  %v244 = vsel %vm31, %v28, 0.0
  %v245 = vrot.slane %v244, 4
  %v246 = vadd.f32 %v244, %v245
  %v247 = vrot.slane %v246, 2
  %v248 = vadd.f32 %v246, %v247
  %v249 = vrot.slane %v248, 1
  %v250 = vadd.f32 %v248, %v249
  %v251 = vsel %vm31, %v29, 0.0
  %v252 = vrot.slane %v251, 4
  %v253 = vadd.f32 %v251, %v252
  %v254 = vrot.slane %v253, 2
  %v255 = vadd.f32 %v253, %v254
  %v256 = vrot.slane %v255, 1
  %v257 = vadd.f32 %v255, %v256
  %v258 = vsel %vm31, %v30, 0.0
  %v259 = vrot.slane %v258, 4
  %v260 = vadd.f32 %v258, %v259
  %v261 = vrot.slane %v260, 2
  %v262 = vadd.f32 %v260, %v261
  %v263 = vrot.slane %v262, 1
  %v264 = vadd.f32 %v262, %v263
  %v265 = vmul.f32 %v215, %v144
  %v266 = vmul.f32 %v222, %v144
  %v267 = vmul.f32 %v229, %v144
  %v268 = vmul.f32 %v236, %v144
  %v269 = vmul.f32 %v243, %v144
  %v270 = vmul.f32 %v250, %v144
  %v271 = vmul.f32 %v257, %v144
  %v272 = vmul.f32 %v264, %v144
  %vm281 = vcmask 1041409
  %v282 = vsel %vm281, %v45, %v38
  %vm283 = vcmask 1042434
  %v284 = vsel %vm283, %v52, %v282
  %vm285 = vcmask 1043459
  %v286 = vsel %vm285, %v59, %v284
  %vm287 = vcmask 1044484
  %v288 = vsel %vm287, %v66, %v286
  %vm289 = vcmask 1045509
  %v290 = vsel %vm289, %v73, %v288
  %vm291 = vcmask 1046534
  %v292 = vsel %vm291, %v80, %v290
  %vm293 = vcmask 1047559
  %v294 = vsel %vm293, %v87, %v292
  %v304 = vsel %vm281, %v146, %v145
  %v305 = vsel %vm283, %v147, %v304
  %v306 = vsel %vm285, %v148, %v305
  %v307 = vsel %vm287, %v149, %v306
  %v308 = vsel %vm289, %v150, %v307
  %v309 = vsel %vm291, %v151, %v308
  %v310 = vsel %vm293, %v152, %v309
  %311 = vrot.lane.b32.xlu0 %v310, 32
  %v312 = vpop.permute.xlu0 %311
  %v322 = vsel %vm281, %v166, %v159
  %v323 = vsel %vm283, %v173, %v322
  %v324 = vsel %vm285, %v180, %v323
  %v325 = vsel %vm287, %v187, %v324
  %v326 = vsel %vm289, %v194, %v325
  %v327 = vsel %vm291, %v201, %v326
  %v328 = vsel %vm293, %v208, %v327
  %329 = vrot.lane.b32.xlu0 %v328, 64
  %v330 = vpop.permute.xlu0 %329
  %v340 = vsel %vm281, %v266, %v265
  %v341 = vsel %vm283, %v267, %v340
  %v342 = vsel %vm285, %v268, %v341
  %v343 = vsel %vm287, %v269, %v342
  %v344 = vsel %vm289, %v270, %v343
  %v345 = vsel %vm291, %v271, %v344
  %v346 = vsel %vm293, %v272, %v345
  %347 = vrot.lane.b32.xlu0 %v346, 96
  %v348 = vpop.permute.xlu0 %347
  %vm350 = vcmask 261120
  %v351 = vsel %vm350, %v294, %v312
  %vm352 = vcmask 523264
  %v353 = vsel %vm352, %v351, %v330
  %vm354 = vcmask 785408
  %v355 = vsel %vm354, %v353, %v348
  %v356 = vld [vmem:[%s1] sm:$0xff]
  %v357 = vld [vmem:[%s1 + $0x8] sm:$0xff]
  %v358 = vld [vmem:[%s1 + $0x10] sm:$0xff]
  %v359 = vld [vmem:[%s1 + $0x18] sm:$0xff]
  %v360 = vld [vmem:[%s1 + $0x20] sm:$0xff]
  %v361 = vld [vmem:[%s1 + $0x28] sm:$0xff]
  %v362 = vld [vmem:[%s1 + $0x30] sm:$0xff]
  %v363 = vld [vmem:[%s1 + $0x38] sm:$0xff]
  %v364 = vld [vmem:[%s1 + $0x40] sm:$0xff]
  %v365 = vld [vmem:[%s1 + $0x48] sm:$0xff]
  %v366 = vld [vmem:[%s1 + $0x50] sm:$0xff]
  %v367 = vld [vmem:[%s1 + $0x58] sm:$0xff]
  %v368 = vld [vmem:[%s1 + $0x60] sm:$0xff]
  %v369 = vld [vmem:[%s1 + $0x68] sm:$0xff]
  %v370 = vld [vmem:[%s1 + $0x70] sm:$0xff]
  %v371 = vld [vmem:[%s1 + $0x78] sm:$0xff]
  %v372 = vld [vmem:[%s2] sm:$0x1]
  %v374 = vlaneseq
  %v375 = vshrl.u32 %v374, 7
  %v376 = vsub.s32 0, %v375
  %v377 = vrot.slane %v372, %v376
  %379 = vmatprep.subr.mxu0 0.0
  %380 = vmatpush1.msra.mxu0 %v371
  %381 = vmatprep.subr.mxu0 0.0
  %382 = vmatpush1.msra.mxu0 %v370
  %383 = vmatprep.subr.mxu0 0.0
  %384 = vmatpush1.msra.mxu0 %v369
  %385 = vmatprep.subr.mxu0 0.0
  %386 = vmatpush1.msra.mxu0 %v368
  %387 = vmatprep.subr.mxu0 0.0
  %388 = vmatpush1.msra.mxu0 %v367
  %389 = vmatprep.subr.mxu0 0.0
  %390 = vmatpush1.msra.mxu0 %v366
  %391 = vmatprep.subr.mxu0 0.0
  %392 = vmatpush1.msra.mxu0 %v365
  %393 = vmatprep.subr.mxu0 0.0
  %394 = vmatpush1.msra.mxu0 %v364
  %395 = vmatprep.subr.mxu0 0.0
  %396 = vmatpush1.msra.mxu0 %v363
  %397 = vmatprep.subr.mxu0 0.0
  %398 = vmatpush1.msra.mxu0 %v362
  %399 = vmatprep.subr.mxu0 0.0
  %400 = vmatpush1.msra.mxu0 %v361
  %401 = vmatprep.subr.mxu0 0.0
  %402 = vmatpush1.msra.mxu0 %v360
  %403 = vmatprep.subr.mxu0 0.0
  %404 = vmatpush1.msra.mxu0 %v359
  %405 = vmatprep.subr.mxu0 0.0
  %406 = vmatpush1.msra.mxu0 %v358
  %407 = vmatprep.subr.mxu0 0.0
  %408 = vmatpush1.msra.mxu0 %v357
  %409 = vmatprep.subr.mxu0 0.0
  %410 = vmatpush1.msra.mxu0 %v356
  %411 = vmatprep.subr.mxu0 0.0
  %412 = vmatpush2.msra.mxu0 0.0
  %413 = vmatprep.subr.mxu0 0.0
  %414 = vmatpush2.msra.mxu0 0.0
  %415 = vmatprep.subr.mxu0 0.0
  %416 = vmatpush2.msra.mxu0 0.0
  %417 = vmatprep.subr.mxu0 0.0
  %418 = vmatpush2.msra.mxu0 0.0
  %419 = vmatprep.subr.mxu0 0.0
  %420 = vmatpush2.msra.mxu0 0.0
  %421 = vmatprep.subr.mxu0 0.0
  %422 = vmatpush2.msra.mxu0 0.0
  %423 = vmatprep.subr.mxu0 0.0
  %424 = vmatpush2.msra.mxu0 0.0
  %425 = vmatprep.subr.mxu0 0.0
  %426 = vmatpush2.msra.mxu0 0.0
  %427 = vmatprep.subr.mxu0 0.0
  %428 = vmatpush2.msra.mxu0 0.0
  %429 = vmatprep.subr.mxu0 0.0
  %430 = vmatpush2.msra.mxu0 0.0
  %431 = vmatprep.subr.mxu0 0.0
  %432 = vmatpush2.msra.mxu0 0.0
  %433 = vmatprep.subr.mxu0 0.0
  %434 = vmatpush2.msra.mxu0 0.0
  %435 = vmatprep.subr.mxu0 0.0
  %436 = vmatpush2.msra.mxu0 0.0
  %437 = vmatprep.subr.mxu0 0.0
  %438 = vmatpush2.msra.mxu0 0.0
  %439 = vmatprep.subr.mxu0 0.0
  %440 = vmatpush2.msra.mxu0 0.0
  %441 = vmatprep.subr.mxu0 0.0
  %442 = vmatpush2.msra.mxu0 0.0
  %443 = vmatprep.mubr.f32.mxu0 0.0
  %444 = vmatmul.mubr.f32.gmra.mxu0 %v355
  %v445 = vpop.f32.mrf.mxu0
  %v446 = vadd.f32 %v377, %v445
  %v447 = vpop.f32.mrf.mxu0
  %448 = vdwg.mxu0
  %v449 = vtanh.pop %v446
  %vm450 = vcmask 23552
  %451 = vst.msk [vmem:[%s3] sm:$0xff] %vm450, %v449
  // Predicated region
  $region14: #{esim_forward.7} parent=0 // pred_check
    _
  $region15: #{esim_forward.7} parent=0 // pred_check_branch
    %453 = sbr.rel (0) target = $region17
  $region16: #{esim_forward.7} parent=0 // pred_region
    _
  $region17: #{esim_forward.7} parent=0 // pred_fallthru
    _
  // Predicated region
  $region18: #{esim_forward.7} parent=0 // pred_check
    _
  $region19: #{esim_forward.7} parent=0 // pred_check_branch
    %455 = sbr.rel (0) target = $region21
  $region20: #{esim_forward.7} parent=0 // pred_region
    _
  $region21: #{esim_forward.7} parent=0 // pred_fallthru
    _

// kernel: esim_forward.4
$region0: #{esim_forward.4}
  #allocation0 [shape = 'u32[]', space=smem, size = 0x4, offset = 0x4, fixed_abs, tag = 'smem constant byte address 0x4 - core index']
  #allocation1 [shape = 'u32[144,128]{1,0:T(1,128)}', space=vmem, size = 0x12000, scoped, tag = 'internal scratch']
  #allocation2 [shape = 'f32[8,4,16]{2,1,0:T(4,128)}', space=vmem, size = 0x4000, scoped, tag = 'scratch operand']
  #allocation3 [shape = 'f32[8,4,16]{2,1,0:T(4,128)}', space=vmem, size = 0x4000, scoped, tag = 'scratch operand']
  %s0 = inlined_call_operand.vmem [shape: f32[2,8,4,16], index: 0, kind: input, shape index: {}]
  %s1 = inlined_call_operand.vmem [shape: f32[2,32,64], index: 1, kind: input, shape index: {}]
  %s2 = inlined_call_operand.vmem [shape: f32[2,1,64], index: 2, kind: input, shape index: {}]
  %s3 = inlined_call_operand.vmem [shape: f32[2,8,4,32], index: 3, kind: output, shape index: {}]
  %s4 = sld [smem:[#allocation0]]
  $region45: #{esim_forward.4} parent=0
    _
  %s6 = ssub.s32 1, %s4
  %s7 = scalar_select 0, %s6, %s4
  loop: start=0, step=1, limit=4
  $region2: #{esim_forward.4} parent=0 // loop_pre_header
    _
  $region3: #{esim_forward.4} parent=0 // loop_header
    %s9 = sphi 0, %s13
    %p10 = scmp.ge.s32.totalorder %s9, 4
    %s19 = sphi 0, %s21
    %s22 = sphi 0, %s19
    %s23 = sphi 0, %s22
    %s39 = sphi 0, %s23
    %s43 = sphi 0, %s43
    %s45 = sphi 0, %s43
    %s46 = sphi 0, %s45
    %s60 = sphi 0, %s46
    %s64 = sphi 0, %s64
    %s66 = sphi 0, %s64
    %s67 = sphi 0, %s66
    %s81 = sphi 0, %s67
    %s87 = sphi 0, %s89
    %s90 = sphi 0, %s87
    %s91 = sphi 0, %s90
    %s107 = sphi 0, %s91
  $region4: #{esim_forward.4} parent=0 // loop_header_branch
    %12 = sbr.rel (%p10) target = $region8
  $region5: #{esim_forward.4} parent=0 // loop_body
    %s14 = ssub.s32 %s9, 1
    %s15 = ssub.s32 %s9, 2
    %s16 = sadd.s32 %s9, 1
    %s17 = ssub.s32 %s9, %s16
    %p18 = scmp.eq.s32.totalorder %s17, 0
    %s20 = sadd.s32 %s19, 1
    %s21 = scalar_select %p18, %s19, %s20
    %p24 = pneg %p18
    %p25 = scmp.eq.s32.totalorder %s9, 1
    %p26 = por %p24, %p25
    %p27 = scmp.ne.s32.totalorder %s19, %s22
    %p28 = scmp.eq.s32.totalorder %s9, 0
    %p29 = por %p27, %p28
    %p30 = scmp.ne.s32.totalorder %s19, %s22
    %p31 = scmp.eq.s32.totalorder %s14, 1
    %p32 = por %p30, %p31
    %p33 = scmp.ne.s32.totalorder %s22, %s23
    %p34 = scmp.eq.s32.totalorder %s14, 0
    %p35 = por %p33, %p34
    %p36 = scmp.ne.s32.totalorder %s22, %s23
    %p37 = scmp.eq.s32.totalorder %s15, 1
    %p38 = por %p36, %p37
    %p40 = scmp.ne.s32.totalorder %s23, %s39
    %p41 = scmp.eq.s32.totalorder %s15, 0
    %p42 = por %p40, %p41
    %s44 = sadd.s32 %s43, 1
    %p47 = scmp.eq.s32.totalorder %s9, 1
    %p48 = scmp.ne.s32.totalorder %s43, %s45
    %p49 = scmp.eq.s32.totalorder %s9, 0
    %p50 = por %p48, %p49
    %p51 = scmp.ne.s32.totalorder %s43, %s45
    %p52 = scmp.eq.s32.totalorder %s14, 1
    %p53 = por %p51, %p52
    %p54 = scmp.ne.s32.totalorder %s45, %s46
    %p55 = scmp.eq.s32.totalorder %s14, 0
    %p56 = por %p54, %p55
    %p57 = scmp.ne.s32.totalorder %s45, %s46
    %p58 = scmp.eq.s32.totalorder %s15, 1
    %p59 = por %p57, %p58
    %p61 = scmp.ne.s32.totalorder %s46, %s60
    %p62 = scmp.eq.s32.totalorder %s15, 0
    %p63 = por %p61, %p62
    %s65 = sadd.s32 %s64, 1
    %p68 = scmp.eq.s32.totalorder %s9, 1
    %p69 = scmp.ne.s32.totalorder %s64, %s66
    %p70 = scmp.eq.s32.totalorder %s9, 0
    %p71 = por %p69, %p70
    %p72 = scmp.ne.s32.totalorder %s64, %s66
    %p73 = scmp.eq.s32.totalorder %s14, 1
    %p74 = por %p72, %p73
    %p75 = scmp.ne.s32.totalorder %s66, %s67
    %p76 = scmp.eq.s32.totalorder %s14, 0
    %p77 = por %p75, %p76
    %p78 = scmp.ne.s32.totalorder %s66, %s67
    %p79 = scmp.eq.s32.totalorder %s15, 1
    %p80 = por %p78, %p79
    %p82 = scmp.ne.s32.totalorder %s67, %s81
    %p83 = scmp.eq.s32.totalorder %s15, 0
    %p84 = por %p82, %p83
    %s85 = ssub.s32 %s9, %s16
    %p86 = scmp.eq.s32.totalorder %s85, 0
    %s88 = sadd.s32 %s87, 1
    %s89 = scalar_select %p86, %s87, %s88
    %p92 = pneg %p86
    %p93 = scmp.eq.s32.totalorder %s9, 1
    %p94 = por %p92, %p93
    %p95 = scmp.ne.s32.totalorder %s87, %s90
    %p96 = scmp.eq.s32.totalorder %s9, 0
    %p97 = por %p95, %p96
    %p98 = scmp.ne.s32.totalorder %s87, %s90
    %p99 = scmp.eq.s32.totalorder %s14, 1
    %p100 = por %p98, %p99
    %p101 = scmp.ne.s32.totalorder %s90, %s91
    %p102 = scmp.eq.s32.totalorder %s14, 0
    %p103 = por %p101, %p102
    %p104 = scmp.ne.s32.totalorder %s90, %s91
    %p105 = scmp.eq.s32.totalorder %s15, 1
    %p106 = por %p104, %p105
    %p108 = scmp.ne.s32.totalorder %s91, %s107
    %p109 = scmp.eq.s32.totalorder %s15, 0
    %p110 = por %p108, %p109
    %p111 = scmp.le.s32.totalorder 1, %s9
    %p112 = scmp.lt.s32.totalorder %s9, 3
    %p113 = pnand %p111, %p112
    %p114 = pneg %p113
    // Predicated region
    $region9: #{esim_forward.4} parent=5 // pred_check
      _
    $region10: #{esim_forward.4} parent=5 // pred_check_branch
      %116 = sbr.rel (%p113) target = $region12
    $region11: #{esim_forward.4} parent=5 // pred_region
      %s117 = ssub.s32 %s9, 1
      // Predicated region
      $region13: #{esim_forward.4} parent=11 // pred_check
        %p118 = pneg %p56
      $region14: #{esim_forward.4} parent=11 // pred_check_branch
        %120 = sbr.rel (%p118) target = $region16
      $region15: #{esim_forward.4} parent=11 // pred_region
        _
      $region16: #{esim_forward.4} parent=11 // pred_fallthru
        _
      // Predicated region
      $region17: #{esim_forward.4} parent=11 // pred_check
        %p121 = pneg %p77
      $region18: #{esim_forward.4} parent=11 // pred_check_branch
        %123 = sbr.rel (%p121) target = $region20
      $region19: #{esim_forward.4} parent=11 // pred_region
        _
      $region20: #{esim_forward.4} parent=11 // pred_fallthru
        _
    $region12: #{esim_forward.4} parent=5 // pred_fallthru
      _
    %p124 = scmp.lt.s32.totalorder %s9, 2
    // Predicated region
    $region21: #{esim_forward.4} parent=5 // pred_check
      %p125 = pneg %p124
    $region22: #{esim_forward.4} parent=5 // pred_check_branch
      %127 = sbr.rel (%p125) target = $region24
    $region23: #{esim_forward.4} parent=5 // pred_region
      // Predicated region
      $region25: #{esim_forward.4} parent=23 // pred_check
        %p128 = pneg %p29
      $region26: #{esim_forward.4} parent=23 // pred_check_branch
        %130 = sbr.rel (%p128) target = $region28
      $region27: #{esim_forward.4} parent=23 // pred_region
        %p131 = scmp.lt.s32.totalorder %s9, 1
        %s132 = scalar_select %p131, %s9, 1
        %s133 = smul.addr %s132, 8
        %s134 = smul.addr %s133, 4
        %s135 = scalar_lea.vmem %s0, %s134
      $region28: #{esim_forward.4} parent=23 // pred_fallthru
        _
    $region24: #{esim_forward.4} parent=5 // pred_fallthru
      _
    %p136 = scmp.le.s32.totalorder 1, %s9
    %p137 = scmp.lt.s32.totalorder %s9, 3
    %p138 = pnand %p136, %p137
    %p139 = pneg %p138
    // Predicated region
    $region29: #{esim_forward.4} parent=5 // pred_check
      _
    $region30: #{esim_forward.4} parent=5 // pred_check_branch
      %141 = sbr.rel (%p138) target = $region32
    $region31: #{esim_forward.4} parent=5 // pred_region
      %s142 = ssub.s32 %s9, 1
      %p143 = scmp.lt.s32.totalorder %s14, 1
      %s144 = scalar_select %p143, %s14, 1
      %s145 = smul.addr %s144, 8
      %s146 = smul.addr %s145, 4
      %s147 = scalar_lea.vmem %s0, %s146
      %p148 = pneg %p35
      %p149 = pneg %p32
      %p150 = pneg %p56
      %p151 = pneg %p53
      %p152 = pneg %p77
      %p153 = pneg %p74
      %p154 = pneg %p103
      %p155 = pneg %p100
      %p156 = scmp.lt.s32.totalorder %s14, 1
      %s157 = scalar_select %p156, %s14, 1
      %s158 = smul.addr %s157, 8
      %s159 = smul.addr %s158, 4
      %s160 = scalar_lea.vmem %s3, %s159
      %p161 = scmp.lt.s32.totalorder %s14, 1
      %s162 = scalar_select %p161, %s14, 1
      %s163 = smul.addr %s162, 8
      %s164 = smul.addr %s163, 4
      %s165 = scalar_lea.vmem %s0, %s164
      %p166 = scmp.lt.s32.totalorder %s14, 1
      %s167 = scalar_select %p166, %s14, 1
      %s168 = smul.addr %s167, 8
      %s169 = smul.addr %s168, 4
      %s170 = scalar_lea.vmem %s3, %s169
      %v171 = vld [vmem:[%s1] sm:$0xff]
      %v172 = vld [vmem:[%s1 + $0x8] sm:$0xff]
      %v173 = vld [vmem:[%s1 + $0x10] sm:$0xff]
      %v174 = vld [vmem:[%s1 + $0x18] sm:$0xff]
      %s175 = scalar_lea.vmem %s1, 32
      %v176 = vld [vmem:[%s175] sm:$0xff]
      %v177 = vld [vmem:[%s175 + $0x8] sm:$0xff]
      %v178 = vld [vmem:[%s175 + $0x10] sm:$0xff]
      %v179 = vld [vmem:[%s175 + $0x18] sm:$0xff]
      %v180 = vld [vmem:[%s2] sm:$0x1]
      %s181 = scalar_lea.vmem %s2, 1
      %v182 = vld [vmem:[%s181] sm:$0x1]
      %v183 = vld [vmem:[%s165] sm:$0xf]
      %vm184 = vcmask 130048
      %v185 = vsel %vm184, %v183, 0.0
      %v187 = vlaneseq
      %v188 = vshrl.u32 %v187, 7
      %v189 = vsub.s32 0, %v188
      %v190 = vrot.slane %v180, %v189
      %vm192 = vcmask 261120
      %v194 = vsel %vm192, %v185, 0
      %196 = vmatprep.subr.mxu0 0.0
      %197 = vmatpush1.msra.mxu0 0.0
      %198 = vmatprep.subr.mxu0 0.0
      %199 = vmatpush1.msra.mxu0 0.0
      %200 = vmatprep.subr.mxu0 0.0
      %201 = vmatpush1.msra.mxu0 0.0
      %202 = vmatprep.subr.mxu0 0.0
      %203 = vmatpush1.msra.mxu0 0.0
      %204 = vmatprep.subr.mxu0 0.0
      %205 = vmatpush1.msra.mxu0 0.0
      %206 = vmatprep.subr.mxu0 0.0
      %207 = vmatpush1.msra.mxu0 0.0
      %208 = vmatprep.subr.mxu0 0.0
      %209 = vmatpush1.msra.mxu0 0.0
      %210 = vmatprep.subr.mxu0 0.0
      %211 = vmatpush1.msra.mxu0 0.0
      %212 = vmatprep.subr.mxu0 0.0
      %213 = vmatpush1.msra.mxu0 0.0
      %214 = vmatprep.subr.mxu0 0.0
      %215 = vmatpush1.msra.mxu0 0.0
      %216 = vmatprep.subr.mxu0 0.0
      %217 = vmatpush1.msra.mxu0 0.0
      %218 = vmatprep.subr.mxu0 0.0
      %219 = vmatpush1.msra.mxu0 0.0
      %220 = vmatprep.subr.mxu0 0.0
      %221 = vmatpush1.msra.mxu0 %v174
      %222 = vmatprep.subr.mxu0 0.0
      %223 = vmatpush1.msra.mxu0 %v173
      %224 = vmatprep.subr.mxu0 0.0
      %225 = vmatpush1.msra.mxu0 %v172
      %226 = vmatprep.subr.mxu0 0.0
      %227 = vmatpush1.msra.mxu0 %v171
      %228 = vmatprep.subr.mxu0 0.0
      %229 = vmatpush2.msra.mxu0 0.0
      %230 = vmatprep.subr.mxu0 0.0
      %231 = vmatpush2.msra.mxu0 0.0
      %232 = vmatprep.subr.mxu0 0.0
      %233 = vmatpush2.msra.mxu0 0.0
      %234 = vmatprep.subr.mxu0 0.0
      %235 = vmatpush2.msra.mxu0 0.0
      %236 = vmatprep.subr.mxu0 0.0
      %237 = vmatpush2.msra.mxu0 0.0
      %238 = vmatprep.subr.mxu0 0.0
      %239 = vmatpush2.msra.mxu0 0.0
      %240 = vmatprep.subr.mxu0 0.0
      %241 = vmatpush2.msra.mxu0 0.0
      %242 = vmatprep.subr.mxu0 0.0
      %243 = vmatpush2.msra.mxu0 0.0
      %244 = vmatprep.subr.mxu0 0.0
      %245 = vmatpush2.msra.mxu0 0.0
      %246 = vmatprep.subr.mxu0 0.0
      %247 = vmatpush2.msra.mxu0 0.0
      %248 = vmatprep.subr.mxu0 0.0
      %249 = vmatpush2.msra.mxu0 0.0
      %250 = vmatprep.subr.mxu0 0.0
      %251 = vmatpush2.msra.mxu0 0.0
      %252 = vmatprep.subr.mxu0 0.0
      %253 = vmatpush2.msra.mxu0 0.0
      %254 = vmatprep.subr.mxu0 0.0
      %255 = vmatpush2.msra.mxu0 0.0
      %256 = vmatprep.subr.mxu0 0.0
      %257 = vmatpush2.msra.mxu0 0.0
      %258 = vmatprep.subr.mxu0 0.0
      %259 = vmatpush2.msra.mxu0 0.0
      %260 = vmatprep.mubr.f32.mxu0 0.0
      %261 = vmatmul.mubr.f32.gmra.mxu0 %v194
      %v262 = vpop.f32.mrf.mxu0
      %v263 = vadd.f32 %v190, %v262
      %v264 = vpop.f32.mrf.mxu0
      %265 = vdwg.mxu0
      %v266 = vxor.u32 %v263, 2147483648
      %v267 = vmul.f32 %v266, 1.442695
      %v268 = vpow.pop %v267
      %v269 = vadd.f32 %v268, 1.0
      %v270 = vrcp.pop %v269
      %v271 = vmul.f32 1.0, %v270
      %v272 = vtanh.pop %v263
      %v273 = vmul.f32 %v271, 0.0
      %275 = vrot.lane.b32.xlu0 %v272, 96
      %v276 = vpop.permute.xlu0 %275
      %v278 = vmul.f32 %v271, %v276
      %280 = vrot.lane.b32.xlu0 %v278, 16
      %v281 = vpop.permute.xlu0 %280
      %v283 = vadd.f32 %v273, %v281
      %v284 = vtanh.pop %v283
      %286 = vrot.lane.b32.xlu0 %v284, 32
      %v287 = vpop.permute.xlu0 %286
      %v289 = vmul.f32 %v271, %v287
      %s290 = scalar_lea.vmem %s165, 28
      %v291 = vld [vmem:[%s290] sm:$0xf]
      %v292 = vsel %vm184, %v291, 0.0
      %v294 = vlaneseq
      %v295 = vshrl.u32 %v294, 7
      %v296 = vsub.s32 0, %v295
      %v297 = vrot.slane %v182, %v296
      %v300 = vsel %vm192, %v292, 0
      %302 = vmatprep.subr.mxu0 0.0
      %303 = vmatpush1.msra.mxu0 0.0
      %304 = vmatprep.subr.mxu0 0.0
      %305 = vmatpush1.msra.mxu0 0.0
      %306 = vmatprep.subr.mxu0 0.0
      %307 = vmatpush1.msra.mxu0 0.0
      %308 = vmatprep.subr.mxu0 0.0
      %309 = vmatpush1.msra.mxu0 0.0
      %310 = vmatprep.subr.mxu0 0.0
      %311 = vmatpush1.msra.mxu0 0.0
      %312 = vmatprep.subr.mxu0 0.0
      %313 = vmatpush1.msra.mxu0 0.0
      %314 = vmatprep.subr.mxu0 0.0
      %315 = vmatpush1.msra.mxu0 0.0
      %316 = vmatprep.subr.mxu0 0.0
      %317 = vmatpush1.msra.mxu0 0.0
      %318 = vmatprep.subr.mxu0 0.0
      %319 = vmatpush1.msra.mxu0 0.0
      %320 = vmatprep.subr.mxu0 0.0
      %321 = vmatpush1.msra.mxu0 0.0
      %322 = vmatprep.subr.mxu0 0.0
      %323 = vmatpush1.msra.mxu0 0.0
      %324 = vmatprep.subr.mxu0 0.0
      %325 = vmatpush1.msra.mxu0 0.0
      %326 = vmatprep.subr.mxu0 0.0
      %327 = vmatpush1.msra.mxu0 %v179
      %328 = vmatprep.subr.mxu0 0.0
      %329 = vmatpush1.msra.mxu0 %v178
      %330 = vmatprep.subr.mxu0 0.0
      %331 = vmatpush1.msra.mxu0 %v177
      %332 = vmatprep.subr.mxu0 0.0
      %333 = vmatpush1.msra.mxu0 %v176
      %334 = vmatprep.subr.mxu0 0.0
      %335 = vmatpush2.msra.mxu0 0.0
      %336 = vmatprep.subr.mxu0 0.0
      %337 = vmatpush2.msra.mxu0 0.0
      %338 = vmatprep.subr.mxu0 0.0
      %339 = vmatpush2.msra.mxu0 0.0
      %340 = vmatprep.subr.mxu0 0.0
      %341 = vmatpush2.msra.mxu0 0.0
      %342 = vmatprep.subr.mxu0 0.0
      %343 = vmatpush2.msra.mxu0 0.0
      %344 = vmatprep.subr.mxu0 0.0
      %345 = vmatpush2.msra.mxu0 0.0
      %346 = vmatprep.subr.mxu0 0.0
      %347 = vmatpush2.msra.mxu0 0.0
      %348 = vmatprep.subr.mxu0 0.0
      %349 = vmatpush2.msra.mxu0 0.0
      %350 = vmatprep.subr.mxu0 0.0
      %351 = vmatpush2.msra.mxu0 0.0
      %352 = vmatprep.subr.mxu0 0.0
      %353 = vmatpush2.msra.mxu0 0.0
      %354 = vmatprep.subr.mxu0 0.0
      %355 = vmatpush2.msra.mxu0 0.0
      %356 = vmatprep.subr.mxu0 0.0
      %357 = vmatpush2.msra.mxu0 0.0
      %358 = vmatprep.subr.mxu0 0.0
      %359 = vmatpush2.msra.mxu0 0.0
      %360 = vmatprep.subr.mxu0 0.0
      %361 = vmatpush2.msra.mxu0 0.0
      %362 = vmatprep.subr.mxu0 0.0
      %363 = vmatpush2.msra.mxu0 0.0
      %364 = vmatprep.subr.mxu0 0.0
      %365 = vmatpush2.msra.mxu0 0.0
      %366 = vmatprep.mubr.f32.mxu0 0.0
      %367 = vmatmul.mubr.f32.gmra.mxu0 %v300
      %v368 = vpop.f32.mrf.mxu0
      %v369 = vadd.f32 %v297, %v368
      %v370 = vpop.f32.mrf.mxu0
      %371 = vdwg.mxu0
      %v372 = vxor.u32 %v369, 2147483648
      %v373 = vmul.f32 %v372, 1.442695
      %v374 = vpow.pop %v373
      %v375 = vadd.f32 %v374, 1.0
      %v376 = vrcp.pop %v375
      %v377 = vmul.f32 1.0, %v376
      %v378 = vtanh.pop %v369
      %v379 = vmul.f32 %v377, 0.0
      %381 = vrot.lane.b32.xlu0 %v378, 96
      %v382 = vpop.permute.xlu0 %381
      %v384 = vmul.f32 %v377, %v382
      %386 = vrot.lane.b32.xlu0 %v384, 16
      %v387 = vpop.permute.xlu0 %386
      %v389 = vadd.f32 %v379, %v387
      %v390 = vtanh.pop %v389
      %392 = vrot.lane.b32.xlu0 %v390, 32
      %v393 = vpop.permute.xlu0 %392
      %v395 = vmul.f32 %v377, %v393
      %397 = vrot.lane.b32.xlu0 %v289, 80
      %v398 = vpop.permute.xlu0 %397
      %vm400 = vcmask 125952
      %401 = vst.msk [vmem:[#allocation2] sm:$0xf] %vm400, %v398
      %403 = vrot.lane.b32.xlu0 %v395, 80
      %v404 = vpop.permute.xlu0 %403
      %s406 = scalar_lea.vmem [#allocation3], 28
      %407 = vst.msk [vmem:[%s406] sm:$0xf] %vm400, %v404
      %s408 = scalar_lea.vmem %s165, 4
      %v409 = vld [vmem:[%s408] sm:$0xf]
      %410 = vrot.lane.b32.xlu0 %v289, 96
      %v411 = vpop.permute.xlu0 %410
      %v413 = vsel %vm184, %v409, %v411
      %v415 = vsel %vm192, %v413, 0
      %417 = vmatprep.subr.mxu0 0.0
      %418 = vmatpush1.msra.mxu0 0.0
      %419 = vmatprep.subr.mxu0 0.0
      %420 = vmatpush1.msra.mxu0 0.0
      %421 = vmatprep.subr.mxu0 0.0
      %422 = vmatpush1.msra.mxu0 0.0
      %423 = vmatprep.subr.mxu0 0.0
      %424 = vmatpush1.msra.mxu0 0.0
      %425 = vmatprep.subr.mxu0 0.0
      %426 = vmatpush1.msra.mxu0 0.0
      %427 = vmatprep.subr.mxu0 0.0
      %428 = vmatpush1.msra.mxu0 0.0
      %429 = vmatprep.subr.mxu0 0.0
      %430 = vmatpush1.msra.mxu0 0.0
      %431 = vmatprep.subr.mxu0 0.0
      %432 = vmatpush1.msra.mxu0 0.0
      %433 = vmatprep.subr.mxu0 0.0
      %434 = vmatpush1.msra.mxu0 0.0
      %435 = vmatprep.subr.mxu0 0.0
      %436 = vmatpush1.msra.mxu0 0.0
      %437 = vmatprep.subr.mxu0 0.0
      %438 = vmatpush1.msra.mxu0 0.0
      %439 = vmatprep.subr.mxu0 0.0
      %440 = vmatpush1.msra.mxu0 0.0
      %441 = vmatprep.subr.mxu0 0.0
      %442 = vmatpush1.msra.mxu0 %v174
      %443 = vmatprep.subr.mxu0 0.0
      %444 = vmatpush1.msra.mxu0 %v173
      %445 = vmatprep.subr.mxu0 0.0
      %446 = vmatpush1.msra.mxu0 %v172
      %447 = vmatprep.subr.mxu0 0.0
      %448 = vmatpush1.msra.mxu0 %v171
      %449 = vmatprep.subr.mxu0 0.0
      %450 = vmatpush2.msra.mxu0 0.0
      %451 = vmatprep.subr.mxu0 0.0
      %452 = vmatpush2.msra.mxu0 0.0
      %453 = vmatprep.subr.mxu0 0.0
      %454 = vmatpush2.msra.mxu0 0.0
      %455 = vmatprep.subr.mxu0 0.0
      %456 = vmatpush2.msra.mxu0 0.0
      %457 = vmatprep.subr.mxu0 0.0
      %458 = vmatpush2.msra.mxu0 0.0
      %459 = vmatprep.subr.mxu0 0.0
      %460 = vmatpush2.msra.mxu0 0.0
      %461 = vmatprep.subr.mxu0 0.0
      %462 = vmatpush2.msra.mxu0 0.0
      %463 = vmatprep.subr.mxu0 0.0
      %464 = vmatpush2.msra.mxu0 0.0
      %465 = vmatprep.subr.mxu0 0.0
      %466 = vmatpush2.msra.mxu0 0.0
      %467 = vmatprep.subr.mxu0 0.0
      %468 = vmatpush2.msra.mxu0 0.0
      %469 = vmatprep.subr.mxu0 0.0
      %470 = vmatpush2.msra.mxu0 0.0
      %471 = vmatprep.subr.mxu0 0.0
      %472 = vmatpush2.msra.mxu0 0.0
      %473 = vmatprep.subr.mxu0 0.0
      %474 = vmatpush2.msra.mxu0 0.0
      %475 = vmatprep.subr.mxu0 0.0
      %476 = vmatpush2.msra.mxu0 0.0
      %477 = vmatprep.subr.mxu0 0.0
      %478 = vmatpush2.msra.mxu0 0.0
      %479 = vmatprep.subr.mxu0 0.0
      %480 = vmatpush2.msra.mxu0 0.0
      %481 = vmatprep.mubr.f32.mxu0 0.0
      %482 = vmatmul.mubr.f32.gmra.mxu0 %v415
      %v483 = vpop.f32.mrf.mxu0
      %v484 = vadd.f32 %v190, %v483
      %v485 = vpop.f32.mrf.mxu0
      %486 = vdwg.mxu0
      %v487 = vxor.u32 %v484, 2147483648
      %v488 = vmul.f32 %v487, 1.442695
      %v489 = vpow.pop %v488
      %v490 = vadd.f32 %v489, 1.0
      %v491 = vrcp.pop %v490
      %v492 = vmul.f32 1.0, %v491
      %v493 = vtanh.pop %v484
      %v494 = vmul.f32 %v492, %v283
      %496 = vrot.lane.b32.xlu0 %v493, 96
      %v497 = vpop.permute.xlu0 %496
      %v499 = vmul.f32 %v492, %v497
      %501 = vrot.lane.b32.xlu0 %v499, 16
      %v502 = vpop.permute.xlu0 %501
      %v504 = vadd.f32 %v494, %v502
      %v505 = vtanh.pop %v504
      %507 = vrot.lane.b32.xlu0 %v505, 32
      %v508 = vpop.permute.xlu0 %507
      %v510 = vmul.f32 %v492, %v508
      %s511 = scalar_lea.vmem %s165, 24
      %v512 = vld [vmem:[%s511] sm:$0xf]
      %513 = vrot.lane.b32.xlu0 %v395, 96
      %v514 = vpop.permute.xlu0 %513
      %v516 = vsel %vm184, %v512, %v514
      %v518 = vsel %vm192, %v516, 0
      %520 = vmatprep.subr.mxu0 0.0
      %521 = vmatpush1.msra.mxu0 0.0
      %522 = vmatprep.subr.mxu0 0.0
      %523 = vmatpush1.msra.mxu0 0.0
      %524 = vmatprep.subr.mxu0 0.0
      %525 = vmatpush1.msra.mxu0 0.0
      %526 = vmatprep.subr.mxu0 0.0
      %527 = vmatpush1.msra.mxu0 0.0
      %528 = vmatprep.subr.mxu0 0.0
      %529 = vmatpush1.msra.mxu0 0.0
      %530 = vmatprep.subr.mxu0 0.0
      %531 = vmatpush1.msra.mxu0 0.0
      %532 = vmatprep.subr.mxu0 0.0
      %533 = vmatpush1.msra.mxu0 0.0
      %534 = vmatprep.subr.mxu0 0.0
      %535 = vmatpush1.msra.mxu0 0.0
      %536 = vmatprep.subr.mxu0 0.0
      %537 = vmatpush1.msra.mxu0 0.0
      %538 = vmatprep.subr.mxu0 0.0
      %539 = vmatpush1.msra.mxu0 0.0
      %540 = vmatprep.subr.mxu0 0.0
      %541 = vmatpush1.msra.mxu0 0.0
      %542 = vmatprep.subr.mxu0 0.0
      %543 = vmatpush1.msra.mxu0 0.0
      %544 = vmatprep.subr.mxu0 0.0
      %545 = vmatpush1.msra.mxu0 %v179
      %546 = vmatprep.subr.mxu0 0.0
      %547 = vmatpush1.msra.mxu0 %v178
      %548 = vmatprep.subr.mxu0 0.0
      %549 = vmatpush1.msra.mxu0 %v177
      %550 = vmatprep.subr.mxu0 0.0
      %551 = vmatpush1.msra.mxu0 %v176
      %552 = vmatprep.subr.mxu0 0.0
      %553 = vmatpush2.msra.mxu0 0.0
      %554 = vmatprep.subr.mxu0 0.0
      %555 = vmatpush2.msra.mxu0 0.0
      %556 = vmatprep.subr.mxu0 0.0
      %557 = vmatpush2.msra.mxu0 0.0
      %558 = vmatprep.subr.mxu0 0.0
      %559 = vmatpush2.msra.mxu0 0.0
      %560 = vmatprep.subr.mxu0 0.0
      %561 = vmatpush2.msra.mxu0 0.0
      %562 = vmatprep.subr.mxu0 0.0
      %563 = vmatpush2.msra.mxu0 0.0
      %564 = vmatprep.subr.mxu0 0.0
      %565 = vmatpush2.msra.mxu0 0.0
      %566 = vmatprep.subr.mxu0 0.0
      %567 = vmatpush2.msra.mxu0 0.0
      %568 = vmatprep.subr.mxu0 0.0
      %569 = vmatpush2.msra.mxu0 0.0
      %570 = vmatprep.subr.mxu0 0.0
      %571 = vmatpush2.msra.mxu0 0.0
      %572 = vmatprep.subr.mxu0 0.0
      %573 = vmatpush2.msra.mxu0 0.0
      %574 = vmatprep.subr.mxu0 0.0
      %575 = vmatpush2.msra.mxu0 0.0
      %576 = vmatprep.subr.mxu0 0.0
      %577 = vmatpush2.msra.mxu0 0.0
      %578 = vmatprep.subr.mxu0 0.0
      %579 = vmatpush2.msra.mxu0 0.0
      %580 = vmatprep.subr.mxu0 0.0
      %581 = vmatpush2.msra.mxu0 0.0
      %582 = vmatprep.subr.mxu0 0.0
      %583 = vmatpush2.msra.mxu0 0.0
      %584 = vmatprep.mubr.f32.mxu0 0.0
      %585 = vmatmul.mubr.f32.gmra.mxu0 %v518
      %v586 = vpop.f32.mrf.mxu0
      %v587 = vadd.f32 %v297, %v586
      %v588 = vpop.f32.mrf.mxu0
      %589 = vdwg.mxu0
      %v590 = vxor.u32 %v587, 2147483648
      %v591 = vmul.f32 %v590, 1.442695
      %v592 = vpow.pop %v591
      %v593 = vadd.f32 %v592, 1.0
      %v594 = vrcp.pop %v593
      %v595 = vmul.f32 1.0, %v594
      %v596 = vtanh.pop %v587
      %v597 = vmul.f32 %v595, %v389
      %599 = vrot.lane.b32.xlu0 %v596, 96
      %v600 = vpop.permute.xlu0 %599
      %v602 = vmul.f32 %v595, %v600
      %604 = vrot.lane.b32.xlu0 %v602, 16
      %v605 = vpop.permute.xlu0 %604
      %v607 = vadd.f32 %v597, %v605
      %v608 = vtanh.pop %v607
      %610 = vrot.lane.b32.xlu0 %v608, 32
      %v611 = vpop.permute.xlu0 %610
      %v613 = vmul.f32 %v595, %v611
      %615 = vrot.lane.b32.xlu0 %v510, 80
      %v616 = vpop.permute.xlu0 %615
      %s618 = scalar_lea.vmem [#allocation2], 4
      %619 = vst.msk [vmem:[%s618] sm:$0xf] %vm400, %v616
      %621 = vrot.lane.b32.xlu0 %v613, 80
      %v622 = vpop.permute.xlu0 %621
      %s624 = scalar_lea.vmem [#allocation3], 24
      %625 = vst.msk [vmem:[%s624] sm:$0xf] %vm400, %v622
      %s626 = scalar_lea.vmem %s165, 8
      %v627 = vld [vmem:[%s626] sm:$0xf]
      %628 = vrot.lane.b32.xlu0 %v510, 96
      %v629 = vpop.permute.xlu0 %628
      %v631 = vsel %vm184, %v627, %v629
      %v633 = vsel %vm192, %v631, 0
      %635 = vmatprep.subr.mxu0 0.0
      %636 = vmatpush1.msra.mxu0 0.0
      %637 = vmatprep.subr.mxu0 0.0
      %638 = vmatpush1.msra.mxu0 0.0
      %639 = vmatprep.subr.mxu0 0.0
      %640 = vmatpush1.msra.mxu0 0.0
      %641 = vmatprep.subr.mxu0 0.0
      %642 = vmatpush1.msra.mxu0 0.0
      %643 = vmatprep.subr.mxu0 0.0
      %644 = vmatpush1.msra.mxu0 0.0
      %645 = vmatprep.subr.mxu0 0.0
      %646 = vmatpush1.msra.mxu0 0.0
      %647 = vmatprep.subr.mxu0 0.0
      %648 = vmatpush1.msra.mxu0 0.0
      %649 = vmatprep.subr.mxu0 0.0
      %650 = vmatpush1.msra.mxu0 0.0
      %651 = vmatprep.subr.mxu0 0.0
      %652 = vmatpush1.msra.mxu0 0.0
      %653 = vmatprep.subr.mxu0 0.0
      %654 = vmatpush1.msra.mxu0 0.0
      %655 = vmatprep.subr.mxu0 0.0
      %656 = vmatpush1.msra.mxu0 0.0
      %657 = vmatprep.subr.mxu0 0.0
      %658 = vmatpush1.msra.mxu0 0.0
      %659 = vmatprep.subr.mxu0 0.0
      %660 = vmatpush1.msra.mxu0 %v174
      %661 = vmatprep.subr.mxu0 0.0
      %662 = vmatpush1.msra.mxu0 %v173
      %663 = vmatprep.subr.mxu0 0.0
      %664 = vmatpush1.msra.mxu0 %v172
      %665 = vmatprep.subr.mxu0 0.0
      %666 = vmatpush1.msra.mxu0 %v171
      %667 = vmatprep.subr.mxu0 0.0
      %668 = vmatpush2.msra.mxu0 0.0
      %669 = vmatprep.subr.mxu0 0.0
      %670 = vmatpush2.msra.mxu0 0.0
      %671 = vmatprep.subr.mxu0 0.0
      %672 = vmatpush2.msra.mxu0 0.0
      %673 = vmatprep.subr.mxu0 0.0
      %674 = vmatpush2.msra.mxu0 0.0
      %675 = vmatprep.subr.mxu0 0.0
      %676 = vmatpush2.msra.mxu0 0.0
      %677 = vmatprep.subr.mxu0 0.0
      %678 = vmatpush2.msra.mxu0 0.0
      %679 = vmatprep.subr.mxu0 0.0
      %680 = vmatpush2.msra.mxu0 0.0
      %681 = vmatprep.subr.mxu0 0.0
      %682 = vmatpush2.msra.mxu0 0.0
      %683 = vmatprep.subr.mxu0 0.0
      %684 = vmatpush2.msra.mxu0 0.0
      %685 = vmatprep.subr.mxu0 0.0
      %686 = vmatpush2.msra.mxu0 0.0
      %687 = vmatprep.subr.mxu0 0.0
      %688 = vmatpush2.msra.mxu0 0.0
      %689 = vmatprep.subr.mxu0 0.0
      %690 = vmatpush2.msra.mxu0 0.0
      %691 = vmatprep.subr.mxu0 0.0
      %692 = vmatpush2.msra.mxu0 0.0
      %693 = vmatprep.subr.mxu0 0.0
      %694 = vmatpush2.msra.mxu0 0.0
      %695 = vmatprep.subr.mxu0 0.0
      %696 = vmatpush2.msra.mxu0 0.0
      %697 = vmatprep.subr.mxu0 0.0
      %698 = vmatpush2.msra.mxu0 0.0
      %699 = vmatprep.mubr.f32.mxu0 0.0
      %700 = vmatmul.mubr.f32.gmra.mxu0 %v633
      %v701 = vpop.f32.mrf.mxu0
      %v702 = vadd.f32 %v190, %v701
      %v703 = vpop.f32.mrf.mxu0
      %704 = vdwg.mxu0
      %v705 = vxor.u32 %v702, 2147483648
      %v706 = vmul.f32 %v705, 1.442695
      %v707 = vpow.pop %v706
      %v708 = vadd.f32 %v707, 1.0
      %v709 = vrcp.pop %v708
      %v710 = vmul.f32 1.0, %v709
      %v711 = vtanh.pop %v702
      %v712 = vmul.f32 %v710, %v504
      %714 = vrot.lane.b32.xlu0 %v711, 96
      %v715 = vpop.permute.xlu0 %714
      %v717 = vmul.f32 %v710, %v715
      %719 = vrot.lane.b32.xlu0 %v717, 16
      %v720 = vpop.permute.xlu0 %719
      %v722 = vadd.f32 %v712, %v720
      %v723 = vtanh.pop %v722
      %725 = vrot.lane.b32.xlu0 %v723, 32
      %v726 = vpop.permute.xlu0 %725
      %v728 = vmul.f32 %v710, %v726
      %s729 = scalar_lea.vmem %s165, 20
      %v730 = vld [vmem:[%s729] sm:$0xf]
      %731 = vrot.lane.b32.xlu0 %v613, 96
      %v732 = vpop.permute.xlu0 %731
      %v734 = vsel %vm184, %v730, %v732
      %v736 = vsel %vm192, %v734, 0
      %738 = vmatprep.subr.mxu0 0.0
      %739 = vmatpush1.msra.mxu0 0.0
      %740 = vmatprep.subr.mxu0 0.0
      %741 = vmatpush1.msra.mxu0 0.0
      %742 = vmatprep.subr.mxu0 0.0
      %743 = vmatpush1.msra.mxu0 0.0
      %744 = vmatprep.subr.mxu0 0.0
      %745 = vmatpush1.msra.mxu0 0.0
      %746 = vmatprep.subr.mxu0 0.0
      %747 = vmatpush1.msra.mxu0 0.0
      %748 = vmatprep.subr.mxu0 0.0
      %749 = vmatpush1.msra.mxu0 0.0
      %750 = vmatprep.subr.mxu0 0.0
      %751 = vmatpush1.msra.mxu0 0.0
      %752 = vmatprep.subr.mxu0 0.0
      %753 = vmatpush1.msra.mxu0 0.0
      %754 = vmatprep.subr.mxu0 0.0
      %755 = vmatpush1.msra.mxu0 0.0
      %756 = vmatprep.subr.mxu0 0.0
      %757 = vmatpush1.msra.mxu0 0.0
      %758 = vmatprep.subr.mxu0 0.0
      %759 = vmatpush1.msra.mxu0 0.0
      %760 = vmatprep.subr.mxu0 0.0
      %761 = vmatpush1.msra.mxu0 0.0
      %762 = vmatprep.subr.mxu0 0.0
      %763 = vmatpush1.msra.mxu0 %v179
      %764 = vmatprep.subr.mxu0 0.0
      %765 = vmatpush1.msra.mxu0 %v178
      %766 = vmatprep.subr.mxu0 0.0
      %767 = vmatpush1.msra.mxu0 %v177
      %768 = vmatprep.subr.mxu0 0.0
      %769 = vmatpush1.msra.mxu0 %v176
      %770 = vmatprep.subr.mxu0 0.0
      %771 = vmatpush2.msra.mxu0 0.0
      %772 = vmatprep.subr.mxu0 0.0
      %773 = vmatpush2.msra.mxu0 0.0
      %774 = vmatprep.subr.mxu0 0.0
      %775 = vmatpush2.msra.mxu0 0.0
      %776 = vmatprep.subr.mxu0 0.0
      %777 = vmatpush2.msra.mxu0 0.0
      %778 = vmatprep.subr.mxu0 0.0
      %779 = vmatpush2.msra.mxu0 0.0
      %780 = vmatprep.subr.mxu0 0.0
      %781 = vmatpush2.msra.mxu0 0.0
      %782 = vmatprep.subr.mxu0 0.0
      %783 = vmatpush2.msra.mxu0 0.0
      %784 = vmatprep.subr.mxu0 0.0
      %785 = vmatpush2.msra.mxu0 0.0
      %786 = vmatprep.subr.mxu0 0.0
      %787 = vmatpush2.msra.mxu0 0.0
      %788 = vmatprep.subr.mxu0 0.0
      %789 = vmatpush2.msra.mxu0 0.0
      %790 = vmatprep.subr.mxu0 0.0
      %791 = vmatpush2.msra.mxu0 0.0
      %792 = vmatprep.subr.mxu0 0.0
      %793 = vmatpush2.msra.mxu0 0.0
      %794 = vmatprep.subr.mxu0 0.0
      %795 = vmatpush2.msra.mxu0 0.0
      %796 = vmatprep.subr.mxu0 0.0
      %797 = vmatpush2.msra.mxu0 0.0
      %798 = vmatprep.subr.mxu0 0.0
      %799 = vmatpush2.msra.mxu0 0.0
      %800 = vmatprep.subr.mxu0 0.0
      %801 = vmatpush2.msra.mxu0 0.0
      %802 = vmatprep.mubr.f32.mxu0 0.0
      %803 = vmatmul.mubr.f32.gmra.mxu0 %v736
      %v804 = vpop.f32.mrf.mxu0
      %v805 = vadd.f32 %v297, %v804
      %v806 = vpop.f32.mrf.mxu0
      %807 = vdwg.mxu0
      %v808 = vxor.u32 %v805, 2147483648
      %v809 = vmul.f32 %v808, 1.442695
      %v810 = vpow.pop %v809
      %v811 = vadd.f32 %v810, 1.0
      %v812 = vrcp.pop %v811
      %v813 = vmul.f32 1.0, %v812
      %v814 = vtanh.pop %v805
      %v815 = vmul.f32 %v813, %v607
      %817 = vrot.lane.b32.xlu0 %v814, 96
      %v818 = vpop.permute.xlu0 %817
      %v820 = vmul.f32 %v813, %v818
      %822 = vrot.lane.b32.xlu0 %v820, 16
      %v823 = vpop.permute.xlu0 %822
      %v825 = vadd.f32 %v815, %v823
      %v826 = vtanh.pop %v825
      %828 = vrot.lane.b32.xlu0 %v826, 32
      %v829 = vpop.permute.xlu0 %828
      %v831 = vmul.f32 %v813, %v829
      %833 = vrot.lane.b32.xlu0 %v728, 80
      %v834 = vpop.permute.xlu0 %833
      %s836 = scalar_lea.vmem [#allocation2], 8
      %837 = vst.msk [vmem:[%s836] sm:$0xf] %vm400, %v834
      %839 = vrot.lane.b32.xlu0 %v831, 80
      %v840 = vpop.permute.xlu0 %839
      %s842 = scalar_lea.vmem [#allocation3], 20
      %843 = vst.msk [vmem:[%s842] sm:$0xf] %vm400, %v840
      %s844 = scalar_lea.vmem %s165, 12
      %v845 = vld [vmem:[%s844] sm:$0xf]
      %846 = vrot.lane.b32.xlu0 %v728, 96
      %v847 = vpop.permute.xlu0 %846
      %v849 = vsel %vm184, %v845, %v847
      %v851 = vsel %vm192, %v849, 0
      %853 = vmatprep.subr.mxu0 0.0
      %854 = vmatpush1.msra.mxu0 0.0
      %855 = vmatprep.subr.mxu0 0.0
      %856 = vmatpush1.msra.mxu0 0.0
      %857 = vmatprep.subr.mxu0 0.0
      %858 = vmatpush1.msra.mxu0 0.0
      %859 = vmatprep.subr.mxu0 0.0
      %860 = vmatpush1.msra.mxu0 0.0
      %861 = vmatprep.subr.mxu0 0.0
      %862 = vmatpush1.msra.mxu0 0.0
      %863 = vmatprep.subr.mxu0 0.0
      %864 = vmatpush1.msra.mxu0 0.0
      %865 = vmatprep.subr.mxu0 0.0
      %866 = vmatpush1.msra.mxu0 0.0
      %867 = vmatprep.subr.mxu0 0.0
      %868 = vmatpush1.msra.mxu0 0.0
      %869 = vmatprep.subr.mxu0 0.0
      %870 = vmatpush1.msra.mxu0 0.0
      %871 = vmatprep.subr.mxu0 0.0
      %872 = vmatpush1.msra.mxu0 0.0
      %873 = vmatprep.subr.mxu0 0.0
      %874 = vmatpush1.msra.mxu0 0.0
      %875 = vmatprep.subr.mxu0 0.0
      %876 = vmatpush1.msra.mxu0 0.0
      %877 = vmatprep.subr.mxu0 0.0
      %878 = vmatpush1.msra.mxu0 %v174
      %879 = vmatprep.subr.mxu0 0.0
      %880 = vmatpush1.msra.mxu0 %v173
      %881 = vmatprep.subr.mxu0 0.0
      %882 = vmatpush1.msra.mxu0 %v172
      %883 = vmatprep.subr.mxu0 0.0
      %884 = vmatpush1.msra.mxu0 %v171
      %885 = vmatprep.subr.mxu0 0.0
      %886 = vmatpush2.msra.mxu0 0.0
      %887 = vmatprep.subr.mxu0 0.0
      %888 = vmatpush2.msra.mxu0 0.0
      %889 = vmatprep.subr.mxu0 0.0
      %890 = vmatpush2.msra.mxu0 0.0
      %891 = vmatprep.subr.mxu0 0.0
      %892 = vmatpush2.msra.mxu0 0.0
      %893 = vmatprep.subr.mxu0 0.0
      %894 = vmatpush2.msra.mxu0 0.0
      %895 = vmatprep.subr.mxu0 0.0
      %896 = vmatpush2.msra.mxu0 0.0
      %897 = vmatprep.subr.mxu0 0.0
      %898 = vmatpush2.msra.mxu0 0.0
      %899 = vmatprep.subr.mxu0 0.0
      %900 = vmatpush2.msra.mxu0 0.0
      %901 = vmatprep.subr.mxu0 0.0
      %902 = vmatpush2.msra.mxu0 0.0
      %903 = vmatprep.subr.mxu0 0.0
      %904 = vmatpush2.msra.mxu0 0.0
      %905 = vmatprep.subr.mxu0 0.0
      %906 = vmatpush2.msra.mxu0 0.0
      %907 = vmatprep.subr.mxu0 0.0
      %908 = vmatpush2.msra.mxu0 0.0
      %909 = vmatprep.subr.mxu0 0.0
      %910 = vmatpush2.msra.mxu0 0.0
      %911 = vmatprep.subr.mxu0 0.0
      %912 = vmatpush2.msra.mxu0 0.0
      %913 = vmatprep.subr.mxu0 0.0
      %914 = vmatpush2.msra.mxu0 0.0
      %915 = vmatprep.subr.mxu0 0.0
      %916 = vmatpush2.msra.mxu0 0.0
      %917 = vmatprep.mubr.f32.mxu0 0.0
      %918 = vmatmul.mubr.f32.gmra.mxu0 %v851
      %v919 = vpop.f32.mrf.mxu0
      %v920 = vadd.f32 %v190, %v919
      %v921 = vpop.f32.mrf.mxu0
      %922 = vdwg.mxu0
      %v923 = vxor.u32 %v920, 2147483648
      %v924 = vmul.f32 %v923, 1.442695
      %v925 = vpow.pop %v924
      %v926 = vadd.f32 %v925, 1.0
      %v927 = vrcp.pop %v926
      %v928 = vmul.f32 1.0, %v927
      %v929 = vtanh.pop %v920
      %v930 = vmul.f32 %v928, %v722
      %932 = vrot.lane.b32.xlu0 %v929, 96
      %v933 = vpop.permute.xlu0 %932
      %v935 = vmul.f32 %v928, %v933
      %937 = vrot.lane.b32.xlu0 %v935, 16
      %v938 = vpop.permute.xlu0 %937
      %v940 = vadd.f32 %v930, %v938
      %v941 = vtanh.pop %v940
      %943 = vrot.lane.b32.xlu0 %v941, 32
      %v944 = vpop.permute.xlu0 %943
      %v946 = vmul.f32 %v928, %v944
      %s947 = scalar_lea.vmem %s165, 16
      %v948 = vld [vmem:[%s947] sm:$0xf]
      %949 = vrot.lane.b32.xlu0 %v831, 96
      %v950 = vpop.permute.xlu0 %949
      %v952 = vsel %vm184, %v948, %v950
      %v954 = vsel %vm192, %v952, 0
      %956 = vmatprep.subr.mxu0 0.0
      %957 = vmatpush1.msra.mxu0 0.0
      %958 = vmatprep.subr.mxu0 0.0
      %959 = vmatpush1.msra.mxu0 0.0
      %960 = vmatprep.subr.mxu0 0.0
      %961 = vmatpush1.msra.mxu0 0.0
      %962 = vmatprep.subr.mxu0 0.0
      %963 = vmatpush1.msra.mxu0 0.0
      %964 = vmatprep.subr.mxu0 0.0
      %965 = vmatpush1.msra.mxu0 0.0
      %966 = vmatprep.subr.mxu0 0.0
      %967 = vmatpush1.msra.mxu0 0.0
      %968 = vmatprep.subr.mxu0 0.0
      %969 = vmatpush1.msra.mxu0 0.0
      %970 = vmatprep.subr.mxu0 0.0
      %971 = vmatpush1.msra.mxu0 0.0
      %972 = vmatprep.subr.mxu0 0.0
      %973 = vmatpush1.msra.mxu0 0.0
      %974 = vmatprep.subr.mxu0 0.0
      %975 = vmatpush1.msra.mxu0 0.0
      %976 = vmatprep.subr.mxu0 0.0
      %977 = vmatpush1.msra.mxu0 0.0
      %978 = vmatprep.subr.mxu0 0.0
      %979 = vmatpush1.msra.mxu0 0.0
      %980 = vmatprep.subr.mxu0 0.0
      %981 = vmatpush1.msra.mxu0 %v179
      %982 = vmatprep.subr.mxu0 0.0
      %983 = vmatpush1.msra.mxu0 %v178
      %984 = vmatprep.subr.mxu0 0.0
      %985 = vmatpush1.msra.mxu0 %v177
      %986 = vmatprep.subr.mxu0 0.0
      %987 = vmatpush1.msra.mxu0 %v176
      %988 = vmatprep.subr.mxu0 0.0
      %989 = vmatpush2.msra.mxu0 0.0
      %990 = vmatprep.subr.mxu0 0.0
      %991 = vmatpush2.msra.mxu0 0.0
      %992 = vmatprep.subr.mxu0 0.0
      %993 = vmatpush2.msra.mxu0 0.0
      %994 = vmatprep.subr.mxu0 0.0
      %995 = vmatpush2.msra.mxu0 0.0
      %996 = vmatprep.subr.mxu0 0.0
      %997 = vmatpush2.msra.mxu0 0.0
      %998 = vmatprep.subr.mxu0 0.0
      %999 = vmatpush2.msra.mxu0 0.0
      %1000 = vmatprep.subr.mxu0 0.0
      %1001 = vmatpush2.msra.mxu0 0.0
      %1002 = vmatprep.subr.mxu0 0.0
      %1003 = vmatpush2.msra.mxu0 0.0
      %1004 = vmatprep.subr.mxu0 0.0
      %1005 = vmatpush2.msra.mxu0 0.0
      %1006 = vmatprep.subr.mxu0 0.0
      %1007 = vmatpush2.msra.mxu0 0.0
      %1008 = vmatprep.subr.mxu0 0.0
      %1009 = vmatpush2.msra.mxu0 0.0
      %1010 = vmatprep.subr.mxu0 0.0
      %1011 = vmatpush2.msra.mxu0 0.0
      %1012 = vmatprep.subr.mxu0 0.0
      %1013 = vmatpush2.msra.mxu0 0.0
      %1014 = vmatprep.subr.mxu0 0.0
      %1015 = vmatpush2.msra.mxu0 0.0
      %1016 = vmatprep.subr.mxu0 0.0
      %1017 = vmatpush2.msra.mxu0 0.0
      %1018 = vmatprep.subr.mxu0 0.0
      %1019 = vmatpush2.msra.mxu0 0.0
      %1020 = vmatprep.mubr.f32.mxu0 0.0
      %1021 = vmatmul.mubr.f32.gmra.mxu0 %v954
      %v1022 = vpop.f32.mrf.mxu0
      %v1023 = vadd.f32 %v297, %v1022
      %v1024 = vpop.f32.mrf.mxu0
      %1025 = vdwg.mxu0
      %v1026 = vxor.u32 %v1023, 2147483648
      %v1027 = vmul.f32 %v1026, 1.442695
      %v1028 = vpow.pop %v1027
      %v1029 = vadd.f32 %v1028, 1.0
      %v1030 = vrcp.pop %v1029
      %v1031 = vmul.f32 1.0, %v1030
      %v1032 = vtanh.pop %v1023
      %v1033 = vmul.f32 %v1031, %v825
      %1035 = vrot.lane.b32.xlu0 %v1032, 96
      %v1036 = vpop.permute.xlu0 %1035
      %v1038 = vmul.f32 %v1031, %v1036
      %1040 = vrot.lane.b32.xlu0 %v1038, 16
      %v1041 = vpop.permute.xlu0 %1040
      %v1043 = vadd.f32 %v1033, %v1041
      %v1044 = vtanh.pop %v1043
      %1046 = vrot.lane.b32.xlu0 %v1044, 32
      %v1047 = vpop.permute.xlu0 %1046
      %v1049 = vmul.f32 %v1031, %v1047
      %1051 = vrot.lane.b32.xlu0 %v946, 80
      %v1052 = vpop.permute.xlu0 %1051
      %s1054 = scalar_lea.vmem [#allocation2], 12
      %1055 = vst.msk [vmem:[%s1054] sm:$0xf] %vm400, %v1052
      %1057 = vrot.lane.b32.xlu0 %v1049, 80
      %v1058 = vpop.permute.xlu0 %1057
      %s1060 = scalar_lea.vmem [#allocation3], 16
      %1061 = vst.msk [vmem:[%s1060] sm:$0xf] %vm400, %v1058
      %v1062 = vld [vmem:[%s947] sm:$0xf]
      %1063 = vrot.lane.b32.xlu0 %v946, 96
      %v1064 = vpop.permute.xlu0 %1063
      %v1066 = vsel %vm184, %v1062, %v1064
      %v1068 = vsel %vm192, %v1066, 0
      %1070 = vmatprep.subr.mxu0 0.0
      %1071 = vmatpush1.msra.mxu0 0.0
      %1072 = vmatprep.subr.mxu0 0.0
      %1073 = vmatpush1.msra.mxu0 0.0
      %1074 = vmatprep.subr.mxu0 0.0
      %1075 = vmatpush1.msra.mxu0 0.0
      %1076 = vmatprep.subr.mxu0 0.0
      %1077 = vmatpush1.msra.mxu0 0.0
      %1078 = vmatprep.subr.mxu0 0.0
      %1079 = vmatpush1.msra.mxu0 0.0
      %1080 = vmatprep.subr.mxu0 0.0
      %1081 = vmatpush1.msra.mxu0 0.0
      %1082 = vmatprep.subr.mxu0 0.0
      %1083 = vmatpush1.msra.mxu0 0.0
      %1084 = vmatprep.subr.mxu0 0.0
      %1085 = vmatpush1.msra.mxu0 0.0
      %1086 = vmatprep.subr.mxu0 0.0
      %1087 = vmatpush1.msra.mxu0 0.0
      %1088 = vmatprep.subr.mxu0 0.0
      %1089 = vmatpush1.msra.mxu0 0.0
      %1090 = vmatprep.subr.mxu0 0.0
      %1091 = vmatpush1.msra.mxu0 0.0
      %1092 = vmatprep.subr.mxu0 0.0
      %1093 = vmatpush1.msra.mxu0 0.0
      %1094 = vmatprep.subr.mxu0 0.0
      %1095 = vmatpush1.msra.mxu0 %v174
      %1096 = vmatprep.subr.mxu0 0.0
      %1097 = vmatpush1.msra.mxu0 %v173
      %1098 = vmatprep.subr.mxu0 0.0
      %1099 = vmatpush1.msra.mxu0 %v172
      %1100 = vmatprep.subr.mxu0 0.0
      %1101 = vmatpush1.msra.mxu0 %v171
      %1102 = vmatprep.subr.mxu0 0.0
      %1103 = vmatpush2.msra.mxu0 0.0
      %1104 = vmatprep.subr.mxu0 0.0
      %1105 = vmatpush2.msra.mxu0 0.0
      %1106 = vmatprep.subr.mxu0 0.0
      %1107 = vmatpush2.msra.mxu0 0.0
      %1108 = vmatprep.subr.mxu0 0.0
      %1109 = vmatpush2.msra.mxu0 0.0
      %1110 = vmatprep.subr.mxu0 0.0
      %1111 = vmatpush2.msra.mxu0 0.0
      %1112 = vmatprep.subr.mxu0 0.0
      %1113 = vmatpush2.msra.mxu0 0.0
      %1114 = vmatprep.subr.mxu0 0.0
      %1115 = vmatpush2.msra.mxu0 0.0
      %1116 = vmatprep.subr.mxu0 0.0
      %1117 = vmatpush2.msra.mxu0 0.0
      %1118 = vmatprep.subr.mxu0 0.0
      %1119 = vmatpush2.msra.mxu0 0.0
      %1120 = vmatprep.subr.mxu0 0.0
      %1121 = vmatpush2.msra.mxu0 0.0
      %1122 = vmatprep.subr.mxu0 0.0
      %1123 = vmatpush2.msra.mxu0 0.0
      %1124 = vmatprep.subr.mxu0 0.0
      %1125 = vmatpush2.msra.mxu0 0.0
      %1126 = vmatprep.subr.mxu0 0.0
      %1127 = vmatpush2.msra.mxu0 0.0
      %1128 = vmatprep.subr.mxu0 0.0
      %1129 = vmatpush2.msra.mxu0 0.0
      %1130 = vmatprep.subr.mxu0 0.0
      %1131 = vmatpush2.msra.mxu0 0.0
      %1132 = vmatprep.subr.mxu0 0.0
      %1133 = vmatpush2.msra.mxu0 0.0
      %1134 = vmatprep.mubr.f32.mxu0 0.0
      %1135 = vmatmul.mubr.f32.gmra.mxu0 %v1068
      %v1136 = vpop.f32.mrf.mxu0
      %v1137 = vadd.f32 %v190, %v1136
      %v1138 = vpop.f32.mrf.mxu0
      %1139 = vdwg.mxu0
      %v1140 = vxor.u32 %v1137, 2147483648
      %v1141 = vmul.f32 %v1140, 1.442695
      %v1142 = vpow.pop %v1141
      %v1143 = vadd.f32 %v1142, 1.0
      %v1144 = vrcp.pop %v1143
      %v1145 = vmul.f32 1.0, %v1144
      %v1146 = vtanh.pop %v1137
      %v1147 = vmul.f32 %v1145, %v940
      %1149 = vrot.lane.b32.xlu0 %v1146, 96
      %v1150 = vpop.permute.xlu0 %1149
      %v1152 = vmul.f32 %v1145, %v1150
      %1154 = vrot.lane.b32.xlu0 %v1152, 16
      %v1155 = vpop.permute.xlu0 %1154
      %v1157 = vadd.f32 %v1147, %v1155
      %v1158 = vtanh.pop %v1157
      %1160 = vrot.lane.b32.xlu0 %v1158, 32
      %v1161 = vpop.permute.xlu0 %1160
      %v1163 = vmul.f32 %v1145, %v1161
      %v1164 = vld [vmem:[%s844] sm:$0xf]
      %1165 = vrot.lane.b32.xlu0 %v1049, 96
      %v1166 = vpop.permute.xlu0 %1165
      %v1168 = vsel %vm184, %v1164, %v1166
      %v1170 = vsel %vm192, %v1168, 0
      %1172 = vmatprep.subr.mxu0 0.0
      %1173 = vmatpush1.msra.mxu0 0.0
      %1174 = vmatprep.subr.mxu0 0.0
      %1175 = vmatpush1.msra.mxu0 0.0
      %1176 = vmatprep.subr.mxu0 0.0
      %1177 = vmatpush1.msra.mxu0 0.0
      %1178 = vmatprep.subr.mxu0 0.0
      %1179 = vmatpush1.msra.mxu0 0.0
      %1180 = vmatprep.subr.mxu0 0.0
      %1181 = vmatpush1.msra.mxu0 0.0
      %1182 = vmatprep.subr.mxu0 0.0
      %1183 = vmatpush1.msra.mxu0 0.0
      %1184 = vmatprep.subr.mxu0 0.0
      %1185 = vmatpush1.msra.mxu0 0.0
      %1186 = vmatprep.subr.mxu0 0.0
      %1187 = vmatpush1.msra.mxu0 0.0
      %1188 = vmatprep.subr.mxu0 0.0
      %1189 = vmatpush1.msra.mxu0 0.0
      %1190 = vmatprep.subr.mxu0 0.0
      %1191 = vmatpush1.msra.mxu0 0.0
      %1192 = vmatprep.subr.mxu0 0.0
      %1193 = vmatpush1.msra.mxu0 0.0
      %1194 = vmatprep.subr.mxu0 0.0
      %1195 = vmatpush1.msra.mxu0 0.0
      %1196 = vmatprep.subr.mxu0 0.0
      %1197 = vmatpush1.msra.mxu0 %v179
      %1198 = vmatprep.subr.mxu0 0.0
      %1199 = vmatpush1.msra.mxu0 %v178
      %1200 = vmatprep.subr.mxu0 0.0
      %1201 = vmatpush1.msra.mxu0 %v177
      %1202 = vmatprep.subr.mxu0 0.0
      %1203 = vmatpush1.msra.mxu0 %v176
      %1204 = vmatprep.subr.mxu0 0.0
      %1205 = vmatpush2.msra.mxu0 0.0
      %1206 = vmatprep.subr.mxu0 0.0
      %1207 = vmatpush2.msra.mxu0 0.0
      %1208 = vmatprep.subr.mxu0 0.0
      %1209 = vmatpush2.msra.mxu0 0.0
      %1210 = vmatprep.subr.mxu0 0.0
      %1211 = vmatpush2.msra.mxu0 0.0
      %1212 = vmatprep.subr.mxu0 0.0
      %1213 = vmatpush2.msra.mxu0 0.0
      %1214 = vmatprep.subr.mxu0 0.0
      %1215 = vmatpush2.msra.mxu0 0.0
      %1216 = vmatprep.subr.mxu0 0.0
      %1217 = vmatpush2.msra.mxu0 0.0
      %1218 = vmatprep.subr.mxu0 0.0
      %1219 = vmatpush2.msra.mxu0 0.0
      %1220 = vmatprep.subr.mxu0 0.0
      %1221 = vmatpush2.msra.mxu0 0.0
      %1222 = vmatprep.subr.mxu0 0.0
      %1223 = vmatpush2.msra.mxu0 0.0
      %1224 = vmatprep.subr.mxu0 0.0
      %1225 = vmatpush2.msra.mxu0 0.0
      %1226 = vmatprep.subr.mxu0 0.0
      %1227 = vmatpush2.msra.mxu0 0.0
      %1228 = vmatprep.subr.mxu0 0.0
      %1229 = vmatpush2.msra.mxu0 0.0
      %1230 = vmatprep.subr.mxu0 0.0
      %1231 = vmatpush2.msra.mxu0 0.0
      %1232 = vmatprep.subr.mxu0 0.0
      %1233 = vmatpush2.msra.mxu0 0.0
      %1234 = vmatprep.subr.mxu0 0.0
      %1235 = vmatpush2.msra.mxu0 0.0
      %1236 = vmatprep.mubr.f32.mxu0 0.0
      %1237 = vmatmul.mubr.f32.gmra.mxu0 %v1170
      %v1238 = vpop.f32.mrf.mxu0
      %v1239 = vadd.f32 %v297, %v1238
      %v1240 = vpop.f32.mrf.mxu0
      %1241 = vdwg.mxu0
      %v1242 = vxor.u32 %v1239, 2147483648
      %v1243 = vmul.f32 %v1242, 1.442695
      %v1244 = vpow.pop %v1243
      %v1245 = vadd.f32 %v1244, 1.0
      %v1246 = vrcp.pop %v1245
      %v1247 = vmul.f32 1.0, %v1246
      %v1248 = vtanh.pop %v1239
      %v1249 = vmul.f32 %v1247, %v1043
      %1251 = vrot.lane.b32.xlu0 %v1248, 96
      %v1252 = vpop.permute.xlu0 %1251
      %v1254 = vmul.f32 %v1247, %v1252
      %1256 = vrot.lane.b32.xlu0 %v1254, 16
      %v1257 = vpop.permute.xlu0 %1256
      %v1259 = vadd.f32 %v1249, %v1257
      %v1260 = vtanh.pop %v1259
      %1262 = vrot.lane.b32.xlu0 %v1260, 32
      %v1263 = vpop.permute.xlu0 %1262
      %v1265 = vmul.f32 %v1247, %v1263
      %1267 = vrot.lane.b32.xlu0 %v1163, 80
      %v1268 = vpop.permute.xlu0 %1267
      %s1270 = scalar_lea.vmem [#allocation2], 16
      %1271 = vst.msk [vmem:[%s1270] sm:$0xf] %vm400, %v1268
      %1273 = vrot.lane.b32.xlu0 %v1265, 80
      %v1274 = vpop.permute.xlu0 %1273
      %s1276 = scalar_lea.vmem [#allocation3], 12
      %1277 = vst.msk [vmem:[%s1276] sm:$0xf] %vm400, %v1274
      %v1278 = vld [vmem:[%s729] sm:$0xf]
      %1279 = vrot.lane.b32.xlu0 %v1163, 96
      %v1280 = vpop.permute.xlu0 %1279
      %v1282 = vsel %vm184, %v1278, %v1280
      %v1284 = vsel %vm192, %v1282, 0
      %1286 = vmatprep.subr.mxu0 0.0
      %1287 = vmatpush1.msra.mxu0 0.0
      %1288 = vmatprep.subr.mxu0 0.0
      %1289 = vmatpush1.msra.mxu0 0.0
      %1290 = vmatprep.subr.mxu0 0.0
      %1291 = vmatpush1.msra.mxu0 0.0
      %1292 = vmatprep.subr.mxu0 0.0
      %1293 = vmatpush1.msra.mxu0 0.0
      %1294 = vmatprep.subr.mxu0 0.0
      %1295 = vmatpush1.msra.mxu0 0.0
      %1296 = vmatprep.subr.mxu0 0.0
      %1297 = vmatpush1.msra.mxu0 0.0
      %1298 = vmatprep.subr.mxu0 0.0
      %1299 = vmatpush1.msra.mxu0 0.0
      %1300 = vmatprep.subr.mxu0 0.0
      %1301 = vmatpush1.msra.mxu0 0.0
      %1302 = vmatprep.subr.mxu0 0.0
      %1303 = vmatpush1.msra.mxu0 0.0
      %1304 = vmatprep.subr.mxu0 0.0
      %1305 = vmatpush1.msra.mxu0 0.0
      %1306 = vmatprep.subr.mxu0 0.0
      %1307 = vmatpush1.msra.mxu0 0.0
      %1308 = vmatprep.subr.mxu0 0.0
      %1309 = vmatpush1.msra.mxu0 0.0
      %1310 = vmatprep.subr.mxu0 0.0
      %1311 = vmatpush1.msra.mxu0 %v174
      %1312 = vmatprep.subr.mxu0 0.0
      %1313 = vmatpush1.msra.mxu0 %v173
      %1314 = vmatprep.subr.mxu0 0.0
      %1315 = vmatpush1.msra.mxu0 %v172
      %1316 = vmatprep.subr.mxu0 0.0
      %1317 = vmatpush1.msra.mxu0 %v171
      %1318 = vmatprep.subr.mxu0 0.0
      %1319 = vmatpush2.msra.mxu0 0.0
      %1320 = vmatprep.subr.mxu0 0.0
      %1321 = vmatpush2.msra.mxu0 0.0
      %1322 = vmatprep.subr.mxu0 0.0
      %1323 = vmatpush2.msra.mxu0 0.0
      %1324 = vmatprep.subr.mxu0 0.0
      %1325 = vmatpush2.msra.mxu0 0.0
      %1326 = vmatprep.subr.mxu0 0.0
      %1327 = vmatpush2.msra.mxu0 0.0
      %1328 = vmatprep.subr.mxu0 0.0
      %1329 = vmatpush2.msra.mxu0 0.0
      %1330 = vmatprep.subr.mxu0 0.0
      %1331 = vmatpush2.msra.mxu0 0.0
      %1332 = vmatprep.subr.mxu0 0.0
      %1333 = vmatpush2.msra.mxu0 0.0
      %1334 = vmatprep.subr.mxu0 0.0
      %1335 = vmatpush2.msra.mxu0 0.0
      %1336 = vmatprep.subr.mxu0 0.0
      %1337 = vmatpush2.msra.mxu0 0.0
      %1338 = vmatprep.subr.mxu0 0.0
      %1339 = vmatpush2.msra.mxu0 0.0
      %1340 = vmatprep.subr.mxu0 0.0
      %1341 = vmatpush2.msra.mxu0 0.0
      %1342 = vmatprep.subr.mxu0 0.0
      %1343 = vmatpush2.msra.mxu0 0.0
      %1344 = vmatprep.subr.mxu0 0.0
      %1345 = vmatpush2.msra.mxu0 0.0
      %1346 = vmatprep.subr.mxu0 0.0
      %1347 = vmatpush2.msra.mxu0 0.0
      %1348 = vmatprep.subr.mxu0 0.0
      %1349 = vmatpush2.msra.mxu0 0.0
      %1350 = vmatprep.mubr.f32.mxu0 0.0
      %1351 = vmatmul.mubr.f32.gmra.mxu0 %v1284
      %v1352 = vpop.f32.mrf.mxu0
      %v1353 = vadd.f32 %v190, %v1352
      %v1354 = vpop.f32.mrf.mxu0
      %1355 = vdwg.mxu0
      %v1356 = vxor.u32 %v1353, 2147483648
      %v1357 = vmul.f32 %v1356, 1.442695
      %v1358 = vpow.pop %v1357
      %v1359 = vadd.f32 %v1358, 1.0
      %v1360 = vrcp.pop %v1359
      %v1361 = vmul.f32 1.0, %v1360
      %v1362 = vtanh.pop %v1353
      %v1363 = vmul.f32 %v1361, %v1157
      %1365 = vrot.lane.b32.xlu0 %v1362, 96
      %v1366 = vpop.permute.xlu0 %1365
      %v1368 = vmul.f32 %v1361, %v1366
      %1370 = vrot.lane.b32.xlu0 %v1368, 16
      %v1371 = vpop.permute.xlu0 %1370
      %v1373 = vadd.f32 %v1363, %v1371
      %v1374 = vtanh.pop %v1373
      %1376 = vrot.lane.b32.xlu0 %v1374, 32
      %v1377 = vpop.permute.xlu0 %1376
      %v1379 = vmul.f32 %v1361, %v1377
      %v1380 = vld [vmem:[%s626] sm:$0xf]
      %1381 = vrot.lane.b32.xlu0 %v1265, 96
      %v1382 = vpop.permute.xlu0 %1381
      %v1384 = vsel %vm184, %v1380, %v1382
      %v1386 = vsel %vm192, %v1384, 0
      %1388 = vmatprep.subr.mxu0 0.0
      %1389 = vmatpush1.msra.mxu0 0.0
      %1390 = vmatprep.subr.mxu0 0.0
      %1391 = vmatpush1.msra.mxu0 0.0
      %1392 = vmatprep.subr.mxu0 0.0
      %1393 = vmatpush1.msra.mxu0 0.0
      %1394 = vmatprep.subr.mxu0 0.0
      %1395 = vmatpush1.msra.mxu0 0.0
      %1396 = vmatprep.subr.mxu0 0.0
      %1397 = vmatpush1.msra.mxu0 0.0
      %1398 = vmatprep.subr.mxu0 0.0
      %1399 = vmatpush1.msra.mxu0 0.0
      %1400 = vmatprep.subr.mxu0 0.0
      %1401 = vmatpush1.msra.mxu0 0.0
      %1402 = vmatprep.subr.mxu0 0.0
      %1403 = vmatpush1.msra.mxu0 0.0
      %1404 = vmatprep.subr.mxu0 0.0
      %1405 = vmatpush1.msra.mxu0 0.0
      %1406 = vmatprep.subr.mxu0 0.0
      %1407 = vmatpush1.msra.mxu0 0.0
      %1408 = vmatprep.subr.mxu0 0.0
      %1409 = vmatpush1.msra.mxu0 0.0
      %1410 = vmatprep.subr.mxu0 0.0
      %1411 = vmatpush1.msra.mxu0 0.0
      %1412 = vmatprep.subr.mxu0 0.0
      %1413 = vmatpush1.msra.mxu0 %v179
      %1414 = vmatprep.subr.mxu0 0.0
      %1415 = vmatpush1.msra.mxu0 %v178
      %1416 = vmatprep.subr.mxu0 0.0
      %1417 = vmatpush1.msra.mxu0 %v177
      %1418 = vmatprep.subr.mxu0 0.0
      %1419 = vmatpush1.msra.mxu0 %v176
      %1420 = vmatprep.subr.mxu0 0.0
      %1421 = vmatpush2.msra.mxu0 0.0
      %1422 = vmatprep.subr.mxu0 0.0
      %1423 = vmatpush2.msra.mxu0 0.0
      %1424 = vmatprep.subr.mxu0 0.0
      %1425 = vmatpush2.msra.mxu0 0.0
      %1426 = vmatprep.subr.mxu0 0.0
      %1427 = vmatpush2.msra.mxu0 0.0
      %1428 = vmatprep.subr.mxu0 0.0
      %1429 = vmatpush2.msra.mxu0 0.0
      %1430 = vmatprep.subr.mxu0 0.0
      %1431 = vmatpush2.msra.mxu0 0.0
      %1432 = vmatprep.subr.mxu0 0.0
      %1433 = vmatpush2.msra.mxu0 0.0
      %1434 = vmatprep.subr.mxu0 0.0
      %1435 = vmatpush2.msra.mxu0 0.0
      %1436 = vmatprep.subr.mxu0 0.0
      %1437 = vmatpush2.msra.mxu0 0.0
      %1438 = vmatprep.subr.mxu0 0.0
      %1439 = vmatpush2.msra.mxu0 0.0
      %1440 = vmatprep.subr.mxu0 0.0
      %1441 = vmatpush2.msra.mxu0 0.0
      %1442 = vmatprep.subr.mxu0 0.0
      %1443 = vmatpush2.msra.mxu0 0.0
      %1444 = vmatprep.subr.mxu0 0.0
      %1445 = vmatpush2.msra.mxu0 0.0
      %1446 = vmatprep.subr.mxu0 0.0
      %1447 = vmatpush2.msra.mxu0 0.0
      %1448 = vmatprep.subr.mxu0 0.0
      %1449 = vmatpush2.msra.mxu0 0.0
      %1450 = vmatprep.subr.mxu0 0.0
      %1451 = vmatpush2.msra.mxu0 0.0
      %1452 = vmatprep.mubr.f32.mxu0 0.0
      %1453 = vmatmul.mubr.f32.gmra.mxu0 %v1386
      %v1454 = vpop.f32.mrf.mxu0
      %v1455 = vadd.f32 %v297, %v1454
      %v1456 = vpop.f32.mrf.mxu0
      %1457 = vdwg.mxu0
      %v1458 = vxor.u32 %v1455, 2147483648
      %v1459 = vmul.f32 %v1458, 1.442695
      %v1460 = vpow.pop %v1459
      %v1461 = vadd.f32 %v1460, 1.0
      %v1462 = vrcp.pop %v1461
      %v1463 = vmul.f32 1.0, %v1462
      %v1464 = vtanh.pop %v1455
      %v1465 = vmul.f32 %v1463, %v1259
      %1467 = vrot.lane.b32.xlu0 %v1464, 96
      %v1468 = vpop.permute.xlu0 %1467
      %v1470 = vmul.f32 %v1463, %v1468
      %1472 = vrot.lane.b32.xlu0 %v1470, 16
      %v1473 = vpop.permute.xlu0 %1472
      %v1475 = vadd.f32 %v1465, %v1473
      %v1476 = vtanh.pop %v1475
      %1478 = vrot.lane.b32.xlu0 %v1476, 32
      %v1479 = vpop.permute.xlu0 %1478
      %v1481 = vmul.f32 %v1463, %v1479
      %1483 = vrot.lane.b32.xlu0 %v1379, 80
      %v1484 = vpop.permute.xlu0 %1483
      %s1486 = scalar_lea.vmem [#allocation2], 20
      %1487 = vst.msk [vmem:[%s1486] sm:$0xf] %vm400, %v1484
      %1489 = vrot.lane.b32.xlu0 %v1481, 80
      %v1490 = vpop.permute.xlu0 %1489
      %s1492 = scalar_lea.vmem [#allocation3], 8
      %1493 = vst.msk [vmem:[%s1492] sm:$0xf] %vm400, %v1490
      %v1494 = vld [vmem:[%s511] sm:$0xf]
      %1495 = vrot.lane.b32.xlu0 %v1379, 96
      %v1496 = vpop.permute.xlu0 %1495
      %v1498 = vsel %vm184, %v1494, %v1496
      %v1500 = vsel %vm192, %v1498, 0
      %1502 = vmatprep.subr.mxu0 0.0
      %1503 = vmatpush1.msra.mxu0 0.0
      %1504 = vmatprep.subr.mxu0 0.0
      %1505 = vmatpush1.msra.mxu0 0.0
      %1506 = vmatprep.subr.mxu0 0.0
      %1507 = vmatpush1.msra.mxu0 0.0
      %1508 = vmatprep.subr.mxu0 0.0
      %1509 = vmatpush1.msra.mxu0 0.0
      %1510 = vmatprep.subr.mxu0 0.0
      %1511 = vmatpush1.msra.mxu0 0.0
      %1512 = vmatprep.subr.mxu0 0.0
      %1513 = vmatpush1.msra.mxu0 0.0
      %1514 = vmatprep.subr.mxu0 0.0
      %1515 = vmatpush1.msra.mxu0 0.0
      %1516 = vmatprep.subr.mxu0 0.0
      %1517 = vmatpush1.msra.mxu0 0.0
      %1518 = vmatprep.subr.mxu0 0.0
      %1519 = vmatpush1.msra.mxu0 0.0
      %1520 = vmatprep.subr.mxu0 0.0
      %1521 = vmatpush1.msra.mxu0 0.0
      %1522 = vmatprep.subr.mxu0 0.0
      %1523 = vmatpush1.msra.mxu0 0.0
      %1524 = vmatprep.subr.mxu0 0.0
      %1525 = vmatpush1.msra.mxu0 0.0
      %1526 = vmatprep.subr.mxu0 0.0
      %1527 = vmatpush1.msra.mxu0 %v174
      %1528 = vmatprep.subr.mxu0 0.0
      %1529 = vmatpush1.msra.mxu0 %v173
      %1530 = vmatprep.subr.mxu0 0.0
      %1531 = vmatpush1.msra.mxu0 %v172
      %1532 = vmatprep.subr.mxu0 0.0
      %1533 = vmatpush1.msra.mxu0 %v171
      %1534 = vmatprep.subr.mxu0 0.0
      %1535 = vmatpush2.msra.mxu0 0.0
      %1536 = vmatprep.subr.mxu0 0.0
      %1537 = vmatpush2.msra.mxu0 0.0
      %1538 = vmatprep.subr.mxu0 0.0
      %1539 = vmatpush2.msra.mxu0 0.0
      %1540 = vmatprep.subr.mxu0 0.0
      %1541 = vmatpush2.msra.mxu0 0.0
      %1542 = vmatprep.subr.mxu0 0.0
      %1543 = vmatpush2.msra.mxu0 0.0
      %1544 = vmatprep.subr.mxu0 0.0
      %1545 = vmatpush2.msra.mxu0 0.0
      %1546 = vmatprep.subr.mxu0 0.0
      %1547 = vmatpush2.msra.mxu0 0.0
      %1548 = vmatprep.subr.mxu0 0.0
      %1549 = vmatpush2.msra.mxu0 0.0
      %1550 = vmatprep.subr.mxu0 0.0
      %1551 = vmatpush2.msra.mxu0 0.0
      %1552 = vmatprep.subr.mxu0 0.0
      %1553 = vmatpush2.msra.mxu0 0.0
      %1554 = vmatprep.subr.mxu0 0.0
      %1555 = vmatpush2.msra.mxu0 0.0
      %1556 = vmatprep.subr.mxu0 0.0
      %1557 = vmatpush2.msra.mxu0 0.0
      %1558 = vmatprep.subr.mxu0 0.0
      %1559 = vmatpush2.msra.mxu0 0.0
      %1560 = vmatprep.subr.mxu0 0.0
      %1561 = vmatpush2.msra.mxu0 0.0
      %1562 = vmatprep.subr.mxu0 0.0
      %1563 = vmatpush2.msra.mxu0 0.0
      %1564 = vmatprep.subr.mxu0 0.0
      %1565 = vmatpush2.msra.mxu0 0.0
      %1566 = vmatprep.mubr.f32.mxu0 0.0
      %1567 = vmatmul.mubr.f32.gmra.mxu0 %v1500
      %v1568 = vpop.f32.mrf.mxu0
      %v1569 = vadd.f32 %v190, %v1568
      %v1570 = vpop.f32.mrf.mxu0
      %1571 = vdwg.mxu0
      %v1572 = vxor.u32 %v1569, 2147483648
      %v1573 = vmul.f32 %v1572, 1.442695
      %v1574 = vpow.pop %v1573
      %v1575 = vadd.f32 %v1574, 1.0
      %v1576 = vrcp.pop %v1575
      %v1577 = vmul.f32 1.0, %v1576
      %v1578 = vtanh.pop %v1569
      %v1579 = vmul.f32 %v1577, %v1373
      %1581 = vrot.lane.b32.xlu0 %v1578, 96
      %v1582 = vpop.permute.xlu0 %1581
      %v1584 = vmul.f32 %v1577, %v1582
      %1586 = vrot.lane.b32.xlu0 %v1584, 16
      %v1587 = vpop.permute.xlu0 %1586
      %v1589 = vadd.f32 %v1579, %v1587
      %v1590 = vtanh.pop %v1589
      %1592 = vrot.lane.b32.xlu0 %v1590, 32
      %v1593 = vpop.permute.xlu0 %1592
      %v1595 = vmul.f32 %v1577, %v1593
      %v1596 = vld [vmem:[%s408] sm:$0xf]
      %1597 = vrot.lane.b32.xlu0 %v1481, 96
      %v1598 = vpop.permute.xlu0 %1597
      %v1600 = vsel %vm184, %v1596, %v1598
      %v1602 = vsel %vm192, %v1600, 0
      %1604 = vmatprep.subr.mxu0 0.0
      %1605 = vmatpush1.msra.mxu0 0.0
      %1606 = vmatprep.subr.mxu0 0.0
      %1607 = vmatpush1.msra.mxu0 0.0
      %1608 = vmatprep.subr.mxu0 0.0
      %1609 = vmatpush1.msra.mxu0 0.0
      %1610 = vmatprep.subr.mxu0 0.0
      %1611 = vmatpush1.msra.mxu0 0.0
      %1612 = vmatprep.subr.mxu0 0.0
      %1613 = vmatpush1.msra.mxu0 0.0
      %1614 = vmatprep.subr.mxu0 0.0
      %1615 = vmatpush1.msra.mxu0 0.0
      %1616 = vmatprep.subr.mxu0 0.0
      %1617 = vmatpush1.msra.mxu0 0.0
      %1618 = vmatprep.subr.mxu0 0.0
      %1619 = vmatpush1.msra.mxu0 0.0
      %1620 = vmatprep.subr.mxu0 0.0
      %1621 = vmatpush1.msra.mxu0 0.0
      %1622 = vmatprep.subr.mxu0 0.0
      %1623 = vmatpush1.msra.mxu0 0.0
      %1624 = vmatprep.subr.mxu0 0.0
      %1625 = vmatpush1.msra.mxu0 0.0
      %1626 = vmatprep.subr.mxu0 0.0
      %1627 = vmatpush1.msra.mxu0 0.0
      %1628 = vmatprep.subr.mxu0 0.0
      %1629 = vmatpush1.msra.mxu0 %v179
      %1630 = vmatprep.subr.mxu0 0.0
      %1631 = vmatpush1.msra.mxu0 %v178
      %1632 = vmatprep.subr.mxu0 0.0
      %1633 = vmatpush1.msra.mxu0 %v177
      %1634 = vmatprep.subr.mxu0 0.0
      %1635 = vmatpush1.msra.mxu0 %v176
      %1636 = vmatprep.subr.mxu0 0.0
      %1637 = vmatpush2.msra.mxu0 0.0
      %1638 = vmatprep.subr.mxu0 0.0
      %1639 = vmatpush2.msra.mxu0 0.0
      %1640 = vmatprep.subr.mxu0 0.0
      %1641 = vmatpush2.msra.mxu0 0.0
      %1642 = vmatprep.subr.mxu0 0.0
      %1643 = vmatpush2.msra.mxu0 0.0
      %1644 = vmatprep.subr.mxu0 0.0
      %1645 = vmatpush2.msra.mxu0 0.0
      %1646 = vmatprep.subr.mxu0 0.0
      %1647 = vmatpush2.msra.mxu0 0.0
      %1648 = vmatprep.subr.mxu0 0.0
      %1649 = vmatpush2.msra.mxu0 0.0
      %1650 = vmatprep.subr.mxu0 0.0
      %1651 = vmatpush2.msra.mxu0 0.0
      %1652 = vmatprep.subr.mxu0 0.0
      %1653 = vmatpush2.msra.mxu0 0.0
      %1654 = vmatprep.subr.mxu0 0.0
      %1655 = vmatpush2.msra.mxu0 0.0
      %1656 = vmatprep.subr.mxu0 0.0
      %1657 = vmatpush2.msra.mxu0 0.0
      %1658 = vmatprep.subr.mxu0 0.0
      %1659 = vmatpush2.msra.mxu0 0.0
      %1660 = vmatprep.subr.mxu0 0.0
      %1661 = vmatpush2.msra.mxu0 0.0
      %1662 = vmatprep.subr.mxu0 0.0
      %1663 = vmatpush2.msra.mxu0 0.0
      %1664 = vmatprep.subr.mxu0 0.0
      %1665 = vmatpush2.msra.mxu0 0.0
      %1666 = vmatprep.subr.mxu0 0.0
      %1667 = vmatpush2.msra.mxu0 0.0
      %1668 = vmatprep.mubr.f32.mxu0 0.0
      %1669 = vmatmul.mubr.f32.gmra.mxu0 %v1602
      %v1670 = vpop.f32.mrf.mxu0
      %v1671 = vadd.f32 %v297, %v1670
      %v1672 = vpop.f32.mrf.mxu0
      %1673 = vdwg.mxu0
      %v1674 = vxor.u32 %v1671, 2147483648
      %v1675 = vmul.f32 %v1674, 1.442695
      %v1676 = vpow.pop %v1675
      %v1677 = vadd.f32 %v1676, 1.0
      %v1678 = vrcp.pop %v1677
      %v1679 = vmul.f32 1.0, %v1678
      %v1680 = vtanh.pop %v1671
      %v1681 = vmul.f32 %v1679, %v1475
      %1683 = vrot.lane.b32.xlu0 %v1680, 96
      %v1684 = vpop.permute.xlu0 %1683
      %v1686 = vmul.f32 %v1679, %v1684
      %1688 = vrot.lane.b32.xlu0 %v1686, 16
      %v1689 = vpop.permute.xlu0 %1688
      %v1691 = vadd.f32 %v1681, %v1689
      %v1692 = vtanh.pop %v1691
      %1694 = vrot.lane.b32.xlu0 %v1692, 32
      %v1695 = vpop.permute.xlu0 %1694
      %v1697 = vmul.f32 %v1679, %v1695
      %1699 = vrot.lane.b32.xlu0 %v1595, 80
      %v1700 = vpop.permute.xlu0 %1699
      %s1702 = scalar_lea.vmem [#allocation2], 24
      %1703 = vst.msk [vmem:[%s1702] sm:$0xf] %vm400, %v1700
      %1705 = vrot.lane.b32.xlu0 %v1697, 80
      %v1706 = vpop.permute.xlu0 %1705
      %s1708 = scalar_lea.vmem [#allocation3], 4
      %1709 = vst.msk [vmem:[%s1708] sm:$0xf] %vm400, %v1706
      %v1710 = vld [vmem:[%s290] sm:$0xf]
      %1711 = vrot.lane.b32.xlu0 %v1595, 96
      %v1712 = vpop.permute.xlu0 %1711
      %v1714 = vsel %vm184, %v1710, %v1712
      %v1716 = vsel %vm192, %v1714, 0
      %1718 = vmatprep.subr.mxu0 0.0
      %1719 = vmatpush1.msra.mxu0 0.0
      %1720 = vmatprep.subr.mxu0 0.0
      %1721 = vmatpush1.msra.mxu0 0.0
      %1722 = vmatprep.subr.mxu0 0.0
      %1723 = vmatpush1.msra.mxu0 0.0
      %1724 = vmatprep.subr.mxu0 0.0
      %1725 = vmatpush1.msra.mxu0 0.0
      %1726 = vmatprep.subr.mxu0 0.0
      %1727 = vmatpush1.msra.mxu0 0.0
      %1728 = vmatprep.subr.mxu0 0.0
      %1729 = vmatpush1.msra.mxu0 0.0
      %1730 = vmatprep.subr.mxu0 0.0
      %1731 = vmatpush1.msra.mxu0 0.0
      %1732 = vmatprep.subr.mxu0 0.0
      %1733 = vmatpush1.msra.mxu0 0.0
      %1734 = vmatprep.subr.mxu0 0.0
      %1735 = vmatpush1.msra.mxu0 0.0
      %1736 = vmatprep.subr.mxu0 0.0
      %1737 = vmatpush1.msra.mxu0 0.0
      %1738 = vmatprep.subr.mxu0 0.0
      %1739 = vmatpush1.msra.mxu0 0.0
      %1740 = vmatprep.subr.mxu0 0.0
      %1741 = vmatpush1.msra.mxu0 0.0
      %1742 = vmatprep.subr.mxu0 0.0
      %1743 = vmatpush1.msra.mxu0 %v174
      %1744 = vmatprep.subr.mxu0 0.0
      %1745 = vmatpush1.msra.mxu0 %v173
      %1746 = vmatprep.subr.mxu0 0.0
      %1747 = vmatpush1.msra.mxu0 %v172
      %1748 = vmatprep.subr.mxu0 0.0
      %1749 = vmatpush1.msra.mxu0 %v171
      %1750 = vmatprep.subr.mxu0 0.0
      %1751 = vmatpush2.msra.mxu0 0.0
      %1752 = vmatprep.subr.mxu0 0.0
      %1753 = vmatpush2.msra.mxu0 0.0
      %1754 = vmatprep.subr.mxu0 0.0
      %1755 = vmatpush2.msra.mxu0 0.0
      %1756 = vmatprep.subr.mxu0 0.0
      %1757 = vmatpush2.msra.mxu0 0.0
      %1758 = vmatprep.subr.mxu0 0.0
      %1759 = vmatpush2.msra.mxu0 0.0
      %1760 = vmatprep.subr.mxu0 0.0
      %1761 = vmatpush2.msra.mxu0 0.0
      %1762 = vmatprep.subr.mxu0 0.0
      %1763 = vmatpush2.msra.mxu0 0.0
      %1764 = vmatprep.subr.mxu0 0.0
      %1765 = vmatpush2.msra.mxu0 0.0
      %1766 = vmatprep.subr.mxu0 0.0
      %1767 = vmatpush2.msra.mxu0 0.0
      %1768 = vmatprep.subr.mxu0 0.0
      %1769 = vmatpush2.msra.mxu0 0.0
      %1770 = vmatprep.subr.mxu0 0.0
      %1771 = vmatpush2.msra.mxu0 0.0
      %1772 = vmatprep.subr.mxu0 0.0
      %1773 = vmatpush2.msra.mxu0 0.0
      %1774 = vmatprep.subr.mxu0 0.0
      %1775 = vmatpush2.msra.mxu0 0.0
      %1776 = vmatprep.subr.mxu0 0.0
      %1777 = vmatpush2.msra.mxu0 0.0
      %1778 = vmatprep.subr.mxu0 0.0
      %1779 = vmatpush2.msra.mxu0 0.0
      %1780 = vmatprep.subr.mxu0 0.0
      %1781 = vmatpush2.msra.mxu0 0.0
      %1782 = vmatprep.mubr.f32.mxu0 0.0
      %1783 = vmatmul.mubr.f32.gmra.mxu0 %v1716
      %v1784 = vpop.f32.mrf.mxu0
      %v1785 = vadd.f32 %v190, %v1784
      %v1786 = vpop.f32.mrf.mxu0
      %1787 = vdwg.mxu0
      %v1788 = vxor.u32 %v1785, 2147483648
      %v1789 = vmul.f32 %v1788, 1.442695
      %v1790 = vpow.pop %v1789
      %v1791 = vadd.f32 %v1790, 1.0
      %v1792 = vrcp.pop %v1791
      %v1793 = vmul.f32 1.0, %v1792
      %v1794 = vtanh.pop %v1785
      %v1795 = vmul.f32 %v1793, %v1589
      %1797 = vrot.lane.b32.xlu0 %v1794, 96
      %v1798 = vpop.permute.xlu0 %1797
      %v1800 = vmul.f32 %v1793, %v1798
      %1802 = vrot.lane.b32.xlu0 %v1800, 16
      %v1803 = vpop.permute.xlu0 %1802
      %v1805 = vadd.f32 %v1795, %v1803
      %v1806 = vtanh.pop %v1805
      %1808 = vrot.lane.b32.xlu0 %v1806, 32
      %v1809 = vpop.permute.xlu0 %1808
      %v1811 = vmul.f32 %v1793, %v1809
      %v1812 = vld [vmem:[%s165] sm:$0xf]
      %1813 = vrot.lane.b32.xlu0 %v1697, 96
      %v1814 = vpop.permute.xlu0 %1813
      %v1816 = vsel %vm184, %v1812, %v1814
      %v1818 = vsel %vm192, %v1816, 0
      %1820 = vmatprep.subr.mxu0 0.0
      %1821 = vmatpush1.msra.mxu0 0.0
      %1822 = vmatprep.subr.mxu0 0.0
      %1823 = vmatpush1.msra.mxu0 0.0
      %1824 = vmatprep.subr.mxu0 0.0
      %1825 = vmatpush1.msra.mxu0 0.0
      %1826 = vmatprep.subr.mxu0 0.0
      %1827 = vmatpush1.msra.mxu0 0.0
      %1828 = vmatprep.subr.mxu0 0.0
      %1829 = vmatpush1.msra.mxu0 0.0
      %1830 = vmatprep.subr.mxu0 0.0
      %1831 = vmatpush1.msra.mxu0 0.0
      %1832 = vmatprep.subr.mxu0 0.0
      %1833 = vmatpush1.msra.mxu0 0.0
      %1834 = vmatprep.subr.mxu0 0.0
      %1835 = vmatpush1.msra.mxu0 0.0
      %1836 = vmatprep.subr.mxu0 0.0
      %1837 = vmatpush1.msra.mxu0 0.0
      %1838 = vmatprep.subr.mxu0 0.0
      %1839 = vmatpush1.msra.mxu0 0.0
      %1840 = vmatprep.subr.mxu0 0.0
      %1841 = vmatpush1.msra.mxu0 0.0
      %1842 = vmatprep.subr.mxu0 0.0
      %1843 = vmatpush1.msra.mxu0 0.0
      %1844 = vmatprep.subr.mxu0 0.0
      %1845 = vmatpush1.msra.mxu0 %v179
      %1846 = vmatprep.subr.mxu0 0.0
      %1847 = vmatpush1.msra.mxu0 %v178
      %1848 = vmatprep.subr.mxu0 0.0
      %1849 = vmatpush1.msra.mxu0 %v177
      %1850 = vmatprep.subr.mxu0 0.0
      %1851 = vmatpush1.msra.mxu0 %v176
      %1852 = vmatprep.subr.mxu0 0.0
      %1853 = vmatpush2.msra.mxu0 0.0
      %1854 = vmatprep.subr.mxu0 0.0
      %1855 = vmatpush2.msra.mxu0 0.0
      %1856 = vmatprep.subr.mxu0 0.0
      %1857 = vmatpush2.msra.mxu0 0.0
      %1858 = vmatprep.subr.mxu0 0.0
      %1859 = vmatpush2.msra.mxu0 0.0
      %1860 = vmatprep.subr.mxu0 0.0
      %1861 = vmatpush2.msra.mxu0 0.0
      %1862 = vmatprep.subr.mxu0 0.0
      %1863 = vmatpush2.msra.mxu0 0.0
      %1864 = vmatprep.subr.mxu0 0.0
      %1865 = vmatpush2.msra.mxu0 0.0
      %1866 = vmatprep.subr.mxu0 0.0
      %1867 = vmatpush2.msra.mxu0 0.0
      %1868 = vmatprep.subr.mxu0 0.0
      %1869 = vmatpush2.msra.mxu0 0.0
      %1870 = vmatprep.subr.mxu0 0.0
      %1871 = vmatpush2.msra.mxu0 0.0
      %1872 = vmatprep.subr.mxu0 0.0
      %1873 = vmatpush2.msra.mxu0 0.0
      %1874 = vmatprep.subr.mxu0 0.0
      %1875 = vmatpush2.msra.mxu0 0.0
      %1876 = vmatprep.subr.mxu0 0.0
      %1877 = vmatpush2.msra.mxu0 0.0
      %1878 = vmatprep.subr.mxu0 0.0
      %1879 = vmatpush2.msra.mxu0 0.0
      %1880 = vmatprep.subr.mxu0 0.0
      %1881 = vmatpush2.msra.mxu0 0.0
      %1882 = vmatprep.subr.mxu0 0.0
      %1883 = vmatpush2.msra.mxu0 0.0
      %1884 = vmatprep.mubr.f32.mxu0 0.0
      %1885 = vmatmul.mubr.f32.gmra.mxu0 %v1818
      %v1886 = vpop.f32.mrf.mxu0
      %v1887 = vadd.f32 %v297, %v1886
      %v1888 = vpop.f32.mrf.mxu0
      %1889 = vdwg.mxu0
      %v1890 = vxor.u32 %v1887, 2147483648
      %v1891 = vmul.f32 %v1890, 1.442695
      %v1892 = vpow.pop %v1891
      %v1893 = vadd.f32 %v1892, 1.0
      %v1894 = vrcp.pop %v1893
      %v1895 = vmul.f32 1.0, %v1894
      %v1896 = vtanh.pop %v1887
      %v1897 = vmul.f32 %v1895, %v1691
      %1899 = vrot.lane.b32.xlu0 %v1896, 96
      %v1900 = vpop.permute.xlu0 %1899
      %v1902 = vmul.f32 %v1895, %v1900
      %1904 = vrot.lane.b32.xlu0 %v1902, 16
      %v1905 = vpop.permute.xlu0 %1904
      %v1907 = vadd.f32 %v1897, %v1905
      %v1908 = vtanh.pop %v1907
      %1910 = vrot.lane.b32.xlu0 %v1908, 32
      %v1911 = vpop.permute.xlu0 %1910
      %v1913 = vmul.f32 %v1895, %v1911
      %1915 = vrot.lane.b32.xlu0 %v1811, 80
      %v1916 = vpop.permute.xlu0 %1915
      %s1918 = scalar_lea.vmem [#allocation2], 28
      %1919 = vst.msk [vmem:[%s1918] sm:$0xf] %vm400, %v1916
      %1921 = vrot.lane.b32.xlu0 %v1913, 80
      %v1922 = vpop.permute.xlu0 %1921
      %1924 = vst.msk [vmem:[#allocation3] sm:$0xf] %vm400, %v1922
      %v1925 = vld [vmem:[#allocation2] sm:$0xf]
      %v1926 = vld [vmem:[#allocation2 + $0x4] sm:$0xf]
      %v1927 = vld [vmem:[#allocation2 + $0x8] sm:$0xf]
      %v1928 = vld [vmem:[#allocation2 + $0xc] sm:$0xf]
      %v1929 = vld [vmem:[#allocation2 + $0x10] sm:$0xf]
      %v1930 = vld [vmem:[#allocation2 + $0x14] sm:$0xf]
      %v1931 = vld [vmem:[#allocation2 + $0x18] sm:$0xf]
      %v1932 = vld [vmem:[#allocation2 + $0x1c] sm:$0xf]
      %v1933 = vld [vmem:[#allocation3] sm:$0xf]
      %v1934 = vld [vmem:[#allocation3 + $0x4] sm:$0xf]
      %v1935 = vld [vmem:[#allocation3 + $0x8] sm:$0xf]
      %v1936 = vld [vmem:[#allocation3 + $0xc] sm:$0xf]
      %v1937 = vld [vmem:[#allocation3 + $0x10] sm:$0xf]
      %v1938 = vld [vmem:[#allocation3 + $0x14] sm:$0xf]
      %v1939 = vld [vmem:[#allocation3 + $0x18] sm:$0xf]
      %v1940 = vld [vmem:[#allocation3 + $0x1c] sm:$0xf]
      %1949 = vrot.lane.b32.xlu0 %v1933, 16
      %v1950 = vpop.permute.xlu0 %1949
      %1951 = vrot.lane.b32.xlu0 %v1934, 16
      %v1952 = vpop.permute.xlu0 %1951
      %1953 = vrot.lane.b32.xlu0 %v1935, 16
      %v1954 = vpop.permute.xlu0 %1953
      %1955 = vrot.lane.b32.xlu0 %v1936, 16
      %v1956 = vpop.permute.xlu0 %1955
      %1957 = vrot.lane.b32.xlu0 %v1937, 16
      %v1958 = vpop.permute.xlu0 %1957
      %1959 = vrot.lane.b32.xlu0 %v1938, 16
      %v1960 = vpop.permute.xlu0 %1959
      %1961 = vrot.lane.b32.xlu0 %v1939, 16
      %v1962 = vpop.permute.xlu0 %1961
      %1963 = vrot.lane.b32.xlu0 %v1940, 16
      %v1964 = vpop.permute.xlu0 %1963
      %v1973 = vsel %vm184, %v1925, %v1950
      %v1974 = vsel %vm184, %v1926, %v1952
      %v1975 = vsel %vm184, %v1927, %v1954
      %v1976 = vsel %vm184, %v1928, %v1956
      %v1977 = vsel %vm184, %v1929, %v1958
      %v1978 = vsel %vm184, %v1930, %v1960
      %v1979 = vsel %vm184, %v1931, %v1962
      %v1980 = vsel %vm184, %v1932, %v1964
      %vm1981 = vcmask 257024
      %1982 = vst.msk [vmem:[%s170] sm:$0xf] %vm1981, %v1973
      %1983 = vst.msk [vmem:[%s170 + $0x4] sm:$0xf] %vm1981, %v1974
      %1984 = vst.msk [vmem:[%s170 + $0x8] sm:$0xf] %vm1981, %v1975
      %1985 = vst.msk [vmem:[%s170 + $0xc] sm:$0xf] %vm1981, %v1976
      %1986 = vst.msk [vmem:[%s170 + $0x10] sm:$0xf] %vm1981, %v1977
      %1987 = vst.msk [vmem:[%s170 + $0x14] sm:$0xf] %vm1981, %v1978
      %1988 = vst.msk [vmem:[%s170 + $0x18] sm:$0xf] %vm1981, %v1979
      %1989 = vst.msk [vmem:[%s170 + $0x1c] sm:$0xf] %vm1981, %v1980
      %p1990 = scmp.lt.s32.totalorder %s14, 1
      %s1991 = scalar_select %p1990, %s14, 1
      %s1992 = smul.addr %s1991, 8
      %s1993 = smul.addr %s1992, 4
      %s1994 = scalar_lea.vmem %s3, %s1993
      // Predicated region
      $region33: #{esim_forward.4} parent=31 // pred_check
        %p1995 = pneg %p100
      $region34: #{esim_forward.4} parent=31 // pred_check_branch
        %1997 = sbr.rel (%p1995) target = $region36
      $region35: #{esim_forward.4} parent=31 // pred_region
        _
      $region36: #{esim_forward.4} parent=31 // pred_fallthru
        _
    $region32: #{esim_forward.4} parent=5 // pred_fallthru
      _
    %p1998 = scmp.le.s32.totalorder 2, %s9
    // Predicated region
    $region37: #{esim_forward.4} parent=5 // pred_check
      %p1999 = pneg %p1998
    $region38: #{esim_forward.4} parent=5 // pred_check_branch
      %2001 = sbr.rel (%p1999) target = $region40
    $region39: #{esim_forward.4} parent=5 // pred_region
      %s2002 = ssub.s32 %s9, 2
      // Predicated region
      $region41: #{esim_forward.4} parent=39 // pred_check
        %p2003 = pneg %p106
      $region42: #{esim_forward.4} parent=39 // pred_check_branch
        %2005 = sbr.rel (%p2003) target = $region44
      $region43: #{esim_forward.4} parent=39 // pred_region
        %p2006 = scmp.lt.s32.totalorder %s15, 1
        %s2007 = scalar_select %p2006, %s15, 1
        %s2008 = smul.addr %s2007, 8
        %s2009 = smul.addr %s2008, 4
        %s2010 = scalar_lea.vmem %s3, %s2009
      $region44: #{esim_forward.4} parent=39 // pred_fallthru
        _
    $region40: #{esim_forward.4} parent=5 // pred_fallthru
      _
  $region6: #{esim_forward.4} parent=0 // loop_footer
    %s13 = sadd.s32 1, %s9
  $region7: #{esim_forward.4} parent=0 // loop_footer_branch
    %8 = sbr.rel target = $region3
  $region8: #{esim_forward.4} parent=0 // loop_exit
    _

// kernel: esim_forward.6
$region0: #{esim_forward.6}
  #allocation0 [shape = 'u32[]', space=smem, size = 0x4, offset = 0x4, fixed_abs, tag = 'smem constant byte address 0x4 - core index']
  #allocation1 [shape = 'u32[144,128]{1,0:T(1,128)}', space=vmem, size = 0x12000, scoped, tag = 'internal scratch']
  #allocation2 [shape = 'f32[8,4,16]{2,1,0:T(4,128)}', space=vmem, size = 0x4000, scoped, tag = 'scratch operand']
  #allocation3 [shape = 'f32[8,4,16]{2,1,0:T(4,128)}', space=vmem, size = 0x4000, scoped, tag = 'scratch operand']
  %s0 = inlined_call_operand.vmem [shape: f32[2,8,4,128], index: 0, kind: input, shape index: {}]
  %s1 = inlined_call_operand.vmem [shape: f32[2,144,64], index: 1, kind: input, shape index: {}]
  %s2 = inlined_call_operand.vmem [shape: f32[2,1,64], index: 2, kind: input, shape index: {}]
  %s3 = inlined_call_operand.vmem [shape: f32[2,8,4,32], index: 3, kind: output, shape index: {}]
  %s4 = sld [smem:[#allocation0]]
  $region45: #{esim_forward.6} parent=0
    _
  %s6 = ssub.s32 1, %s4
  %s7 = scalar_select 0, %s6, %s4
  loop: start=0, step=1, limit=4
  $region2: #{esim_forward.6} parent=0 // loop_pre_header
    _
  $region3: #{esim_forward.6} parent=0 // loop_header
    %s9 = sphi 0, %s13
    %p10 = scmp.ge.s32.totalorder %s9, 4
    %s19 = sphi 0, %s21
    %s22 = sphi 0, %s19
    %s23 = sphi 0, %s22
    %s39 = sphi 0, %s23
    %s43 = sphi 0, %s43
    %s45 = sphi 0, %s43
    %s46 = sphi 0, %s45
    %s60 = sphi 0, %s46
    %s64 = sphi 0, %s64
    %s66 = sphi 0, %s64
    %s67 = sphi 0, %s66
    %s81 = sphi 0, %s67
    %s87 = sphi 0, %s89
    %s90 = sphi 0, %s87
    %s91 = sphi 0, %s90
    %s107 = sphi 0, %s91
  $region4: #{esim_forward.6} parent=0 // loop_header_branch
    %12 = sbr.rel (%p10) target = $region8
  $region5: #{esim_forward.6} parent=0 // loop_body
    %s14 = ssub.s32 %s9, 1
    %s15 = ssub.s32 %s9, 2
    %s16 = sadd.s32 %s9, 1
    %s17 = ssub.s32 %s9, %s16
    %p18 = scmp.eq.s32.totalorder %s17, 0
    %s20 = sadd.s32 %s19, 1
    %s21 = scalar_select %p18, %s19, %s20
    %p24 = pneg %p18
    %p25 = scmp.eq.s32.totalorder %s9, 1
    %p26 = por %p24, %p25
    %p27 = scmp.ne.s32.totalorder %s19, %s22
    %p28 = scmp.eq.s32.totalorder %s9, 0
    %p29 = por %p27, %p28
    %p30 = scmp.ne.s32.totalorder %s19, %s22
    %p31 = scmp.eq.s32.totalorder %s14, 1
    %p32 = por %p30, %p31
    %p33 = scmp.ne.s32.totalorder %s22, %s23
    %p34 = scmp.eq.s32.totalorder %s14, 0
    %p35 = por %p33, %p34
    %p36 = scmp.ne.s32.totalorder %s22, %s23
    %p37 = scmp.eq.s32.totalorder %s15, 1
    %p38 = por %p36, %p37
    %p40 = scmp.ne.s32.totalorder %s23, %s39
    %p41 = scmp.eq.s32.totalorder %s15, 0
    %p42 = por %p40, %p41
    %s44 = sadd.s32 %s43, 1
    %p47 = scmp.eq.s32.totalorder %s9, 1
    %p48 = scmp.ne.s32.totalorder %s43, %s45
    %p49 = scmp.eq.s32.totalorder %s9, 0
    %p50 = por %p48, %p49
    %p51 = scmp.ne.s32.totalorder %s43, %s45
    %p52 = scmp.eq.s32.totalorder %s14, 1
    %p53 = por %p51, %p52
    %p54 = scmp.ne.s32.totalorder %s45, %s46
    %p55 = scmp.eq.s32.totalorder %s14, 0
    %p56 = por %p54, %p55
    %p57 = scmp.ne.s32.totalorder %s45, %s46
    %p58 = scmp.eq.s32.totalorder %s15, 1
    %p59 = por %p57, %p58
    %p61 = scmp.ne.s32.totalorder %s46, %s60
    %p62 = scmp.eq.s32.totalorder %s15, 0
    %p63 = por %p61, %p62
    %s65 = sadd.s32 %s64, 1
    %p68 = scmp.eq.s32.totalorder %s9, 1
    %p69 = scmp.ne.s32.totalorder %s64, %s66
    %p70 = scmp.eq.s32.totalorder %s9, 0
    %p71 = por %p69, %p70
    %p72 = scmp.ne.s32.totalorder %s64, %s66
    %p73 = scmp.eq.s32.totalorder %s14, 1
    %p74 = por %p72, %p73
    %p75 = scmp.ne.s32.totalorder %s66, %s67
    %p76 = scmp.eq.s32.totalorder %s14, 0
    %p77 = por %p75, %p76
    %p78 = scmp.ne.s32.totalorder %s66, %s67
    %p79 = scmp.eq.s32.totalorder %s15, 1
    %p80 = por %p78, %p79
    %p82 = scmp.ne.s32.totalorder %s67, %s81
    %p83 = scmp.eq.s32.totalorder %s15, 0
    %p84 = por %p82, %p83
    %s85 = ssub.s32 %s9, %s16
    %p86 = scmp.eq.s32.totalorder %s85, 0
    %s88 = sadd.s32 %s87, 1
    %s89 = scalar_select %p86, %s87, %s88
    %p92 = pneg %p86
    %p93 = scmp.eq.s32.totalorder %s9, 1
    %p94 = por %p92, %p93
    %p95 = scmp.ne.s32.totalorder %s87, %s90
    %p96 = scmp.eq.s32.totalorder %s9, 0
    %p97 = por %p95, %p96
    %p98 = scmp.ne.s32.totalorder %s87, %s90
    %p99 = scmp.eq.s32.totalorder %s14, 1
    %p100 = por %p98, %p99
    %p101 = scmp.ne.s32.totalorder %s90, %s91
    %p102 = scmp.eq.s32.totalorder %s14, 0
    %p103 = por %p101, %p102
    %p104 = scmp.ne.s32.totalorder %s90, %s91
    %p105 = scmp.eq.s32.totalorder %s15, 1
    %p106 = por %p104, %p105
    %p108 = scmp.ne.s32.totalorder %s91, %s107
    %p109 = scmp.eq.s32.totalorder %s15, 0
    %p110 = por %p108, %p109
    %p111 = scmp.le.s32.totalorder 1, %s9
    %p112 = scmp.lt.s32.totalorder %s9, 3
    %p113 = pnand %p111, %p112
    %p114 = pneg %p113
    // Predicated region
    $region9: #{esim_forward.6} parent=5 // pred_check
      _
    $region10: #{esim_forward.6} parent=5 // pred_check_branch
      %116 = sbr.rel (%p113) target = $region12
    $region11: #{esim_forward.6} parent=5 // pred_region
      %s117 = ssub.s32 %s9, 1
      // Predicated region
      $region13: #{esim_forward.6} parent=11 // pred_check
        %p118 = pneg %p56
      $region14: #{esim_forward.6} parent=11 // pred_check_branch
        %120 = sbr.rel (%p118) target = $region16
      $region15: #{esim_forward.6} parent=11 // pred_region
        _
      $region16: #{esim_forward.6} parent=11 // pred_fallthru
        _
      // Predicated region
      $region17: #{esim_forward.6} parent=11 // pred_check
        %p121 = pneg %p77
      $region18: #{esim_forward.6} parent=11 // pred_check_branch
        %123 = sbr.rel (%p121) target = $region20
      $region19: #{esim_forward.6} parent=11 // pred_region
        _
      $region20: #{esim_forward.6} parent=11 // pred_fallthru
        _
    $region12: #{esim_forward.6} parent=5 // pred_fallthru
      _
    %p124 = scmp.lt.s32.totalorder %s9, 2
    // Predicated region
    $region21: #{esim_forward.6} parent=5 // pred_check
      %p125 = pneg %p124
    $region22: #{esim_forward.6} parent=5 // pred_check_branch
      %127 = sbr.rel (%p125) target = $region24
    $region23: #{esim_forward.6} parent=5 // pred_region
      // Predicated region
      $region25: #{esim_forward.6} parent=23 // pred_check
        %p128 = pneg %p29
      $region26: #{esim_forward.6} parent=23 // pred_check_branch
        %130 = sbr.rel (%p128) target = $region28
      $region27: #{esim_forward.6} parent=23 // pred_region
        %p131 = scmp.lt.s32.totalorder %s9, 1
        %s132 = scalar_select %p131, %s9, 1
        %s133 = smul.addr %s132, 8
        %s134 = smul.addr %s133, 4
        %s135 = scalar_lea.vmem %s0, %s134
      $region28: #{esim_forward.6} parent=23 // pred_fallthru
        _
    $region24: #{esim_forward.6} parent=5 // pred_fallthru
      _
    %p136 = scmp.le.s32.totalorder 1, %s9
    %p137 = scmp.lt.s32.totalorder %s9, 3
    %p138 = pnand %p136, %p137
    %p139 = pneg %p138
    // Predicated region
    $region29: #{esim_forward.6} parent=5 // pred_check
      _
    $region30: #{esim_forward.6} parent=5 // pred_check_branch
      %141 = sbr.rel (%p138) target = $region32
    $region31: #{esim_forward.6} parent=5 // pred_region
      %s142 = ssub.s32 %s9, 1
      %p143 = scmp.lt.s32.totalorder %s14, 1
      %s144 = scalar_select %p143, %s14, 1
      %s145 = smul.addr %s144, 8
      %s146 = smul.addr %s145, 4
      %s147 = scalar_lea.vmem %s0, %s146
      %p148 = pneg %p35
      %p149 = pneg %p32
      %p150 = pneg %p56
      %p151 = pneg %p53
      %p152 = pneg %p77
      %p153 = pneg %p74
      %p154 = pneg %p103
      %p155 = pneg %p100
      %p156 = scmp.lt.s32.totalorder %s14, 1
      %s157 = scalar_select %p156, %s14, 1
      %s158 = smul.addr %s157, 8
      %s159 = smul.addr %s158, 4
      %s160 = scalar_lea.vmem %s3, %s159
      %p161 = scmp.lt.s32.totalorder %s14, 1
      %s162 = scalar_select %p161, %s14, 1
      %s163 = smul.addr %s162, 8
      %s164 = smul.addr %s163, 4
      %s165 = scalar_lea.vmem %s0, %s164
      %p166 = scmp.lt.s32.totalorder %s14, 1
      %s167 = scalar_select %p166, %s14, 1
      %s168 = smul.addr %s167, 8
      %s169 = smul.addr %s168, 4
      %s170 = scalar_lea.vmem %s3, %s169
      %v171 = vld [vmem:[%s1] sm:$0xff]
      %v172 = vld [vmem:[%s1 + $0x8] sm:$0xff]
      %v173 = vld [vmem:[%s1 + $0x10] sm:$0xff]
      %v174 = vld [vmem:[%s1 + $0x18] sm:$0xff]
      %v175 = vld [vmem:[%s1 + $0x20] sm:$0xff]
      %v176 = vld [vmem:[%s1 + $0x28] sm:$0xff]
      %v177 = vld [vmem:[%s1 + $0x30] sm:$0xff]
      %v178 = vld [vmem:[%s1 + $0x38] sm:$0xff]
      %v179 = vld [vmem:[%s1 + $0x40] sm:$0xff]
      %v180 = vld [vmem:[%s1 + $0x48] sm:$0xff]
      %v181 = vld [vmem:[%s1 + $0x50] sm:$0xff]
      %v182 = vld [vmem:[%s1 + $0x58] sm:$0xff]
      %v183 = vld [vmem:[%s1 + $0x60] sm:$0xff]
      %v184 = vld [vmem:[%s1 + $0x68] sm:$0xff]
      %v185 = vld [vmem:[%s1 + $0x70] sm:$0xff]
      %v186 = vld [vmem:[%s1 + $0x78] sm:$0xff]
      %v187 = vld [vmem:[%s1 + $0x80] sm:$0xff]
      %v188 = vld [vmem:[%s1 + $0x88] sm:$0xff]
      %s189 = scalar_lea.vmem %s1, 144
      %v190 = vld [vmem:[%s189] sm:$0xff]
      %v191 = vld [vmem:[%s189 + $0x8] sm:$0xff]
      %v192 = vld [vmem:[%s189 + $0x10] sm:$0xff]
      %v193 = vld [vmem:[%s189 + $0x18] sm:$0xff]
      %v194 = vld [vmem:[%s189 + $0x20] sm:$0xff]
      %v195 = vld [vmem:[%s189 + $0x28] sm:$0xff]
      %v196 = vld [vmem:[%s189 + $0x30] sm:$0xff]
      %v197 = vld [vmem:[%s189 + $0x38] sm:$0xff]
      %v198 = vld [vmem:[%s189 + $0x40] sm:$0xff]
      %v199 = vld [vmem:[%s189 + $0x48] sm:$0xff]
      %v200 = vld [vmem:[%s189 + $0x50] sm:$0xff]
      %v201 = vld [vmem:[%s189 + $0x58] sm:$0xff]
      %v202 = vld [vmem:[%s189 + $0x60] sm:$0xff]
      %v203 = vld [vmem:[%s189 + $0x68] sm:$0xff]
      %v204 = vld [vmem:[%s189 + $0x70] sm:$0xff]
      %v205 = vld [vmem:[%s189 + $0x78] sm:$0xff]
      %v206 = vld [vmem:[%s189 + $0x80] sm:$0xff]
      %v207 = vld [vmem:[%s189 + $0x88] sm:$0xff]
      %v208 = vld [vmem:[%s2] sm:$0x1]
      %s209 = scalar_lea.vmem %s2, 1
      %v210 = vld [vmem:[%s209] sm:$0x1]
      %v211 = vld [vmem:[%s165] sm:$0xf]
      %v213 = vlaneseq
      %v214 = vshrl.u32 %v213, 7
      %v215 = vsub.s32 0, %v214
      %v216 = vrot.slane %v208, %v215
      %vm218 = vcmask 130048
      %v220 = vsel %vm218, 0.0, 0
      %222 = vmatprep.subr.mxu0 0.0
      %223 = vmatpush1.msra.mxu0 %v186
      %224 = vmatprep.subr.mxu0 0.0
      %225 = vmatpush1.msra.mxu0 %v185
      %226 = vmatprep.subr.mxu0 0.0
      %227 = vmatpush1.msra.mxu0 %v184
      %228 = vmatprep.subr.mxu0 0.0
      %229 = vmatpush1.msra.mxu0 %v183
      %230 = vmatprep.subr.mxu0 0.0
      %231 = vmatpush1.msra.mxu0 %v182
      %232 = vmatprep.subr.mxu0 0.0
      %233 = vmatpush1.msra.mxu0 %v181
      %234 = vmatprep.subr.mxu0 0.0
      %235 = vmatpush1.msra.mxu0 %v180
      %236 = vmatprep.subr.mxu0 0.0
      %237 = vmatpush1.msra.mxu0 %v179
      %238 = vmatprep.subr.mxu0 0.0
      %239 = vmatpush1.msra.mxu0 %v178
      %240 = vmatprep.subr.mxu0 0.0
      %241 = vmatpush1.msra.mxu0 %v177
      %242 = vmatprep.subr.mxu0 0.0
      %243 = vmatpush1.msra.mxu0 %v176
      %244 = vmatprep.subr.mxu0 0.0
      %245 = vmatpush1.msra.mxu0 %v175
      %246 = vmatprep.subr.mxu0 0.0
      %247 = vmatpush1.msra.mxu0 %v174
      %248 = vmatprep.subr.mxu0 0.0
      %249 = vmatpush1.msra.mxu0 %v173
      %250 = vmatprep.subr.mxu0 0.0
      %251 = vmatpush1.msra.mxu0 %v172
      %252 = vmatprep.subr.mxu0 0.0
      %253 = vmatpush1.msra.mxu0 %v171
      %254 = vmatprep.subr.mxu0 0.0
      %255 = vmatpush2.msra.mxu0 0.0
      %256 = vmatprep.subr.mxu0 0.0
      %257 = vmatpush2.msra.mxu0 0.0
      %258 = vmatprep.subr.mxu0 0.0
      %259 = vmatpush2.msra.mxu0 0.0
      %260 = vmatprep.subr.mxu0 0.0
      %261 = vmatpush2.msra.mxu0 0.0
      %262 = vmatprep.subr.mxu0 0.0
      %263 = vmatpush2.msra.mxu0 0.0
      %264 = vmatprep.subr.mxu0 0.0
      %265 = vmatpush2.msra.mxu0 0.0
      %266 = vmatprep.subr.mxu0 0.0
      %267 = vmatpush2.msra.mxu0 0.0
      %268 = vmatprep.subr.mxu0 0.0
      %269 = vmatpush2.msra.mxu0 0.0
      %270 = vmatprep.subr.mxu0 0.0
      %271 = vmatpush2.msra.mxu0 0.0
      %272 = vmatprep.subr.mxu0 0.0
      %273 = vmatpush2.msra.mxu0 0.0
      %274 = vmatprep.subr.mxu0 0.0
      %275 = vmatpush2.msra.mxu0 0.0
      %276 = vmatprep.subr.mxu0 0.0
      %277 = vmatpush2.msra.mxu0 0.0
      %278 = vmatprep.subr.mxu0 0.0
      %279 = vmatpush2.msra.mxu0 0.0
      %280 = vmatprep.subr.mxu0 0.0
      %281 = vmatpush2.msra.mxu0 0.0
      %282 = vmatprep.subr.mxu0 0.0
      %283 = vmatpush2.msra.mxu0 %v188
      %284 = vmatprep.subr.mxu0 0.0
      %285 = vmatpush2.msra.mxu0 %v187
      %286 = vmatprep.mubr.f32.mxu0 %v220
      %287 = vmatmul.mubr.f32.gmra.mxu0 %v211
      %v288 = vpop.f32.mrf.mxu0
      %v289 = vadd.f32 %v216, %v288
      %v290 = vpop.f32.mrf.mxu0
      %291 = vdwg.mxu0
      %v292 = vxor.u32 %v289, 2147483648
      %v293 = vmul.f32 %v292, 1.442695
      %v294 = vpow.pop %v293
      %v295 = vadd.f32 %v294, 1.0
      %v296 = vrcp.pop %v295
      %v297 = vmul.f32 1.0, %v296
      %v298 = vtanh.pop %v289
      %v299 = vmul.f32 %v297, 0.0
      %301 = vrot.lane.b32.xlu0 %v298, 96
      %v302 = vpop.permute.xlu0 %301
      %v304 = vmul.f32 %v297, %v302
      %306 = vrot.lane.b32.xlu0 %v304, 16
      %v307 = vpop.permute.xlu0 %306
      %v309 = vadd.f32 %v299, %v307
      %v310 = vtanh.pop %v309
      %312 = vrot.lane.b32.xlu0 %v310, 32
      %v313 = vpop.permute.xlu0 %312
      %v315 = vmul.f32 %v297, %v313
      %s316 = scalar_lea.vmem %s165, 28
      %v317 = vld [vmem:[%s316] sm:$0xf]
      %v319 = vlaneseq
      %v320 = vshrl.u32 %v319, 7
      %v321 = vsub.s32 0, %v320
      %v322 = vrot.slane %v210, %v321
      %324 = vmatprep.subr.mxu0 0.0
      %325 = vmatpush1.msra.mxu0 %v205
      %326 = vmatprep.subr.mxu0 0.0
      %327 = vmatpush1.msra.mxu0 %v204
      %328 = vmatprep.subr.mxu0 0.0
      %329 = vmatpush1.msra.mxu0 %v203
      %330 = vmatprep.subr.mxu0 0.0
      %331 = vmatpush1.msra.mxu0 %v202
      %332 = vmatprep.subr.mxu0 0.0
      %333 = vmatpush1.msra.mxu0 %v201
      %334 = vmatprep.subr.mxu0 0.0
      %335 = vmatpush1.msra.mxu0 %v200
      %336 = vmatprep.subr.mxu0 0.0
      %337 = vmatpush1.msra.mxu0 %v199
      %338 = vmatprep.subr.mxu0 0.0
      %339 = vmatpush1.msra.mxu0 %v198
      %340 = vmatprep.subr.mxu0 0.0
      %341 = vmatpush1.msra.mxu0 %v197
      %342 = vmatprep.subr.mxu0 0.0
      %343 = vmatpush1.msra.mxu0 %v196
      %344 = vmatprep.subr.mxu0 0.0
      %345 = vmatpush1.msra.mxu0 %v195
      %346 = vmatprep.subr.mxu0 0.0
      %347 = vmatpush1.msra.mxu0 %v194
      %348 = vmatprep.subr.mxu0 0.0
      %349 = vmatpush1.msra.mxu0 %v193
      %350 = vmatprep.subr.mxu0 0.0
      %351 = vmatpush1.msra.mxu0 %v192
      %352 = vmatprep.subr.mxu0 0.0
      %353 = vmatpush1.msra.mxu0 %v191
      %354 = vmatprep.subr.mxu0 0.0
      %355 = vmatpush1.msra.mxu0 %v190
      %356 = vmatprep.subr.mxu0 0.0
      %357 = vmatpush2.msra.mxu0 0.0
      %358 = vmatprep.subr.mxu0 0.0
      %359 = vmatpush2.msra.mxu0 0.0
      %360 = vmatprep.subr.mxu0 0.0
      %361 = vmatpush2.msra.mxu0 0.0
      %362 = vmatprep.subr.mxu0 0.0
      %363 = vmatpush2.msra.mxu0 0.0
      %364 = vmatprep.subr.mxu0 0.0
      %365 = vmatpush2.msra.mxu0 0.0
      %366 = vmatprep.subr.mxu0 0.0
      %367 = vmatpush2.msra.mxu0 0.0
      %368 = vmatprep.subr.mxu0 0.0
      %369 = vmatpush2.msra.mxu0 0.0
      %370 = vmatprep.subr.mxu0 0.0
      %371 = vmatpush2.msra.mxu0 0.0
      %372 = vmatprep.subr.mxu0 0.0
      %373 = vmatpush2.msra.mxu0 0.0
      %374 = vmatprep.subr.mxu0 0.0
      %375 = vmatpush2.msra.mxu0 0.0
      %376 = vmatprep.subr.mxu0 0.0
      %377 = vmatpush2.msra.mxu0 0.0
      %378 = vmatprep.subr.mxu0 0.0
      %379 = vmatpush2.msra.mxu0 0.0
      %380 = vmatprep.subr.mxu0 0.0
      %381 = vmatpush2.msra.mxu0 0.0
      %382 = vmatprep.subr.mxu0 0.0
      %383 = vmatpush2.msra.mxu0 0.0
      %384 = vmatprep.subr.mxu0 0.0
      %385 = vmatpush2.msra.mxu0 %v207
      %386 = vmatprep.subr.mxu0 0.0
      %387 = vmatpush2.msra.mxu0 %v206
      %388 = vmatprep.mubr.f32.mxu0 %v220
      %389 = vmatmul.mubr.f32.gmra.mxu0 %v317
      %v390 = vpop.f32.mrf.mxu0
      %v391 = vadd.f32 %v322, %v390
      %v392 = vpop.f32.mrf.mxu0
      %393 = vdwg.mxu0
      %v394 = vxor.u32 %v391, 2147483648
      %v395 = vmul.f32 %v394, 1.442695
      %v396 = vpow.pop %v395
      %v397 = vadd.f32 %v396, 1.0
      %v398 = vrcp.pop %v397
      %v399 = vmul.f32 1.0, %v398
      %v400 = vtanh.pop %v391
      %v401 = vmul.f32 %v399, 0.0
      %403 = vrot.lane.b32.xlu0 %v400, 96
      %v404 = vpop.permute.xlu0 %403
      %v406 = vmul.f32 %v399, %v404
      %408 = vrot.lane.b32.xlu0 %v406, 16
      %v409 = vpop.permute.xlu0 %408
      %v411 = vadd.f32 %v401, %v409
      %v412 = vtanh.pop %v411
      %414 = vrot.lane.b32.xlu0 %v412, 32
      %v415 = vpop.permute.xlu0 %414
      %v417 = vmul.f32 %v399, %v415
      %419 = vrot.lane.b32.xlu0 %v315, 80
      %v420 = vpop.permute.xlu0 %419
      %vm422 = vcmask 125952
      %423 = vst.msk [vmem:[#allocation2] sm:$0xf] %vm422, %v420
      %425 = vrot.lane.b32.xlu0 %v417, 80
      %v426 = vpop.permute.xlu0 %425
      %s428 = scalar_lea.vmem [#allocation3], 28
      %429 = vst.msk [vmem:[%s428] sm:$0xf] %vm422, %v426
      %s430 = scalar_lea.vmem %s165, 4
      %v431 = vld [vmem:[%s430] sm:$0xf]
      %v432 = vsel %vm218, %v420, 0
      %434 = vmatprep.subr.mxu0 0.0
      %435 = vmatpush1.msra.mxu0 %v186
      %436 = vmatprep.subr.mxu0 0.0
      %437 = vmatpush1.msra.mxu0 %v185
      %438 = vmatprep.subr.mxu0 0.0
      %439 = vmatpush1.msra.mxu0 %v184
      %440 = vmatprep.subr.mxu0 0.0
      %441 = vmatpush1.msra.mxu0 %v183
      %442 = vmatprep.subr.mxu0 0.0
      %443 = vmatpush1.msra.mxu0 %v182
      %444 = vmatprep.subr.mxu0 0.0
      %445 = vmatpush1.msra.mxu0 %v181
      %446 = vmatprep.subr.mxu0 0.0
      %447 = vmatpush1.msra.mxu0 %v180
      %448 = vmatprep.subr.mxu0 0.0
      %449 = vmatpush1.msra.mxu0 %v179
      %450 = vmatprep.subr.mxu0 0.0
      %451 = vmatpush1.msra.mxu0 %v178
      %452 = vmatprep.subr.mxu0 0.0
      %453 = vmatpush1.msra.mxu0 %v177
      %454 = vmatprep.subr.mxu0 0.0
      %455 = vmatpush1.msra.mxu0 %v176
      %456 = vmatprep.subr.mxu0 0.0
      %457 = vmatpush1.msra.mxu0 %v175
      %458 = vmatprep.subr.mxu0 0.0
      %459 = vmatpush1.msra.mxu0 %v174
      %460 = vmatprep.subr.mxu0 0.0
      %461 = vmatpush1.msra.mxu0 %v173
      %462 = vmatprep.subr.mxu0 0.0
      %463 = vmatpush1.msra.mxu0 %v172
      %464 = vmatprep.subr.mxu0 0.0
      %465 = vmatpush1.msra.mxu0 %v171
      %466 = vmatprep.subr.mxu0 0.0
      %467 = vmatpush2.msra.mxu0 0.0
      %468 = vmatprep.subr.mxu0 0.0
      %469 = vmatpush2.msra.mxu0 0.0
      %470 = vmatprep.subr.mxu0 0.0
      %471 = vmatpush2.msra.mxu0 0.0
      %472 = vmatprep.subr.mxu0 0.0
      %473 = vmatpush2.msra.mxu0 0.0
      %474 = vmatprep.subr.mxu0 0.0
      %475 = vmatpush2.msra.mxu0 0.0
      %476 = vmatprep.subr.mxu0 0.0
      %477 = vmatpush2.msra.mxu0 0.0
      %478 = vmatprep.subr.mxu0 0.0
      %479 = vmatpush2.msra.mxu0 0.0
      %480 = vmatprep.subr.mxu0 0.0
      %481 = vmatpush2.msra.mxu0 0.0
      %482 = vmatprep.subr.mxu0 0.0
      %483 = vmatpush2.msra.mxu0 0.0
      %484 = vmatprep.subr.mxu0 0.0
      %485 = vmatpush2.msra.mxu0 0.0
      %486 = vmatprep.subr.mxu0 0.0
      %487 = vmatpush2.msra.mxu0 0.0
      %488 = vmatprep.subr.mxu0 0.0
      %489 = vmatpush2.msra.mxu0 0.0
      %490 = vmatprep.subr.mxu0 0.0
      %491 = vmatpush2.msra.mxu0 0.0
      %492 = vmatprep.subr.mxu0 0.0
      %493 = vmatpush2.msra.mxu0 0.0
      %494 = vmatprep.subr.mxu0 0.0
      %495 = vmatpush2.msra.mxu0 %v188
      %496 = vmatprep.subr.mxu0 0.0
      %497 = vmatpush2.msra.mxu0 %v187
      %498 = vmatprep.mubr.f32.mxu0 %v432
      %499 = vmatmul.mubr.f32.gmra.mxu0 %v431
      %v500 = vpop.f32.mrf.mxu0
      %v501 = vadd.f32 %v216, %v500
      %v502 = vpop.f32.mrf.mxu0
      %503 = vdwg.mxu0
      %v504 = vxor.u32 %v501, 2147483648
      %v505 = vmul.f32 %v504, 1.442695
      %v506 = vpow.pop %v505
      %v507 = vadd.f32 %v506, 1.0
      %v508 = vrcp.pop %v507
      %v509 = vmul.f32 1.0, %v508
      %v510 = vtanh.pop %v501
      %v511 = vmul.f32 %v509, %v309
      %513 = vrot.lane.b32.xlu0 %v510, 96
      %v514 = vpop.permute.xlu0 %513
      %v516 = vmul.f32 %v509, %v514
      %518 = vrot.lane.b32.xlu0 %v516, 16
      %v519 = vpop.permute.xlu0 %518
      %v521 = vadd.f32 %v511, %v519
      %v522 = vtanh.pop %v521
      %524 = vrot.lane.b32.xlu0 %v522, 32
      %v525 = vpop.permute.xlu0 %524
      %v527 = vmul.f32 %v509, %v525
      %s528 = scalar_lea.vmem %s165, 24
      %v529 = vld [vmem:[%s528] sm:$0xf]
      %v530 = vsel %vm218, %v426, 0
      %532 = vmatprep.subr.mxu0 0.0
      %533 = vmatpush1.msra.mxu0 %v205
      %534 = vmatprep.subr.mxu0 0.0
      %535 = vmatpush1.msra.mxu0 %v204
      %536 = vmatprep.subr.mxu0 0.0
      %537 = vmatpush1.msra.mxu0 %v203
      %538 = vmatprep.subr.mxu0 0.0
      %539 = vmatpush1.msra.mxu0 %v202
      %540 = vmatprep.subr.mxu0 0.0
      %541 = vmatpush1.msra.mxu0 %v201
      %542 = vmatprep.subr.mxu0 0.0
      %543 = vmatpush1.msra.mxu0 %v200
      %544 = vmatprep.subr.mxu0 0.0
      %545 = vmatpush1.msra.mxu0 %v199
      %546 = vmatprep.subr.mxu0 0.0
      %547 = vmatpush1.msra.mxu0 %v198
      %548 = vmatprep.subr.mxu0 0.0
      %549 = vmatpush1.msra.mxu0 %v197
      %550 = vmatprep.subr.mxu0 0.0
      %551 = vmatpush1.msra.mxu0 %v196
      %552 = vmatprep.subr.mxu0 0.0
      %553 = vmatpush1.msra.mxu0 %v195
      %554 = vmatprep.subr.mxu0 0.0
      %555 = vmatpush1.msra.mxu0 %v194
      %556 = vmatprep.subr.mxu0 0.0
      %557 = vmatpush1.msra.mxu0 %v193
      %558 = vmatprep.subr.mxu0 0.0
      %559 = vmatpush1.msra.mxu0 %v192
      %560 = vmatprep.subr.mxu0 0.0
      %561 = vmatpush1.msra.mxu0 %v191
      %562 = vmatprep.subr.mxu0 0.0
      %563 = vmatpush1.msra.mxu0 %v190
      %564 = vmatprep.subr.mxu0 0.0
      %565 = vmatpush2.msra.mxu0 0.0
      %566 = vmatprep.subr.mxu0 0.0
      %567 = vmatpush2.msra.mxu0 0.0
      %568 = vmatprep.subr.mxu0 0.0
      %569 = vmatpush2.msra.mxu0 0.0
      %570 = vmatprep.subr.mxu0 0.0
      %571 = vmatpush2.msra.mxu0 0.0
      %572 = vmatprep.subr.mxu0 0.0
      %573 = vmatpush2.msra.mxu0 0.0
      %574 = vmatprep.subr.mxu0 0.0
      %575 = vmatpush2.msra.mxu0 0.0
      %576 = vmatprep.subr.mxu0 0.0
      %577 = vmatpush2.msra.mxu0 0.0
      %578 = vmatprep.subr.mxu0 0.0
      %579 = vmatpush2.msra.mxu0 0.0
      %580 = vmatprep.subr.mxu0 0.0
      %581 = vmatpush2.msra.mxu0 0.0
      %582 = vmatprep.subr.mxu0 0.0
      %583 = vmatpush2.msra.mxu0 0.0
      %584 = vmatprep.subr.mxu0 0.0
      %585 = vmatpush2.msra.mxu0 0.0
      %586 = vmatprep.subr.mxu0 0.0
      %587 = vmatpush2.msra.mxu0 0.0
      %588 = vmatprep.subr.mxu0 0.0
      %589 = vmatpush2.msra.mxu0 0.0
      %590 = vmatprep.subr.mxu0 0.0
      %591 = vmatpush2.msra.mxu0 0.0
      %592 = vmatprep.subr.mxu0 0.0
      %593 = vmatpush2.msra.mxu0 %v207
      %594 = vmatprep.subr.mxu0 0.0
      %595 = vmatpush2.msra.mxu0 %v206
      %596 = vmatprep.mubr.f32.mxu0 %v530
      %597 = vmatmul.mubr.f32.gmra.mxu0 %v529
      %v598 = vpop.f32.mrf.mxu0
      %v599 = vadd.f32 %v322, %v598
      %v600 = vpop.f32.mrf.mxu0
      %601 = vdwg.mxu0
      %v602 = vxor.u32 %v599, 2147483648
      %v603 = vmul.f32 %v602, 1.442695
      %v604 = vpow.pop %v603
      %v605 = vadd.f32 %v604, 1.0
      %v606 = vrcp.pop %v605
      %v607 = vmul.f32 1.0, %v606
      %v608 = vtanh.pop %v599
      %v609 = vmul.f32 %v607, %v411
      %611 = vrot.lane.b32.xlu0 %v608, 96
      %v612 = vpop.permute.xlu0 %611
      %v614 = vmul.f32 %v607, %v612
      %616 = vrot.lane.b32.xlu0 %v614, 16
      %v617 = vpop.permute.xlu0 %616
      %v619 = vadd.f32 %v609, %v617
      %v620 = vtanh.pop %v619
      %622 = vrot.lane.b32.xlu0 %v620, 32
      %v623 = vpop.permute.xlu0 %622
      %v625 = vmul.f32 %v607, %v623
      %627 = vrot.lane.b32.xlu0 %v527, 80
      %v628 = vpop.permute.xlu0 %627
      %s630 = scalar_lea.vmem [#allocation2], 4
      %631 = vst.msk [vmem:[%s630] sm:$0xf] %vm422, %v628
      %633 = vrot.lane.b32.xlu0 %v625, 80
      %v634 = vpop.permute.xlu0 %633
      %s636 = scalar_lea.vmem [#allocation3], 24
      %637 = vst.msk [vmem:[%s636] sm:$0xf] %vm422, %v634
      %s638 = scalar_lea.vmem %s165, 8
      %v639 = vld [vmem:[%s638] sm:$0xf]
      %v640 = vsel %vm218, %v628, 0
      %642 = vmatprep.subr.mxu0 0.0
      %643 = vmatpush1.msra.mxu0 %v186
      %644 = vmatprep.subr.mxu0 0.0
      %645 = vmatpush1.msra.mxu0 %v185
      %646 = vmatprep.subr.mxu0 0.0
      %647 = vmatpush1.msra.mxu0 %v184
      %648 = vmatprep.subr.mxu0 0.0
      %649 = vmatpush1.msra.mxu0 %v183
      %650 = vmatprep.subr.mxu0 0.0
      %651 = vmatpush1.msra.mxu0 %v182
      %652 = vmatprep.subr.mxu0 0.0
      %653 = vmatpush1.msra.mxu0 %v181
      %654 = vmatprep.subr.mxu0 0.0
      %655 = vmatpush1.msra.mxu0 %v180
      %656 = vmatprep.subr.mxu0 0.0
      %657 = vmatpush1.msra.mxu0 %v179
      %658 = vmatprep.subr.mxu0 0.0
      %659 = vmatpush1.msra.mxu0 %v178
      %660 = vmatprep.subr.mxu0 0.0
      %661 = vmatpush1.msra.mxu0 %v177
      %662 = vmatprep.subr.mxu0 0.0
      %663 = vmatpush1.msra.mxu0 %v176
      %664 = vmatprep.subr.mxu0 0.0
      %665 = vmatpush1.msra.mxu0 %v175
      %666 = vmatprep.subr.mxu0 0.0
      %667 = vmatpush1.msra.mxu0 %v174
      %668 = vmatprep.subr.mxu0 0.0
      %669 = vmatpush1.msra.mxu0 %v173
      %670 = vmatprep.subr.mxu0 0.0
      %671 = vmatpush1.msra.mxu0 %v172
      %672 = vmatprep.subr.mxu0 0.0
      %673 = vmatpush1.msra.mxu0 %v171
      %674 = vmatprep.subr.mxu0 0.0
      %675 = vmatpush2.msra.mxu0 0.0
      %676 = vmatprep.subr.mxu0 0.0
      %677 = vmatpush2.msra.mxu0 0.0
      %678 = vmatprep.subr.mxu0 0.0
      %679 = vmatpush2.msra.mxu0 0.0
      %680 = vmatprep.subr.mxu0 0.0
      %681 = vmatpush2.msra.mxu0 0.0
      %682 = vmatprep.subr.mxu0 0.0
      %683 = vmatpush2.msra.mxu0 0.0
      %684 = vmatprep.subr.mxu0 0.0
      %685 = vmatpush2.msra.mxu0 0.0
      %686 = vmatprep.subr.mxu0 0.0
      %687 = vmatpush2.msra.mxu0 0.0
      %688 = vmatprep.subr.mxu0 0.0
      %689 = vmatpush2.msra.mxu0 0.0
      %690 = vmatprep.subr.mxu0 0.0
      %691 = vmatpush2.msra.mxu0 0.0
      %692 = vmatprep.subr.mxu0 0.0
      %693 = vmatpush2.msra.mxu0 0.0
      %694 = vmatprep.subr.mxu0 0.0
      %695 = vmatpush2.msra.mxu0 0.0
      %696 = vmatprep.subr.mxu0 0.0
      %697 = vmatpush2.msra.mxu0 0.0
      %698 = vmatprep.subr.mxu0 0.0
      %699 = vmatpush2.msra.mxu0 0.0
      %700 = vmatprep.subr.mxu0 0.0
      %701 = vmatpush2.msra.mxu0 0.0
      %702 = vmatprep.subr.mxu0 0.0
      %703 = vmatpush2.msra.mxu0 %v188
      %704 = vmatprep.subr.mxu0 0.0
      %705 = vmatpush2.msra.mxu0 %v187
      %706 = vmatprep.mubr.f32.mxu0 %v640
      %707 = vmatmul.mubr.f32.gmra.mxu0 %v639
      %v708 = vpop.f32.mrf.mxu0
      %v709 = vadd.f32 %v216, %v708
      %v710 = vpop.f32.mrf.mxu0
      %711 = vdwg.mxu0
      %v712 = vxor.u32 %v709, 2147483648
      %v713 = vmul.f32 %v712, 1.442695
      %v714 = vpow.pop %v713
      %v715 = vadd.f32 %v714, 1.0
      %v716 = vrcp.pop %v715
      %v717 = vmul.f32 1.0, %v716
      %v718 = vtanh.pop %v709
      %v719 = vmul.f32 %v717, %v521
      %721 = vrot.lane.b32.xlu0 %v718, 96
      %v722 = vpop.permute.xlu0 %721
      %v724 = vmul.f32 %v717, %v722
      %726 = vrot.lane.b32.xlu0 %v724, 16
      %v727 = vpop.permute.xlu0 %726
      %v729 = vadd.f32 %v719, %v727
      %v730 = vtanh.pop %v729
      %732 = vrot.lane.b32.xlu0 %v730, 32
      %v733 = vpop.permute.xlu0 %732
      %v735 = vmul.f32 %v717, %v733
      %s736 = scalar_lea.vmem %s165, 20
      %v737 = vld [vmem:[%s736] sm:$0xf]
      %v738 = vsel %vm218, %v634, 0
      %740 = vmatprep.subr.mxu0 0.0
      %741 = vmatpush1.msra.mxu0 %v205
      %742 = vmatprep.subr.mxu0 0.0
      %743 = vmatpush1.msra.mxu0 %v204
      %744 = vmatprep.subr.mxu0 0.0
      %745 = vmatpush1.msra.mxu0 %v203
      %746 = vmatprep.subr.mxu0 0.0
      %747 = vmatpush1.msra.mxu0 %v202
      %748 = vmatprep.subr.mxu0 0.0
      %749 = vmatpush1.msra.mxu0 %v201
      %750 = vmatprep.subr.mxu0 0.0
      %751 = vmatpush1.msra.mxu0 %v200
      %752 = vmatprep.subr.mxu0 0.0
      %753 = vmatpush1.msra.mxu0 %v199
      %754 = vmatprep.subr.mxu0 0.0
      %755 = vmatpush1.msra.mxu0 %v198
      %756 = vmatprep.subr.mxu0 0.0
      %757 = vmatpush1.msra.mxu0 %v197
      %758 = vmatprep.subr.mxu0 0.0
      %759 = vmatpush1.msra.mxu0 %v196
      %760 = vmatprep.subr.mxu0 0.0
      %761 = vmatpush1.msra.mxu0 %v195
      %762 = vmatprep.subr.mxu0 0.0
      %763 = vmatpush1.msra.mxu0 %v194
      %764 = vmatprep.subr.mxu0 0.0
      %765 = vmatpush1.msra.mxu0 %v193
      %766 = vmatprep.subr.mxu0 0.0
      %767 = vmatpush1.msra.mxu0 %v192
      %768 = vmatprep.subr.mxu0 0.0
      %769 = vmatpush1.msra.mxu0 %v191
      %770 = vmatprep.subr.mxu0 0.0
      %771 = vmatpush1.msra.mxu0 %v190
      %772 = vmatprep.subr.mxu0 0.0
      %773 = vmatpush2.msra.mxu0 0.0
      %774 = vmatprep.subr.mxu0 0.0
      %775 = vmatpush2.msra.mxu0 0.0
      %776 = vmatprep.subr.mxu0 0.0
      %777 = vmatpush2.msra.mxu0 0.0
      %778 = vmatprep.subr.mxu0 0.0
      %779 = vmatpush2.msra.mxu0 0.0
      %780 = vmatprep.subr.mxu0 0.0
      %781 = vmatpush2.msra.mxu0 0.0
      %782 = vmatprep.subr.mxu0 0.0
      %783 = vmatpush2.msra.mxu0 0.0
      %784 = vmatprep.subr.mxu0 0.0
      %785 = vmatpush2.msra.mxu0 0.0
      %786 = vmatprep.subr.mxu0 0.0
      %787 = vmatpush2.msra.mxu0 0.0
      %788 = vmatprep.subr.mxu0 0.0
      %789 = vmatpush2.msra.mxu0 0.0
      %790 = vmatprep.subr.mxu0 0.0
      %791 = vmatpush2.msra.mxu0 0.0
      %792 = vmatprep.subr.mxu0 0.0
      %793 = vmatpush2.msra.mxu0 0.0
      %794 = vmatprep.subr.mxu0 0.0
      %795 = vmatpush2.msra.mxu0 0.0
      %796 = vmatprep.subr.mxu0 0.0
      %797 = vmatpush2.msra.mxu0 0.0
      %798 = vmatprep.subr.mxu0 0.0
      %799 = vmatpush2.msra.mxu0 0.0
      %800 = vmatprep.subr.mxu0 0.0
      %801 = vmatpush2.msra.mxu0 %v207
      %802 = vmatprep.subr.mxu0 0.0
      %803 = vmatpush2.msra.mxu0 %v206
      %804 = vmatprep.mubr.f32.mxu0 %v738
      %805 = vmatmul.mubr.f32.gmra.mxu0 %v737
      %v806 = vpop.f32.mrf.mxu0
      %v807 = vadd.f32 %v322, %v806
      %v808 = vpop.f32.mrf.mxu0
      %809 = vdwg.mxu0
      %v810 = vxor.u32 %v807, 2147483648
      %v811 = vmul.f32 %v810, 1.442695
      %v812 = vpow.pop %v811
      %v813 = vadd.f32 %v812, 1.0
      %v814 = vrcp.pop %v813
      %v815 = vmul.f32 1.0, %v814
      %v816 = vtanh.pop %v807
      %v817 = vmul.f32 %v815, %v619
      %819 = vrot.lane.b32.xlu0 %v816, 96
      %v820 = vpop.permute.xlu0 %819
      %v822 = vmul.f32 %v815, %v820
      %824 = vrot.lane.b32.xlu0 %v822, 16
      %v825 = vpop.permute.xlu0 %824
      %v827 = vadd.f32 %v817, %v825
      %v828 = vtanh.pop %v827
      %830 = vrot.lane.b32.xlu0 %v828, 32
      %v831 = vpop.permute.xlu0 %830
      %v833 = vmul.f32 %v815, %v831
      %835 = vrot.lane.b32.xlu0 %v735, 80
      %v836 = vpop.permute.xlu0 %835
      %s838 = scalar_lea.vmem [#allocation2], 8
      %839 = vst.msk [vmem:[%s838] sm:$0xf] %vm422, %v836
      %841 = vrot.lane.b32.xlu0 %v833, 80
      %v842 = vpop.permute.xlu0 %841
      %s844 = scalar_lea.vmem [#allocation3], 20
      %845 = vst.msk [vmem:[%s844] sm:$0xf] %vm422, %v842
      %s846 = scalar_lea.vmem %s165, 12
      %v847 = vld [vmem:[%s846] sm:$0xf]
      %v848 = vsel %vm218, %v836, 0
      %850 = vmatprep.subr.mxu0 0.0
      %851 = vmatpush1.msra.mxu0 %v186
      %852 = vmatprep.subr.mxu0 0.0
      %853 = vmatpush1.msra.mxu0 %v185
      %854 = vmatprep.subr.mxu0 0.0
      %855 = vmatpush1.msra.mxu0 %v184
      %856 = vmatprep.subr.mxu0 0.0
      %857 = vmatpush1.msra.mxu0 %v183
      %858 = vmatprep.subr.mxu0 0.0
      %859 = vmatpush1.msra.mxu0 %v182
      %860 = vmatprep.subr.mxu0 0.0
      %861 = vmatpush1.msra.mxu0 %v181
      %862 = vmatprep.subr.mxu0 0.0
      %863 = vmatpush1.msra.mxu0 %v180
      %864 = vmatprep.subr.mxu0 0.0
      %865 = vmatpush1.msra.mxu0 %v179
      %866 = vmatprep.subr.mxu0 0.0
      %867 = vmatpush1.msra.mxu0 %v178
      %868 = vmatprep.subr.mxu0 0.0
      %869 = vmatpush1.msra.mxu0 %v177
      %870 = vmatprep.subr.mxu0 0.0
      %871 = vmatpush1.msra.mxu0 %v176
      %872 = vmatprep.subr.mxu0 0.0
      %873 = vmatpush1.msra.mxu0 %v175
      %874 = vmatprep.subr.mxu0 0.0
      %875 = vmatpush1.msra.mxu0 %v174
      %876 = vmatprep.subr.mxu0 0.0
      %877 = vmatpush1.msra.mxu0 %v173
      %878 = vmatprep.subr.mxu0 0.0
      %879 = vmatpush1.msra.mxu0 %v172
      %880 = vmatprep.subr.mxu0 0.0
      %881 = vmatpush1.msra.mxu0 %v171
      %882 = vmatprep.subr.mxu0 0.0
      %883 = vmatpush2.msra.mxu0 0.0
      %884 = vmatprep.subr.mxu0 0.0
      %885 = vmatpush2.msra.mxu0 0.0
      %886 = vmatprep.subr.mxu0 0.0
      %887 = vmatpush2.msra.mxu0 0.0
      %888 = vmatprep.subr.mxu0 0.0
      %889 = vmatpush2.msra.mxu0 0.0
      %890 = vmatprep.subr.mxu0 0.0
      %891 = vmatpush2.msra.mxu0 0.0
      %892 = vmatprep.subr.mxu0 0.0
      %893 = vmatpush2.msra.mxu0 0.0
      %894 = vmatprep.subr.mxu0 0.0
      %895 = vmatpush2.msra.mxu0 0.0
      %896 = vmatprep.subr.mxu0 0.0
      %897 = vmatpush2.msra.mxu0 0.0
      %898 = vmatprep.subr.mxu0 0.0
      %899 = vmatpush2.msra.mxu0 0.0
      %900 = vmatprep.subr.mxu0 0.0
      %901 = vmatpush2.msra.mxu0 0.0
      %902 = vmatprep.subr.mxu0 0.0
      %903 = vmatpush2.msra.mxu0 0.0
      %904 = vmatprep.subr.mxu0 0.0
      %905 = vmatpush2.msra.mxu0 0.0
      %906 = vmatprep.subr.mxu0 0.0
      %907 = vmatpush2.msra.mxu0 0.0
      %908 = vmatprep.subr.mxu0 0.0
      %909 = vmatpush2.msra.mxu0 0.0
      %910 = vmatprep.subr.mxu0 0.0
      %911 = vmatpush2.msra.mxu0 %v188
      %912 = vmatprep.subr.mxu0 0.0
      %913 = vmatpush2.msra.mxu0 %v187
      %914 = vmatprep.mubr.f32.mxu0 %v848
      %915 = vmatmul.mubr.f32.gmra.mxu0 %v847
      %v916 = vpop.f32.mrf.mxu0
      %v917 = vadd.f32 %v216, %v916
      %v918 = vpop.f32.mrf.mxu0
      %919 = vdwg.mxu0
      %v920 = vxor.u32 %v917, 2147483648
      %v921 = vmul.f32 %v920, 1.442695
      %v922 = vpow.pop %v921
      %v923 = vadd.f32 %v922, 1.0
      %v924 = vrcp.pop %v923
      %v925 = vmul.f32 1.0, %v924
      %v926 = vtanh.pop %v917
      %v927 = vmul.f32 %v925, %v729
      %929 = vrot.lane.b32.xlu0 %v926, 96
      %v930 = vpop.permute.xlu0 %929
      %v932 = vmul.f32 %v925, %v930
      %934 = vrot.lane.b32.xlu0 %v932, 16
      %v935 = vpop.permute.xlu0 %934
      %v937 = vadd.f32 %v927, %v935
      %v938 = vtanh.pop %v937
      %940 = vrot.lane.b32.xlu0 %v938, 32
      %v941 = vpop.permute.xlu0 %940
      %v943 = vmul.f32 %v925, %v941
      %s944 = scalar_lea.vmem %s165, 16
      %v945 = vld [vmem:[%s944] sm:$0xf]
      %v946 = vsel %vm218, %v842, 0
      %948 = vmatprep.subr.mxu0 0.0
      %949 = vmatpush1.msra.mxu0 %v205
      %950 = vmatprep.subr.mxu0 0.0
      %951 = vmatpush1.msra.mxu0 %v204
      %952 = vmatprep.subr.mxu0 0.0
      %953 = vmatpush1.msra.mxu0 %v203
      %954 = vmatprep.subr.mxu0 0.0
      %955 = vmatpush1.msra.mxu0 %v202
      %956 = vmatprep.subr.mxu0 0.0
      %957 = vmatpush1.msra.mxu0 %v201
      %958 = vmatprep.subr.mxu0 0.0
      %959 = vmatpush1.msra.mxu0 %v200
      %960 = vmatprep.subr.mxu0 0.0
      %961 = vmatpush1.msra.mxu0 %v199
      %962 = vmatprep.subr.mxu0 0.0
      %963 = vmatpush1.msra.mxu0 %v198
      %964 = vmatprep.subr.mxu0 0.0
      %965 = vmatpush1.msra.mxu0 %v197
      %966 = vmatprep.subr.mxu0 0.0
      %967 = vmatpush1.msra.mxu0 %v196
      %968 = vmatprep.subr.mxu0 0.0
      %969 = vmatpush1.msra.mxu0 %v195
      %970 = vmatprep.subr.mxu0 0.0
      %971 = vmatpush1.msra.mxu0 %v194
      %972 = vmatprep.subr.mxu0 0.0
      %973 = vmatpush1.msra.mxu0 %v193
      %974 = vmatprep.subr.mxu0 0.0
      %975 = vmatpush1.msra.mxu0 %v192
      %976 = vmatprep.subr.mxu0 0.0
      %977 = vmatpush1.msra.mxu0 %v191
      %978 = vmatprep.subr.mxu0 0.0
      %979 = vmatpush1.msra.mxu0 %v190
      %980 = vmatprep.subr.mxu0 0.0
      %981 = vmatpush2.msra.mxu0 0.0
      %982 = vmatprep.subr.mxu0 0.0
      %983 = vmatpush2.msra.mxu0 0.0
      %984 = vmatprep.subr.mxu0 0.0
      %985 = vmatpush2.msra.mxu0 0.0
      %986 = vmatprep.subr.mxu0 0.0
      %987 = vmatpush2.msra.mxu0 0.0
      %988 = vmatprep.subr.mxu0 0.0
      %989 = vmatpush2.msra.mxu0 0.0
      %990 = vmatprep.subr.mxu0 0.0
      %991 = vmatpush2.msra.mxu0 0.0
      %992 = vmatprep.subr.mxu0 0.0
      %993 = vmatpush2.msra.mxu0 0.0
      %994 = vmatprep.subr.mxu0 0.0
      %995 = vmatpush2.msra.mxu0 0.0
      %996 = vmatprep.subr.mxu0 0.0
      %997 = vmatpush2.msra.mxu0 0.0
      %998 = vmatprep.subr.mxu0 0.0
      %999 = vmatpush2.msra.mxu0 0.0
      %1000 = vmatprep.subr.mxu0 0.0
      %1001 = vmatpush2.msra.mxu0 0.0
      %1002 = vmatprep.subr.mxu0 0.0
      %1003 = vmatpush2.msra.mxu0 0.0
      %1004 = vmatprep.subr.mxu0 0.0
      %1005 = vmatpush2.msra.mxu0 0.0
      %1006 = vmatprep.subr.mxu0 0.0
      %1007 = vmatpush2.msra.mxu0 0.0
      %1008 = vmatprep.subr.mxu0 0.0
      %1009 = vmatpush2.msra.mxu0 %v207
      %1010 = vmatprep.subr.mxu0 0.0
      %1011 = vmatpush2.msra.mxu0 %v206
      %1012 = vmatprep.mubr.f32.mxu0 %v946
      %1013 = vmatmul.mubr.f32.gmra.mxu0 %v945
      %v1014 = vpop.f32.mrf.mxu0
      %v1015 = vadd.f32 %v322, %v1014
      %v1016 = vpop.f32.mrf.mxu0
      %1017 = vdwg.mxu0
      %v1018 = vxor.u32 %v1015, 2147483648
      %v1019 = vmul.f32 %v1018, 1.442695
      %v1020 = vpow.pop %v1019
      %v1021 = vadd.f32 %v1020, 1.0
      %v1022 = vrcp.pop %v1021
      %v1023 = vmul.f32 1.0, %v1022
      %v1024 = vtanh.pop %v1015
      %v1025 = vmul.f32 %v1023, %v827
      %1027 = vrot.lane.b32.xlu0 %v1024, 96
      %v1028 = vpop.permute.xlu0 %1027
      %v1030 = vmul.f32 %v1023, %v1028
      %1032 = vrot.lane.b32.xlu0 %v1030, 16
      %v1033 = vpop.permute.xlu0 %1032
      %v1035 = vadd.f32 %v1025, %v1033
      %v1036 = vtanh.pop %v1035
      %1038 = vrot.lane.b32.xlu0 %v1036, 32
      %v1039 = vpop.permute.xlu0 %1038
      %v1041 = vmul.f32 %v1023, %v1039
      %1043 = vrot.lane.b32.xlu0 %v943, 80
      %v1044 = vpop.permute.xlu0 %1043
      %s1046 = scalar_lea.vmem [#allocation2], 12
      %1047 = vst.msk [vmem:[%s1046] sm:$0xf] %vm422, %v1044
      %1049 = vrot.lane.b32.xlu0 %v1041, 80
      %v1050 = vpop.permute.xlu0 %1049
      %s1052 = scalar_lea.vmem [#allocation3], 16
      %1053 = vst.msk [vmem:[%s1052] sm:$0xf] %vm422, %v1050
      %v1054 = vld [vmem:[%s944] sm:$0xf]
      %v1055 = vsel %vm218, %v1044, 0
      %1057 = vmatprep.subr.mxu0 0.0
      %1058 = vmatpush1.msra.mxu0 %v186
      %1059 = vmatprep.subr.mxu0 0.0
      %1060 = vmatpush1.msra.mxu0 %v185
      %1061 = vmatprep.subr.mxu0 0.0
      %1062 = vmatpush1.msra.mxu0 %v184
      %1063 = vmatprep.subr.mxu0 0.0
      %1064 = vmatpush1.msra.mxu0 %v183
      %1065 = vmatprep.subr.mxu0 0.0
      %1066 = vmatpush1.msra.mxu0 %v182
      %1067 = vmatprep.subr.mxu0 0.0
      %1068 = vmatpush1.msra.mxu0 %v181
      %1069 = vmatprep.subr.mxu0 0.0
      %1070 = vmatpush1.msra.mxu0 %v180
      %1071 = vmatprep.subr.mxu0 0.0
      %1072 = vmatpush1.msra.mxu0 %v179
      %1073 = vmatprep.subr.mxu0 0.0
      %1074 = vmatpush1.msra.mxu0 %v178
      %1075 = vmatprep.subr.mxu0 0.0
      %1076 = vmatpush1.msra.mxu0 %v177
      %1077 = vmatprep.subr.mxu0 0.0
      %1078 = vmatpush1.msra.mxu0 %v176
      %1079 = vmatprep.subr.mxu0 0.0
      %1080 = vmatpush1.msra.mxu0 %v175
      %1081 = vmatprep.subr.mxu0 0.0
      %1082 = vmatpush1.msra.mxu0 %v174
      %1083 = vmatprep.subr.mxu0 0.0
      %1084 = vmatpush1.msra.mxu0 %v173
      %1085 = vmatprep.subr.mxu0 0.0
      %1086 = vmatpush1.msra.mxu0 %v172
      %1087 = vmatprep.subr.mxu0 0.0
      %1088 = vmatpush1.msra.mxu0 %v171
      %1089 = vmatprep.subr.mxu0 0.0
      %1090 = vmatpush2.msra.mxu0 0.0
      %1091 = vmatprep.subr.mxu0 0.0
      %1092 = vmatpush2.msra.mxu0 0.0
      %1093 = vmatprep.subr.mxu0 0.0
      %1094 = vmatpush2.msra.mxu0 0.0
      %1095 = vmatprep.subr.mxu0 0.0
      %1096 = vmatpush2.msra.mxu0 0.0
      %1097 = vmatprep.subr.mxu0 0.0
      %1098 = vmatpush2.msra.mxu0 0.0
      %1099 = vmatprep.subr.mxu0 0.0
      %1100 = vmatpush2.msra.mxu0 0.0
      %1101 = vmatprep.subr.mxu0 0.0
      %1102 = vmatpush2.msra.mxu0 0.0
      %1103 = vmatprep.subr.mxu0 0.0
      %1104 = vmatpush2.msra.mxu0 0.0
      %1105 = vmatprep.subr.mxu0 0.0
      %1106 = vmatpush2.msra.mxu0 0.0
      %1107 = vmatprep.subr.mxu0 0.0
      %1108 = vmatpush2.msra.mxu0 0.0
      %1109 = vmatprep.subr.mxu0 0.0
      %1110 = vmatpush2.msra.mxu0 0.0
      %1111 = vmatprep.subr.mxu0 0.0
      %1112 = vmatpush2.msra.mxu0 0.0
      %1113 = vmatprep.subr.mxu0 0.0
      %1114 = vmatpush2.msra.mxu0 0.0
      %1115 = vmatprep.subr.mxu0 0.0
      %1116 = vmatpush2.msra.mxu0 0.0
      %1117 = vmatprep.subr.mxu0 0.0
      %1118 = vmatpush2.msra.mxu0 %v188
      %1119 = vmatprep.subr.mxu0 0.0
      %1120 = vmatpush2.msra.mxu0 %v187
      %1121 = vmatprep.mubr.f32.mxu0 %v1055
      %1122 = vmatmul.mubr.f32.gmra.mxu0 %v1054
      %v1123 = vpop.f32.mrf.mxu0
      %v1124 = vadd.f32 %v216, %v1123
      %v1125 = vpop.f32.mrf.mxu0
      %1126 = vdwg.mxu0
      %v1127 = vxor.u32 %v1124, 2147483648
      %v1128 = vmul.f32 %v1127, 1.442695
      %v1129 = vpow.pop %v1128
      %v1130 = vadd.f32 %v1129, 1.0
      %v1131 = vrcp.pop %v1130
      %v1132 = vmul.f32 1.0, %v1131
      %v1133 = vtanh.pop %v1124
      %v1134 = vmul.f32 %v1132, %v937
      %1136 = vrot.lane.b32.xlu0 %v1133, 96
      %v1137 = vpop.permute.xlu0 %1136
      %v1139 = vmul.f32 %v1132, %v1137
      %1141 = vrot.lane.b32.xlu0 %v1139, 16
      %v1142 = vpop.permute.xlu0 %1141
      %v1144 = vadd.f32 %v1134, %v1142
      %v1145 = vtanh.pop %v1144
      %1147 = vrot.lane.b32.xlu0 %v1145, 32
      %v1148 = vpop.permute.xlu0 %1147
      %v1150 = vmul.f32 %v1132, %v1148
      %v1151 = vld [vmem:[%s846] sm:$0xf]
      %v1152 = vsel %vm218, %v1050, 0
      %1154 = vmatprep.subr.mxu0 0.0
      %1155 = vmatpush1.msra.mxu0 %v205
      %1156 = vmatprep.subr.mxu0 0.0
      %1157 = vmatpush1.msra.mxu0 %v204
      %1158 = vmatprep.subr.mxu0 0.0
      %1159 = vmatpush1.msra.mxu0 %v203
      %1160 = vmatprep.subr.mxu0 0.0
      %1161 = vmatpush1.msra.mxu0 %v202
      %1162 = vmatprep.subr.mxu0 0.0
      %1163 = vmatpush1.msra.mxu0 %v201
      %1164 = vmatprep.subr.mxu0 0.0
      %1165 = vmatpush1.msra.mxu0 %v200
      %1166 = vmatprep.subr.mxu0 0.0
      %1167 = vmatpush1.msra.mxu0 %v199
      %1168 = vmatprep.subr.mxu0 0.0
      %1169 = vmatpush1.msra.mxu0 %v198
      %1170 = vmatprep.subr.mxu0 0.0
      %1171 = vmatpush1.msra.mxu0 %v197
      %1172 = vmatprep.subr.mxu0 0.0
      %1173 = vmatpush1.msra.mxu0 %v196
      %1174 = vmatprep.subr.mxu0 0.0
      %1175 = vmatpush1.msra.mxu0 %v195
      %1176 = vmatprep.subr.mxu0 0.0
      %1177 = vmatpush1.msra.mxu0 %v194
      %1178 = vmatprep.subr.mxu0 0.0
      %1179 = vmatpush1.msra.mxu0 %v193
      %1180 = vmatprep.subr.mxu0 0.0
      %1181 = vmatpush1.msra.mxu0 %v192
      %1182 = vmatprep.subr.mxu0 0.0
      %1183 = vmatpush1.msra.mxu0 %v191
      %1184 = vmatprep.subr.mxu0 0.0
      %1185 = vmatpush1.msra.mxu0 %v190
      %1186 = vmatprep.subr.mxu0 0.0
      %1187 = vmatpush2.msra.mxu0 0.0
      %1188 = vmatprep.subr.mxu0 0.0
      %1189 = vmatpush2.msra.mxu0 0.0
      %1190 = vmatprep.subr.mxu0 0.0
      %1191 = vmatpush2.msra.mxu0 0.0
      %1192 = vmatprep.subr.mxu0 0.0
      %1193 = vmatpush2.msra.mxu0 0.0
      %1194 = vmatprep.subr.mxu0 0.0
      %1195 = vmatpush2.msra.mxu0 0.0
      %1196 = vmatprep.subr.mxu0 0.0
      %1197 = vmatpush2.msra.mxu0 0.0
      %1198 = vmatprep.subr.mxu0 0.0
      %1199 = vmatpush2.msra.mxu0 0.0
      %1200 = vmatprep.subr.mxu0 0.0
      %1201 = vmatpush2.msra.mxu0 0.0
      %1202 = vmatprep.subr.mxu0 0.0
      %1203 = vmatpush2.msra.mxu0 0.0
      %1204 = vmatprep.subr.mxu0 0.0
      %1205 = vmatpush2.msra.mxu0 0.0
      %1206 = vmatprep.subr.mxu0 0.0
      %1207 = vmatpush2.msra.mxu0 0.0
      %1208 = vmatprep.subr.mxu0 0.0
      %1209 = vmatpush2.msra.mxu0 0.0
      %1210 = vmatprep.subr.mxu0 0.0
      %1211 = vmatpush2.msra.mxu0 0.0
      %1212 = vmatprep.subr.mxu0 0.0
      %1213 = vmatpush2.msra.mxu0 0.0
      %1214 = vmatprep.subr.mxu0 0.0
      %1215 = vmatpush2.msra.mxu0 %v207
      %1216 = vmatprep.subr.mxu0 0.0
      %1217 = vmatpush2.msra.mxu0 %v206
      %1218 = vmatprep.mubr.f32.mxu0 %v1152
      %1219 = vmatmul.mubr.f32.gmra.mxu0 %v1151
      %v1220 = vpop.f32.mrf.mxu0
      %v1221 = vadd.f32 %v322, %v1220
      %v1222 = vpop.f32.mrf.mxu0
      %1223 = vdwg.mxu0
      %v1224 = vxor.u32 %v1221, 2147483648
      %v1225 = vmul.f32 %v1224, 1.442695
      %v1226 = vpow.pop %v1225
      %v1227 = vadd.f32 %v1226, 1.0
      %v1228 = vrcp.pop %v1227
      %v1229 = vmul.f32 1.0, %v1228
      %v1230 = vtanh.pop %v1221
      %v1231 = vmul.f32 %v1229, %v1035
      %1233 = vrot.lane.b32.xlu0 %v1230, 96
      %v1234 = vpop.permute.xlu0 %1233
      %v1236 = vmul.f32 %v1229, %v1234
      %1238 = vrot.lane.b32.xlu0 %v1236, 16
      %v1239 = vpop.permute.xlu0 %1238
      %v1241 = vadd.f32 %v1231, %v1239
      %v1242 = vtanh.pop %v1241
      %1244 = vrot.lane.b32.xlu0 %v1242, 32
      %v1245 = vpop.permute.xlu0 %1244
      %v1247 = vmul.f32 %v1229, %v1245
      %1249 = vrot.lane.b32.xlu0 %v1150, 80
      %v1250 = vpop.permute.xlu0 %1249
      %s1252 = scalar_lea.vmem [#allocation2], 16
      %1253 = vst.msk [vmem:[%s1252] sm:$0xf] %vm422, %v1250
      %1255 = vrot.lane.b32.xlu0 %v1247, 80
      %v1256 = vpop.permute.xlu0 %1255
      %s1258 = scalar_lea.vmem [#allocation3], 12
      %1259 = vst.msk [vmem:[%s1258] sm:$0xf] %vm422, %v1256
      %v1260 = vld [vmem:[%s736] sm:$0xf]
      %v1261 = vsel %vm218, %v1250, 0
      %1263 = vmatprep.subr.mxu0 0.0
      %1264 = vmatpush1.msra.mxu0 %v186
      %1265 = vmatprep.subr.mxu0 0.0
      %1266 = vmatpush1.msra.mxu0 %v185
      %1267 = vmatprep.subr.mxu0 0.0
      %1268 = vmatpush1.msra.mxu0 %v184
      %1269 = vmatprep.subr.mxu0 0.0
      %1270 = vmatpush1.msra.mxu0 %v183
      %1271 = vmatprep.subr.mxu0 0.0
      %1272 = vmatpush1.msra.mxu0 %v182
      %1273 = vmatprep.subr.mxu0 0.0
      %1274 = vmatpush1.msra.mxu0 %v181
      %1275 = vmatprep.subr.mxu0 0.0
      %1276 = vmatpush1.msra.mxu0 %v180
      %1277 = vmatprep.subr.mxu0 0.0
      %1278 = vmatpush1.msra.mxu0 %v179
      %1279 = vmatprep.subr.mxu0 0.0
      %1280 = vmatpush1.msra.mxu0 %v178
      %1281 = vmatprep.subr.mxu0 0.0
      %1282 = vmatpush1.msra.mxu0 %v177
      %1283 = vmatprep.subr.mxu0 0.0
      %1284 = vmatpush1.msra.mxu0 %v176
      %1285 = vmatprep.subr.mxu0 0.0
      %1286 = vmatpush1.msra.mxu0 %v175
      %1287 = vmatprep.subr.mxu0 0.0
      %1288 = vmatpush1.msra.mxu0 %v174
      %1289 = vmatprep.subr.mxu0 0.0
      %1290 = vmatpush1.msra.mxu0 %v173
      %1291 = vmatprep.subr.mxu0 0.0
      %1292 = vmatpush1.msra.mxu0 %v172
      %1293 = vmatprep.subr.mxu0 0.0
      %1294 = vmatpush1.msra.mxu0 %v171
      %1295 = vmatprep.subr.mxu0 0.0
      %1296 = vmatpush2.msra.mxu0 0.0
      %1297 = vmatprep.subr.mxu0 0.0
      %1298 = vmatpush2.msra.mxu0 0.0
      %1299 = vmatprep.subr.mxu0 0.0
      %1300 = vmatpush2.msra.mxu0 0.0
      %1301 = vmatprep.subr.mxu0 0.0
      %1302 = vmatpush2.msra.mxu0 0.0
      %1303 = vmatprep.subr.mxu0 0.0
      %1304 = vmatpush2.msra.mxu0 0.0
      %1305 = vmatprep.subr.mxu0 0.0
      %1306 = vmatpush2.msra.mxu0 0.0
      %1307 = vmatprep.subr.mxu0 0.0
      %1308 = vmatpush2.msra.mxu0 0.0
      %1309 = vmatprep.subr.mxu0 0.0
      %1310 = vmatpush2.msra.mxu0 0.0
      %1311 = vmatprep.subr.mxu0 0.0
      %1312 = vmatpush2.msra.mxu0 0.0
      %1313 = vmatprep.subr.mxu0 0.0
      %1314 = vmatpush2.msra.mxu0 0.0
      %1315 = vmatprep.subr.mxu0 0.0
      %1316 = vmatpush2.msra.mxu0 0.0
      %1317 = vmatprep.subr.mxu0 0.0
      %1318 = vmatpush2.msra.mxu0 0.0
      %1319 = vmatprep.subr.mxu0 0.0
      %1320 = vmatpush2.msra.mxu0 0.0
      %1321 = vmatprep.subr.mxu0 0.0
      %1322 = vmatpush2.msra.mxu0 0.0
      %1323 = vmatprep.subr.mxu0 0.0
      %1324 = vmatpush2.msra.mxu0 %v188
      %1325 = vmatprep.subr.mxu0 0.0
      %1326 = vmatpush2.msra.mxu0 %v187
      %1327 = vmatprep.mubr.f32.mxu0 %v1261
      %1328 = vmatmul.mubr.f32.gmra.mxu0 %v1260
      %v1329 = vpop.f32.mrf.mxu0
      %v1330 = vadd.f32 %v216, %v1329
      %v1331 = vpop.f32.mrf.mxu0
      %1332 = vdwg.mxu0
      %v1333 = vxor.u32 %v1330, 2147483648
      %v1334 = vmul.f32 %v1333, 1.442695
      %v1335 = vpow.pop %v1334
      %v1336 = vadd.f32 %v1335, 1.0
      %v1337 = vrcp.pop %v1336
      %v1338 = vmul.f32 1.0, %v1337
      %v1339 = vtanh.pop %v1330
      %v1340 = vmul.f32 %v1338, %v1144
      %1342 = vrot.lane.b32.xlu0 %v1339, 96
      %v1343 = vpop.permute.xlu0 %1342
      %v1345 = vmul.f32 %v1338, %v1343
      %1347 = vrot.lane.b32.xlu0 %v1345, 16
      %v1348 = vpop.permute.xlu0 %1347
      %v1350 = vadd.f32 %v1340, %v1348
      %v1351 = vtanh.pop %v1350
      %1353 = vrot.lane.b32.xlu0 %v1351, 32
      %v1354 = vpop.permute.xlu0 %1353
      %v1356 = vmul.f32 %v1338, %v1354
      %v1357 = vld [vmem:[%s638] sm:$0xf]
      %v1358 = vsel %vm218, %v1256, 0
      %1360 = vmatprep.subr.mxu0 0.0
      %1361 = vmatpush1.msra.mxu0 %v205
      %1362 = vmatprep.subr.mxu0 0.0
      %1363 = vmatpush1.msra.mxu0 %v204
      %1364 = vmatprep.subr.mxu0 0.0
      %1365 = vmatpush1.msra.mxu0 %v203
      %1366 = vmatprep.subr.mxu0 0.0
      %1367 = vmatpush1.msra.mxu0 %v202
      %1368 = vmatprep.subr.mxu0 0.0
      %1369 = vmatpush1.msra.mxu0 %v201
      %1370 = vmatprep.subr.mxu0 0.0
      %1371 = vmatpush1.msra.mxu0 %v200
      %1372 = vmatprep.subr.mxu0 0.0
      %1373 = vmatpush1.msra.mxu0 %v199
      %1374 = vmatprep.subr.mxu0 0.0
      %1375 = vmatpush1.msra.mxu0 %v198
      %1376 = vmatprep.subr.mxu0 0.0
      %1377 = vmatpush1.msra.mxu0 %v197
      %1378 = vmatprep.subr.mxu0 0.0
      %1379 = vmatpush1.msra.mxu0 %v196
      %1380 = vmatprep.subr.mxu0 0.0
      %1381 = vmatpush1.msra.mxu0 %v195
      %1382 = vmatprep.subr.mxu0 0.0
      %1383 = vmatpush1.msra.mxu0 %v194
      %1384 = vmatprep.subr.mxu0 0.0
      %1385 = vmatpush1.msra.mxu0 %v193
      %1386 = vmatprep.subr.mxu0 0.0
      %1387 = vmatpush1.msra.mxu0 %v192
      %1388 = vmatprep.subr.mxu0 0.0
      %1389 = vmatpush1.msra.mxu0 %v191
      %1390 = vmatprep.subr.mxu0 0.0
      %1391 = vmatpush1.msra.mxu0 %v190
      %1392 = vmatprep.subr.mxu0 0.0
      %1393 = vmatpush2.msra.mxu0 0.0
      %1394 = vmatprep.subr.mxu0 0.0
      %1395 = vmatpush2.msra.mxu0 0.0
      %1396 = vmatprep.subr.mxu0 0.0
      %1397 = vmatpush2.msra.mxu0 0.0
      %1398 = vmatprep.subr.mxu0 0.0
      %1399 = vmatpush2.msra.mxu0 0.0
      %1400 = vmatprep.subr.mxu0 0.0
      %1401 = vmatpush2.msra.mxu0 0.0
      %1402 = vmatprep.subr.mxu0 0.0
      %1403 = vmatpush2.msra.mxu0 0.0
      %1404 = vmatprep.subr.mxu0 0.0
      %1405 = vmatpush2.msra.mxu0 0.0
      %1406 = vmatprep.subr.mxu0 0.0
      %1407 = vmatpush2.msra.mxu0 0.0
      %1408 = vmatprep.subr.mxu0 0.0
      %1409 = vmatpush2.msra.mxu0 0.0
      %1410 = vmatprep.subr.mxu0 0.0
      %1411 = vmatpush2.msra.mxu0 0.0
      %1412 = vmatprep.subr.mxu0 0.0
      %1413 = vmatpush2.msra.mxu0 0.0
      %1414 = vmatprep.subr.mxu0 0.0
      %1415 = vmatpush2.msra.mxu0 0.0
      %1416 = vmatprep.subr.mxu0 0.0
      %1417 = vmatpush2.msra.mxu0 0.0
      %1418 = vmatprep.subr.mxu0 0.0
      %1419 = vmatpush2.msra.mxu0 0.0
      %1420 = vmatprep.subr.mxu0 0.0
      %1421 = vmatpush2.msra.mxu0 %v207
      %1422 = vmatprep.subr.mxu0 0.0
      %1423 = vmatpush2.msra.mxu0 %v206
      %1424 = vmatprep.mubr.f32.mxu0 %v1358
      %1425 = vmatmul.mubr.f32.gmra.mxu0 %v1357
      %v1426 = vpop.f32.mrf.mxu0
      %v1427 = vadd.f32 %v322, %v1426
      %v1428 = vpop.f32.mrf.mxu0
      %1429 = vdwg.mxu0
      %v1430 = vxor.u32 %v1427, 2147483648
      %v1431 = vmul.f32 %v1430, 1.442695
      %v1432 = vpow.pop %v1431
      %v1433 = vadd.f32 %v1432, 1.0
      %v1434 = vrcp.pop %v1433
      %v1435 = vmul.f32 1.0, %v1434
      %v1436 = vtanh.pop %v1427
      %v1437 = vmul.f32 %v1435, %v1241
      %1439 = vrot.lane.b32.xlu0 %v1436, 96
      %v1440 = vpop.permute.xlu0 %1439
      %v1442 = vmul.f32 %v1435, %v1440
      %1444 = vrot.lane.b32.xlu0 %v1442, 16
      %v1445 = vpop.permute.xlu0 %1444
      %v1447 = vadd.f32 %v1437, %v1445
      %v1448 = vtanh.pop %v1447
      %1450 = vrot.lane.b32.xlu0 %v1448, 32
      %v1451 = vpop.permute.xlu0 %1450
      %v1453 = vmul.f32 %v1435, %v1451
      %1455 = vrot.lane.b32.xlu0 %v1356, 80
      %v1456 = vpop.permute.xlu0 %1455
      %s1458 = scalar_lea.vmem [#allocation2], 20
      %1459 = vst.msk [vmem:[%s1458] sm:$0xf] %vm422, %v1456
      %1461 = vrot.lane.b32.xlu0 %v1453, 80
      %v1462 = vpop.permute.xlu0 %1461
      %s1464 = scalar_lea.vmem [#allocation3], 8
      %1465 = vst.msk [vmem:[%s1464] sm:$0xf] %vm422, %v1462
      %v1466 = vld [vmem:[%s528] sm:$0xf]
      %v1467 = vsel %vm218, %v1456, 0
      %1469 = vmatprep.subr.mxu0 0.0
      %1470 = vmatpush1.msra.mxu0 %v186
      %1471 = vmatprep.subr.mxu0 0.0
      %1472 = vmatpush1.msra.mxu0 %v185
      %1473 = vmatprep.subr.mxu0 0.0
      %1474 = vmatpush1.msra.mxu0 %v184
      %1475 = vmatprep.subr.mxu0 0.0
      %1476 = vmatpush1.msra.mxu0 %v183
      %1477 = vmatprep.subr.mxu0 0.0
      %1478 = vmatpush1.msra.mxu0 %v182
      %1479 = vmatprep.subr.mxu0 0.0
      %1480 = vmatpush1.msra.mxu0 %v181
      %1481 = vmatprep.subr.mxu0 0.0
      %1482 = vmatpush1.msra.mxu0 %v180
      %1483 = vmatprep.subr.mxu0 0.0
      %1484 = vmatpush1.msra.mxu0 %v179
      %1485 = vmatprep.subr.mxu0 0.0
      %1486 = vmatpush1.msra.mxu0 %v178
      %1487 = vmatprep.subr.mxu0 0.0
      %1488 = vmatpush1.msra.mxu0 %v177
      %1489 = vmatprep.subr.mxu0 0.0
      %1490 = vmatpush1.msra.mxu0 %v176
      %1491 = vmatprep.subr.mxu0 0.0
      %1492 = vmatpush1.msra.mxu0 %v175
      %1493 = vmatprep.subr.mxu0 0.0
      %1494 = vmatpush1.msra.mxu0 %v174
      %1495 = vmatprep.subr.mxu0 0.0
      %1496 = vmatpush1.msra.mxu0 %v173
      %1497 = vmatprep.subr.mxu0 0.0
      %1498 = vmatpush1.msra.mxu0 %v172
      %1499 = vmatprep.subr.mxu0 0.0
      %1500 = vmatpush1.msra.mxu0 %v171
      %1501 = vmatprep.subr.mxu0 0.0
      %1502 = vmatpush2.msra.mxu0 0.0
      %1503 = vmatprep.subr.mxu0 0.0
      %1504 = vmatpush2.msra.mxu0 0.0
      %1505 = vmatprep.subr.mxu0 0.0
      %1506 = vmatpush2.msra.mxu0 0.0
      %1507 = vmatprep.subr.mxu0 0.0
      %1508 = vmatpush2.msra.mxu0 0.0
      %1509 = vmatprep.subr.mxu0 0.0
      %1510 = vmatpush2.msra.mxu0 0.0
      %1511 = vmatprep.subr.mxu0 0.0
      %1512 = vmatpush2.msra.mxu0 0.0
      %1513 = vmatprep.subr.mxu0 0.0
      %1514 = vmatpush2.msra.mxu0 0.0
      %1515 = vmatprep.subr.mxu0 0.0
      %1516 = vmatpush2.msra.mxu0 0.0
      %1517 = vmatprep.subr.mxu0 0.0
      %1518 = vmatpush2.msra.mxu0 0.0
      %1519 = vmatprep.subr.mxu0 0.0
      %1520 = vmatpush2.msra.mxu0 0.0
      %1521 = vmatprep.subr.mxu0 0.0
      %1522 = vmatpush2.msra.mxu0 0.0
      %1523 = vmatprep.subr.mxu0 0.0
      %1524 = vmatpush2.msra.mxu0 0.0
      %1525 = vmatprep.subr.mxu0 0.0
      %1526 = vmatpush2.msra.mxu0 0.0
      %1527 = vmatprep.subr.mxu0 0.0
      %1528 = vmatpush2.msra.mxu0 0.0
      %1529 = vmatprep.subr.mxu0 0.0
      %1530 = vmatpush2.msra.mxu0 %v188
      %1531 = vmatprep.subr.mxu0 0.0
      %1532 = vmatpush2.msra.mxu0 %v187
      %1533 = vmatprep.mubr.f32.mxu0 %v1467
      %1534 = vmatmul.mubr.f32.gmra.mxu0 %v1466
      %v1535 = vpop.f32.mrf.mxu0
      %v1536 = vadd.f32 %v216, %v1535
      %v1537 = vpop.f32.mrf.mxu0
      %1538 = vdwg.mxu0
      %v1539 = vxor.u32 %v1536, 2147483648
      %v1540 = vmul.f32 %v1539, 1.442695
      %v1541 = vpow.pop %v1540
      %v1542 = vadd.f32 %v1541, 1.0
      %v1543 = vrcp.pop %v1542
      %v1544 = vmul.f32 1.0, %v1543
      %v1545 = vtanh.pop %v1536
      %v1546 = vmul.f32 %v1544, %v1350
      %1548 = vrot.lane.b32.xlu0 %v1545, 96
      %v1549 = vpop.permute.xlu0 %1548
      %v1551 = vmul.f32 %v1544, %v1549
      %1553 = vrot.lane.b32.xlu0 %v1551, 16
      %v1554 = vpop.permute.xlu0 %1553
      %v1556 = vadd.f32 %v1546, %v1554
      %v1557 = vtanh.pop %v1556
      %1559 = vrot.lane.b32.xlu0 %v1557, 32
      %v1560 = vpop.permute.xlu0 %1559
      %v1562 = vmul.f32 %v1544, %v1560
      %v1563 = vld [vmem:[%s430] sm:$0xf]
      %v1564 = vsel %vm218, %v1462, 0
      %1566 = vmatprep.subr.mxu0 0.0
      %1567 = vmatpush1.msra.mxu0 %v205
      %1568 = vmatprep.subr.mxu0 0.0
      %1569 = vmatpush1.msra.mxu0 %v204
      %1570 = vmatprep.subr.mxu0 0.0
      %1571 = vmatpush1.msra.mxu0 %v203
      %1572 = vmatprep.subr.mxu0 0.0
      %1573 = vmatpush1.msra.mxu0 %v202
      %1574 = vmatprep.subr.mxu0 0.0
      %1575 = vmatpush1.msra.mxu0 %v201
      %1576 = vmatprep.subr.mxu0 0.0
      %1577 = vmatpush1.msra.mxu0 %v200
      %1578 = vmatprep.subr.mxu0 0.0
      %1579 = vmatpush1.msra.mxu0 %v199
      %1580 = vmatprep.subr.mxu0 0.0
      %1581 = vmatpush1.msra.mxu0 %v198
      %1582 = vmatprep.subr.mxu0 0.0
      %1583 = vmatpush1.msra.mxu0 %v197
      %1584 = vmatprep.subr.mxu0 0.0
      %1585 = vmatpush1.msra.mxu0 %v196
      %1586 = vmatprep.subr.mxu0 0.0
      %1587 = vmatpush1.msra.mxu0 %v195
      %1588 = vmatprep.subr.mxu0 0.0
      %1589 = vmatpush1.msra.mxu0 %v194
      %1590 = vmatprep.subr.mxu0 0.0
      %1591 = vmatpush1.msra.mxu0 %v193
      %1592 = vmatprep.subr.mxu0 0.0
      %1593 = vmatpush1.msra.mxu0 %v192
      %1594 = vmatprep.subr.mxu0 0.0
      %1595 = vmatpush1.msra.mxu0 %v191
      %1596 = vmatprep.subr.mxu0 0.0
      %1597 = vmatpush1.msra.mxu0 %v190
      %1598 = vmatprep.subr.mxu0 0.0
      %1599 = vmatpush2.msra.mxu0 0.0
      %1600 = vmatprep.subr.mxu0 0.0
      %1601 = vmatpush2.msra.mxu0 0.0
      %1602 = vmatprep.subr.mxu0 0.0
      %1603 = vmatpush2.msra.mxu0 0.0
      %1604 = vmatprep.subr.mxu0 0.0
      %1605 = vmatpush2.msra.mxu0 0.0
      %1606 = vmatprep.subr.mxu0 0.0
      %1607 = vmatpush2.msra.mxu0 0.0
      %1608 = vmatprep.subr.mxu0 0.0
      %1609 = vmatpush2.msra.mxu0 0.0
      %1610 = vmatprep.subr.mxu0 0.0
      %1611 = vmatpush2.msra.mxu0 0.0
      %1612 = vmatprep.subr.mxu0 0.0
      %1613 = vmatpush2.msra.mxu0 0.0
      %1614 = vmatprep.subr.mxu0 0.0
      %1615 = vmatpush2.msra.mxu0 0.0
      %1616 = vmatprep.subr.mxu0 0.0
      %1617 = vmatpush2.msra.mxu0 0.0
      %1618 = vmatprep.subr.mxu0 0.0
      %1619 = vmatpush2.msra.mxu0 0.0
      %1620 = vmatprep.subr.mxu0 0.0
      %1621 = vmatpush2.msra.mxu0 0.0
      %1622 = vmatprep.subr.mxu0 0.0
      %1623 = vmatpush2.msra.mxu0 0.0
      %1624 = vmatprep.subr.mxu0 0.0
      %1625 = vmatpush2.msra.mxu0 0.0
      %1626 = vmatprep.subr.mxu0 0.0
      %1627 = vmatpush2.msra.mxu0 %v207
      %1628 = vmatprep.subr.mxu0 0.0
      %1629 = vmatpush2.msra.mxu0 %v206
      %1630 = vmatprep.mubr.f32.mxu0 %v1564
      %1631 = vmatmul.mubr.f32.gmra.mxu0 %v1563
      %v1632 = vpop.f32.mrf.mxu0
      %v1633 = vadd.f32 %v322, %v1632
      %v1634 = vpop.f32.mrf.mxu0
      %1635 = vdwg.mxu0
      %v1636 = vxor.u32 %v1633, 2147483648
      %v1637 = vmul.f32 %v1636, 1.442695
      %v1638 = vpow.pop %v1637
      %v1639 = vadd.f32 %v1638, 1.0
      %v1640 = vrcp.pop %v1639
      %v1641 = vmul.f32 1.0, %v1640
      %v1642 = vtanh.pop %v1633
      %v1643 = vmul.f32 %v1641, %v1447
      %1645 = vrot.lane.b32.xlu0 %v1642, 96
      %v1646 = vpop.permute.xlu0 %1645
      %v1648 = vmul.f32 %v1641, %v1646
      %1650 = vrot.lane.b32.xlu0 %v1648, 16
      %v1651 = vpop.permute.xlu0 %1650
      %v1653 = vadd.f32 %v1643, %v1651
      %v1654 = vtanh.pop %v1653
      %1656 = vrot.lane.b32.xlu0 %v1654, 32
      %v1657 = vpop.permute.xlu0 %1656
      %v1659 = vmul.f32 %v1641, %v1657
      %1661 = vrot.lane.b32.xlu0 %v1562, 80
      %v1662 = vpop.permute.xlu0 %1661
      %s1664 = scalar_lea.vmem [#allocation2], 24
      %1665 = vst.msk [vmem:[%s1664] sm:$0xf] %vm422, %v1662
      %1667 = vrot.lane.b32.xlu0 %v1659, 80
      %v1668 = vpop.permute.xlu0 %1667
      %s1670 = scalar_lea.vmem [#allocation3], 4
      %1671 = vst.msk [vmem:[%s1670] sm:$0xf] %vm422, %v1668
      %v1672 = vld [vmem:[%s316] sm:$0xf]
      %v1673 = vsel %vm218, %v1662, 0
      %1675 = vmatprep.subr.mxu0 0.0
      %1676 = vmatpush1.msra.mxu0 %v186
      %1677 = vmatprep.subr.mxu0 0.0
      %1678 = vmatpush1.msra.mxu0 %v185
      %1679 = vmatprep.subr.mxu0 0.0
      %1680 = vmatpush1.msra.mxu0 %v184
      %1681 = vmatprep.subr.mxu0 0.0
      %1682 = vmatpush1.msra.mxu0 %v183
      %1683 = vmatprep.subr.mxu0 0.0
      %1684 = vmatpush1.msra.mxu0 %v182
      %1685 = vmatprep.subr.mxu0 0.0
      %1686 = vmatpush1.msra.mxu0 %v181
      %1687 = vmatprep.subr.mxu0 0.0
      %1688 = vmatpush1.msra.mxu0 %v180
      %1689 = vmatprep.subr.mxu0 0.0
      %1690 = vmatpush1.msra.mxu0 %v179
      %1691 = vmatprep.subr.mxu0 0.0
      %1692 = vmatpush1.msra.mxu0 %v178
      %1693 = vmatprep.subr.mxu0 0.0
      %1694 = vmatpush1.msra.mxu0 %v177
      %1695 = vmatprep.subr.mxu0 0.0
      %1696 = vmatpush1.msra.mxu0 %v176
      %1697 = vmatprep.subr.mxu0 0.0
      %1698 = vmatpush1.msra.mxu0 %v175
      %1699 = vmatprep.subr.mxu0 0.0
      %1700 = vmatpush1.msra.mxu0 %v174
      %1701 = vmatprep.subr.mxu0 0.0
      %1702 = vmatpush1.msra.mxu0 %v173
      %1703 = vmatprep.subr.mxu0 0.0
      %1704 = vmatpush1.msra.mxu0 %v172
      %1705 = vmatprep.subr.mxu0 0.0
      %1706 = vmatpush1.msra.mxu0 %v171
      %1707 = vmatprep.subr.mxu0 0.0
      %1708 = vmatpush2.msra.mxu0 0.0
      %1709 = vmatprep.subr.mxu0 0.0
      %1710 = vmatpush2.msra.mxu0 0.0
      %1711 = vmatprep.subr.mxu0 0.0
      %1712 = vmatpush2.msra.mxu0 0.0
      %1713 = vmatprep.subr.mxu0 0.0
      %1714 = vmatpush2.msra.mxu0 0.0
      %1715 = vmatprep.subr.mxu0 0.0
      %1716 = vmatpush2.msra.mxu0 0.0
      %1717 = vmatprep.subr.mxu0 0.0
      %1718 = vmatpush2.msra.mxu0 0.0
      %1719 = vmatprep.subr.mxu0 0.0
      %1720 = vmatpush2.msra.mxu0 0.0
      %1721 = vmatprep.subr.mxu0 0.0
      %1722 = vmatpush2.msra.mxu0 0.0
      %1723 = vmatprep.subr.mxu0 0.0
      %1724 = vmatpush2.msra.mxu0 0.0
      %1725 = vmatprep.subr.mxu0 0.0
      %1726 = vmatpush2.msra.mxu0 0.0
      %1727 = vmatprep.subr.mxu0 0.0
      %1728 = vmatpush2.msra.mxu0 0.0
      %1729 = vmatprep.subr.mxu0 0.0
      %1730 = vmatpush2.msra.mxu0 0.0
      %1731 = vmatprep.subr.mxu0 0.0
      %1732 = vmatpush2.msra.mxu0 0.0
      %1733 = vmatprep.subr.mxu0 0.0
      %1734 = vmatpush2.msra.mxu0 0.0
      %1735 = vmatprep.subr.mxu0 0.0
      %1736 = vmatpush2.msra.mxu0 %v188
      %1737 = vmatprep.subr.mxu0 0.0
      %1738 = vmatpush2.msra.mxu0 %v187
      %1739 = vmatprep.mubr.f32.mxu0 %v1673
      %1740 = vmatmul.mubr.f32.gmra.mxu0 %v1672
      %v1741 = vpop.f32.mrf.mxu0
      %v1742 = vadd.f32 %v216, %v1741
      %v1743 = vpop.f32.mrf.mxu0
      %1744 = vdwg.mxu0
      %v1745 = vxor.u32 %v1742, 2147483648
      %v1746 = vmul.f32 %v1745, 1.442695
      %v1747 = vpow.pop %v1746
      %v1748 = vadd.f32 %v1747, 1.0
      %v1749 = vrcp.pop %v1748
      %v1750 = vmul.f32 1.0, %v1749
      %v1751 = vtanh.pop %v1742
      %v1752 = vmul.f32 %v1750, %v1556
      %1754 = vrot.lane.b32.xlu0 %v1751, 96
      %v1755 = vpop.permute.xlu0 %1754
      %v1757 = vmul.f32 %v1750, %v1755
      %1759 = vrot.lane.b32.xlu0 %v1757, 16
      %v1760 = vpop.permute.xlu0 %1759
      %v1762 = vadd.f32 %v1752, %v1760
      %v1763 = vtanh.pop %v1762
      %1765 = vrot.lane.b32.xlu0 %v1763, 32
      %v1766 = vpop.permute.xlu0 %1765
      %v1768 = vmul.f32 %v1750, %v1766
      %v1769 = vld [vmem:[%s165] sm:$0xf]
      %v1770 = vsel %vm218, %v1668, 0
      %1772 = vmatprep.subr.mxu0 0.0
      %1773 = vmatpush1.msra.mxu0 %v205
      %1774 = vmatprep.subr.mxu0 0.0
      %1775 = vmatpush1.msra.mxu0 %v204
      %1776 = vmatprep.subr.mxu0 0.0
      %1777 = vmatpush1.msra.mxu0 %v203
      %1778 = vmatprep.subr.mxu0 0.0
      %1779 = vmatpush1.msra.mxu0 %v202
      %1780 = vmatprep.subr.mxu0 0.0
      %1781 = vmatpush1.msra.mxu0 %v201
      %1782 = vmatprep.subr.mxu0 0.0
      %1783 = vmatpush1.msra.mxu0 %v200
      %1784 = vmatprep.subr.mxu0 0.0
      %1785 = vmatpush1.msra.mxu0 %v199
      %1786 = vmatprep.subr.mxu0 0.0
      %1787 = vmatpush1.msra.mxu0 %v198
      %1788 = vmatprep.subr.mxu0 0.0
      %1789 = vmatpush1.msra.mxu0 %v197
      %1790 = vmatprep.subr.mxu0 0.0
      %1791 = vmatpush1.msra.mxu0 %v196
      %1792 = vmatprep.subr.mxu0 0.0
      %1793 = vmatpush1.msra.mxu0 %v195
      %1794 = vmatprep.subr.mxu0 0.0
      %1795 = vmatpush1.msra.mxu0 %v194
      %1796 = vmatprep.subr.mxu0 0.0
      %1797 = vmatpush1.msra.mxu0 %v193
      %1798 = vmatprep.subr.mxu0 0.0
      %1799 = vmatpush1.msra.mxu0 %v192
      %1800 = vmatprep.subr.mxu0 0.0
      %1801 = vmatpush1.msra.mxu0 %v191
      %1802 = vmatprep.subr.mxu0 0.0
      %1803 = vmatpush1.msra.mxu0 %v190
      %1804 = vmatprep.subr.mxu0 0.0
      %1805 = vmatpush2.msra.mxu0 0.0
      %1806 = vmatprep.subr.mxu0 0.0
      %1807 = vmatpush2.msra.mxu0 0.0
      %1808 = vmatprep.subr.mxu0 0.0
      %1809 = vmatpush2.msra.mxu0 0.0
      %1810 = vmatprep.subr.mxu0 0.0
      %1811 = vmatpush2.msra.mxu0 0.0
      %1812 = vmatprep.subr.mxu0 0.0
      %1813 = vmatpush2.msra.mxu0 0.0
      %1814 = vmatprep.subr.mxu0 0.0
      %1815 = vmatpush2.msra.mxu0 0.0
      %1816 = vmatprep.subr.mxu0 0.0
      %1817 = vmatpush2.msra.mxu0 0.0
      %1818 = vmatprep.subr.mxu0 0.0
      %1819 = vmatpush2.msra.mxu0 0.0
      %1820 = vmatprep.subr.mxu0 0.0
      %1821 = vmatpush2.msra.mxu0 0.0
      %1822 = vmatprep.subr.mxu0 0.0
      %1823 = vmatpush2.msra.mxu0 0.0
      %1824 = vmatprep.subr.mxu0 0.0
      %1825 = vmatpush2.msra.mxu0 0.0
      %1826 = vmatprep.subr.mxu0 0.0
      %1827 = vmatpush2.msra.mxu0 0.0
      %1828 = vmatprep.subr.mxu0 0.0
      %1829 = vmatpush2.msra.mxu0 0.0
      %1830 = vmatprep.subr.mxu0 0.0
      %1831 = vmatpush2.msra.mxu0 0.0
      %1832 = vmatprep.subr.mxu0 0.0
      %1833 = vmatpush2.msra.mxu0 %v207
      %1834 = vmatprep.subr.mxu0 0.0
      %1835 = vmatpush2.msra.mxu0 %v206
      %1836 = vmatprep.mubr.f32.mxu0 %v1770
      %1837 = vmatmul.mubr.f32.gmra.mxu0 %v1769
      %v1838 = vpop.f32.mrf.mxu0
      %v1839 = vadd.f32 %v322, %v1838
      %v1840 = vpop.f32.mrf.mxu0
      %1841 = vdwg.mxu0
      %v1842 = vxor.u32 %v1839, 2147483648
      %v1843 = vmul.f32 %v1842, 1.442695
      %v1844 = vpow.pop %v1843
      %v1845 = vadd.f32 %v1844, 1.0
      %v1846 = vrcp.pop %v1845
      %v1847 = vmul.f32 1.0, %v1846
      %v1848 = vtanh.pop %v1839
      %v1849 = vmul.f32 %v1847, %v1653
      %1851 = vrot.lane.b32.xlu0 %v1848, 96
      %v1852 = vpop.permute.xlu0 %1851
      %v1854 = vmul.f32 %v1847, %v1852
      %1856 = vrot.lane.b32.xlu0 %v1854, 16
      %v1857 = vpop.permute.xlu0 %1856
      %v1859 = vadd.f32 %v1849, %v1857
      %v1860 = vtanh.pop %v1859
      %1862 = vrot.lane.b32.xlu0 %v1860, 32
      %v1863 = vpop.permute.xlu0 %1862
      %v1865 = vmul.f32 %v1847, %v1863
      %1867 = vrot.lane.b32.xlu0 %v1768, 80
      %v1868 = vpop.permute.xlu0 %1867
      %s1870 = scalar_lea.vmem [#allocation2], 28
      %1871 = vst.msk [vmem:[%s1870] sm:$0xf] %vm422, %v1868
      %1873 = vrot.lane.b32.xlu0 %v1865, 80
      %v1874 = vpop.permute.xlu0 %1873
      %1876 = vst.msk [vmem:[#allocation3] sm:$0xf] %vm422, %v1874
      %v1877 = vld [vmem:[#allocation2] sm:$0xf]
      %v1878 = vld [vmem:[#allocation2 + $0x4] sm:$0xf]
      %v1879 = vld [vmem:[#allocation2 + $0x8] sm:$0xf]
      %v1880 = vld [vmem:[#allocation2 + $0xc] sm:$0xf]
      %v1881 = vld [vmem:[#allocation2 + $0x10] sm:$0xf]
      %v1882 = vld [vmem:[#allocation2 + $0x14] sm:$0xf]
      %v1883 = vld [vmem:[#allocation2 + $0x18] sm:$0xf]
      %v1884 = vld [vmem:[#allocation2 + $0x1c] sm:$0xf]
      %v1885 = vld [vmem:[#allocation3] sm:$0xf]
      %v1886 = vld [vmem:[#allocation3 + $0x4] sm:$0xf]
      %v1887 = vld [vmem:[#allocation3 + $0x8] sm:$0xf]
      %v1888 = vld [vmem:[#allocation3 + $0xc] sm:$0xf]
      %v1889 = vld [vmem:[#allocation3 + $0x10] sm:$0xf]
      %v1890 = vld [vmem:[#allocation3 + $0x14] sm:$0xf]
      %v1891 = vld [vmem:[#allocation3 + $0x18] sm:$0xf]
      %v1892 = vld [vmem:[#allocation3 + $0x1c] sm:$0xf]
      %1901 = vrot.lane.b32.xlu0 %v1885, 16
      %v1902 = vpop.permute.xlu0 %1901
      %1903 = vrot.lane.b32.xlu0 %v1886, 16
      %v1904 = vpop.permute.xlu0 %1903
      %1905 = vrot.lane.b32.xlu0 %v1887, 16
      %v1906 = vpop.permute.xlu0 %1905
      %1907 = vrot.lane.b32.xlu0 %v1888, 16
      %v1908 = vpop.permute.xlu0 %1907
      %1909 = vrot.lane.b32.xlu0 %v1889, 16
      %v1910 = vpop.permute.xlu0 %1909
      %1911 = vrot.lane.b32.xlu0 %v1890, 16
      %v1912 = vpop.permute.xlu0 %1911
      %1913 = vrot.lane.b32.xlu0 %v1891, 16
      %v1914 = vpop.permute.xlu0 %1913
      %1915 = vrot.lane.b32.xlu0 %v1892, 16
      %v1916 = vpop.permute.xlu0 %1915
      %v1925 = vsel %vm218, %v1877, %v1902
      %v1926 = vsel %vm218, %v1878, %v1904
      %v1927 = vsel %vm218, %v1879, %v1906
      %v1928 = vsel %vm218, %v1880, %v1908
      %v1929 = vsel %vm218, %v1881, %v1910
      %v1930 = vsel %vm218, %v1882, %v1912
      %v1931 = vsel %vm218, %v1883, %v1914
      %v1932 = vsel %vm218, %v1884, %v1916
      %vm1933 = vcmask 257024
      %1934 = vst.msk [vmem:[%s170] sm:$0xf] %vm1933, %v1925
      %1935 = vst.msk [vmem:[%s170 + $0x4] sm:$0xf] %vm1933, %v1926
      %1936 = vst.msk [vmem:[%s170 + $0x8] sm:$0xf] %vm1933, %v1927
      %1937 = vst.msk [vmem:[%s170 + $0xc] sm:$0xf] %vm1933, %v1928
      %1938 = vst.msk [vmem:[%s170 + $0x10] sm:$0xf] %vm1933, %v1929
      %1939 = vst.msk [vmem:[%s170 + $0x14] sm:$0xf] %vm1933, %v1930
      %1940 = vst.msk [vmem:[%s170 + $0x18] sm:$0xf] %vm1933, %v1931
      %1941 = vst.msk [vmem:[%s170 + $0x1c] sm:$0xf] %vm1933, %v1932
      %p1942 = scmp.lt.s32.totalorder %s14, 1
      %s1943 = scalar_select %p1942, %s14, 1
      %s1944 = smul.addr %s1943, 8
      %s1945 = smul.addr %s1944, 4
      %s1946 = scalar_lea.vmem %s3, %s1945
      // Predicated region
      $region33: #{esim_forward.6} parent=31 // pred_check
        %p1947 = pneg %p100
      $region34: #{esim_forward.6} parent=31 // pred_check_branch
        %1949 = sbr.rel (%p1947) target = $region36
      $region35: #{esim_forward.6} parent=31 // pred_region
        _
      $region36: #{esim_forward.6} parent=31 // pred_fallthru
        _
    $region32: #{esim_forward.6} parent=5 // pred_fallthru
      _
    %p1950 = scmp.le.s32.totalorder 2, %s9
    // Predicated region
    $region37: #{esim_forward.6} parent=5 // pred_check
      %p1951 = pneg %p1950
    $region38: #{esim_forward.6} parent=5 // pred_check_branch
      %1953 = sbr.rel (%p1951) target = $region40
    $region39: #{esim_forward.6} parent=5 // pred_region
      %s1954 = ssub.s32 %s9, 2
      // Predicated region
      $region41: #{esim_forward.6} parent=39 // pred_check
        %p1955 = pneg %p106
      $region42: #{esim_forward.6} parent=39 // pred_check_branch
        %1957 = sbr.rel (%p1955) target = $region44
      $region43: #{esim_forward.6} parent=39 // pred_region
        %p1958 = scmp.lt.s32.totalorder %s15, 1
        %s1959 = scalar_select %p1958, %s15, 1
        %s1960 = smul.addr %s1959, 8
        %s1961 = smul.addr %s1960, 4
        %s1962 = scalar_lea.vmem %s3, %s1961
      $region44: #{esim_forward.6} parent=39 // pred_fallthru
        _
    $region40: #{esim_forward.6} parent=5 // pred_fallthru
      _
  $region6: #{esim_forward.6} parent=0 // loop_footer
    %s13 = sadd.s32 1, %s9
  $region7: #{esim_forward.6} parent=0 // loop_footer_branch
    %8 = sbr.rel target = $region3
  $region8: #{esim_forward.6} parent=0 // loop_exit
    _

// kernel: esim_forward.5
$region0: #{esim_forward.5}
  #allocation0 [shape = 'u32[]', space=smem, size = 0x4, offset = 0x4, fixed_abs, tag = 'smem constant byte address 0x4 - core index']
  #allocation1 [shape = 'u32[144,128]{1,0:T(1,128)}', space=vmem, size = 0x12000, scoped, tag = 'internal scratch']
  %s0 = inlined_call_operand.vmem [shape: f32[2,8,4,32], index: 0, kind: input, shape index: {}]
  %s1 = inlined_call_operand.vmem [shape: f32[2,8,4,128], index: 1, kind: output, shape index: {}]
  %s2 = sld [smem:[#allocation0]]
  $region14: #{esim_forward.5} parent=0
    _
  %s4 = ssub.s32 1, %s2
  %s5 = scalar_select 0, %s4, %s2
  // Predicated region
  $region2: #{esim_forward.5} parent=0 // pred_check
    _
  $region3: #{esim_forward.5} parent=0 // pred_check_branch
    %7 = sbr.rel (0) target = $region5
  $region4: #{esim_forward.5} parent=0 // pred_region
    _
  $region5: #{esim_forward.5} parent=0 // pred_fallthru
    _
  %v8 = vld [vmem:[%s0] sm:$0xf]
  %v9 = vld [vmem:[%s0 + $0x4] sm:$0xf]
  %v10 = vld [vmem:[%s0 + $0x8] sm:$0xf]
  %v11 = vld [vmem:[%s0 + $0xc] sm:$0xf]
  %v12 = vld [vmem:[%s0 + $0x10] sm:$0xf]
  %v13 = vld [vmem:[%s0 + $0x14] sm:$0xf]
  %v14 = vld [vmem:[%s0 + $0x18] sm:$0xf]
  %v15 = vld [vmem:[%s0 + $0x1c] sm:$0xf]
  %s16 = scalar_lea.vmem %s0, 32
  %v17 = vld [vmem:[%s16] sm:$0xf]
  %v18 = vld [vmem:[%s16 + $0x4] sm:$0xf]
  %v19 = vld [vmem:[%s16 + $0x8] sm:$0xf]
  %v20 = vld [vmem:[%s16 + $0xc] sm:$0xf]
  %v21 = vld [vmem:[%s16 + $0x10] sm:$0xf]
  %v22 = vld [vmem:[%s16 + $0x14] sm:$0xf]
  %v23 = vld [vmem:[%s16 + $0x18] sm:$0xf]
  %v24 = vld [vmem:[%s16 + $0x1c] sm:$0xf]
  %vm25 = vcmask 261120
  %v27 = vsel %vm25, %v8, 0
  %v30 = vsel %vm25, %v17, 0
  %32 = vmatprep.subr.mxu0 0.0
  %33 = vmatpush1.xpose.msra.mxu0 0.0
  %34 = vmatprep.subr.mxu0 0.0
  %35 = vmatpush1.xpose.msra.mxu0 0.0
  %36 = vmatprep.subr.mxu0 0.0
  %37 = vmatpush1.xpose.msra.mxu0 0.0
  %38 = vmatprep.subr.mxu0 0.0
  %39 = vmatpush1.xpose.msra.mxu0 0.0
  %40 = vmatprep.subr.mxu0 0.0
  %41 = vmatpush1.xpose.msra.mxu0 0.0
  %42 = vmatprep.subr.mxu0 0.0
  %43 = vmatpush1.xpose.msra.mxu0 0.0
  %44 = vmatprep.subr.mxu0 0.0
  %45 = vmatpush1.xpose.msra.mxu0 0.0
  %46 = vmatprep.subr.mxu0 0.0
  %47 = vmatpush1.xpose.msra.mxu0 0.0
  %48 = vmatprep.subr.mxu0 0.0
  %49 = vmatpush1.xpose.msra.mxu0 0.0
  %50 = vmatprep.subr.mxu0 0.0
  %51 = vmatpush1.xpose.msra.mxu0 0.0
  %52 = vmatprep.subr.mxu0 0.0
  %53 = vmatpush1.xpose.msra.mxu0 0.0
  %54 = vmatprep.subr.mxu0 0.0
  %55 = vmatpush1.xpose.msra.mxu0 0.0
  %56 = vmatprep.subr.mxu0 0.0
  %57 = vmatpush1.xpose.msra.mxu0 0.0
  %58 = vmatprep.subr.mxu0 0.0
  %59 = vmatpush1.xpose.msra.mxu0 0.0
  %60 = vmatprep.subr.mxu0 0.0
  %61 = vmatpush1.xpose.msra.mxu0 0.0
  %62 = vmatprep.subr.mxu0 0.0
  %63 = vmatpush1.xpose.msra.mxu0 %v30
  %64 = vmatprep.subr.mxu0 0.0
  %65 = vmatpush2.xpose.msra.mxu0 0.0
  %66 = vmatprep.subr.mxu0 0.0
  %67 = vmatpush2.xpose.msra.mxu0 0.0
  %68 = vmatprep.subr.mxu0 0.0
  %69 = vmatpush2.xpose.msra.mxu0 0.0
  %70 = vmatprep.subr.mxu0 0.0
  %71 = vmatpush2.xpose.msra.mxu0 0.0
  %72 = vmatprep.subr.mxu0 0.0
  %73 = vmatpush2.xpose.msra.mxu0 0.0
  %74 = vmatprep.subr.mxu0 0.0
  %75 = vmatpush2.xpose.msra.mxu0 0.0
  %76 = vmatprep.subr.mxu0 0.0
  %77 = vmatpush2.xpose.msra.mxu0 0.0
  %78 = vmatprep.subr.mxu0 0.0
  %79 = vmatpush2.xpose.msra.mxu0 0.0
  %80 = vmatprep.subr.mxu0 0.0
  %81 = vmatpush2.xpose.msra.mxu0 0.0
  %82 = vmatprep.subr.mxu0 0.0
  %83 = vmatpush2.xpose.msra.mxu0 0.0
  %84 = vmatprep.subr.mxu0 0.0
  %85 = vmatpush2.xpose.msra.mxu0 0.0
  %86 = vmatprep.subr.mxu0 0.0
  %87 = vmatpush2.xpose.msra.mxu0 0.0
  %88 = vmatprep.subr.mxu0 0.0
  %89 = vmatpush2.xpose.msra.mxu0 0.0
  %90 = vmatprep.subr.mxu0 0.0
  %91 = vmatpush2.xpose.msra.mxu0 0.0
  %92 = vmatprep.subr.mxu0 0.0
  %93 = vmatpush2.xpose.msra.mxu0 0.0
  %94 = vmatprep.subr.mxu0 0.0
  %95 = vmatpush2.xpose.msra.mxu0 0.0
  %96 = vmatprep.mubr.f32.mxu0 0.0
  %97 = vmatmul.mubr.f32.gmra.mxu0 %v27
  %v98 = vpop.f32.mrf.mxu0
  %v99 = vadd.f32 0.0, %v98
  %v100 = vpop.f32.mrf.mxu0
  %101 = vdwg.mxu0
  %v103 = vsel %vm25, %v9, 0
  %v106 = vsel %vm25, %v18, 0
  %108 = vmatprep.subr.mxu0 0.0
  %109 = vmatpush1.xpose.msra.mxu0 0.0
  %110 = vmatprep.subr.mxu0 0.0
  %111 = vmatpush1.xpose.msra.mxu0 0.0
  %112 = vmatprep.subr.mxu0 0.0
  %113 = vmatpush1.xpose.msra.mxu0 0.0
  %114 = vmatprep.subr.mxu0 0.0
  %115 = vmatpush1.xpose.msra.mxu0 0.0
  %116 = vmatprep.subr.mxu0 0.0
  %117 = vmatpush1.xpose.msra.mxu0 0.0
  %118 = vmatprep.subr.mxu0 0.0
  %119 = vmatpush1.xpose.msra.mxu0 0.0
  %120 = vmatprep.subr.mxu0 0.0
  %121 = vmatpush1.xpose.msra.mxu0 0.0
  %122 = vmatprep.subr.mxu0 0.0
  %123 = vmatpush1.xpose.msra.mxu0 0.0
  %124 = vmatprep.subr.mxu0 0.0
  %125 = vmatpush1.xpose.msra.mxu0 0.0
  %126 = vmatprep.subr.mxu0 0.0
  %127 = vmatpush1.xpose.msra.mxu0 0.0
  %128 = vmatprep.subr.mxu0 0.0
  %129 = vmatpush1.xpose.msra.mxu0 0.0
  %130 = vmatprep.subr.mxu0 0.0
  %131 = vmatpush1.xpose.msra.mxu0 0.0
  %132 = vmatprep.subr.mxu0 0.0
  %133 = vmatpush1.xpose.msra.mxu0 0.0
  %134 = vmatprep.subr.mxu0 0.0
  %135 = vmatpush1.xpose.msra.mxu0 0.0
  %136 = vmatprep.subr.mxu0 0.0
  %137 = vmatpush1.xpose.msra.mxu0 0.0
  %138 = vmatprep.subr.mxu0 0.0
  %139 = vmatpush1.xpose.msra.mxu0 %v106
  %140 = vmatprep.subr.mxu0 0.0
  %141 = vmatpush2.xpose.msra.mxu0 0.0
  %142 = vmatprep.subr.mxu0 0.0
  %143 = vmatpush2.xpose.msra.mxu0 0.0
  %144 = vmatprep.subr.mxu0 0.0
  %145 = vmatpush2.xpose.msra.mxu0 0.0
  %146 = vmatprep.subr.mxu0 0.0
  %147 = vmatpush2.xpose.msra.mxu0 0.0
  %148 = vmatprep.subr.mxu0 0.0
  %149 = vmatpush2.xpose.msra.mxu0 0.0
  %150 = vmatprep.subr.mxu0 0.0
  %151 = vmatpush2.xpose.msra.mxu0 0.0
  %152 = vmatprep.subr.mxu0 0.0
  %153 = vmatpush2.xpose.msra.mxu0 0.0
  %154 = vmatprep.subr.mxu0 0.0
  %155 = vmatpush2.xpose.msra.mxu0 0.0
  %156 = vmatprep.subr.mxu0 0.0
  %157 = vmatpush2.xpose.msra.mxu0 0.0
  %158 = vmatprep.subr.mxu0 0.0
  %159 = vmatpush2.xpose.msra.mxu0 0.0
  %160 = vmatprep.subr.mxu0 0.0
  %161 = vmatpush2.xpose.msra.mxu0 0.0
  %162 = vmatprep.subr.mxu0 0.0
  %163 = vmatpush2.xpose.msra.mxu0 0.0
  %164 = vmatprep.subr.mxu0 0.0
  %165 = vmatpush2.xpose.msra.mxu0 0.0
  %166 = vmatprep.subr.mxu0 0.0
  %167 = vmatpush2.xpose.msra.mxu0 0.0
  %168 = vmatprep.subr.mxu0 0.0
  %169 = vmatpush2.xpose.msra.mxu0 0.0
  %170 = vmatprep.subr.mxu0 0.0
  %171 = vmatpush2.xpose.msra.mxu0 0.0
  %172 = vmatprep.mubr.f32.mxu0 0.0
  %173 = vmatmul.mubr.f32.gmra.mxu0 %v103
  %v174 = vpop.f32.mrf.mxu0
  %v175 = vadd.f32 0.0, %v174
  %v176 = vpop.f32.mrf.mxu0
  %177 = vdwg.mxu0
  %v179 = vsel %vm25, %v10, 0
  %v182 = vsel %vm25, %v19, 0
  %184 = vmatprep.subr.mxu0 0.0
  %185 = vmatpush1.xpose.msra.mxu0 0.0
  %186 = vmatprep.subr.mxu0 0.0
  %187 = vmatpush1.xpose.msra.mxu0 0.0
  %188 = vmatprep.subr.mxu0 0.0
  %189 = vmatpush1.xpose.msra.mxu0 0.0
  %190 = vmatprep.subr.mxu0 0.0
  %191 = vmatpush1.xpose.msra.mxu0 0.0
  %192 = vmatprep.subr.mxu0 0.0
  %193 = vmatpush1.xpose.msra.mxu0 0.0
  %194 = vmatprep.subr.mxu0 0.0
  %195 = vmatpush1.xpose.msra.mxu0 0.0
  %196 = vmatprep.subr.mxu0 0.0
  %197 = vmatpush1.xpose.msra.mxu0 0.0
  %198 = vmatprep.subr.mxu0 0.0
  %199 = vmatpush1.xpose.msra.mxu0 0.0
  %200 = vmatprep.subr.mxu0 0.0
  %201 = vmatpush1.xpose.msra.mxu0 0.0
  %202 = vmatprep.subr.mxu0 0.0
  %203 = vmatpush1.xpose.msra.mxu0 0.0
  %204 = vmatprep.subr.mxu0 0.0
  %205 = vmatpush1.xpose.msra.mxu0 0.0
  %206 = vmatprep.subr.mxu0 0.0
  %207 = vmatpush1.xpose.msra.mxu0 0.0
  %208 = vmatprep.subr.mxu0 0.0
  %209 = vmatpush1.xpose.msra.mxu0 0.0
  %210 = vmatprep.subr.mxu0 0.0
  %211 = vmatpush1.xpose.msra.mxu0 0.0
  %212 = vmatprep.subr.mxu0 0.0
  %213 = vmatpush1.xpose.msra.mxu0 0.0
  %214 = vmatprep.subr.mxu0 0.0
  %215 = vmatpush1.xpose.msra.mxu0 %v182
  %216 = vmatprep.subr.mxu0 0.0
  %217 = vmatpush2.xpose.msra.mxu0 0.0
  %218 = vmatprep.subr.mxu0 0.0
  %219 = vmatpush2.xpose.msra.mxu0 0.0
  %220 = vmatprep.subr.mxu0 0.0
  %221 = vmatpush2.xpose.msra.mxu0 0.0
  %222 = vmatprep.subr.mxu0 0.0
  %223 = vmatpush2.xpose.msra.mxu0 0.0
  %224 = vmatprep.subr.mxu0 0.0
  %225 = vmatpush2.xpose.msra.mxu0 0.0
  %226 = vmatprep.subr.mxu0 0.0
  %227 = vmatpush2.xpose.msra.mxu0 0.0
  %228 = vmatprep.subr.mxu0 0.0
  %229 = vmatpush2.xpose.msra.mxu0 0.0
  %230 = vmatprep.subr.mxu0 0.0
  %231 = vmatpush2.xpose.msra.mxu0 0.0
  %232 = vmatprep.subr.mxu0 0.0
  %233 = vmatpush2.xpose.msra.mxu0 0.0
  %234 = vmatprep.subr.mxu0 0.0
  %235 = vmatpush2.xpose.msra.mxu0 0.0
  %236 = vmatprep.subr.mxu0 0.0
  %237 = vmatpush2.xpose.msra.mxu0 0.0
  %238 = vmatprep.subr.mxu0 0.0
  %239 = vmatpush2.xpose.msra.mxu0 0.0
  %240 = vmatprep.subr.mxu0 0.0
  %241 = vmatpush2.xpose.msra.mxu0 0.0
  %242 = vmatprep.subr.mxu0 0.0
  %243 = vmatpush2.xpose.msra.mxu0 0.0
  %244 = vmatprep.subr.mxu0 0.0
  %245 = vmatpush2.xpose.msra.mxu0 0.0
  %246 = vmatprep.subr.mxu0 0.0
  %247 = vmatpush2.xpose.msra.mxu0 0.0
  %248 = vmatprep.mubr.f32.mxu0 0.0
  %249 = vmatmul.mubr.f32.gmra.mxu0 %v179
  %v250 = vpop.f32.mrf.mxu0
  %v251 = vadd.f32 0.0, %v250
  %v252 = vpop.f32.mrf.mxu0
  %253 = vdwg.mxu0
  %v255 = vsel %vm25, %v11, 0
  %v258 = vsel %vm25, %v20, 0
  %260 = vmatprep.subr.mxu0 0.0
  %261 = vmatpush1.xpose.msra.mxu0 0.0
  %262 = vmatprep.subr.mxu0 0.0
  %263 = vmatpush1.xpose.msra.mxu0 0.0
  %264 = vmatprep.subr.mxu0 0.0
  %265 = vmatpush1.xpose.msra.mxu0 0.0
  %266 = vmatprep.subr.mxu0 0.0
  %267 = vmatpush1.xpose.msra.mxu0 0.0
  %268 = vmatprep.subr.mxu0 0.0
  %269 = vmatpush1.xpose.msra.mxu0 0.0
  %270 = vmatprep.subr.mxu0 0.0
  %271 = vmatpush1.xpose.msra.mxu0 0.0
  %272 = vmatprep.subr.mxu0 0.0
  %273 = vmatpush1.xpose.msra.mxu0 0.0
  %274 = vmatprep.subr.mxu0 0.0
  %275 = vmatpush1.xpose.msra.mxu0 0.0
  %276 = vmatprep.subr.mxu0 0.0
  %277 = vmatpush1.xpose.msra.mxu0 0.0
  %278 = vmatprep.subr.mxu0 0.0
  %279 = vmatpush1.xpose.msra.mxu0 0.0
  %280 = vmatprep.subr.mxu0 0.0
  %281 = vmatpush1.xpose.msra.mxu0 0.0
  %282 = vmatprep.subr.mxu0 0.0
  %283 = vmatpush1.xpose.msra.mxu0 0.0
  %284 = vmatprep.subr.mxu0 0.0
  %285 = vmatpush1.xpose.msra.mxu0 0.0
  %286 = vmatprep.subr.mxu0 0.0
  %287 = vmatpush1.xpose.msra.mxu0 0.0
  %288 = vmatprep.subr.mxu0 0.0
  %289 = vmatpush1.xpose.msra.mxu0 0.0
  %290 = vmatprep.subr.mxu0 0.0
  %291 = vmatpush1.xpose.msra.mxu0 %v258
  %292 = vmatprep.subr.mxu0 0.0
  %293 = vmatpush2.xpose.msra.mxu0 0.0
  %294 = vmatprep.subr.mxu0 0.0
  %295 = vmatpush2.xpose.msra.mxu0 0.0
  %296 = vmatprep.subr.mxu0 0.0
  %297 = vmatpush2.xpose.msra.mxu0 0.0
  %298 = vmatprep.subr.mxu0 0.0
  %299 = vmatpush2.xpose.msra.mxu0 0.0
  %300 = vmatprep.subr.mxu0 0.0
  %301 = vmatpush2.xpose.msra.mxu0 0.0
  %302 = vmatprep.subr.mxu0 0.0
  %303 = vmatpush2.xpose.msra.mxu0 0.0
  %304 = vmatprep.subr.mxu0 0.0
  %305 = vmatpush2.xpose.msra.mxu0 0.0
  %306 = vmatprep.subr.mxu0 0.0
  %307 = vmatpush2.xpose.msra.mxu0 0.0
  %308 = vmatprep.subr.mxu0 0.0
  %309 = vmatpush2.xpose.msra.mxu0 0.0
  %310 = vmatprep.subr.mxu0 0.0
  %311 = vmatpush2.xpose.msra.mxu0 0.0
  %312 = vmatprep.subr.mxu0 0.0
  %313 = vmatpush2.xpose.msra.mxu0 0.0
  %314 = vmatprep.subr.mxu0 0.0
  %315 = vmatpush2.xpose.msra.mxu0 0.0
  %316 = vmatprep.subr.mxu0 0.0
  %317 = vmatpush2.xpose.msra.mxu0 0.0
  %318 = vmatprep.subr.mxu0 0.0
  %319 = vmatpush2.xpose.msra.mxu0 0.0
  %320 = vmatprep.subr.mxu0 0.0
  %321 = vmatpush2.xpose.msra.mxu0 0.0
  %322 = vmatprep.subr.mxu0 0.0
  %323 = vmatpush2.xpose.msra.mxu0 0.0
  %324 = vmatprep.mubr.f32.mxu0 0.0
  %325 = vmatmul.mubr.f32.gmra.mxu0 %v255
  %v326 = vpop.f32.mrf.mxu0
  %v327 = vadd.f32 0.0, %v326
  %v328 = vpop.f32.mrf.mxu0
  %329 = vdwg.mxu0
  %v331 = vsel %vm25, %v12, 0
  %v334 = vsel %vm25, %v21, 0
  %336 = vmatprep.subr.mxu0 0.0
  %337 = vmatpush1.xpose.msra.mxu0 0.0
  %338 = vmatprep.subr.mxu0 0.0
  %339 = vmatpush1.xpose.msra.mxu0 0.0
  %340 = vmatprep.subr.mxu0 0.0
  %341 = vmatpush1.xpose.msra.mxu0 0.0
  %342 = vmatprep.subr.mxu0 0.0
  %343 = vmatpush1.xpose.msra.mxu0 0.0
  %344 = vmatprep.subr.mxu0 0.0
  %345 = vmatpush1.xpose.msra.mxu0 0.0
  %346 = vmatprep.subr.mxu0 0.0
  %347 = vmatpush1.xpose.msra.mxu0 0.0
  %348 = vmatprep.subr.mxu0 0.0
  %349 = vmatpush1.xpose.msra.mxu0 0.0
  %350 = vmatprep.subr.mxu0 0.0
  %351 = vmatpush1.xpose.msra.mxu0 0.0
  %352 = vmatprep.subr.mxu0 0.0
  %353 = vmatpush1.xpose.msra.mxu0 0.0
  %354 = vmatprep.subr.mxu0 0.0
  %355 = vmatpush1.xpose.msra.mxu0 0.0
  %356 = vmatprep.subr.mxu0 0.0
  %357 = vmatpush1.xpose.msra.mxu0 0.0
  %358 = vmatprep.subr.mxu0 0.0
  %359 = vmatpush1.xpose.msra.mxu0 0.0
  %360 = vmatprep.subr.mxu0 0.0
  %361 = vmatpush1.xpose.msra.mxu0 0.0
  %362 = vmatprep.subr.mxu0 0.0
  %363 = vmatpush1.xpose.msra.mxu0 0.0
  %364 = vmatprep.subr.mxu0 0.0
  %365 = vmatpush1.xpose.msra.mxu0 0.0
  %366 = vmatprep.subr.mxu0 0.0
  %367 = vmatpush1.xpose.msra.mxu0 %v334
  %368 = vmatprep.subr.mxu0 0.0
  %369 = vmatpush2.xpose.msra.mxu0 0.0
  %370 = vmatprep.subr.mxu0 0.0
  %371 = vmatpush2.xpose.msra.mxu0 0.0
  %372 = vmatprep.subr.mxu0 0.0
  %373 = vmatpush2.xpose.msra.mxu0 0.0
  %374 = vmatprep.subr.mxu0 0.0
  %375 = vmatpush2.xpose.msra.mxu0 0.0
  %376 = vmatprep.subr.mxu0 0.0
  %377 = vmatpush2.xpose.msra.mxu0 0.0
  %378 = vmatprep.subr.mxu0 0.0
  %379 = vmatpush2.xpose.msra.mxu0 0.0
  %380 = vmatprep.subr.mxu0 0.0
  %381 = vmatpush2.xpose.msra.mxu0 0.0
  %382 = vmatprep.subr.mxu0 0.0
  %383 = vmatpush2.xpose.msra.mxu0 0.0
  %384 = vmatprep.subr.mxu0 0.0
  %385 = vmatpush2.xpose.msra.mxu0 0.0
  %386 = vmatprep.subr.mxu0 0.0
  %387 = vmatpush2.xpose.msra.mxu0 0.0
  %388 = vmatprep.subr.mxu0 0.0
  %389 = vmatpush2.xpose.msra.mxu0 0.0
  %390 = vmatprep.subr.mxu0 0.0
  %391 = vmatpush2.xpose.msra.mxu0 0.0
  %392 = vmatprep.subr.mxu0 0.0
  %393 = vmatpush2.xpose.msra.mxu0 0.0
  %394 = vmatprep.subr.mxu0 0.0
  %395 = vmatpush2.xpose.msra.mxu0 0.0
  %396 = vmatprep.subr.mxu0 0.0
  %397 = vmatpush2.xpose.msra.mxu0 0.0
  %398 = vmatprep.subr.mxu0 0.0
  %399 = vmatpush2.xpose.msra.mxu0 0.0
  %400 = vmatprep.mubr.f32.mxu0 0.0
  %401 = vmatmul.mubr.f32.gmra.mxu0 %v331
  %v402 = vpop.f32.mrf.mxu0
  %v403 = vadd.f32 0.0, %v402
  %v404 = vpop.f32.mrf.mxu0
  %405 = vdwg.mxu0
  %v407 = vsel %vm25, %v13, 0
  %v410 = vsel %vm25, %v22, 0
  %412 = vmatprep.subr.mxu0 0.0
  %413 = vmatpush1.xpose.msra.mxu0 0.0
  %414 = vmatprep.subr.mxu0 0.0
  %415 = vmatpush1.xpose.msra.mxu0 0.0
  %416 = vmatprep.subr.mxu0 0.0
  %417 = vmatpush1.xpose.msra.mxu0 0.0
  %418 = vmatprep.subr.mxu0 0.0
  %419 = vmatpush1.xpose.msra.mxu0 0.0
  %420 = vmatprep.subr.mxu0 0.0
  %421 = vmatpush1.xpose.msra.mxu0 0.0
  %422 = vmatprep.subr.mxu0 0.0
  %423 = vmatpush1.xpose.msra.mxu0 0.0
  %424 = vmatprep.subr.mxu0 0.0
  %425 = vmatpush1.xpose.msra.mxu0 0.0
  %426 = vmatprep.subr.mxu0 0.0
  %427 = vmatpush1.xpose.msra.mxu0 0.0
  %428 = vmatprep.subr.mxu0 0.0
  %429 = vmatpush1.xpose.msra.mxu0 0.0
  %430 = vmatprep.subr.mxu0 0.0
  %431 = vmatpush1.xpose.msra.mxu0 0.0
  %432 = vmatprep.subr.mxu0 0.0
  %433 = vmatpush1.xpose.msra.mxu0 0.0
  %434 = vmatprep.subr.mxu0 0.0
  %435 = vmatpush1.xpose.msra.mxu0 0.0
  %436 = vmatprep.subr.mxu0 0.0
  %437 = vmatpush1.xpose.msra.mxu0 0.0
  %438 = vmatprep.subr.mxu0 0.0
  %439 = vmatpush1.xpose.msra.mxu0 0.0
  %440 = vmatprep.subr.mxu0 0.0
  %441 = vmatpush1.xpose.msra.mxu0 0.0
  %442 = vmatprep.subr.mxu0 0.0
  %443 = vmatpush1.xpose.msra.mxu0 %v410
  %444 = vmatprep.subr.mxu0 0.0
  %445 = vmatpush2.xpose.msra.mxu0 0.0
  %446 = vmatprep.subr.mxu0 0.0
  %447 = vmatpush2.xpose.msra.mxu0 0.0
  %448 = vmatprep.subr.mxu0 0.0
  %449 = vmatpush2.xpose.msra.mxu0 0.0
  %450 = vmatprep.subr.mxu0 0.0
  %451 = vmatpush2.xpose.msra.mxu0 0.0
  %452 = vmatprep.subr.mxu0 0.0
  %453 = vmatpush2.xpose.msra.mxu0 0.0
  %454 = vmatprep.subr.mxu0 0.0
  %455 = vmatpush2.xpose.msra.mxu0 0.0
  %456 = vmatprep.subr.mxu0 0.0
  %457 = vmatpush2.xpose.msra.mxu0 0.0
  %458 = vmatprep.subr.mxu0 0.0
  %459 = vmatpush2.xpose.msra.mxu0 0.0
  %460 = vmatprep.subr.mxu0 0.0
  %461 = vmatpush2.xpose.msra.mxu0 0.0
  %462 = vmatprep.subr.mxu0 0.0
  %463 = vmatpush2.xpose.msra.mxu0 0.0
  %464 = vmatprep.subr.mxu0 0.0
  %465 = vmatpush2.xpose.msra.mxu0 0.0
  %466 = vmatprep.subr.mxu0 0.0
  %467 = vmatpush2.xpose.msra.mxu0 0.0
  %468 = vmatprep.subr.mxu0 0.0
  %469 = vmatpush2.xpose.msra.mxu0 0.0
  %470 = vmatprep.subr.mxu0 0.0
  %471 = vmatpush2.xpose.msra.mxu0 0.0
  %472 = vmatprep.subr.mxu0 0.0
  %473 = vmatpush2.xpose.msra.mxu0 0.0
  %474 = vmatprep.subr.mxu0 0.0
  %475 = vmatpush2.xpose.msra.mxu0 0.0
  %476 = vmatprep.mubr.f32.mxu0 0.0
  %477 = vmatmul.mubr.f32.gmra.mxu0 %v407
  %v478 = vpop.f32.mrf.mxu0
  %v479 = vadd.f32 0.0, %v478
  %v480 = vpop.f32.mrf.mxu0
  %481 = vdwg.mxu0
  %v483 = vsel %vm25, %v14, 0
  %v486 = vsel %vm25, %v23, 0
  %488 = vmatprep.subr.mxu0 0.0
  %489 = vmatpush1.xpose.msra.mxu0 0.0
  %490 = vmatprep.subr.mxu0 0.0
  %491 = vmatpush1.xpose.msra.mxu0 0.0
  %492 = vmatprep.subr.mxu0 0.0
  %493 = vmatpush1.xpose.msra.mxu0 0.0
  %494 = vmatprep.subr.mxu0 0.0
  %495 = vmatpush1.xpose.msra.mxu0 0.0
  %496 = vmatprep.subr.mxu0 0.0
  %497 = vmatpush1.xpose.msra.mxu0 0.0
  %498 = vmatprep.subr.mxu0 0.0
  %499 = vmatpush1.xpose.msra.mxu0 0.0
  %500 = vmatprep.subr.mxu0 0.0
  %501 = vmatpush1.xpose.msra.mxu0 0.0
  %502 = vmatprep.subr.mxu0 0.0
  %503 = vmatpush1.xpose.msra.mxu0 0.0
  %504 = vmatprep.subr.mxu0 0.0
  %505 = vmatpush1.xpose.msra.mxu0 0.0
  %506 = vmatprep.subr.mxu0 0.0
  %507 = vmatpush1.xpose.msra.mxu0 0.0
  %508 = vmatprep.subr.mxu0 0.0
  %509 = vmatpush1.xpose.msra.mxu0 0.0
  %510 = vmatprep.subr.mxu0 0.0
  %511 = vmatpush1.xpose.msra.mxu0 0.0
  %512 = vmatprep.subr.mxu0 0.0
  %513 = vmatpush1.xpose.msra.mxu0 0.0
  %514 = vmatprep.subr.mxu0 0.0
  %515 = vmatpush1.xpose.msra.mxu0 0.0
  %516 = vmatprep.subr.mxu0 0.0
  %517 = vmatpush1.xpose.msra.mxu0 0.0
  %518 = vmatprep.subr.mxu0 0.0
  %519 = vmatpush1.xpose.msra.mxu0 %v486
  %520 = vmatprep.subr.mxu0 0.0
  %521 = vmatpush2.xpose.msra.mxu0 0.0
  %522 = vmatprep.subr.mxu0 0.0
  %523 = vmatpush2.xpose.msra.mxu0 0.0
  %524 = vmatprep.subr.mxu0 0.0
  %525 = vmatpush2.xpose.msra.mxu0 0.0
  %526 = vmatprep.subr.mxu0 0.0
  %527 = vmatpush2.xpose.msra.mxu0 0.0
  %528 = vmatprep.subr.mxu0 0.0
  %529 = vmatpush2.xpose.msra.mxu0 0.0
  %530 = vmatprep.subr.mxu0 0.0
  %531 = vmatpush2.xpose.msra.mxu0 0.0
  %532 = vmatprep.subr.mxu0 0.0
  %533 = vmatpush2.xpose.msra.mxu0 0.0
  %534 = vmatprep.subr.mxu0 0.0
  %535 = vmatpush2.xpose.msra.mxu0 0.0
  %536 = vmatprep.subr.mxu0 0.0
  %537 = vmatpush2.xpose.msra.mxu0 0.0
  %538 = vmatprep.subr.mxu0 0.0
  %539 = vmatpush2.xpose.msra.mxu0 0.0
  %540 = vmatprep.subr.mxu0 0.0
  %541 = vmatpush2.xpose.msra.mxu0 0.0
  %542 = vmatprep.subr.mxu0 0.0
  %543 = vmatpush2.xpose.msra.mxu0 0.0
  %544 = vmatprep.subr.mxu0 0.0
  %545 = vmatpush2.xpose.msra.mxu0 0.0
  %546 = vmatprep.subr.mxu0 0.0
  %547 = vmatpush2.xpose.msra.mxu0 0.0
  %548 = vmatprep.subr.mxu0 0.0
  %549 = vmatpush2.xpose.msra.mxu0 0.0
  %550 = vmatprep.subr.mxu0 0.0
  %551 = vmatpush2.xpose.msra.mxu0 0.0
  %552 = vmatprep.mubr.f32.mxu0 0.0
  %553 = vmatmul.mubr.f32.gmra.mxu0 %v483
  %v554 = vpop.f32.mrf.mxu0
  %v555 = vadd.f32 0.0, %v554
  %v556 = vpop.f32.mrf.mxu0
  %557 = vdwg.mxu0
  %v559 = vsel %vm25, %v15, 0
  %v562 = vsel %vm25, %v24, 0
  %564 = vmatprep.subr.mxu0 0.0
  %565 = vmatpush1.xpose.msra.mxu0 0.0
  %566 = vmatprep.subr.mxu0 0.0
  %567 = vmatpush1.xpose.msra.mxu0 0.0
  %568 = vmatprep.subr.mxu0 0.0
  %569 = vmatpush1.xpose.msra.mxu0 0.0
  %570 = vmatprep.subr.mxu0 0.0
  %571 = vmatpush1.xpose.msra.mxu0 0.0
  %572 = vmatprep.subr.mxu0 0.0
  %573 = vmatpush1.xpose.msra.mxu0 0.0
  %574 = vmatprep.subr.mxu0 0.0
  %575 = vmatpush1.xpose.msra.mxu0 0.0
  %576 = vmatprep.subr.mxu0 0.0
  %577 = vmatpush1.xpose.msra.mxu0 0.0
  %578 = vmatprep.subr.mxu0 0.0
  %579 = vmatpush1.xpose.msra.mxu0 0.0
  %580 = vmatprep.subr.mxu0 0.0
  %581 = vmatpush1.xpose.msra.mxu0 0.0
  %582 = vmatprep.subr.mxu0 0.0
  %583 = vmatpush1.xpose.msra.mxu0 0.0
  %584 = vmatprep.subr.mxu0 0.0
  %585 = vmatpush1.xpose.msra.mxu0 0.0
  %586 = vmatprep.subr.mxu0 0.0
  %587 = vmatpush1.xpose.msra.mxu0 0.0
  %588 = vmatprep.subr.mxu0 0.0
  %589 = vmatpush1.xpose.msra.mxu0 0.0
  %590 = vmatprep.subr.mxu0 0.0
  %591 = vmatpush1.xpose.msra.mxu0 0.0
  %592 = vmatprep.subr.mxu0 0.0
  %593 = vmatpush1.xpose.msra.mxu0 0.0
  %594 = vmatprep.subr.mxu0 0.0
  %595 = vmatpush1.xpose.msra.mxu0 %v562
  %596 = vmatprep.subr.mxu0 0.0
  %597 = vmatpush2.xpose.msra.mxu0 0.0
  %598 = vmatprep.subr.mxu0 0.0
  %599 = vmatpush2.xpose.msra.mxu0 0.0
  %600 = vmatprep.subr.mxu0 0.0
  %601 = vmatpush2.xpose.msra.mxu0 0.0
  %602 = vmatprep.subr.mxu0 0.0
  %603 = vmatpush2.xpose.msra.mxu0 0.0
  %604 = vmatprep.subr.mxu0 0.0
  %605 = vmatpush2.xpose.msra.mxu0 0.0
  %606 = vmatprep.subr.mxu0 0.0
  %607 = vmatpush2.xpose.msra.mxu0 0.0
  %608 = vmatprep.subr.mxu0 0.0
  %609 = vmatpush2.xpose.msra.mxu0 0.0
  %610 = vmatprep.subr.mxu0 0.0
  %611 = vmatpush2.xpose.msra.mxu0 0.0
  %612 = vmatprep.subr.mxu0 0.0
  %613 = vmatpush2.xpose.msra.mxu0 0.0
  %614 = vmatprep.subr.mxu0 0.0
  %615 = vmatpush2.xpose.msra.mxu0 0.0
  %616 = vmatprep.subr.mxu0 0.0
  %617 = vmatpush2.xpose.msra.mxu0 0.0
  %618 = vmatprep.subr.mxu0 0.0
  %619 = vmatpush2.xpose.msra.mxu0 0.0
  %620 = vmatprep.subr.mxu0 0.0
  %621 = vmatpush2.xpose.msra.mxu0 0.0
  %622 = vmatprep.subr.mxu0 0.0
  %623 = vmatpush2.xpose.msra.mxu0 0.0
  %624 = vmatprep.subr.mxu0 0.0
  %625 = vmatpush2.xpose.msra.mxu0 0.0
  %626 = vmatprep.subr.mxu0 0.0
  %627 = vmatpush2.xpose.msra.mxu0 0.0
  %628 = vmatprep.mubr.f32.mxu0 0.0
  %629 = vmatmul.mubr.f32.gmra.mxu0 %v559
  %v630 = vpop.f32.mrf.mxu0
  %v631 = vadd.f32 0.0, %v630
  %v632 = vpop.f32.mrf.mxu0
  %633 = vdwg.mxu0
  %vm634 = vcmask 27648
  %v635 = vsel %vm634, %v99, -inf
  %636 = vmax.xlane.f32.xlu0 %v635
  %v637 = vpop.xlane.xlu0 %636
  %v638 = vsel %vm634, %v175, -inf
  %639 = vmax.xlane.f32.xlu0 %v638
  %v640 = vpop.xlane.xlu0 %639
  %v641 = vsel %vm634, %v251, -inf
  %642 = vmax.xlane.f32.xlu0 %v641
  %v643 = vpop.xlane.xlu0 %642
  %v644 = vsel %vm634, %v327, -inf
  %645 = vmax.xlane.f32.xlu0 %v644
  %v646 = vpop.xlane.xlu0 %645
  %v647 = vsel %vm634, %v403, -inf
  %648 = vmax.xlane.f32.xlu0 %v647
  %v649 = vpop.xlane.xlu0 %648
  %v650 = vsel %vm634, %v479, -inf
  %651 = vmax.xlane.f32.xlu0 %v650
  %v652 = vpop.xlane.xlu0 %651
  %v653 = vsel %vm634, %v555, -inf
  %654 = vmax.xlane.f32.xlu0 %v653
  %v655 = vpop.xlane.xlu0 %654
  %v656 = vsel %vm634, %v631, -inf
  %657 = vmax.xlane.f32.xlu0 %v656
  %v658 = vpop.xlane.xlu0 %657
  %v659 = vsub.f32 %v99, %v637
  %v660 = vsub.f32 %v175, %v640
  %v661 = vsub.f32 %v251, %v643
  %v662 = vsub.f32 %v327, %v646
  %v663 = vsub.f32 %v403, %v649
  %v664 = vsub.f32 %v479, %v652
  %v665 = vsub.f32 %v555, %v655
  %v666 = vsub.f32 %v631, %v658
  %v667 = vmul.f32 %v659, 1.442695
  %v668 = vpow.pop %v667
  %v669 = vmul.f32 %v660, 1.442695
  %v670 = vpow.pop %v669
  %v671 = vmul.f32 %v661, 1.442695
  %v672 = vpow.pop %v671
  %v673 = vmul.f32 %v662, 1.442695
  %v674 = vpow.pop %v673
  %v675 = vmul.f32 %v663, 1.442695
  %v676 = vpow.pop %v675
  %v677 = vmul.f32 %v664, 1.442695
  %v678 = vpow.pop %v677
  %v679 = vmul.f32 %v665, 1.442695
  %v680 = vpow.pop %v679
  %v681 = vmul.f32 %v666, 1.442695
  %v682 = vpow.pop %v681
  %v683 = vsel %vm634, %v668, 0.0
  %684 = vadd.xlane.f32.xlu0 %v683
  %v685 = vpop.xlane.xlu0 %684
  %v686 = vsel %vm634, %v670, 0.0
  %687 = vadd.xlane.f32.xlu0 %v686
  %v688 = vpop.xlane.xlu0 %687
  %v689 = vsel %vm634, %v672, 0.0
  %690 = vadd.xlane.f32.xlu0 %v689
  %v691 = vpop.xlane.xlu0 %690
  %v692 = vsel %vm634, %v674, 0.0
  %693 = vadd.xlane.f32.xlu0 %v692
  %v694 = vpop.xlane.xlu0 %693
  %v695 = vsel %vm634, %v676, 0.0
  %696 = vadd.xlane.f32.xlu0 %v695
  %v697 = vpop.xlane.xlu0 %696
  %v698 = vsel %vm634, %v678, 0.0
  %699 = vadd.xlane.f32.xlu0 %v698
  %v700 = vpop.xlane.xlu0 %699
  %v701 = vsel %vm634, %v680, 0.0
  %702 = vadd.xlane.f32.xlu0 %v701
  %v703 = vpop.xlane.xlu0 %702
  %v704 = vsel %vm634, %v682, 0.0
  %705 = vadd.xlane.f32.xlu0 %v704
  %v706 = vpop.xlane.xlu0 %705
  %v707 = vrcp.pop %v685
  %v708 = vmul.f32 %v668, %v707
  %v709 = vrcp.pop %v688
  %v710 = vmul.f32 %v670, %v709
  %v711 = vrcp.pop %v691
  %v712 = vmul.f32 %v672, %v711
  %v713 = vrcp.pop %v694
  %v714 = vmul.f32 %v674, %v713
  %v715 = vrcp.pop %v697
  %v716 = vmul.f32 %v676, %v715
  %v717 = vrcp.pop %v700
  %v718 = vmul.f32 %v678, %v717
  %v719 = vrcp.pop %v703
  %v720 = vmul.f32 %v680, %v719
  %v721 = vrcp.pop %v706
  %v722 = vmul.f32 %v682, %v721
  %vm723 = vcmask 31744
  %v725 = vsel %vm723, %v708, 0
  %vm727 = vcmask 1043456
  %v728 = vsel %vm727, %v17, 0
  %730 = vmatprep.subr.mxu0 0.0
  %731 = vmatpush1.msra.mxu0 0.0
  %732 = vmatprep.subr.mxu0 0.0
  %733 = vmatpush1.msra.mxu0 0.0
  %734 = vmatprep.subr.mxu0 0.0
  %735 = vmatpush1.msra.mxu0 0.0
  %736 = vmatprep.subr.mxu0 0.0
  %737 = vmatpush1.msra.mxu0 0.0
  %738 = vmatprep.subr.mxu0 0.0
  %739 = vmatpush1.msra.mxu0 0.0
  %740 = vmatprep.subr.mxu0 0.0
  %741 = vmatpush1.msra.mxu0 0.0
  %742 = vmatprep.subr.mxu0 0.0
  %743 = vmatpush1.msra.mxu0 0.0
  %744 = vmatprep.subr.mxu0 0.0
  %745 = vmatpush1.msra.mxu0 0.0
  %746 = vmatprep.subr.mxu0 0.0
  %747 = vmatpush1.msra.mxu0 0.0
  %748 = vmatprep.subr.mxu0 0.0
  %749 = vmatpush1.msra.mxu0 0.0
  %750 = vmatprep.subr.mxu0 0.0
  %751 = vmatpush1.msra.mxu0 0.0
  %752 = vmatprep.subr.mxu0 0.0
  %753 = vmatpush1.msra.mxu0 0.0
  %754 = vmatprep.subr.mxu0 0.0
  %755 = vmatpush1.msra.mxu0 0.0
  %756 = vmatprep.subr.mxu0 0.0
  %757 = vmatpush1.msra.mxu0 0.0
  %758 = vmatprep.subr.mxu0 0.0
  %759 = vmatpush1.msra.mxu0 0.0
  %760 = vmatprep.subr.mxu0 0.0
  %761 = vmatpush1.msra.mxu0 %v728
  %762 = vmatprep.subr.mxu0 0.0
  %763 = vmatpush2.msra.mxu0 0.0
  %764 = vmatprep.subr.mxu0 0.0
  %765 = vmatpush2.msra.mxu0 0.0
  %766 = vmatprep.subr.mxu0 0.0
  %767 = vmatpush2.msra.mxu0 0.0
  %768 = vmatprep.subr.mxu0 0.0
  %769 = vmatpush2.msra.mxu0 0.0
  %770 = vmatprep.subr.mxu0 0.0
  %771 = vmatpush2.msra.mxu0 0.0
  %772 = vmatprep.subr.mxu0 0.0
  %773 = vmatpush2.msra.mxu0 0.0
  %774 = vmatprep.subr.mxu0 0.0
  %775 = vmatpush2.msra.mxu0 0.0
  %776 = vmatprep.subr.mxu0 0.0
  %777 = vmatpush2.msra.mxu0 0.0
  %778 = vmatprep.subr.mxu0 0.0
  %779 = vmatpush2.msra.mxu0 0.0
  %780 = vmatprep.subr.mxu0 0.0
  %781 = vmatpush2.msra.mxu0 0.0
  %782 = vmatprep.subr.mxu0 0.0
  %783 = vmatpush2.msra.mxu0 0.0
  %784 = vmatprep.subr.mxu0 0.0
  %785 = vmatpush2.msra.mxu0 0.0
  %786 = vmatprep.subr.mxu0 0.0
  %787 = vmatpush2.msra.mxu0 0.0
  %788 = vmatprep.subr.mxu0 0.0
  %789 = vmatpush2.msra.mxu0 0.0
  %790 = vmatprep.subr.mxu0 0.0
  %791 = vmatpush2.msra.mxu0 0.0
  %792 = vmatprep.subr.mxu0 0.0
  %793 = vmatpush2.msra.mxu0 0.0
  %794 = vmatprep.mubr.f32.mxu0 0.0
  %795 = vmatmul.mubr.f32.gmra.mxu0 %v725
  %v796 = vpop.f32.mrf.mxu0
  %v797 = vadd.f32 0.0, %v796
  %v798 = vpop.f32.mrf.mxu0
  %799 = vdwg.mxu0
  %v801 = vsel %vm723, %v710, 0
  %v803 = vsel %vm727, %v18, 0
  %805 = vmatprep.subr.mxu0 0.0
  %806 = vmatpush1.msra.mxu0 0.0
  %807 = vmatprep.subr.mxu0 0.0
  %808 = vmatpush1.msra.mxu0 0.0
  %809 = vmatprep.subr.mxu0 0.0
  %810 = vmatpush1.msra.mxu0 0.0
  %811 = vmatprep.subr.mxu0 0.0
  %812 = vmatpush1.msra.mxu0 0.0
  %813 = vmatprep.subr.mxu0 0.0
  %814 = vmatpush1.msra.mxu0 0.0
  %815 = vmatprep.subr.mxu0 0.0
  %816 = vmatpush1.msra.mxu0 0.0
  %817 = vmatprep.subr.mxu0 0.0
  %818 = vmatpush1.msra.mxu0 0.0
  %819 = vmatprep.subr.mxu0 0.0
  %820 = vmatpush1.msra.mxu0 0.0
  %821 = vmatprep.subr.mxu0 0.0
  %822 = vmatpush1.msra.mxu0 0.0
  %823 = vmatprep.subr.mxu0 0.0
  %824 = vmatpush1.msra.mxu0 0.0
  %825 = vmatprep.subr.mxu0 0.0
  %826 = vmatpush1.msra.mxu0 0.0
  %827 = vmatprep.subr.mxu0 0.0
  %828 = vmatpush1.msra.mxu0 0.0
  %829 = vmatprep.subr.mxu0 0.0
  %830 = vmatpush1.msra.mxu0 0.0
  %831 = vmatprep.subr.mxu0 0.0
  %832 = vmatpush1.msra.mxu0 0.0
  %833 = vmatprep.subr.mxu0 0.0
  %834 = vmatpush1.msra.mxu0 0.0
  %835 = vmatprep.subr.mxu0 0.0
  %836 = vmatpush1.msra.mxu0 %v803
  %837 = vmatprep.subr.mxu0 0.0
  %838 = vmatpush2.msra.mxu0 0.0
  %839 = vmatprep.subr.mxu0 0.0
  %840 = vmatpush2.msra.mxu0 0.0
  %841 = vmatprep.subr.mxu0 0.0
  %842 = vmatpush2.msra.mxu0 0.0
  %843 = vmatprep.subr.mxu0 0.0
  %844 = vmatpush2.msra.mxu0 0.0
  %845 = vmatprep.subr.mxu0 0.0
  %846 = vmatpush2.msra.mxu0 0.0
  %847 = vmatprep.subr.mxu0 0.0
  %848 = vmatpush2.msra.mxu0 0.0
  %849 = vmatprep.subr.mxu0 0.0
  %850 = vmatpush2.msra.mxu0 0.0
  %851 = vmatprep.subr.mxu0 0.0
  %852 = vmatpush2.msra.mxu0 0.0
  %853 = vmatprep.subr.mxu0 0.0
  %854 = vmatpush2.msra.mxu0 0.0
  %855 = vmatprep.subr.mxu0 0.0
  %856 = vmatpush2.msra.mxu0 0.0
  %857 = vmatprep.subr.mxu0 0.0
  %858 = vmatpush2.msra.mxu0 0.0
  %859 = vmatprep.subr.mxu0 0.0
  %860 = vmatpush2.msra.mxu0 0.0
  %861 = vmatprep.subr.mxu0 0.0
  %862 = vmatpush2.msra.mxu0 0.0
  %863 = vmatprep.subr.mxu0 0.0
  %864 = vmatpush2.msra.mxu0 0.0
  %865 = vmatprep.subr.mxu0 0.0
  %866 = vmatpush2.msra.mxu0 0.0
  %867 = vmatprep.subr.mxu0 0.0
  %868 = vmatpush2.msra.mxu0 0.0
  %869 = vmatprep.mubr.f32.mxu0 0.0
  %870 = vmatmul.mubr.f32.gmra.mxu0 %v801
  %v871 = vpop.f32.mrf.mxu0
  %v872 = vadd.f32 0.0, %v871
  %v873 = vpop.f32.mrf.mxu0
  %874 = vdwg.mxu0
  %v876 = vsel %vm723, %v712, 0
  %v878 = vsel %vm727, %v19, 0
  %880 = vmatprep.subr.mxu0 0.0
  %881 = vmatpush1.msra.mxu0 0.0
  %882 = vmatprep.subr.mxu0 0.0
  %883 = vmatpush1.msra.mxu0 0.0
  %884 = vmatprep.subr.mxu0 0.0
  %885 = vmatpush1.msra.mxu0 0.0
  %886 = vmatprep.subr.mxu0 0.0
  %887 = vmatpush1.msra.mxu0 0.0
  %888 = vmatprep.subr.mxu0 0.0
  %889 = vmatpush1.msra.mxu0 0.0
  %890 = vmatprep.subr.mxu0 0.0
  %891 = vmatpush1.msra.mxu0 0.0
  %892 = vmatprep.subr.mxu0 0.0
  %893 = vmatpush1.msra.mxu0 0.0
  %894 = vmatprep.subr.mxu0 0.0
  %895 = vmatpush1.msra.mxu0 0.0
  %896 = vmatprep.subr.mxu0 0.0
  %897 = vmatpush1.msra.mxu0 0.0
  %898 = vmatprep.subr.mxu0 0.0
  %899 = vmatpush1.msra.mxu0 0.0
  %900 = vmatprep.subr.mxu0 0.0
  %901 = vmatpush1.msra.mxu0 0.0
  %902 = vmatprep.subr.mxu0 0.0
  %903 = vmatpush1.msra.mxu0 0.0
  %904 = vmatprep.subr.mxu0 0.0
  %905 = vmatpush1.msra.mxu0 0.0
  %906 = vmatprep.subr.mxu0 0.0
  %907 = vmatpush1.msra.mxu0 0.0
  %908 = vmatprep.subr.mxu0 0.0
  %909 = vmatpush1.msra.mxu0 0.0
  %910 = vmatprep.subr.mxu0 0.0
  %911 = vmatpush1.msra.mxu0 %v878
  %912 = vmatprep.subr.mxu0 0.0
  %913 = vmatpush2.msra.mxu0 0.0
  %914 = vmatprep.subr.mxu0 0.0
  %915 = vmatpush2.msra.mxu0 0.0
  %916 = vmatprep.subr.mxu0 0.0
  %917 = vmatpush2.msra.mxu0 0.0
  %918 = vmatprep.subr.mxu0 0.0
  %919 = vmatpush2.msra.mxu0 0.0
  %920 = vmatprep.subr.mxu0 0.0
  %921 = vmatpush2.msra.mxu0 0.0
  %922 = vmatprep.subr.mxu0 0.0
  %923 = vmatpush2.msra.mxu0 0.0
  %924 = vmatprep.subr.mxu0 0.0
  %925 = vmatpush2.msra.mxu0 0.0
  %926 = vmatprep.subr.mxu0 0.0
  %927 = vmatpush2.msra.mxu0 0.0
  %928 = vmatprep.subr.mxu0 0.0
  %929 = vmatpush2.msra.mxu0 0.0
  %930 = vmatprep.subr.mxu0 0.0
  %931 = vmatpush2.msra.mxu0 0.0
  %932 = vmatprep.subr.mxu0 0.0
  %933 = vmatpush2.msra.mxu0 0.0
  %934 = vmatprep.subr.mxu0 0.0
  %935 = vmatpush2.msra.mxu0 0.0
  %936 = vmatprep.subr.mxu0 0.0
  %937 = vmatpush2.msra.mxu0 0.0
  %938 = vmatprep.subr.mxu0 0.0
  %939 = vmatpush2.msra.mxu0 0.0
  %940 = vmatprep.subr.mxu0 0.0
  %941 = vmatpush2.msra.mxu0 0.0
  %942 = vmatprep.subr.mxu0 0.0
  %943 = vmatpush2.msra.mxu0 0.0
  %944 = vmatprep.mubr.f32.mxu0 0.0
  %945 = vmatmul.mubr.f32.gmra.mxu0 %v876
  %v946 = vpop.f32.mrf.mxu0
  %v947 = vadd.f32 0.0, %v946
  %v948 = vpop.f32.mrf.mxu0
  %949 = vdwg.mxu0
  %v951 = vsel %vm723, %v714, 0
  %v953 = vsel %vm727, %v20, 0
  %955 = vmatprep.subr.mxu0 0.0
  %956 = vmatpush1.msra.mxu0 0.0
  %957 = vmatprep.subr.mxu0 0.0
  %958 = vmatpush1.msra.mxu0 0.0
  %959 = vmatprep.subr.mxu0 0.0
  %960 = vmatpush1.msra.mxu0 0.0
  %961 = vmatprep.subr.mxu0 0.0
  %962 = vmatpush1.msra.mxu0 0.0
  %963 = vmatprep.subr.mxu0 0.0
  %964 = vmatpush1.msra.mxu0 0.0
  %965 = vmatprep.subr.mxu0 0.0
  %966 = vmatpush1.msra.mxu0 0.0
  %967 = vmatprep.subr.mxu0 0.0
  %968 = vmatpush1.msra.mxu0 0.0
  %969 = vmatprep.subr.mxu0 0.0
  %970 = vmatpush1.msra.mxu0 0.0
  %971 = vmatprep.subr.mxu0 0.0
  %972 = vmatpush1.msra.mxu0 0.0
  %973 = vmatprep.subr.mxu0 0.0
  %974 = vmatpush1.msra.mxu0 0.0
  %975 = vmatprep.subr.mxu0 0.0
  %976 = vmatpush1.msra.mxu0 0.0
  %977 = vmatprep.subr.mxu0 0.0
  %978 = vmatpush1.msra.mxu0 0.0
  %979 = vmatprep.subr.mxu0 0.0
  %980 = vmatpush1.msra.mxu0 0.0
  %981 = vmatprep.subr.mxu0 0.0
  %982 = vmatpush1.msra.mxu0 0.0
  %983 = vmatprep.subr.mxu0 0.0
  %984 = vmatpush1.msra.mxu0 0.0
  %985 = vmatprep.subr.mxu0 0.0
  %986 = vmatpush1.msra.mxu0 %v953
  %987 = vmatprep.subr.mxu0 0.0
  %988 = vmatpush2.msra.mxu0 0.0
  %989 = vmatprep.subr.mxu0 0.0
  %990 = vmatpush2.msra.mxu0 0.0
  %991 = vmatprep.subr.mxu0 0.0
  %992 = vmatpush2.msra.mxu0 0.0
  %993 = vmatprep.subr.mxu0 0.0
  %994 = vmatpush2.msra.mxu0 0.0
  %995 = vmatprep.subr.mxu0 0.0
  %996 = vmatpush2.msra.mxu0 0.0
  %997 = vmatprep.subr.mxu0 0.0
  %998 = vmatpush2.msra.mxu0 0.0
  %999 = vmatprep.subr.mxu0 0.0
  %1000 = vmatpush2.msra.mxu0 0.0
  %1001 = vmatprep.subr.mxu0 0.0
  %1002 = vmatpush2.msra.mxu0 0.0
  %1003 = vmatprep.subr.mxu0 0.0
  %1004 = vmatpush2.msra.mxu0 0.0
  %1005 = vmatprep.subr.mxu0 0.0
  %1006 = vmatpush2.msra.mxu0 0.0
  %1007 = vmatprep.subr.mxu0 0.0
  %1008 = vmatpush2.msra.mxu0 0.0
  %1009 = vmatprep.subr.mxu0 0.0
  %1010 = vmatpush2.msra.mxu0 0.0
  %1011 = vmatprep.subr.mxu0 0.0
  %1012 = vmatpush2.msra.mxu0 0.0
  %1013 = vmatprep.subr.mxu0 0.0
  %1014 = vmatpush2.msra.mxu0 0.0
  %1015 = vmatprep.subr.mxu0 0.0
  %1016 = vmatpush2.msra.mxu0 0.0
  %1017 = vmatprep.subr.mxu0 0.0
  %1018 = vmatpush2.msra.mxu0 0.0
  %1019 = vmatprep.mubr.f32.mxu0 0.0
  %1020 = vmatmul.mubr.f32.gmra.mxu0 %v951
  %v1021 = vpop.f32.mrf.mxu0
  %v1022 = vadd.f32 0.0, %v1021
  %v1023 = vpop.f32.mrf.mxu0
  %1024 = vdwg.mxu0
  %v1026 = vsel %vm723, %v716, 0
  %v1028 = vsel %vm727, %v21, 0
  %1030 = vmatprep.subr.mxu0 0.0
  %1031 = vmatpush1.msra.mxu0 0.0
  %1032 = vmatprep.subr.mxu0 0.0
  %1033 = vmatpush1.msra.mxu0 0.0
  %1034 = vmatprep.subr.mxu0 0.0
  %1035 = vmatpush1.msra.mxu0 0.0
  %1036 = vmatprep.subr.mxu0 0.0
  %1037 = vmatpush1.msra.mxu0 0.0
  %1038 = vmatprep.subr.mxu0 0.0
  %1039 = vmatpush1.msra.mxu0 0.0
  %1040 = vmatprep.subr.mxu0 0.0
  %1041 = vmatpush1.msra.mxu0 0.0
  %1042 = vmatprep.subr.mxu0 0.0
  %1043 = vmatpush1.msra.mxu0 0.0
  %1044 = vmatprep.subr.mxu0 0.0
  %1045 = vmatpush1.msra.mxu0 0.0
  %1046 = vmatprep.subr.mxu0 0.0
  %1047 = vmatpush1.msra.mxu0 0.0
  %1048 = vmatprep.subr.mxu0 0.0
  %1049 = vmatpush1.msra.mxu0 0.0
  %1050 = vmatprep.subr.mxu0 0.0
  %1051 = vmatpush1.msra.mxu0 0.0
  %1052 = vmatprep.subr.mxu0 0.0
  %1053 = vmatpush1.msra.mxu0 0.0
  %1054 = vmatprep.subr.mxu0 0.0
  %1055 = vmatpush1.msra.mxu0 0.0
  %1056 = vmatprep.subr.mxu0 0.0
  %1057 = vmatpush1.msra.mxu0 0.0
  %1058 = vmatprep.subr.mxu0 0.0
  %1059 = vmatpush1.msra.mxu0 0.0
  %1060 = vmatprep.subr.mxu0 0.0
  %1061 = vmatpush1.msra.mxu0 %v1028
  %1062 = vmatprep.subr.mxu0 0.0
  %1063 = vmatpush2.msra.mxu0 0.0
  %1064 = vmatprep.subr.mxu0 0.0
  %1065 = vmatpush2.msra.mxu0 0.0
  %1066 = vmatprep.subr.mxu0 0.0
  %1067 = vmatpush2.msra.mxu0 0.0
  %1068 = vmatprep.subr.mxu0 0.0
  %1069 = vmatpush2.msra.mxu0 0.0
  %1070 = vmatprep.subr.mxu0 0.0
  %1071 = vmatpush2.msra.mxu0 0.0
  %1072 = vmatprep.subr.mxu0 0.0
  %1073 = vmatpush2.msra.mxu0 0.0
  %1074 = vmatprep.subr.mxu0 0.0
  %1075 = vmatpush2.msra.mxu0 0.0
  %1076 = vmatprep.subr.mxu0 0.0
  %1077 = vmatpush2.msra.mxu0 0.0
  %1078 = vmatprep.subr.mxu0 0.0
  %1079 = vmatpush2.msra.mxu0 0.0
  %1080 = vmatprep.subr.mxu0 0.0
  %1081 = vmatpush2.msra.mxu0 0.0
  %1082 = vmatprep.subr.mxu0 0.0
  %1083 = vmatpush2.msra.mxu0 0.0
  %1084 = vmatprep.subr.mxu0 0.0
  %1085 = vmatpush2.msra.mxu0 0.0
  %1086 = vmatprep.subr.mxu0 0.0
  %1087 = vmatpush2.msra.mxu0 0.0
  %1088 = vmatprep.subr.mxu0 0.0
  %1089 = vmatpush2.msra.mxu0 0.0
  %1090 = vmatprep.subr.mxu0 0.0
  %1091 = vmatpush2.msra.mxu0 0.0
  %1092 = vmatprep.subr.mxu0 0.0
  %1093 = vmatpush2.msra.mxu0 0.0
  %1094 = vmatprep.mubr.f32.mxu0 0.0
  %1095 = vmatmul.mubr.f32.gmra.mxu0 %v1026
  %v1096 = vpop.f32.mrf.mxu0
  %v1097 = vadd.f32 0.0, %v1096
  %v1098 = vpop.f32.mrf.mxu0
  %1099 = vdwg.mxu0
  %v1101 = vsel %vm723, %v718, 0
  %v1103 = vsel %vm727, %v22, 0
  %1105 = vmatprep.subr.mxu0 0.0
  %1106 = vmatpush1.msra.mxu0 0.0
  %1107 = vmatprep.subr.mxu0 0.0
  %1108 = vmatpush1.msra.mxu0 0.0
  %1109 = vmatprep.subr.mxu0 0.0
  %1110 = vmatpush1.msra.mxu0 0.0
  %1111 = vmatprep.subr.mxu0 0.0
  %1112 = vmatpush1.msra.mxu0 0.0
  %1113 = vmatprep.subr.mxu0 0.0
  %1114 = vmatpush1.msra.mxu0 0.0
  %1115 = vmatprep.subr.mxu0 0.0
  %1116 = vmatpush1.msra.mxu0 0.0
  %1117 = vmatprep.subr.mxu0 0.0
  %1118 = vmatpush1.msra.mxu0 0.0
  %1119 = vmatprep.subr.mxu0 0.0
  %1120 = vmatpush1.msra.mxu0 0.0
  %1121 = vmatprep.subr.mxu0 0.0
  %1122 = vmatpush1.msra.mxu0 0.0
  %1123 = vmatprep.subr.mxu0 0.0
  %1124 = vmatpush1.msra.mxu0 0.0
  %1125 = vmatprep.subr.mxu0 0.0
  %1126 = vmatpush1.msra.mxu0 0.0
  %1127 = vmatprep.subr.mxu0 0.0
  %1128 = vmatpush1.msra.mxu0 0.0
  %1129 = vmatprep.subr.mxu0 0.0
  %1130 = vmatpush1.msra.mxu0 0.0
  %1131 = vmatprep.subr.mxu0 0.0
  %1132 = vmatpush1.msra.mxu0 0.0
  %1133 = vmatprep.subr.mxu0 0.0
  %1134 = vmatpush1.msra.mxu0 0.0
  %1135 = vmatprep.subr.mxu0 0.0
  %1136 = vmatpush1.msra.mxu0 %v1103
  %1137 = vmatprep.subr.mxu0 0.0
  %1138 = vmatpush2.msra.mxu0 0.0
  %1139 = vmatprep.subr.mxu0 0.0
  %1140 = vmatpush2.msra.mxu0 0.0
  %1141 = vmatprep.subr.mxu0 0.0
  %1142 = vmatpush2.msra.mxu0 0.0
  %1143 = vmatprep.subr.mxu0 0.0
  %1144 = vmatpush2.msra.mxu0 0.0
  %1145 = vmatprep.subr.mxu0 0.0
  %1146 = vmatpush2.msra.mxu0 0.0
  %1147 = vmatprep.subr.mxu0 0.0
  %1148 = vmatpush2.msra.mxu0 0.0
  %1149 = vmatprep.subr.mxu0 0.0
  %1150 = vmatpush2.msra.mxu0 0.0
  %1151 = vmatprep.subr.mxu0 0.0
  %1152 = vmatpush2.msra.mxu0 0.0
  %1153 = vmatprep.subr.mxu0 0.0
  %1154 = vmatpush2.msra.mxu0 0.0
  %1155 = vmatprep.subr.mxu0 0.0
  %1156 = vmatpush2.msra.mxu0 0.0
  %1157 = vmatprep.subr.mxu0 0.0
  %1158 = vmatpush2.msra.mxu0 0.0
  %1159 = vmatprep.subr.mxu0 0.0
  %1160 = vmatpush2.msra.mxu0 0.0
  %1161 = vmatprep.subr.mxu0 0.0
  %1162 = vmatpush2.msra.mxu0 0.0
  %1163 = vmatprep.subr.mxu0 0.0
  %1164 = vmatpush2.msra.mxu0 0.0
  %1165 = vmatprep.subr.mxu0 0.0
  %1166 = vmatpush2.msra.mxu0 0.0
  %1167 = vmatprep.subr.mxu0 0.0
  %1168 = vmatpush2.msra.mxu0 0.0
  %1169 = vmatprep.mubr.f32.mxu0 0.0
  %1170 = vmatmul.mubr.f32.gmra.mxu0 %v1101
  %v1171 = vpop.f32.mrf.mxu0
  %v1172 = vadd.f32 0.0, %v1171
  %v1173 = vpop.f32.mrf.mxu0
  %1174 = vdwg.mxu0
  %v1176 = vsel %vm723, %v720, 0
  %v1178 = vsel %vm727, %v23, 0
  %1180 = vmatprep.subr.mxu0 0.0
  %1181 = vmatpush1.msra.mxu0 0.0
  %1182 = vmatprep.subr.mxu0 0.0
  %1183 = vmatpush1.msra.mxu0 0.0
  %1184 = vmatprep.subr.mxu0 0.0
  %1185 = vmatpush1.msra.mxu0 0.0
  %1186 = vmatprep.subr.mxu0 0.0
  %1187 = vmatpush1.msra.mxu0 0.0
  %1188 = vmatprep.subr.mxu0 0.0
  %1189 = vmatpush1.msra.mxu0 0.0
  %1190 = vmatprep.subr.mxu0 0.0
  %1191 = vmatpush1.msra.mxu0 0.0
  %1192 = vmatprep.subr.mxu0 0.0
  %1193 = vmatpush1.msra.mxu0 0.0
  %1194 = vmatprep.subr.mxu0 0.0
  %1195 = vmatpush1.msra.mxu0 0.0
  %1196 = vmatprep.subr.mxu0 0.0
  %1197 = vmatpush1.msra.mxu0 0.0
  %1198 = vmatprep.subr.mxu0 0.0
  %1199 = vmatpush1.msra.mxu0 0.0
  %1200 = vmatprep.subr.mxu0 0.0
  %1201 = vmatpush1.msra.mxu0 0.0
  %1202 = vmatprep.subr.mxu0 0.0
  %1203 = vmatpush1.msra.mxu0 0.0
  %1204 = vmatprep.subr.mxu0 0.0
  %1205 = vmatpush1.msra.mxu0 0.0
  %1206 = vmatprep.subr.mxu0 0.0
  %1207 = vmatpush1.msra.mxu0 0.0
  %1208 = vmatprep.subr.mxu0 0.0
  %1209 = vmatpush1.msra.mxu0 0.0
  %1210 = vmatprep.subr.mxu0 0.0
  %1211 = vmatpush1.msra.mxu0 %v1178
  %1212 = vmatprep.subr.mxu0 0.0
  %1213 = vmatpush2.msra.mxu0 0.0
  %1214 = vmatprep.subr.mxu0 0.0
  %1215 = vmatpush2.msra.mxu0 0.0
  %1216 = vmatprep.subr.mxu0 0.0
  %1217 = vmatpush2.msra.mxu0 0.0
  %1218 = vmatprep.subr.mxu0 0.0
  %1219 = vmatpush2.msra.mxu0 0.0
  %1220 = vmatprep.subr.mxu0 0.0
  %1221 = vmatpush2.msra.mxu0 0.0
  %1222 = vmatprep.subr.mxu0 0.0
  %1223 = vmatpush2.msra.mxu0 0.0
  %1224 = vmatprep.subr.mxu0 0.0
  %1225 = vmatpush2.msra.mxu0 0.0
  %1226 = vmatprep.subr.mxu0 0.0
  %1227 = vmatpush2.msra.mxu0 0.0
  %1228 = vmatprep.subr.mxu0 0.0
  %1229 = vmatpush2.msra.mxu0 0.0
  %1230 = vmatprep.subr.mxu0 0.0
  %1231 = vmatpush2.msra.mxu0 0.0
  %1232 = vmatprep.subr.mxu0 0.0
  %1233 = vmatpush2.msra.mxu0 0.0
  %1234 = vmatprep.subr.mxu0 0.0
  %1235 = vmatpush2.msra.mxu0 0.0
  %1236 = vmatprep.subr.mxu0 0.0
  %1237 = vmatpush2.msra.mxu0 0.0
  %1238 = vmatprep.subr.mxu0 0.0
  %1239 = vmatpush2.msra.mxu0 0.0
  %1240 = vmatprep.subr.mxu0 0.0
  %1241 = vmatpush2.msra.mxu0 0.0
  %1242 = vmatprep.subr.mxu0 0.0
  %1243 = vmatpush2.msra.mxu0 0.0
  %1244 = vmatprep.mubr.f32.mxu0 0.0
  %1245 = vmatmul.mubr.f32.gmra.mxu0 %v1176
  %v1246 = vpop.f32.mrf.mxu0
  %v1247 = vadd.f32 0.0, %v1246
  %v1248 = vpop.f32.mrf.mxu0
  %1249 = vdwg.mxu0
  %v1251 = vsel %vm723, %v722, 0
  %v1253 = vsel %vm727, %v24, 0
  %1255 = vmatprep.subr.mxu0 0.0
  %1256 = vmatpush1.msra.mxu0 0.0
  %1257 = vmatprep.subr.mxu0 0.0
  %1258 = vmatpush1.msra.mxu0 0.0
  %1259 = vmatprep.subr.mxu0 0.0
  %1260 = vmatpush1.msra.mxu0 0.0
  %1261 = vmatprep.subr.mxu0 0.0
  %1262 = vmatpush1.msra.mxu0 0.0
  %1263 = vmatprep.subr.mxu0 0.0
  %1264 = vmatpush1.msra.mxu0 0.0
  %1265 = vmatprep.subr.mxu0 0.0
  %1266 = vmatpush1.msra.mxu0 0.0
  %1267 = vmatprep.subr.mxu0 0.0
  %1268 = vmatpush1.msra.mxu0 0.0
  %1269 = vmatprep.subr.mxu0 0.0
  %1270 = vmatpush1.msra.mxu0 0.0
  %1271 = vmatprep.subr.mxu0 0.0
  %1272 = vmatpush1.msra.mxu0 0.0
  %1273 = vmatprep.subr.mxu0 0.0
  %1274 = vmatpush1.msra.mxu0 0.0
  %1275 = vmatprep.subr.mxu0 0.0
  %1276 = vmatpush1.msra.mxu0 0.0
  %1277 = vmatprep.subr.mxu0 0.0
  %1278 = vmatpush1.msra.mxu0 0.0
  %1279 = vmatprep.subr.mxu0 0.0
  %1280 = vmatpush1.msra.mxu0 0.0
  %1281 = vmatprep.subr.mxu0 0.0
  %1282 = vmatpush1.msra.mxu0 0.0
  %1283 = vmatprep.subr.mxu0 0.0
  %1284 = vmatpush1.msra.mxu0 0.0
  %1285 = vmatprep.subr.mxu0 0.0
  %1286 = vmatpush1.msra.mxu0 %v1253
  %1287 = vmatprep.subr.mxu0 0.0
  %1288 = vmatpush2.msra.mxu0 0.0
  %1289 = vmatprep.subr.mxu0 0.0
  %1290 = vmatpush2.msra.mxu0 0.0
  %1291 = vmatprep.subr.mxu0 0.0
  %1292 = vmatpush2.msra.mxu0 0.0
  %1293 = vmatprep.subr.mxu0 0.0
  %1294 = vmatpush2.msra.mxu0 0.0
  %1295 = vmatprep.subr.mxu0 0.0
  %1296 = vmatpush2.msra.mxu0 0.0
  %1297 = vmatprep.subr.mxu0 0.0
  %1298 = vmatpush2.msra.mxu0 0.0
  %1299 = vmatprep.subr.mxu0 0.0
  %1300 = vmatpush2.msra.mxu0 0.0
  %1301 = vmatprep.subr.mxu0 0.0
  %1302 = vmatpush2.msra.mxu0 0.0
  %1303 = vmatprep.subr.mxu0 0.0
  %1304 = vmatpush2.msra.mxu0 0.0
  %1305 = vmatprep.subr.mxu0 0.0
  %1306 = vmatpush2.msra.mxu0 0.0
  %1307 = vmatprep.subr.mxu0 0.0
  %1308 = vmatpush2.msra.mxu0 0.0
  %1309 = vmatprep.subr.mxu0 0.0
  %1310 = vmatpush2.msra.mxu0 0.0
  %1311 = vmatprep.subr.mxu0 0.0
  %1312 = vmatpush2.msra.mxu0 0.0
  %1313 = vmatprep.subr.mxu0 0.0
  %1314 = vmatpush2.msra.mxu0 0.0
  %1315 = vmatprep.subr.mxu0 0.0
  %1316 = vmatpush2.msra.mxu0 0.0
  %1317 = vmatprep.subr.mxu0 0.0
  %1318 = vmatpush2.msra.mxu0 0.0
  %1319 = vmatprep.mubr.f32.mxu0 0.0
  %1320 = vmatmul.mubr.f32.gmra.mxu0 %v1251
  %v1321 = vpop.f32.mrf.mxu0
  %v1322 = vadd.f32 0.0, %v1321
  %v1323 = vpop.f32.mrf.mxu0
  %1324 = vdwg.mxu0
  %v1325 = vrot.slane %v635, 4
  %v1326 = vmax.f32 %v635, %v1325
  %v1327 = vrot.slane %v1326, 2
  %v1328 = vmax.f32 %v1326, %v1327
  %v1329 = vrot.slane %v1328, 1
  %v1330 = vmax.f32 %v1328, %v1329
  %v1331 = vrot.slane %v638, 4
  %v1332 = vmax.f32 %v638, %v1331
  %v1333 = vrot.slane %v1332, 2
  %v1334 = vmax.f32 %v1332, %v1333
  %v1335 = vrot.slane %v1334, 1
  %v1336 = vmax.f32 %v1334, %v1335
  %v1337 = vrot.slane %v641, 4
  %v1338 = vmax.f32 %v641, %v1337
  %v1339 = vrot.slane %v1338, 2
  %v1340 = vmax.f32 %v1338, %v1339
  %v1341 = vrot.slane %v1340, 1
  %v1342 = vmax.f32 %v1340, %v1341
  %v1343 = vrot.slane %v644, 4
  %v1344 = vmax.f32 %v644, %v1343
  %v1345 = vrot.slane %v1344, 2
  %v1346 = vmax.f32 %v1344, %v1345
  %v1347 = vrot.slane %v1346, 1
  %v1348 = vmax.f32 %v1346, %v1347
  %v1349 = vrot.slane %v647, 4
  %v1350 = vmax.f32 %v647, %v1349
  %v1351 = vrot.slane %v1350, 2
  %v1352 = vmax.f32 %v1350, %v1351
  %v1353 = vrot.slane %v1352, 1
  %v1354 = vmax.f32 %v1352, %v1353
  %v1355 = vrot.slane %v650, 4
  %v1356 = vmax.f32 %v650, %v1355
  %v1357 = vrot.slane %v1356, 2
  %v1358 = vmax.f32 %v1356, %v1357
  %v1359 = vrot.slane %v1358, 1
  %v1360 = vmax.f32 %v1358, %v1359
  %v1361 = vrot.slane %v653, 4
  %v1362 = vmax.f32 %v653, %v1361
  %v1363 = vrot.slane %v1362, 2
  %v1364 = vmax.f32 %v1362, %v1363
  %v1365 = vrot.slane %v1364, 1
  %v1366 = vmax.f32 %v1364, %v1365
  %v1367 = vrot.slane %v656, 4
  %v1368 = vmax.f32 %v656, %v1367
  %v1369 = vrot.slane %v1368, 2
  %v1370 = vmax.f32 %v1368, %v1369
  %v1371 = vrot.slane %v1370, 1
  %v1372 = vmax.f32 %v1370, %v1371
  %v1373 = vsub.f32 %v99, %v1330
  %v1374 = vsub.f32 %v175, %v1336
  %v1375 = vsub.f32 %v251, %v1342
  %v1376 = vsub.f32 %v327, %v1348
  %v1377 = vsub.f32 %v403, %v1354
  %v1378 = vsub.f32 %v479, %v1360
  %v1379 = vsub.f32 %v555, %v1366
  %v1380 = vsub.f32 %v631, %v1372
  %v1381 = vmul.f32 %v1373, 1.442695
  %v1382 = vpow.pop %v1381
  %v1383 = vmul.f32 %v1374, 1.442695
  %v1384 = vpow.pop %v1383
  %v1385 = vmul.f32 %v1375, 1.442695
  %v1386 = vpow.pop %v1385
  %v1387 = vmul.f32 %v1376, 1.442695
  %v1388 = vpow.pop %v1387
  %v1389 = vmul.f32 %v1377, 1.442695
  %v1390 = vpow.pop %v1389
  %v1391 = vmul.f32 %v1378, 1.442695
  %v1392 = vpow.pop %v1391
  %v1393 = vmul.f32 %v1379, 1.442695
  %v1394 = vpow.pop %v1393
  %v1395 = vmul.f32 %v1380, 1.442695
  %v1396 = vpow.pop %v1395
  %v1397 = vsel %vm634, %v1382, 0.0
  %v1398 = vrot.slane %v1397, 4
  %v1399 = vadd.f32 %v1397, %v1398
  %v1400 = vrot.slane %v1399, 2
  %v1401 = vadd.f32 %v1399, %v1400
  %v1402 = vrot.slane %v1401, 1
  %v1403 = vadd.f32 %v1401, %v1402
  %v1404 = vsel %vm634, %v1384, 0.0
  %v1405 = vrot.slane %v1404, 4
  %v1406 = vadd.f32 %v1404, %v1405
  %v1407 = vrot.slane %v1406, 2
  %v1408 = vadd.f32 %v1406, %v1407
  %v1409 = vrot.slane %v1408, 1
  %v1410 = vadd.f32 %v1408, %v1409
  %v1411 = vsel %vm634, %v1386, 0.0
  %v1412 = vrot.slane %v1411, 4
  %v1413 = vadd.f32 %v1411, %v1412
  %v1414 = vrot.slane %v1413, 2
  %v1415 = vadd.f32 %v1413, %v1414
  %v1416 = vrot.slane %v1415, 1
  %v1417 = vadd.f32 %v1415, %v1416
  %v1418 = vsel %vm634, %v1388, 0.0
  %v1419 = vrot.slane %v1418, 4
  %v1420 = vadd.f32 %v1418, %v1419
  %v1421 = vrot.slane %v1420, 2
  %v1422 = vadd.f32 %v1420, %v1421
  %v1423 = vrot.slane %v1422, 1
  %v1424 = vadd.f32 %v1422, %v1423
  %v1425 = vsel %vm634, %v1390, 0.0
  %v1426 = vrot.slane %v1425, 4
  %v1427 = vadd.f32 %v1425, %v1426
  %v1428 = vrot.slane %v1427, 2
  %v1429 = vadd.f32 %v1427, %v1428
  %v1430 = vrot.slane %v1429, 1
  %v1431 = vadd.f32 %v1429, %v1430
  %v1432 = vsel %vm634, %v1392, 0.0
  %v1433 = vrot.slane %v1432, 4
  %v1434 = vadd.f32 %v1432, %v1433
  %v1435 = vrot.slane %v1434, 2
  %v1436 = vadd.f32 %v1434, %v1435
  %v1437 = vrot.slane %v1436, 1
  %v1438 = vadd.f32 %v1436, %v1437
  %v1439 = vsel %vm634, %v1394, 0.0
  %v1440 = vrot.slane %v1439, 4
  %v1441 = vadd.f32 %v1439, %v1440
  %v1442 = vrot.slane %v1441, 2
  %v1443 = vadd.f32 %v1441, %v1442
  %v1444 = vrot.slane %v1443, 1
  %v1445 = vadd.f32 %v1443, %v1444
  %v1446 = vsel %vm634, %v1396, 0.0
  %v1447 = vrot.slane %v1446, 4
  %v1448 = vadd.f32 %v1446, %v1447
  %v1449 = vrot.slane %v1448, 2
  %v1450 = vadd.f32 %v1448, %v1449
  %v1451 = vrot.slane %v1450, 1
  %v1452 = vadd.f32 %v1450, %v1451
  %v1453 = vrcp.pop %v1403
  %v1454 = vmul.f32 %v1382, %v1453
  %v1455 = vrcp.pop %v1410
  %v1456 = vmul.f32 %v1384, %v1455
  %v1457 = vrcp.pop %v1417
  %v1458 = vmul.f32 %v1386, %v1457
  %v1459 = vrcp.pop %v1424
  %v1460 = vmul.f32 %v1388, %v1459
  %v1461 = vrcp.pop %v1431
  %v1462 = vmul.f32 %v1390, %v1461
  %v1463 = vrcp.pop %v1438
  %v1464 = vmul.f32 %v1392, %v1463
  %v1465 = vrcp.pop %v1445
  %v1466 = vmul.f32 %v1394, %v1465
  %v1467 = vrcp.pop %v1452
  %v1468 = vmul.f32 %v1396, %v1467
  %1469 = vxpose.xlu0.b32.start [1/16] %v1454, 128
  %1470 = vxpose.xlu0.b32.cont [2/16] 0.0, 128
  %1471 = vxpose.xlu0.b32.cont [3/16] 0.0, 128
  %1472 = vxpose.xlu0.b32.cont [4/16] 0.0, 128
  %1473 = vxpose.xlu0.b32.cont [5/16] 0.0, 128
  %1474 = vxpose.xlu0.b32.cont [6/16] 0.0, 128
  %1475 = vxpose.xlu0.b32.cont [7/16] 0.0, 128
  %1476 = vxpose.xlu0.b32.cont [8/16] 0.0, 128
  %1477 = vxpose.xlu0.b32.cont [9/16] 0.0, 128
  %1478 = vxpose.xlu0.b32.cont [10/16] 0.0, 128
  %1479 = vxpose.xlu0.b32.cont [11/16] 0.0, 128
  %1480 = vxpose.xlu0.b32.cont [12/16] 0.0, 128
  %1481 = vxpose.xlu0.b32.cont [13/16] 0.0, 128
  %1482 = vxpose.xlu0.b32.cont [14/16] 0.0, 128
  %1483 = vxpose.xlu0.b32.cont [15/16] 0.0, 128
  %1484 = vxpose.xlu0.b32.end [16/16] 0.0, 128
  %v1485 = vpop.trf.xlu0
  %v1486 = vpop.trf.xlu0
  %v1487 = vpop.trf.xlu0
  %v1488 = vpop.trf.xlu0
  %v1489 = vpop.trf.xlu0
  %v1490 = vpop.trf.xlu0
  %v1491 = vpop.trf.xlu0
  %v1492 = vpop.trf.xlu0
  %v1493 = vpop.trf.xlu0
  %v1494 = vpop.trf.xlu0
  %v1495 = vpop.trf.xlu0
  %v1496 = vpop.trf.xlu0
  %v1497 = vpop.trf.xlu0
  %v1498 = vpop.trf.xlu0
  %v1499 = vpop.trf.xlu0
  %v1500 = vpop.trf.xlu0
  %v1502 = vsel %vm723, %v1485, 0
  %v1504 = vsel %vm727, %v8, 0
  %1506 = vmatprep.subr.mxu0 0.0
  %1507 = vmatpush1.msra.mxu0 0.0
  %1508 = vmatprep.subr.mxu0 0.0
  %1509 = vmatpush1.msra.mxu0 0.0
  %1510 = vmatprep.subr.mxu0 0.0
  %1511 = vmatpush1.msra.mxu0 0.0
  %1512 = vmatprep.subr.mxu0 0.0
  %1513 = vmatpush1.msra.mxu0 0.0
  %1514 = vmatprep.subr.mxu0 0.0
  %1515 = vmatpush1.msra.mxu0 0.0
  %1516 = vmatprep.subr.mxu0 0.0
  %1517 = vmatpush1.msra.mxu0 0.0
  %1518 = vmatprep.subr.mxu0 0.0
  %1519 = vmatpush1.msra.mxu0 0.0
  %1520 = vmatprep.subr.mxu0 0.0
  %1521 = vmatpush1.msra.mxu0 0.0
  %1522 = vmatprep.subr.mxu0 0.0
  %1523 = vmatpush1.msra.mxu0 0.0
  %1524 = vmatprep.subr.mxu0 0.0
  %1525 = vmatpush1.msra.mxu0 0.0
  %1526 = vmatprep.subr.mxu0 0.0
  %1527 = vmatpush1.msra.mxu0 0.0
  %1528 = vmatprep.subr.mxu0 0.0
  %1529 = vmatpush1.msra.mxu0 0.0
  %1530 = vmatprep.subr.mxu0 0.0
  %1531 = vmatpush1.msra.mxu0 0.0
  %1532 = vmatprep.subr.mxu0 0.0
  %1533 = vmatpush1.msra.mxu0 0.0
  %1534 = vmatprep.subr.mxu0 0.0
  %1535 = vmatpush1.msra.mxu0 0.0
  %1536 = vmatprep.subr.mxu0 0.0
  %1537 = vmatpush1.msra.mxu0 %v1504
  %1538 = vmatprep.subr.mxu0 0.0
  %1539 = vmatpush2.msra.mxu0 0.0
  %1540 = vmatprep.subr.mxu0 0.0
  %1541 = vmatpush2.msra.mxu0 0.0
  %1542 = vmatprep.subr.mxu0 0.0
  %1543 = vmatpush2.msra.mxu0 0.0
  %1544 = vmatprep.subr.mxu0 0.0
  %1545 = vmatpush2.msra.mxu0 0.0
  %1546 = vmatprep.subr.mxu0 0.0
  %1547 = vmatpush2.msra.mxu0 0.0
  %1548 = vmatprep.subr.mxu0 0.0
  %1549 = vmatpush2.msra.mxu0 0.0
  %1550 = vmatprep.subr.mxu0 0.0
  %1551 = vmatpush2.msra.mxu0 0.0
  %1552 = vmatprep.subr.mxu0 0.0
  %1553 = vmatpush2.msra.mxu0 0.0
  %1554 = vmatprep.subr.mxu0 0.0
  %1555 = vmatpush2.msra.mxu0 0.0
  %1556 = vmatprep.subr.mxu0 0.0
  %1557 = vmatpush2.msra.mxu0 0.0
  %1558 = vmatprep.subr.mxu0 0.0
  %1559 = vmatpush2.msra.mxu0 0.0
  %1560 = vmatprep.subr.mxu0 0.0
  %1561 = vmatpush2.msra.mxu0 0.0
  %1562 = vmatprep.subr.mxu0 0.0
  %1563 = vmatpush2.msra.mxu0 0.0
  %1564 = vmatprep.subr.mxu0 0.0
  %1565 = vmatpush2.msra.mxu0 0.0
  %1566 = vmatprep.subr.mxu0 0.0
  %1567 = vmatpush2.msra.mxu0 0.0
  %1568 = vmatprep.subr.mxu0 0.0
  %1569 = vmatpush2.msra.mxu0 0.0
  %1570 = vmatprep.mubr.f32.mxu0 0.0
  %1571 = vmatmul.mubr.f32.gmra.mxu0 %v1502
  %v1572 = vpop.f32.mrf.mxu0
  %v1573 = vadd.f32 0.0, %v1572
  %v1574 = vpop.f32.mrf.mxu0
  %1575 = vdwg.mxu0
  %1576 = vxpose.xlu0.b32.start [1/16] %v1456, 128
  %1577 = vxpose.xlu0.b32.cont [2/16] 0.0, 128
  %1578 = vxpose.xlu0.b32.cont [3/16] 0.0, 128
  %1579 = vxpose.xlu0.b32.cont [4/16] 0.0, 128
  %1580 = vxpose.xlu0.b32.cont [5/16] 0.0, 128
  %1581 = vxpose.xlu0.b32.cont [6/16] 0.0, 128
  %1582 = vxpose.xlu0.b32.cont [7/16] 0.0, 128
  %1583 = vxpose.xlu0.b32.cont [8/16] 0.0, 128
  %1584 = vxpose.xlu0.b32.cont [9/16] 0.0, 128
  %1585 = vxpose.xlu0.b32.cont [10/16] 0.0, 128
  %1586 = vxpose.xlu0.b32.cont [11/16] 0.0, 128
  %1587 = vxpose.xlu0.b32.cont [12/16] 0.0, 128
  %1588 = vxpose.xlu0.b32.cont [13/16] 0.0, 128
  %1589 = vxpose.xlu0.b32.cont [14/16] 0.0, 128
  %1590 = vxpose.xlu0.b32.cont [15/16] 0.0, 128
  %1591 = vxpose.xlu0.b32.end [16/16] 0.0, 128
  %v1592 = vpop.trf.xlu0
  %v1593 = vpop.trf.xlu0
  %v1594 = vpop.trf.xlu0
  %v1595 = vpop.trf.xlu0
  %v1596 = vpop.trf.xlu0
  %v1597 = vpop.trf.xlu0
  %v1598 = vpop.trf.xlu0
  %v1599 = vpop.trf.xlu0
  %v1600 = vpop.trf.xlu0
  %v1601 = vpop.trf.xlu0
  %v1602 = vpop.trf.xlu0
  %v1603 = vpop.trf.xlu0
  %v1604 = vpop.trf.xlu0
  %v1605 = vpop.trf.xlu0
  %v1606 = vpop.trf.xlu0
  %v1607 = vpop.trf.xlu0
  %v1609 = vsel %vm723, %v1592, 0
  %v1611 = vsel %vm727, %v9, 0
  %1613 = vmatprep.subr.mxu0 0.0
  %1614 = vmatpush1.msra.mxu0 0.0
  %1615 = vmatprep.subr.mxu0 0.0
  %1616 = vmatpush1.msra.mxu0 0.0
  %1617 = vmatprep.subr.mxu0 0.0
  %1618 = vmatpush1.msra.mxu0 0.0
  %1619 = vmatprep.subr.mxu0 0.0
  %1620 = vmatpush1.msra.mxu0 0.0
  %1621 = vmatprep.subr.mxu0 0.0
  %1622 = vmatpush1.msra.mxu0 0.0
  %1623 = vmatprep.subr.mxu0 0.0
  %1624 = vmatpush1.msra.mxu0 0.0
  %1625 = vmatprep.subr.mxu0 0.0
  %1626 = vmatpush1.msra.mxu0 0.0
  %1627 = vmatprep.subr.mxu0 0.0
  %1628 = vmatpush1.msra.mxu0 0.0
  %1629 = vmatprep.subr.mxu0 0.0
  %1630 = vmatpush1.msra.mxu0 0.0
  %1631 = vmatprep.subr.mxu0 0.0
  %1632 = vmatpush1.msra.mxu0 0.0
  %1633 = vmatprep.subr.mxu0 0.0
  %1634 = vmatpush1.msra.mxu0 0.0
  %1635 = vmatprep.subr.mxu0 0.0
  %1636 = vmatpush1.msra.mxu0 0.0
  %1637 = vmatprep.subr.mxu0 0.0
  %1638 = vmatpush1.msra.mxu0 0.0
  %1639 = vmatprep.subr.mxu0 0.0
  %1640 = vmatpush1.msra.mxu0 0.0
  %1641 = vmatprep.subr.mxu0 0.0
  %1642 = vmatpush1.msra.mxu0 0.0
  %1643 = vmatprep.subr.mxu0 0.0
  %1644 = vmatpush1.msra.mxu0 %v1611
  %1645 = vmatprep.subr.mxu0 0.0
  %1646 = vmatpush2.msra.mxu0 0.0
  %1647 = vmatprep.subr.mxu0 0.0
  %1648 = vmatpush2.msra.mxu0 0.0
  %1649 = vmatprep.subr.mxu0 0.0
  %1650 = vmatpush2.msra.mxu0 0.0
  %1651 = vmatprep.subr.mxu0 0.0
  %1652 = vmatpush2.msra.mxu0 0.0
  %1653 = vmatprep.subr.mxu0 0.0
  %1654 = vmatpush2.msra.mxu0 0.0
  %1655 = vmatprep.subr.mxu0 0.0
  %1656 = vmatpush2.msra.mxu0 0.0
  %1657 = vmatprep.subr.mxu0 0.0
  %1658 = vmatpush2.msra.mxu0 0.0
  %1659 = vmatprep.subr.mxu0 0.0
  %1660 = vmatpush2.msra.mxu0 0.0
  %1661 = vmatprep.subr.mxu0 0.0
  %1662 = vmatpush2.msra.mxu0 0.0
  %1663 = vmatprep.subr.mxu0 0.0
  %1664 = vmatpush2.msra.mxu0 0.0
  %1665 = vmatprep.subr.mxu0 0.0
  %1666 = vmatpush2.msra.mxu0 0.0
  %1667 = vmatprep.subr.mxu0 0.0
  %1668 = vmatpush2.msra.mxu0 0.0
  %1669 = vmatprep.subr.mxu0 0.0
  %1670 = vmatpush2.msra.mxu0 0.0
  %1671 = vmatprep.subr.mxu0 0.0
  %1672 = vmatpush2.msra.mxu0 0.0
  %1673 = vmatprep.subr.mxu0 0.0
  %1674 = vmatpush2.msra.mxu0 0.0
  %1675 = vmatprep.subr.mxu0 0.0
  %1676 = vmatpush2.msra.mxu0 0.0
  %1677 = vmatprep.mubr.f32.mxu0 0.0
  %1678 = vmatmul.mubr.f32.gmra.mxu0 %v1609
  %v1679 = vpop.f32.mrf.mxu0
  %v1680 = vadd.f32 0.0, %v1679
  %v1681 = vpop.f32.mrf.mxu0
  %1682 = vdwg.mxu0
  %1683 = vxpose.xlu0.b32.start [1/16] %v1458, 128
  %1684 = vxpose.xlu0.b32.cont [2/16] 0.0, 128
  %1685 = vxpose.xlu0.b32.cont [3/16] 0.0, 128
  %1686 = vxpose.xlu0.b32.cont [4/16] 0.0, 128
  %1687 = vxpose.xlu0.b32.cont [5/16] 0.0, 128
  %1688 = vxpose.xlu0.b32.cont [6/16] 0.0, 128
  %1689 = vxpose.xlu0.b32.cont [7/16] 0.0, 128
  %1690 = vxpose.xlu0.b32.cont [8/16] 0.0, 128
  %1691 = vxpose.xlu0.b32.cont [9/16] 0.0, 128
  %1692 = vxpose.xlu0.b32.cont [10/16] 0.0, 128
  %1693 = vxpose.xlu0.b32.cont [11/16] 0.0, 128
  %1694 = vxpose.xlu0.b32.cont [12/16] 0.0, 128
  %1695 = vxpose.xlu0.b32.cont [13/16] 0.0, 128
  %1696 = vxpose.xlu0.b32.cont [14/16] 0.0, 128
  %1697 = vxpose.xlu0.b32.cont [15/16] 0.0, 128
  %1698 = vxpose.xlu0.b32.end [16/16] 0.0, 128
  %v1699 = vpop.trf.xlu0
  %v1700 = vpop.trf.xlu0
  %v1701 = vpop.trf.xlu0
  %v1702 = vpop.trf.xlu0
  %v1703 = vpop.trf.xlu0
  %v1704 = vpop.trf.xlu0
  %v1705 = vpop.trf.xlu0
  %v1706 = vpop.trf.xlu0
  %v1707 = vpop.trf.xlu0
  %v1708 = vpop.trf.xlu0
  %v1709 = vpop.trf.xlu0
  %v1710 = vpop.trf.xlu0
  %v1711 = vpop.trf.xlu0
  %v1712 = vpop.trf.xlu0
  %v1713 = vpop.trf.xlu0
  %v1714 = vpop.trf.xlu0
  %v1716 = vsel %vm723, %v1699, 0
  %v1718 = vsel %vm727, %v10, 0
  %1720 = vmatprep.subr.mxu0 0.0
  %1721 = vmatpush1.msra.mxu0 0.0
  %1722 = vmatprep.subr.mxu0 0.0
  %1723 = vmatpush1.msra.mxu0 0.0
  %1724 = vmatprep.subr.mxu0 0.0
  %1725 = vmatpush1.msra.mxu0 0.0
  %1726 = vmatprep.subr.mxu0 0.0
  %1727 = vmatpush1.msra.mxu0 0.0
  %1728 = vmatprep.subr.mxu0 0.0
  %1729 = vmatpush1.msra.mxu0 0.0
  %1730 = vmatprep.subr.mxu0 0.0
  %1731 = vmatpush1.msra.mxu0 0.0
  %1732 = vmatprep.subr.mxu0 0.0
  %1733 = vmatpush1.msra.mxu0 0.0
  %1734 = vmatprep.subr.mxu0 0.0
  %1735 = vmatpush1.msra.mxu0 0.0
  %1736 = vmatprep.subr.mxu0 0.0
  %1737 = vmatpush1.msra.mxu0 0.0
  %1738 = vmatprep.subr.mxu0 0.0
  %1739 = vmatpush1.msra.mxu0 0.0
  %1740 = vmatprep.subr.mxu0 0.0
  %1741 = vmatpush1.msra.mxu0 0.0
  %1742 = vmatprep.subr.mxu0 0.0
  %1743 = vmatpush1.msra.mxu0 0.0
  %1744 = vmatprep.subr.mxu0 0.0
  %1745 = vmatpush1.msra.mxu0 0.0
  %1746 = vmatprep.subr.mxu0 0.0
  %1747 = vmatpush1.msra.mxu0 0.0
  %1748 = vmatprep.subr.mxu0 0.0
  %1749 = vmatpush1.msra.mxu0 0.0
  %1750 = vmatprep.subr.mxu0 0.0
  %1751 = vmatpush1.msra.mxu0 %v1718
  %1752 = vmatprep.subr.mxu0 0.0
  %1753 = vmatpush2.msra.mxu0 0.0
  %1754 = vmatprep.subr.mxu0 0.0
  %1755 = vmatpush2.msra.mxu0 0.0
  %1756 = vmatprep.subr.mxu0 0.0
  %1757 = vmatpush2.msra.mxu0 0.0
  %1758 = vmatprep.subr.mxu0 0.0
  %1759 = vmatpush2.msra.mxu0 0.0
  %1760 = vmatprep.subr.mxu0 0.0
  %1761 = vmatpush2.msra.mxu0 0.0
  %1762 = vmatprep.subr.mxu0 0.0
  %1763 = vmatpush2.msra.mxu0 0.0
  %1764 = vmatprep.subr.mxu0 0.0
  %1765 = vmatpush2.msra.mxu0 0.0
  %1766 = vmatprep.subr.mxu0 0.0
  %1767 = vmatpush2.msra.mxu0 0.0
  %1768 = vmatprep.subr.mxu0 0.0
  %1769 = vmatpush2.msra.mxu0 0.0
  %1770 = vmatprep.subr.mxu0 0.0
  %1771 = vmatpush2.msra.mxu0 0.0
  %1772 = vmatprep.subr.mxu0 0.0
  %1773 = vmatpush2.msra.mxu0 0.0
  %1774 = vmatprep.subr.mxu0 0.0
  %1775 = vmatpush2.msra.mxu0 0.0
  %1776 = vmatprep.subr.mxu0 0.0
  %1777 = vmatpush2.msra.mxu0 0.0
  %1778 = vmatprep.subr.mxu0 0.0
  %1779 = vmatpush2.msra.mxu0 0.0
  %1780 = vmatprep.subr.mxu0 0.0
  %1781 = vmatpush2.msra.mxu0 0.0
  %1782 = vmatprep.subr.mxu0 0.0
  %1783 = vmatpush2.msra.mxu0 0.0
  %1784 = vmatprep.mubr.f32.mxu0 0.0
  %1785 = vmatmul.mubr.f32.gmra.mxu0 %v1716
  %v1786 = vpop.f32.mrf.mxu0
  %v1787 = vadd.f32 0.0, %v1786
  %v1788 = vpop.f32.mrf.mxu0
  %1789 = vdwg.mxu0
  %1790 = vxpose.xlu0.b32.start [1/16] %v1460, 128
  %1791 = vxpose.xlu0.b32.cont [2/16] 0.0, 128
  %1792 = vxpose.xlu0.b32.cont [3/16] 0.0, 128
  %1793 = vxpose.xlu0.b32.cont [4/16] 0.0, 128
  %1794 = vxpose.xlu0.b32.cont [5/16] 0.0, 128
  %1795 = vxpose.xlu0.b32.cont [6/16] 0.0, 128
  %1796 = vxpose.xlu0.b32.cont [7/16] 0.0, 128
  %1797 = vxpose.xlu0.b32.cont [8/16] 0.0, 128
  %1798 = vxpose.xlu0.b32.cont [9/16] 0.0, 128
  %1799 = vxpose.xlu0.b32.cont [10/16] 0.0, 128
  %1800 = vxpose.xlu0.b32.cont [11/16] 0.0, 128
  %1801 = vxpose.xlu0.b32.cont [12/16] 0.0, 128
  %1802 = vxpose.xlu0.b32.cont [13/16] 0.0, 128
  %1803 = vxpose.xlu0.b32.cont [14/16] 0.0, 128
  %1804 = vxpose.xlu0.b32.cont [15/16] 0.0, 128
  %1805 = vxpose.xlu0.b32.end [16/16] 0.0, 128
  %v1806 = vpop.trf.xlu0
  %v1807 = vpop.trf.xlu0
  %v1808 = vpop.trf.xlu0
  %v1809 = vpop.trf.xlu0
  %v1810 = vpop.trf.xlu0
  %v1811 = vpop.trf.xlu0
  %v1812 = vpop.trf.xlu0
  %v1813 = vpop.trf.xlu0
  %v1814 = vpop.trf.xlu0
  %v1815 = vpop.trf.xlu0
  %v1816 = vpop.trf.xlu0
  %v1817 = vpop.trf.xlu0
  %v1818 = vpop.trf.xlu0
  %v1819 = vpop.trf.xlu0
  %v1820 = vpop.trf.xlu0
  %v1821 = vpop.trf.xlu0
  %v1823 = vsel %vm723, %v1806, 0
  %v1825 = vsel %vm727, %v11, 0
  %1827 = vmatprep.subr.mxu0 0.0
  %1828 = vmatpush1.msra.mxu0 0.0
  %1829 = vmatprep.subr.mxu0 0.0
  %1830 = vmatpush1.msra.mxu0 0.0
  %1831 = vmatprep.subr.mxu0 0.0
  %1832 = vmatpush1.msra.mxu0 0.0
  %1833 = vmatprep.subr.mxu0 0.0
  %1834 = vmatpush1.msra.mxu0 0.0
  %1835 = vmatprep.subr.mxu0 0.0
  %1836 = vmatpush1.msra.mxu0 0.0
  %1837 = vmatprep.subr.mxu0 0.0
  %1838 = vmatpush1.msra.mxu0 0.0
  %1839 = vmatprep.subr.mxu0 0.0
  %1840 = vmatpush1.msra.mxu0 0.0
  %1841 = vmatprep.subr.mxu0 0.0
  %1842 = vmatpush1.msra.mxu0 0.0
  %1843 = vmatprep.subr.mxu0 0.0
  %1844 = vmatpush1.msra.mxu0 0.0
  %1845 = vmatprep.subr.mxu0 0.0
  %1846 = vmatpush1.msra.mxu0 0.0
  %1847 = vmatprep.subr.mxu0 0.0
  %1848 = vmatpush1.msra.mxu0 0.0
  %1849 = vmatprep.subr.mxu0 0.0
  %1850 = vmatpush1.msra.mxu0 0.0
  %1851 = vmatprep.subr.mxu0 0.0
  %1852 = vmatpush1.msra.mxu0 0.0
  %1853 = vmatprep.subr.mxu0 0.0
  %1854 = vmatpush1.msra.mxu0 0.0
  %1855 = vmatprep.subr.mxu0 0.0
  %1856 = vmatpush1.msra.mxu0 0.0
  %1857 = vmatprep.subr.mxu0 0.0
  %1858 = vmatpush1.msra.mxu0 %v1825
  %1859 = vmatprep.subr.mxu0 0.0
  %1860 = vmatpush2.msra.mxu0 0.0
  %1861 = vmatprep.subr.mxu0 0.0
  %1862 = vmatpush2.msra.mxu0 0.0
  %1863 = vmatprep.subr.mxu0 0.0
  %1864 = vmatpush2.msra.mxu0 0.0
  %1865 = vmatprep.subr.mxu0 0.0
  %1866 = vmatpush2.msra.mxu0 0.0
  %1867 = vmatprep.subr.mxu0 0.0
  %1868 = vmatpush2.msra.mxu0 0.0
  %1869 = vmatprep.subr.mxu0 0.0
  %1870 = vmatpush2.msra.mxu0 0.0
  %1871 = vmatprep.subr.mxu0 0.0
  %1872 = vmatpush2.msra.mxu0 0.0
  %1873 = vmatprep.subr.mxu0 0.0
  %1874 = vmatpush2.msra.mxu0 0.0
  %1875 = vmatprep.subr.mxu0 0.0
  %1876 = vmatpush2.msra.mxu0 0.0
  %1877 = vmatprep.subr.mxu0 0.0
  %1878 = vmatpush2.msra.mxu0 0.0
  %1879 = vmatprep.subr.mxu0 0.0
  %1880 = vmatpush2.msra.mxu0 0.0
  %1881 = vmatprep.subr.mxu0 0.0
  %1882 = vmatpush2.msra.mxu0 0.0
  %1883 = vmatprep.subr.mxu0 0.0
  %1884 = vmatpush2.msra.mxu0 0.0
  %1885 = vmatprep.subr.mxu0 0.0
  %1886 = vmatpush2.msra.mxu0 0.0
  %1887 = vmatprep.subr.mxu0 0.0
  %1888 = vmatpush2.msra.mxu0 0.0
  %1889 = vmatprep.subr.mxu0 0.0
  %1890 = vmatpush2.msra.mxu0 0.0
  %1891 = vmatprep.mubr.f32.mxu0 0.0
  %1892 = vmatmul.mubr.f32.gmra.mxu0 %v1823
  %v1893 = vpop.f32.mrf.mxu0
  %v1894 = vadd.f32 0.0, %v1893
  %v1895 = vpop.f32.mrf.mxu0
  %1896 = vdwg.mxu0
  %1897 = vxpose.xlu0.b32.start [1/16] %v1462, 128
  %1898 = vxpose.xlu0.b32.cont [2/16] 0.0, 128
  %1899 = vxpose.xlu0.b32.cont [3/16] 0.0, 128
  %1900 = vxpose.xlu0.b32.cont [4/16] 0.0, 128
  %1901 = vxpose.xlu0.b32.cont [5/16] 0.0, 128
  %1902 = vxpose.xlu0.b32.cont [6/16] 0.0, 128
  %1903 = vxpose.xlu0.b32.cont [7/16] 0.0, 128
  %1904 = vxpose.xlu0.b32.cont [8/16] 0.0, 128
  %1905 = vxpose.xlu0.b32.cont [9/16] 0.0, 128
  %1906 = vxpose.xlu0.b32.cont [10/16] 0.0, 128
  %1907 = vxpose.xlu0.b32.cont [11/16] 0.0, 128
  %1908 = vxpose.xlu0.b32.cont [12/16] 0.0, 128
  %1909 = vxpose.xlu0.b32.cont [13/16] 0.0, 128
  %1910 = vxpose.xlu0.b32.cont [14/16] 0.0, 128
  %1911 = vxpose.xlu0.b32.cont [15/16] 0.0, 128
  %1912 = vxpose.xlu0.b32.end [16/16] 0.0, 128
  %v1913 = vpop.trf.xlu0
  %v1914 = vpop.trf.xlu0
  %v1915 = vpop.trf.xlu0
  %v1916 = vpop.trf.xlu0
  %v1917 = vpop.trf.xlu0
  %v1918 = vpop.trf.xlu0
  %v1919 = vpop.trf.xlu0
  %v1920 = vpop.trf.xlu0
  %v1921 = vpop.trf.xlu0
  %v1922 = vpop.trf.xlu0
  %v1923 = vpop.trf.xlu0
  %v1924 = vpop.trf.xlu0
  %v1925 = vpop.trf.xlu0
  %v1926 = vpop.trf.xlu0
  %v1927 = vpop.trf.xlu0
  %v1928 = vpop.trf.xlu0
  %v1930 = vsel %vm723, %v1913, 0
  %v1932 = vsel %vm727, %v12, 0
  %1934 = vmatprep.subr.mxu0 0.0
  %1935 = vmatpush1.msra.mxu0 0.0
  %1936 = vmatprep.subr.mxu0 0.0
  %1937 = vmatpush1.msra.mxu0 0.0
  %1938 = vmatprep.subr.mxu0 0.0
  %1939 = vmatpush1.msra.mxu0 0.0
  %1940 = vmatprep.subr.mxu0 0.0
  %1941 = vmatpush1.msra.mxu0 0.0
  %1942 = vmatprep.subr.mxu0 0.0
  %1943 = vmatpush1.msra.mxu0 0.0
  %1944 = vmatprep.subr.mxu0 0.0
  %1945 = vmatpush1.msra.mxu0 0.0
  %1946 = vmatprep.subr.mxu0 0.0
  %1947 = vmatpush1.msra.mxu0 0.0
  %1948 = vmatprep.subr.mxu0 0.0
  %1949 = vmatpush1.msra.mxu0 0.0
  %1950 = vmatprep.subr.mxu0 0.0
  %1951 = vmatpush1.msra.mxu0 0.0
  %1952 = vmatprep.subr.mxu0 0.0
  %1953 = vmatpush1.msra.mxu0 0.0
  %1954 = vmatprep.subr.mxu0 0.0
  %1955 = vmatpush1.msra.mxu0 0.0
  %1956 = vmatprep.subr.mxu0 0.0
  %1957 = vmatpush1.msra.mxu0 0.0
  %1958 = vmatprep.subr.mxu0 0.0
  %1959 = vmatpush1.msra.mxu0 0.0
  %1960 = vmatprep.subr.mxu0 0.0
  %1961 = vmatpush1.msra.mxu0 0.0
  %1962 = vmatprep.subr.mxu0 0.0
  %1963 = vmatpush1.msra.mxu0 0.0
  %1964 = vmatprep.subr.mxu0 0.0
  %1965 = vmatpush1.msra.mxu0 %v1932
  %1966 = vmatprep.subr.mxu0 0.0
  %1967 = vmatpush2.msra.mxu0 0.0
  %1968 = vmatprep.subr.mxu0 0.0
  %1969 = vmatpush2.msra.mxu0 0.0
  %1970 = vmatprep.subr.mxu0 0.0
  %1971 = vmatpush2.msra.mxu0 0.0
  %1972 = vmatprep.subr.mxu0 0.0
  %1973 = vmatpush2.msra.mxu0 0.0
  %1974 = vmatprep.subr.mxu0 0.0
  %1975 = vmatpush2.msra.mxu0 0.0
  %1976 = vmatprep.subr.mxu0 0.0
  %1977 = vmatpush2.msra.mxu0 0.0
  %1978 = vmatprep.subr.mxu0 0.0
  %1979 = vmatpush2.msra.mxu0 0.0
  %1980 = vmatprep.subr.mxu0 0.0
  %1981 = vmatpush2.msra.mxu0 0.0
  %1982 = vmatprep.subr.mxu0 0.0
  %1983 = vmatpush2.msra.mxu0 0.0
  %1984 = vmatprep.subr.mxu0 0.0
  %1985 = vmatpush2.msra.mxu0 0.0
  %1986 = vmatprep.subr.mxu0 0.0
  %1987 = vmatpush2.msra.mxu0 0.0
  %1988 = vmatprep.subr.mxu0 0.0
  %1989 = vmatpush2.msra.mxu0 0.0
  %1990 = vmatprep.subr.mxu0 0.0
  %1991 = vmatpush2.msra.mxu0 0.0
  %1992 = vmatprep.subr.mxu0 0.0
  %1993 = vmatpush2.msra.mxu0 0.0
  %1994 = vmatprep.subr.mxu0 0.0
  %1995 = vmatpush2.msra.mxu0 0.0
  %1996 = vmatprep.subr.mxu0 0.0
  %1997 = vmatpush2.msra.mxu0 0.0
  %1998 = vmatprep.mubr.f32.mxu0 0.0
  %1999 = vmatmul.mubr.f32.gmra.mxu0 %v1930
  %v2000 = vpop.f32.mrf.mxu0
  %v2001 = vadd.f32 0.0, %v2000
  %v2002 = vpop.f32.mrf.mxu0
  %2003 = vdwg.mxu0
  %2004 = vxpose.xlu0.b32.start [1/16] %v1464, 128
  %2005 = vxpose.xlu0.b32.cont [2/16] 0.0, 128
  %2006 = vxpose.xlu0.b32.cont [3/16] 0.0, 128
  %2007 = vxpose.xlu0.b32.cont [4/16] 0.0, 128
  %2008 = vxpose.xlu0.b32.cont [5/16] 0.0, 128
  %2009 = vxpose.xlu0.b32.cont [6/16] 0.0, 128
  %2010 = vxpose.xlu0.b32.cont [7/16] 0.0, 128
  %2011 = vxpose.xlu0.b32.cont [8/16] 0.0, 128
  %2012 = vxpose.xlu0.b32.cont [9/16] 0.0, 128
  %2013 = vxpose.xlu0.b32.cont [10/16] 0.0, 128
  %2014 = vxpose.xlu0.b32.cont [11/16] 0.0, 128
  %2015 = vxpose.xlu0.b32.cont [12/16] 0.0, 128
  %2016 = vxpose.xlu0.b32.cont [13/16] 0.0, 128
  %2017 = vxpose.xlu0.b32.cont [14/16] 0.0, 128
  %2018 = vxpose.xlu0.b32.cont [15/16] 0.0, 128
  %2019 = vxpose.xlu0.b32.end [16/16] 0.0, 128
  %v2020 = vpop.trf.xlu0
  %v2021 = vpop.trf.xlu0
  %v2022 = vpop.trf.xlu0
  %v2023 = vpop.trf.xlu0
  %v2024 = vpop.trf.xlu0
  %v2025 = vpop.trf.xlu0
  %v2026 = vpop.trf.xlu0
  %v2027 = vpop.trf.xlu0
  %v2028 = vpop.trf.xlu0
  %v2029 = vpop.trf.xlu0
  %v2030 = vpop.trf.xlu0
  %v2031 = vpop.trf.xlu0
  %v2032 = vpop.trf.xlu0
  %v2033 = vpop.trf.xlu0
  %v2034 = vpop.trf.xlu0
  %v2035 = vpop.trf.xlu0
  %v2037 = vsel %vm723, %v2020, 0
  %v2039 = vsel %vm727, %v13, 0
  %2041 = vmatprep.subr.mxu0 0.0
  %2042 = vmatpush1.msra.mxu0 0.0
  %2043 = vmatprep.subr.mxu0 0.0
  %2044 = vmatpush1.msra.mxu0 0.0
  %2045 = vmatprep.subr.mxu0 0.0
  %2046 = vmatpush1.msra.mxu0 0.0
  %2047 = vmatprep.subr.mxu0 0.0
  %2048 = vmatpush1.msra.mxu0 0.0
  %2049 = vmatprep.subr.mxu0 0.0
  %2050 = vmatpush1.msra.mxu0 0.0
  %2051 = vmatprep.subr.mxu0 0.0
  %2052 = vmatpush1.msra.mxu0 0.0
  %2053 = vmatprep.subr.mxu0 0.0
  %2054 = vmatpush1.msra.mxu0 0.0
  %2055 = vmatprep.subr.mxu0 0.0
  %2056 = vmatpush1.msra.mxu0 0.0
  %2057 = vmatprep.subr.mxu0 0.0
  %2058 = vmatpush1.msra.mxu0 0.0
  %2059 = vmatprep.subr.mxu0 0.0
  %2060 = vmatpush1.msra.mxu0 0.0
  %2061 = vmatprep.subr.mxu0 0.0
  %2062 = vmatpush1.msra.mxu0 0.0
  %2063 = vmatprep.subr.mxu0 0.0
  %2064 = vmatpush1.msra.mxu0 0.0
  %2065 = vmatprep.subr.mxu0 0.0
  %2066 = vmatpush1.msra.mxu0 0.0
  %2067 = vmatprep.subr.mxu0 0.0
  %2068 = vmatpush1.msra.mxu0 0.0
  %2069 = vmatprep.subr.mxu0 0.0
  %2070 = vmatpush1.msra.mxu0 0.0
  %2071 = vmatprep.subr.mxu0 0.0
  %2072 = vmatpush1.msra.mxu0 %v2039
  %2073 = vmatprep.subr.mxu0 0.0
  %2074 = vmatpush2.msra.mxu0 0.0
  %2075 = vmatprep.subr.mxu0 0.0
  %2076 = vmatpush2.msra.mxu0 0.0
  %2077 = vmatprep.subr.mxu0 0.0
  %2078 = vmatpush2.msra.mxu0 0.0
  %2079 = vmatprep.subr.mxu0 0.0
  %2080 = vmatpush2.msra.mxu0 0.0
  %2081 = vmatprep.subr.mxu0 0.0
  %2082 = vmatpush2.msra.mxu0 0.0
  %2083 = vmatprep.subr.mxu0 0.0
  %2084 = vmatpush2.msra.mxu0 0.0
  %2085 = vmatprep.subr.mxu0 0.0
  %2086 = vmatpush2.msra.mxu0 0.0
  %2087 = vmatprep.subr.mxu0 0.0
  %2088 = vmatpush2.msra.mxu0 0.0
  %2089 = vmatprep.subr.mxu0 0.0
  %2090 = vmatpush2.msra.mxu0 0.0
  %2091 = vmatprep.subr.mxu0 0.0
  %2092 = vmatpush2.msra.mxu0 0.0
  %2093 = vmatprep.subr.mxu0 0.0
  %2094 = vmatpush2.msra.mxu0 0.0
  %2095 = vmatprep.subr.mxu0 0.0
  %2096 = vmatpush2.msra.mxu0 0.0
  %2097 = vmatprep.subr.mxu0 0.0
  %2098 = vmatpush2.msra.mxu0 0.0
  %2099 = vmatprep.subr.mxu0 0.0
  %2100 = vmatpush2.msra.mxu0 0.0
  %2101 = vmatprep.subr.mxu0 0.0
  %2102 = vmatpush2.msra.mxu0 0.0
  %2103 = vmatprep.subr.mxu0 0.0
  %2104 = vmatpush2.msra.mxu0 0.0
  %2105 = vmatprep.mubr.f32.mxu0 0.0
  %2106 = vmatmul.mubr.f32.gmra.mxu0 %v2037
  %v2107 = vpop.f32.mrf.mxu0
  %v2108 = vadd.f32 0.0, %v2107
  %v2109 = vpop.f32.mrf.mxu0
  %2110 = vdwg.mxu0
  %2111 = vxpose.xlu0.b32.start [1/16] %v1466, 128
  %2112 = vxpose.xlu0.b32.cont [2/16] 0.0, 128
  %2113 = vxpose.xlu0.b32.cont [3/16] 0.0, 128
  %2114 = vxpose.xlu0.b32.cont [4/16] 0.0, 128
  %2115 = vxpose.xlu0.b32.cont [5/16] 0.0, 128
  %2116 = vxpose.xlu0.b32.cont [6/16] 0.0, 128
  %2117 = vxpose.xlu0.b32.cont [7/16] 0.0, 128
  %2118 = vxpose.xlu0.b32.cont [8/16] 0.0, 128
  %2119 = vxpose.xlu0.b32.cont [9/16] 0.0, 128
  %2120 = vxpose.xlu0.b32.cont [10/16] 0.0, 128
  %2121 = vxpose.xlu0.b32.cont [11/16] 0.0, 128
  %2122 = vxpose.xlu0.b32.cont [12/16] 0.0, 128
  %2123 = vxpose.xlu0.b32.cont [13/16] 0.0, 128
  %2124 = vxpose.xlu0.b32.cont [14/16] 0.0, 128
  %2125 = vxpose.xlu0.b32.cont [15/16] 0.0, 128
  %2126 = vxpose.xlu0.b32.end [16/16] 0.0, 128
  %v2127 = vpop.trf.xlu0
  %v2128 = vpop.trf.xlu0
  %v2129 = vpop.trf.xlu0
  %v2130 = vpop.trf.xlu0
  %v2131 = vpop.trf.xlu0
  %v2132 = vpop.trf.xlu0
  %v2133 = vpop.trf.xlu0
  %v2134 = vpop.trf.xlu0
  %v2135 = vpop.trf.xlu0
  %v2136 = vpop.trf.xlu0
  %v2137 = vpop.trf.xlu0
  %v2138 = vpop.trf.xlu0
  %v2139 = vpop.trf.xlu0
  %v2140 = vpop.trf.xlu0
  %v2141 = vpop.trf.xlu0
  %v2142 = vpop.trf.xlu0
  %v2144 = vsel %vm723, %v2127, 0
  %v2146 = vsel %vm727, %v14, 0
  %2148 = vmatprep.subr.mxu0 0.0
  %2149 = vmatpush1.msra.mxu0 0.0
  %2150 = vmatprep.subr.mxu0 0.0
  %2151 = vmatpush1.msra.mxu0 0.0
  %2152 = vmatprep.subr.mxu0 0.0
  %2153 = vmatpush1.msra.mxu0 0.0
  %2154 = vmatprep.subr.mxu0 0.0
  %2155 = vmatpush1.msra.mxu0 0.0
  %2156 = vmatprep.subr.mxu0 0.0
  %2157 = vmatpush1.msra.mxu0 0.0
  %2158 = vmatprep.subr.mxu0 0.0
  %2159 = vmatpush1.msra.mxu0 0.0
  %2160 = vmatprep.subr.mxu0 0.0
  %2161 = vmatpush1.msra.mxu0 0.0
  %2162 = vmatprep.subr.mxu0 0.0
  %2163 = vmatpush1.msra.mxu0 0.0
  %2164 = vmatprep.subr.mxu0 0.0
  %2165 = vmatpush1.msra.mxu0 0.0
  %2166 = vmatprep.subr.mxu0 0.0
  %2167 = vmatpush1.msra.mxu0 0.0
  %2168 = vmatprep.subr.mxu0 0.0
  %2169 = vmatpush1.msra.mxu0 0.0
  %2170 = vmatprep.subr.mxu0 0.0
  %2171 = vmatpush1.msra.mxu0 0.0
  %2172 = vmatprep.subr.mxu0 0.0
  %2173 = vmatpush1.msra.mxu0 0.0
  %2174 = vmatprep.subr.mxu0 0.0
  %2175 = vmatpush1.msra.mxu0 0.0
  %2176 = vmatprep.subr.mxu0 0.0
  %2177 = vmatpush1.msra.mxu0 0.0
  %2178 = vmatprep.subr.mxu0 0.0
  %2179 = vmatpush1.msra.mxu0 %v2146
  %2180 = vmatprep.subr.mxu0 0.0
  %2181 = vmatpush2.msra.mxu0 0.0
  %2182 = vmatprep.subr.mxu0 0.0
  %2183 = vmatpush2.msra.mxu0 0.0
  %2184 = vmatprep.subr.mxu0 0.0
  %2185 = vmatpush2.msra.mxu0 0.0
  %2186 = vmatprep.subr.mxu0 0.0
  %2187 = vmatpush2.msra.mxu0 0.0
  %2188 = vmatprep.subr.mxu0 0.0
  %2189 = vmatpush2.msra.mxu0 0.0
  %2190 = vmatprep.subr.mxu0 0.0
  %2191 = vmatpush2.msra.mxu0 0.0
  %2192 = vmatprep.subr.mxu0 0.0
  %2193 = vmatpush2.msra.mxu0 0.0
  %2194 = vmatprep.subr.mxu0 0.0
  %2195 = vmatpush2.msra.mxu0 0.0
  %2196 = vmatprep.subr.mxu0 0.0
  %2197 = vmatpush2.msra.mxu0 0.0
  %2198 = vmatprep.subr.mxu0 0.0
  %2199 = vmatpush2.msra.mxu0 0.0
  %2200 = vmatprep.subr.mxu0 0.0
  %2201 = vmatpush2.msra.mxu0 0.0
  %2202 = vmatprep.subr.mxu0 0.0
  %2203 = vmatpush2.msra.mxu0 0.0
  %2204 = vmatprep.subr.mxu0 0.0
  %2205 = vmatpush2.msra.mxu0 0.0
  %2206 = vmatprep.subr.mxu0 0.0
  %2207 = vmatpush2.msra.mxu0 0.0
  %2208 = vmatprep.subr.mxu0 0.0
  %2209 = vmatpush2.msra.mxu0 0.0
  %2210 = vmatprep.subr.mxu0 0.0
  %2211 = vmatpush2.msra.mxu0 0.0
  %2212 = vmatprep.mubr.f32.mxu0 0.0
  %2213 = vmatmul.mubr.f32.gmra.mxu0 %v2144
  %v2214 = vpop.f32.mrf.mxu0
  %v2215 = vadd.f32 0.0, %v2214
  %v2216 = vpop.f32.mrf.mxu0
  %2217 = vdwg.mxu0
  %2218 = vxpose.xlu0.b32.start [1/16] %v1468, 128
  %2219 = vxpose.xlu0.b32.cont [2/16] 0.0, 128
  %2220 = vxpose.xlu0.b32.cont [3/16] 0.0, 128
  %2221 = vxpose.xlu0.b32.cont [4/16] 0.0, 128
  %2222 = vxpose.xlu0.b32.cont [5/16] 0.0, 128
  %2223 = vxpose.xlu0.b32.cont [6/16] 0.0, 128
  %2224 = vxpose.xlu0.b32.cont [7/16] 0.0, 128
  %2225 = vxpose.xlu0.b32.cont [8/16] 0.0, 128
  %2226 = vxpose.xlu0.b32.cont [9/16] 0.0, 128
  %2227 = vxpose.xlu0.b32.cont [10/16] 0.0, 128
  %2228 = vxpose.xlu0.b32.cont [11/16] 0.0, 128
  %2229 = vxpose.xlu0.b32.cont [12/16] 0.0, 128
  %2230 = vxpose.xlu0.b32.cont [13/16] 0.0, 128
  %2231 = vxpose.xlu0.b32.cont [14/16] 0.0, 128
  %2232 = vxpose.xlu0.b32.cont [15/16] 0.0, 128
  %2233 = vxpose.xlu0.b32.end [16/16] 0.0, 128
  %v2234 = vpop.trf.xlu0
  %v2235 = vpop.trf.xlu0
  %v2236 = vpop.trf.xlu0
  %v2237 = vpop.trf.xlu0
  %v2238 = vpop.trf.xlu0
  %v2239 = vpop.trf.xlu0
  %v2240 = vpop.trf.xlu0
  %v2241 = vpop.trf.xlu0
  %v2242 = vpop.trf.xlu0
  %v2243 = vpop.trf.xlu0
  %v2244 = vpop.trf.xlu0
  %v2245 = vpop.trf.xlu0
  %v2246 = vpop.trf.xlu0
  %v2247 = vpop.trf.xlu0
  %v2248 = vpop.trf.xlu0
  %v2249 = vpop.trf.xlu0
  %v2251 = vsel %vm723, %v2234, 0
  %v2253 = vsel %vm727, %v15, 0
  %2255 = vmatprep.subr.mxu0 0.0
  %2256 = vmatpush1.msra.mxu0 0.0
  %2257 = vmatprep.subr.mxu0 0.0
  %2258 = vmatpush1.msra.mxu0 0.0
  %2259 = vmatprep.subr.mxu0 0.0
  %2260 = vmatpush1.msra.mxu0 0.0
  %2261 = vmatprep.subr.mxu0 0.0
  %2262 = vmatpush1.msra.mxu0 0.0
  %2263 = vmatprep.subr.mxu0 0.0
  %2264 = vmatpush1.msra.mxu0 0.0
  %2265 = vmatprep.subr.mxu0 0.0
  %2266 = vmatpush1.msra.mxu0 0.0
  %2267 = vmatprep.subr.mxu0 0.0
  %2268 = vmatpush1.msra.mxu0 0.0
  %2269 = vmatprep.subr.mxu0 0.0
  %2270 = vmatpush1.msra.mxu0 0.0
  %2271 = vmatprep.subr.mxu0 0.0
  %2272 = vmatpush1.msra.mxu0 0.0
  %2273 = vmatprep.subr.mxu0 0.0
  %2274 = vmatpush1.msra.mxu0 0.0
  %2275 = vmatprep.subr.mxu0 0.0
  %2276 = vmatpush1.msra.mxu0 0.0
  %2277 = vmatprep.subr.mxu0 0.0
  %2278 = vmatpush1.msra.mxu0 0.0
  %2279 = vmatprep.subr.mxu0 0.0
  %2280 = vmatpush1.msra.mxu0 0.0
  %2281 = vmatprep.subr.mxu0 0.0
  %2282 = vmatpush1.msra.mxu0 0.0
  %2283 = vmatprep.subr.mxu0 0.0
  %2284 = vmatpush1.msra.mxu0 0.0
  %2285 = vmatprep.subr.mxu0 0.0
  %2286 = vmatpush1.msra.mxu0 %v2253
  %2287 = vmatprep.subr.mxu0 0.0
  %2288 = vmatpush2.msra.mxu0 0.0
  %2289 = vmatprep.subr.mxu0 0.0
  %2290 = vmatpush2.msra.mxu0 0.0
  %2291 = vmatprep.subr.mxu0 0.0
  %2292 = vmatpush2.msra.mxu0 0.0
  %2293 = vmatprep.subr.mxu0 0.0
  %2294 = vmatpush2.msra.mxu0 0.0
  %2295 = vmatprep.subr.mxu0 0.0
  %2296 = vmatpush2.msra.mxu0 0.0
  %2297 = vmatprep.subr.mxu0 0.0
  %2298 = vmatpush2.msra.mxu0 0.0
  %2299 = vmatprep.subr.mxu0 0.0
  %2300 = vmatpush2.msra.mxu0 0.0
  %2301 = vmatprep.subr.mxu0 0.0
  %2302 = vmatpush2.msra.mxu0 0.0
  %2303 = vmatprep.subr.mxu0 0.0
  %2304 = vmatpush2.msra.mxu0 0.0
  %2305 = vmatprep.subr.mxu0 0.0
  %2306 = vmatpush2.msra.mxu0 0.0
  %2307 = vmatprep.subr.mxu0 0.0
  %2308 = vmatpush2.msra.mxu0 0.0
  %2309 = vmatprep.subr.mxu0 0.0
  %2310 = vmatpush2.msra.mxu0 0.0
  %2311 = vmatprep.subr.mxu0 0.0
  %2312 = vmatpush2.msra.mxu0 0.0
  %2313 = vmatprep.subr.mxu0 0.0
  %2314 = vmatpush2.msra.mxu0 0.0
  %2315 = vmatprep.subr.mxu0 0.0
  %2316 = vmatpush2.msra.mxu0 0.0
  %2317 = vmatprep.subr.mxu0 0.0
  %2318 = vmatpush2.msra.mxu0 0.0
  %2319 = vmatprep.mubr.f32.mxu0 0.0
  %2320 = vmatmul.mubr.f32.gmra.mxu0 %v2251
  %v2321 = vpop.f32.mrf.mxu0
  %v2322 = vadd.f32 0.0, %v2321
  %v2323 = vpop.f32.mrf.mxu0
  %2324 = vdwg.mxu0
  %v2325 = vsub.f32 %v8, %v797
  %v2326 = vsub.f32 %v9, %v872
  %v2327 = vsub.f32 %v10, %v947
  %v2328 = vsub.f32 %v11, %v1022
  %v2329 = vsub.f32 %v12, %v1097
  %v2330 = vsub.f32 %v13, %v1172
  %v2331 = vsub.f32 %v14, %v1247
  %v2332 = vsub.f32 %v15, %v1322
  %v2333 = vmul.f32 %v8, %v797
  %v2334 = vmul.f32 %v9, %v872
  %v2335 = vmul.f32 %v10, %v947
  %v2336 = vmul.f32 %v11, %v1022
  %v2337 = vmul.f32 %v12, %v1097
  %v2338 = vmul.f32 %v13, %v1172
  %v2339 = vmul.f32 %v14, %v1247
  %v2340 = vmul.f32 %v15, %v1322
  %2349 = vrot.lane.b32.xlu0 %v797, 32
  %v2350 = vpop.permute.xlu0 %2349
  %2351 = vrot.lane.b32.xlu0 %v872, 32
  %v2352 = vpop.permute.xlu0 %2351
  %2353 = vrot.lane.b32.xlu0 %v947, 32
  %v2354 = vpop.permute.xlu0 %2353
  %2355 = vrot.lane.b32.xlu0 %v1022, 32
  %v2356 = vpop.permute.xlu0 %2355
  %2357 = vrot.lane.b32.xlu0 %v1097, 32
  %v2358 = vpop.permute.xlu0 %2357
  %2359 = vrot.lane.b32.xlu0 %v1172, 32
  %v2360 = vpop.permute.xlu0 %2359
  %2361 = vrot.lane.b32.xlu0 %v1247, 32
  %v2362 = vpop.permute.xlu0 %2361
  %2363 = vrot.lane.b32.xlu0 %v1322, 32
  %v2364 = vpop.permute.xlu0 %2363
  %2381 = vrot.lane.b32.xlu0 %v2325, 64
  %v2382 = vpop.permute.xlu0 %2381
  %2383 = vrot.lane.b32.xlu0 %v2326, 64
  %v2384 = vpop.permute.xlu0 %2383
  %2385 = vrot.lane.b32.xlu0 %v2327, 64
  %v2386 = vpop.permute.xlu0 %2385
  %2387 = vrot.lane.b32.xlu0 %v2328, 64
  %v2388 = vpop.permute.xlu0 %2387
  %2389 = vrot.lane.b32.xlu0 %v2329, 64
  %v2390 = vpop.permute.xlu0 %2389
  %2391 = vrot.lane.b32.xlu0 %v2330, 64
  %v2392 = vpop.permute.xlu0 %2391
  %2393 = vrot.lane.b32.xlu0 %v2331, 64
  %v2394 = vpop.permute.xlu0 %2393
  %2395 = vrot.lane.b32.xlu0 %v2332, 64
  %v2396 = vpop.permute.xlu0 %2395
  %2413 = vrot.lane.b32.xlu0 %v2333, 96
  %v2414 = vpop.permute.xlu0 %2413
  %2415 = vrot.lane.b32.xlu0 %v2334, 96
  %v2416 = vpop.permute.xlu0 %2415
  %2417 = vrot.lane.b32.xlu0 %v2335, 96
  %v2418 = vpop.permute.xlu0 %2417
  %2419 = vrot.lane.b32.xlu0 %v2336, 96
  %v2420 = vpop.permute.xlu0 %2419
  %2421 = vrot.lane.b32.xlu0 %v2337, 96
  %v2422 = vpop.permute.xlu0 %2421
  %2423 = vrot.lane.b32.xlu0 %v2338, 96
  %v2424 = vpop.permute.xlu0 %2423
  %2425 = vrot.lane.b32.xlu0 %v2339, 96
  %v2426 = vpop.permute.xlu0 %2425
  %2427 = vrot.lane.b32.xlu0 %v2340, 96
  %v2428 = vpop.permute.xlu0 %2427
  %v2437 = vsel %vm25, %v8, %v2350
  %v2438 = vsel %vm25, %v9, %v2352
  %v2439 = vsel %vm25, %v10, %v2354
  %v2440 = vsel %vm25, %v11, %v2356
  %v2441 = vsel %vm25, %v12, %v2358
  %v2442 = vsel %vm25, %v13, %v2360
  %v2443 = vsel %vm25, %v14, %v2362
  %v2444 = vsel %vm25, %v15, %v2364
  %vm2445 = vcmask 523264
  %v2446 = vsel %vm2445, %v2437, %v2382
  %v2447 = vsel %vm2445, %v2438, %v2384
  %v2448 = vsel %vm2445, %v2439, %v2386
  %v2449 = vsel %vm2445, %v2440, %v2388
  %v2450 = vsel %vm2445, %v2441, %v2390
  %v2451 = vsel %vm2445, %v2442, %v2392
  %v2452 = vsel %vm2445, %v2443, %v2394
  %v2453 = vsel %vm2445, %v2444, %v2396
  %vm2454 = vcmask 785408
  %v2455 = vsel %vm2454, %v2446, %v2414
  %v2456 = vsel %vm2454, %v2447, %v2416
  %v2457 = vsel %vm2454, %v2448, %v2418
  %v2458 = vsel %vm2454, %v2449, %v2420
  %v2459 = vsel %vm2454, %v2450, %v2422
  %v2460 = vsel %vm2454, %v2451, %v2424
  %v2461 = vsel %vm2454, %v2452, %v2426
  %v2462 = vsel %vm2454, %v2453, %v2428
  %2463 = vst [vmem:[%s1] sm:$0xf] %v2455
  %2464 = vst [vmem:[%s1 + $0x4] sm:$0xf] %v2456
  %2465 = vst [vmem:[%s1 + $0x8] sm:$0xf] %v2457
  %2466 = vst [vmem:[%s1 + $0xc] sm:$0xf] %v2458
  %2467 = vst [vmem:[%s1 + $0x10] sm:$0xf] %v2459
  %2468 = vst [vmem:[%s1 + $0x14] sm:$0xf] %v2460
  %2469 = vst [vmem:[%s1 + $0x18] sm:$0xf] %v2461
  %2470 = vst [vmem:[%s1 + $0x1c] sm:$0xf] %v2462
  %v2471 = vsub.f32 %v17, %v1573
  %v2472 = vsub.f32 %v18, %v1680
  %v2473 = vsub.f32 %v19, %v1787
  %v2474 = vsub.f32 %v20, %v1894
  %v2475 = vsub.f32 %v21, %v2001
  %v2476 = vsub.f32 %v22, %v2108
  %v2477 = vsub.f32 %v23, %v2215
  %v2478 = vsub.f32 %v24, %v2322
  %v2479 = vmul.f32 %v17, %v1573
  %v2480 = vmul.f32 %v18, %v1680
  %v2481 = vmul.f32 %v19, %v1787
  %v2482 = vmul.f32 %v20, %v1894
  %v2483 = vmul.f32 %v21, %v2001
  %v2484 = vmul.f32 %v22, %v2108
  %v2485 = vmul.f32 %v23, %v2215
  %v2486 = vmul.f32 %v24, %v2322
  %2495 = vrot.lane.b32.xlu0 %v1573, 32
  %v2496 = vpop.permute.xlu0 %2495
  %2497 = vrot.lane.b32.xlu0 %v1680, 32
  %v2498 = vpop.permute.xlu0 %2497
  %2499 = vrot.lane.b32.xlu0 %v1787, 32
  %v2500 = vpop.permute.xlu0 %2499
  %2501 = vrot.lane.b32.xlu0 %v1894, 32
  %v2502 = vpop.permute.xlu0 %2501
  %2503 = vrot.lane.b32.xlu0 %v2001, 32
  %v2504 = vpop.permute.xlu0 %2503
  %2505 = vrot.lane.b32.xlu0 %v2108, 32
  %v2506 = vpop.permute.xlu0 %2505
  %2507 = vrot.lane.b32.xlu0 %v2215, 32
  %v2508 = vpop.permute.xlu0 %2507
  %2509 = vrot.lane.b32.xlu0 %v2322, 32
  %v2510 = vpop.permute.xlu0 %2509
  %2527 = vrot.lane.b32.xlu0 %v2471, 64
  %v2528 = vpop.permute.xlu0 %2527
  %2529 = vrot.lane.b32.xlu0 %v2472, 64
  %v2530 = vpop.permute.xlu0 %2529
  %2531 = vrot.lane.b32.xlu0 %v2473, 64
  %v2532 = vpop.permute.xlu0 %2531
  %2533 = vrot.lane.b32.xlu0 %v2474, 64
  %v2534 = vpop.permute.xlu0 %2533
  %2535 = vrot.lane.b32.xlu0 %v2475, 64
  %v2536 = vpop.permute.xlu0 %2535
  %2537 = vrot.lane.b32.xlu0 %v2476, 64
  %v2538 = vpop.permute.xlu0 %2537
  %2539 = vrot.lane.b32.xlu0 %v2477, 64
  %v2540 = vpop.permute.xlu0 %2539
  %2541 = vrot.lane.b32.xlu0 %v2478, 64
  %v2542 = vpop.permute.xlu0 %2541
  %2559 = vrot.lane.b32.xlu0 %v2479, 96
  %v2560 = vpop.permute.xlu0 %2559
  %2561 = vrot.lane.b32.xlu0 %v2480, 96
  %v2562 = vpop.permute.xlu0 %2561
  %2563 = vrot.lane.b32.xlu0 %v2481, 96
  %v2564 = vpop.permute.xlu0 %2563
  %2565 = vrot.lane.b32.xlu0 %v2482, 96
  %v2566 = vpop.permute.xlu0 %2565
  %2567 = vrot.lane.b32.xlu0 %v2483, 96
  %v2568 = vpop.permute.xlu0 %2567
  %2569 = vrot.lane.b32.xlu0 %v2484, 96
  %v2570 = vpop.permute.xlu0 %2569
  %2571 = vrot.lane.b32.xlu0 %v2485, 96
  %v2572 = vpop.permute.xlu0 %2571
  %2573 = vrot.lane.b32.xlu0 %v2486, 96
  %v2574 = vpop.permute.xlu0 %2573
  %v2583 = vsel %vm25, %v17, %v2496
  %v2584 = vsel %vm25, %v18, %v2498
  %v2585 = vsel %vm25, %v19, %v2500
  %v2586 = vsel %vm25, %v20, %v2502
  %v2587 = vsel %vm25, %v21, %v2504
  %v2588 = vsel %vm25, %v22, %v2506
  %v2589 = vsel %vm25, %v23, %v2508
  %v2590 = vsel %vm25, %v24, %v2510
  %v2591 = vsel %vm2445, %v2583, %v2528
  %v2592 = vsel %vm2445, %v2584, %v2530
  %v2593 = vsel %vm2445, %v2585, %v2532
  %v2594 = vsel %vm2445, %v2586, %v2534
  %v2595 = vsel %vm2445, %v2587, %v2536
  %v2596 = vsel %vm2445, %v2588, %v2538
  %v2597 = vsel %vm2445, %v2589, %v2540
  %v2598 = vsel %vm2445, %v2590, %v2542
  %v2599 = vsel %vm2454, %v2591, %v2560
  %v2600 = vsel %vm2454, %v2592, %v2562
  %v2601 = vsel %vm2454, %v2593, %v2564
  %v2602 = vsel %vm2454, %v2594, %v2566
  %v2603 = vsel %vm2454, %v2595, %v2568
  %v2604 = vsel %vm2454, %v2596, %v2570
  %v2605 = vsel %vm2454, %v2597, %v2572
  %v2606 = vsel %vm2454, %v2598, %v2574
  %s2607 = scalar_lea.vmem %s1, 32
  %2608 = vst [vmem:[%s2607] sm:$0xf] %v2599
  %2609 = vst [vmem:[%s2607 + $0x4] sm:$0xf] %v2600
  %2610 = vst [vmem:[%s2607 + $0x8] sm:$0xf] %v2601
  %2611 = vst [vmem:[%s2607 + $0xc] sm:$0xf] %v2602
  %2612 = vst [vmem:[%s2607 + $0x10] sm:$0xf] %v2603
  %2613 = vst [vmem:[%s2607 + $0x14] sm:$0xf] %v2604
  %2614 = vst [vmem:[%s2607 + $0x18] sm:$0xf] %v2605
  %2615 = vst [vmem:[%s2607 + $0x1c] sm:$0xf] %v2606
  // Predicated region
  $region6: #{esim_forward.5} parent=0 // pred_check
    _
  $region7: #{esim_forward.5} parent=0 // pred_check_branch
    %2617 = sbr.rel (0) target = $region9
  $region8: #{esim_forward.5} parent=0 // pred_region
    _
  $region9: #{esim_forward.5} parent=0 // pred_fallthru
    _
  // Predicated region
  $region10: #{esim_forward.5} parent=0 // pred_check
    _
  $region11: #{esim_forward.5} parent=0 // pred_check_branch
    %2619 = sbr.rel (0) target = $region13
  $region12: #{esim_forward.5} parent=0 // pred_region
    _
  $region13: #{esim_forward.5} parent=0 // pred_fallthru
    _

</llo_original>
